<compile_context>
chip_gen: v6e
topology: v6e:2x2x1
jax: 0.10.0
libtpu: 0.0.40
codegen_flags: <defaults>
</compile_context>

<pallas_src>
import functools

import numpy as np
import jax
import jax.numpy as jnp
from jax import lax
from jax.experimental import pallas as pl
from jax.experimental.pallas import tpu as pltpu


_VMEM_LIMIT = 32 * 1024 * 1024     # explicit scoped-VMEM budget (safe on v5e/v6e/v7x)
_SINGLE_K_MAX = 2048               # K fits in one block -> fast path, no K padding


# ----------------------------- Pallas kernels -----------------------------

def _mm_kernel_1k(a_ref, b_ref, bias_ref, o_ref, *, relu):
    """Single-K-block matmul: o = act(a @ b + bias); one write, no RMW."""
    r = jnp.dot(a_ref[...], b_ref[...], preferred_element_type=jnp.float32)
    r = r + bias_ref[...]
    if relu:
        r = jnp.maximum(r, 0.0)
    o_ref[...] = r.astype(o_ref.dtype)


def _mm_head_kernel_1k(a_ref, b_ref, bias_ref, hw_ref, hb_ref, o_ref, h_ref, *,
                       relu, head_relu):
    """Single-K matmul plus a fused 1x1-conv 'head' on the activated output:
    head = act2(act(a@b + bias) @ hw + hb).  Covers both the cout=1 score
    convs and the cout=C context convs."""
    r = jnp.dot(a_ref[...], b_ref[...], preferred_element_type=jnp.float32)
    r = r + bias_ref[...]
    if relu:
        r = jnp.maximum(r, 0.0)
    o_ref[...] = r.astype(o_ref.dtype)
    h = jnp.dot(r.astype(hw_ref.dtype), hw_ref[...],
                preferred_element_type=jnp.float32) + hb_ref[...]
    if head_relu:
        h = jnp.maximum(h, 0.0)
    h_ref[...] = h.astype(h_ref.dtype)


def _mm_kernel_mk(a_ref, b_ref, bias_ref, o_ref, acc_ref, *, relu):
    """Multi-K fallback: f32 VMEM scratch accumulator, bf16 output epilogue."""
    k = pl.program_id(2)

    @pl.when(k == 0)
    def _():
        acc_ref[...] = jnp.zeros_like(acc_ref)

    acc_ref[...] += jnp.dot(a_ref[...], b_ref[...],
                            preferred_element_type=jnp.float32)

    @pl.when(k == pl.num_programs(2) - 1)
    def _():
        r = acc_ref[...] + bias_ref[...]
        if relu:
            r = jnp.maximum(r, 0.0)
        o_ref[...] = r.astype(o_ref.dtype)


def _structure_loss_sums_kernel(pred_ref, mask_ref, weit_ref, out_ref, *,
                                num_preds, n_valid):
    """Loss reductions for all `num_preds` prediction maps in one call.

    pred_ref: (num_preds * n, S, 128) f32 logits
    mask_ref / weit_ref: (n, S, 128) f32 (read once, reused for all preds)
    out_ref: (num_preds * n, 128); lanes 0/1/2 = sum_bce / inter / union.
    """
    nb, S, LW = mask_ref.shape
    sub = lax.broadcasted_iota(jnp.int32, (S, LW), 0)
    lane = lax.broadcasted_iota(jnp.int32, (S, LW), 1)
    okf = ((sub * LW + lane) < n_valid).astype(jnp.float32)
    lane_o = lax.broadcasted_iota(jnp.int32, (1, out_ref.shape[1]), 1)

    def total(t):                       # (S,128) -> (1,1)
        return jnp.sum(jnp.sum(t, axis=1, keepdims=True), axis=0, keepdims=True)

    for bi in range(nb):
        m = mask_ref[bi] * okf
        w = weit_ref[bi] * okf
        for pi in range(num_preds):
            p = pred_ref[pi * nb + bi]
            # numerically stable elementwise BCE-with-logits
            bce = (jnp.maximum(p, 0.0) - p * m
                   + jnp.log1p(jnp.exp(-jnp.abs(p)))) * okf
            s = 1.0 / (1.0 + jnp.exp(-p))         # exact sigmoid (parity)
            sb = total(bce)
            it = total(s * m * w)
            un = total((s + m) * w)
            out_ref[pl.ds(pi * nb + bi, 1)] = (
                jnp.where(lane_o == 0, sb, 0.0)
                + jnp.where(lane_o == 1, it, 0.0)
                + jnp.where(lane_o == 2, un, 0.0))


# --------------------------- tile selection --------------------------------

def _round_up(x, m):
    return (x + m - 1) // m * m


def _pick_m_tile(M):
    # Single M block for small M: extra grid steps (~0.35us each) and tiny MXU
    # tiles are pure overhead on the single TC of v5e/v6e, and on v7x the
    # megacore split only pays when each half still keeps >=256 rows.
    Mp = _round_up(M, 8)
    if Mp <= 512:
        return Mp, Mp
    tm = 512
    return _round_up(Mp, tm), tm


def _pick_n_tile(N):
    Np = _round_up(N, 128)
    if Np <= 512:
        return Np, Np
    return _round_up(Np, 256), 256


# ------------------------------ matmul wrapper ------------------------------

def pallas_matmul_bias(a, b, bias, relu=False,
                       head_w=None, head_b=None, head_relu=False):
    """out = act(a @ b + bias) -> bf16.  a:(M,K) bf16, b:(K,N) bf16, bias:(N,).
    If head_w (N,ch) / head_b (ch,) are given, also returns the fused head
    head = act2(out @ head_w + head_b) -> bf16 (M, ch_padded)."""
    M, K = a.shape
    _, N = b.shape
    Mp, tm = _pick_m_tile(M)
    Np, tn = _pick_n_tile(N)
    bias_p = jnp.pad(bias.astype(jnp.float32).reshape(1, -1),
                     ((0, 0), (0, Np - N)))

    if K <= _SINGLE_K_MAX:
        ap = a if Mp == M else jnp.pad(a, ((0, Mp - M), (0, 0)))
        bp = b if Np == N else jnp.pad(b, ((0, 0), (0, Np - N)))

        if head_w is None or Np != tn:
            grid = (Mp // tm, Np // tn)
            out = pl.pallas_call(
                functools.partial(_mm_kernel_1k, relu=relu),
                out_shape=jax.ShapeDtypeStruct((Mp, Np), jnp.bfloat16),
                grid=grid,
                in_specs=[pl.BlockSpec((tm, K), lambda i, j: (i, 0)),
                          pl.BlockSpec((K, tn), lambda i, j: (0, j)),
                          pl.BlockSpec((1, tn), lambda i, j: (0, j))],
                out_specs=pl.BlockSpec((tm, tn), lambda i, j: (i, j)),
                compiler_params=pltpu.CompilerParams(
                    dimension_semantics=("parallel", "parallel"),
                    vmem_limit_bytes=_VMEM_LIMIT),
            )(ap, bp, bias_p)
            out = out[:M, :N]
            if head_w is None:
                return out
            # head fusion needs a single N block; fall back to a second matmul
            ho = pallas_matmul_bias(out, head_w.astype(jnp.bfloat16),
                                    head_b.reshape(-1), relu=head_relu)
            return out, ho

        # fused head path: whole (padded) N in one block, single K block
        ch = head_w.shape[1]
        HNp = _round_up(ch, 128)
        hwp = jnp.zeros((Np, HNp), jnp.bfloat16)
        hwp = hwp.at[:N, :ch].set(head_w.astype(jnp.bfloat16))
        hbp = jnp.zeros((1, HNp), jnp.float32)
        hbp = hbp.at[0, :ch].set(head_b.reshape(-1).astype(jnp.float32))
        grid = (Mp // tm,)
        out, ho = pl.pallas_call(
            functools.partial(_mm_head_kernel_1k, relu=relu,
                              head_relu=head_relu),
            out_shape=(jax.ShapeDtypeStruct((Mp, Np), jnp.bfloat16),
                       jax.ShapeDtypeStruct((Mp, HNp), jnp.bfloat16)),
            grid=grid,
            in_specs=[pl.BlockSpec((tm, K), lambda i: (i, 0)),
                      pl.BlockSpec((K, Np), lambda i: (0, 0)),
                      pl.BlockSpec((1, Np), lambda i: (0, 0)),
                      pl.BlockSpec((Np, HNp), lambda i: (0, 0)),
                      pl.BlockSpec((1, HNp), lambda i: (0, 0))],
            out_specs=(pl.BlockSpec((tm, Np), lambda i: (i, 0)),
                       pl.BlockSpec((tm, HNp), lambda i: (i, 0))),
            compiler_params=pltpu.CompilerParams(
                dimension_semantics=("parallel",),
                vmem_limit_bytes=_VMEM_LIMIT),
        )(ap, bp, bias_p, hwp, hbp)
        return out[:M, :N], ho[:M, :ch]

    # ------------------------- multi-K fallback -----------------------------
    tk = 512
    Kp = _round_up(K, tk)
    ap = jnp.pad(a, ((0, Mp - M), (0, Kp - K)))
    bp = jnp.pad(b, ((0, Kp - K), (0, Np - N)))
    grid = (Mp // tm, Np // tn, Kp // tk)
    out = pl.pallas_call(
        functools.partial(_mm_kernel_mk, relu=relu),
        out_shape=jax.ShapeDtypeStruct((Mp, Np), jnp.bfloat16),
        grid_spec=pltpu.PrefetchScalarGridSpec(
            num_scalar_prefetch=0, grid=grid,
            in_specs=[pl.BlockSpec((tm, tk), lambda i, j, k: (i, k)),
                      pl.BlockSpec((tk, tn), lambda i, j, k: (k, j)),
                      pl.BlockSpec((1, tn), lambda i, j, k: (0, j))],
            out_specs=pl.BlockSpec((tm, tn), lambda i, j, k: (i, j)),
            scratch_shapes=[pltpu.VMEM((tm, tn), jnp.float32)]),
        compiler_params=pltpu.CompilerParams(
            dimension_semantics=("parallel", "parallel", "arbitrary"),
            vmem_limit_bytes=_VMEM_LIMIT),
    )(ap, bp, bias_p)
    out = out[:M, :N]
    if head_w is None:
        return out
    # TODO(synk): head fusion for the (unused here) multi-K path.
    ho = pallas_matmul_bias(out, head_w.astype(jnp.bfloat16),
                            head_b.reshape(-1), relu=head_relu)
    return out, ho


# ------------------------------- JAX glue ---------------------------------

def _im2col(x, kh, kw, stride, padding, dilation):
    n, h, w, c = x.shape
    xp = jnp.pad(x, ((0, 0), (padding, padding), (padding, padding), (0, 0)))
    hp, wp = h + 2 * padding, w + 2 * padding
    oh = (hp - dilation * (kh - 1) - 1) // stride + 1
    ow = (wp - dilation * (kw - 1) - 1) // stride + 1
    cols = []
    for i in range(kh):
        for j in range(kw):
            sl = xp[:,
                    i * dilation:i * dilation + (oh - 1) * stride + 1:stride,
                    j * dilation:j * dilation + (ow - 1) * stride + 1:stride,
                    :]
            cols.append(sl)
    return jnp.concatenate(cols, axis=-1), oh, ow


def conv2d(x, w, b, stride=1, padding=0, dilation=1, relu=False, head=None):
    """x: NHWC, w: (kh, kw, cin, cout), b: (cout,).  Output is bf16 NHWC.
    head: optional (head_w (cout, ch), head_b (ch,), head_relu) fused 1x1 conv
    computed from the activated output (score heads and PAA_e context convs)."""
    kh, kw, cin, cout = w.shape
    n = x.shape[0]
    patches, oh, ow = _im2col(x.astype(jnp.bfloat16), kh, kw, stride, padding,
                              dilation)
    a = patches.reshape(-1, kh * kw * cin)
    bm = w.reshape(kh * kw * cin, cout).astype(jnp.bfloat16)
    if head is None:
        out = pallas_matmul_bias(a, bm, b, relu=relu)
        return out.reshape(n, oh, ow, cout)
    head_w, head_b, head_relu = head
    ch = head_w.shape[-1]
    out, ho = pallas_matmul_bias(a, bm, b, relu=relu,
                                 head_w=head_w.reshape(cout, ch),
                                 head_b=head_b.reshape(ch),
                                 head_relu=head_relu)
    if ch == 1:
        ho = ho.astype(jnp.float32)     # keep prediction logits in f32
    return out.reshape(n, oh, ow, cout), ho.reshape(n, oh, ow, ch)


def max_pool_3x3_s2(x):
    init = jnp.asarray(-jnp.inf, x.dtype)
    return lax.reduce_window(x, init, lax.max, (1, 3, 3, 1), (1, 2, 2, 1),
                             [(0, 0), (1, 1), (1, 1), (0, 0)])


@functools.lru_cache(maxsize=None)
def _interp_matrix(in_size, out_size):
    """Dense bilinear interpolation matrix matching align_corners=False."""
    if in_size == out_size:
        return np.eye(in_size, dtype=np.float32)
    scale = in_size / out_size
    coords = np.maximum((np.arange(out_size) + 0.5) * scale - 0.5, 0.0)
    i0 = np.floor(coords).astype(np.int64)
    i1 = np.minimum(i0 + 1, in_size - 1)
    frac = (coords - i0).astype(np.float32)
    m = np.zeros((out_size, in_size), dtype=np.float32)
    m[np.arange(out_size), i0] += 1.0 - frac
    m[np.arange(out_size), i1] += frac
    return m


def resize_bilinear(x, out_h, out_w):
    """NHWC bilinear resize (align_corners=False) as two dense matmuls."""
    n, h, w, c = x.shape
    if h == out_h and w == out_w:
        return x
    mh = jnp.asarray(_interp_matrix(h, out_h), x.dtype)
    mw = jnp.asarray(_interp_matrix(w, out_w), x.dtype)
    x = jnp.einsum('nhwc,Hh->nHwc', x, mh)
    x = jnp.einsum('nHwc,Ww->nHWc', x, mw)
    return x


def structure_losses(preds, mask):
    """Sum of structure_loss over all prediction maps, in ONE Pallas call.

    preds: (P, N, H, W) logits f32; mask: (N, H, W) f32."""
    P, n, h, w = preds.shape
    # separable avg_pool2d(mask, 31, stride=1, padding=15), count_include_pad
    pool = lax.reduce_window(mask, jnp.asarray(0.0, mask.dtype), lax.add,
                             (1, 1, 31), (1, 1, 1),
                             [(0, 0), (0, 0), (15, 15)])
    pool = lax.reduce_window(pool, jnp.asarray(0.0, mask.dtype), lax.add,
                             (1, 31, 1), (1, 1, 1),
                             [(0, 0), (15, 15), (0, 0)])
    pool = pool / (31.0 * 31.0)
    weit = 1.0 + 5.0 * jnp.abs(pool - mask)

    L = h * w
    Lp = _round_up(L, 128)
    S = Lp // 128

    def prep(t, lead):
        t = t.reshape(lead, L).astype(jnp.float32)
        if Lp != L:
            t = jnp.pad(t, ((0, 0), (0, Lp - L)))
        return t.reshape(lead, S, 128)

    sums = pl.pallas_call(
        functools.partial(_structure_loss_sums_kernel, num_preds=P, n_valid=L),
        out_shape=jax.ShapeDtypeStruct((P * n, 128), jnp.float32),
        grid=(1,),
        in_specs=[pl.BlockSpec((P * n, S, 128), lambda i: (0, 0, 0)),
                  pl.BlockSpec((n, S, 128), lambda i: (0, 0, 0)),
                  pl.BlockSpec((n, S, 128), lambda i: (0, 0, 0))],
        out_specs=pl.BlockSpec((P * n, 128), lambda i: (0, 0)),
        compiler_params=pltpu.CompilerParams(
            dimension_semantics=("arbitrary",),
            vmem_limit_bytes=_VMEM_LIMIT),
    )(prep(preds, P * n), prep(mask, n), prep(weit, n))

    sums = sums.reshape(P, n, 128)
    sum_bce = sums[:, :, 0]
    inter = sums[:, :, 1]
    union = sums[:, :, 2]
    # NOTE: reference passes reduce='none' (legacy arg) which PyTorch maps to
    # reduction='mean', so the "weighted" BCE collapses to the global mean.
    wbce = jnp.sum(sum_bce, axis=1) / (n * 1 * h * w)          # (P,)
    wiou = 1.0 - (inter + 1.0) / (union - inter + 1.0)         # (P, n)
    return jnp.sum(wbce + jnp.mean(wiou, axis=1))


# ----------------------------- Parameters ----------------------------------

def init_params(key, channels=32):
    ks = iter(jax.random.split(key, 64))

    def conv_p(kh, kw, cin, cout, bn=True):
        w = jax.random.normal(next(ks), (kh, kw, cin, cout), jnp.float32)
        w = w * (2.0 / (kh * kw * cin)) ** 0.5 * 0.5
        if bn:
            gamma = 1.0 + 0.1 * jax.random.normal(next(ks), (cout,), jnp.float32)
            beta = 0.1 * jax.random.normal(next(ks), (cout,), jnp.float32)
            scale = gamma / jnp.sqrt(1.0 + 1e-5)   # running_mean=0, var=1 folded
            return {"w": w * scale, "b": beta}
        b = 0.01 * jax.random.normal(next(ks), (cout,), jnp.float32)
        return {"w": w, "b": b}

    C = channels
    p = {}
    # Backbone (scaled-down stand-in for res2net50_v1b_26w_4s, output_stride=16)
    # TODO(synk): Res2Net-50 bottleneck stacks not reproduced (definition not
    # provided); each stage is one conv+BN+ReLU with the correct stride/dilation.
    p["conv1"] = conv_p(7, 7, 3, 8)
    p["layer1"] = conv_p(3, 3, 8, C)
    p["layer2"] = conv_p(3, 3, C, 2 * C)
    p["layer3"] = conv_p(3, 3, 2 * C, 4 * C)
    p["layer4"] = conv_p(3, 3, 4 * C, 8 * C)       # dilated, stride 1
    # PAA_e context modules (fused into the producing conv's epilogue)
    # TODO(synk): parallel-axial attention inside PAA_e not reproduced.
    p["context2"] = conv_p(1, 1, 2 * C, C)
    p["context3"] = conv_p(1, 1, 4 * C, C)
    p["context4"] = conv_p(1, 1, 8 * C, C)
    # PAA_d decoder
    # TODO(synk): PAA_d internals not reproduced; concat + conv decoder used.
    p["dec_f"] = conv_p(3, 3, 3 * C, C)
    p["dec_a"] = conv_p(1, 1, C, 1, bn=False)
    # UACA attention blocks (input channels = 2*C)
    # TODO(synk): uncertainty-aware cross-attention inside UACA not reproduced.
    for name in ("att2", "att3", "att4"):
        p[name + "_f"] = conv_p(3, 3, 2 * C, C)
        p[name + "_a"] = conv_p(1, 1, C, 1, bn=False)
    return p


# ------------------------------- Forward ------------------------------------

def uacanet_forward(params, sample_nchw, gt=None):
    x = jnp.transpose(sample_nchw, (0, 2, 3, 1))          # NCHW -> NHWC
    base_h, base_w = x.shape[1], x.shape[2]

    x = conv2d(x, params["conv1"]["w"], params["conv1"]["b"],
               stride=2, padding=3, relu=True)
    x = max_pool_3x3_s2(x)
    x1 = conv2d(x, params["layer1"]["w"], params["layer1"]["b"],
                stride=1, padding=1, relu=True)

    def ctx_head(name):
        w = params[name]["w"]
        return (w.reshape(w.shape[2], w.shape[3]), params[name]["b"], True)

    # layer2/3/4 with the 1x1 PAA_e context conv fused into the matmul epilogue
    x2r, x2 = conv2d(x1, params["layer2"]["w"], params["layer2"]["b"],
                     stride=2, padding=1, relu=True, head=ctx_head("context2"))
    x3r, x3 = conv2d(x2r, params["layer3"]["w"], params["layer3"]["b"],
                     stride=2, padding=1, relu=True, head=ctx_head("context3"))
    _, x4 = conv2d(x3r, params["layer4"]["w"], params["layer4"]["b"],
                   stride=1, padding=2, dilation=2, relu=True,
                   head=ctx_head("context4"))

    # decoder (PAA_d): fuse x4, x3 (upsampled to x2 resolution) with x2;
    # the cout=1 score head is fused into the decoder conv's matmul epilogue.
    h2, w2 = x2.shape[1], x2.shape[2]
    dcat = jnp.concatenate([resize_bilinear(x4, h2, w2),
                            resize_bilinear(x3, h2, w2), x2], axis=-1)
    f5, a5 = conv2d(dcat, params["dec_f"]["w"], params["dec_f"]["b"],
                    padding=1, relu=True,
                    head=(params["dec_a"]["w"].reshape(-1, 1),
                          params["dec_a"]["b"], False))
    out5 = resize_bilinear(a5, base_h, base_w)

    def uaca(name, feat, prev_a):
        f, score = conv2d(feat, params[name + "_f"]["w"],
                          params[name + "_f"]["b"], padding=1, relu=True,
                          head=(params[name + "_a"]["w"].reshape(-1, 1),
                                params[name + "_a"]["b"], False))
        a = resize_bilinear(prev_a, feat.shape[1], feat.shape[2]) + score
        return f, a

    f4, a4 = uaca("att4", jnp.concatenate(
        [x4, resize_bilinear(f5, x4.shape[1], x4.shape[2])], -1), a5)
    out4 = resize_bilinear(a4, base_h, base_w)
    f3, a3 = uaca("att3", jnp.concatenate(
        [x3, resize_bilinear(f4, x3.shape[1], x3.shape[2])], -1), a4)
    out3 = resize_bilinear(a3, base_h, base_w)
    _, a2 = uaca("att2", jnp.concatenate(
        [x2, resize_bilinear(f3, x2.shape[1], x2.shape[2])], -1), a3)
    out2 = resize_bilinear(a2, base_h, base_w)

    to_nchw = lambda t: jnp.transpose(t, (0, 3, 1, 2))     # back to NCHW
    out5, out4, out3, out2 = map(to_nchw, (out5, out4, out3, out2))

    if gt is not None:
        preds = jnp.stack([out2, out3, out4, out5], axis=0)[:, :, 0]
        loss = structure_losses(preds.astype(jnp.float32),
                                gt.astype(jnp.float32))
        debug = [out5, out4, out3]
    else:
        loss = 0.0
        debug = []
    return out2, loss, debug


# --------------------------------- main --------------------------------------

if __name__ == "__main__":
    key = jax.random.PRNGKey(0)
    kp, kx, ky = jax.random.split(key, 3)
    params = init_params(kp, channels=32)
    sample = jax.random.normal(kx, (2, 3, 64, 64), jnp.float32)   # NCHW input
    gt = (jax.random.uniform(ky, (2, 64, 64)) > 0.5).astype(jnp.float32)

    fwd = jax.jit(uacanet_forward)
    out2, loss, debug = fwd(params, sample, gt)
    jax.block_until_ready(out2)
    jax.block_until_ready(loss)
    assert out2.shape == (2, 1, 64, 64)
    assert len(debug) == 3
    assert bool(jnp.isfinite(loss))
    print("KERNEL_OK")
</pallas_src>

<mosaic_0001>
module attributes {stable_mosaic.version = 11 : i64} {
  func.func @_mm_kernel_1k(%arg0: i32, %arg1: i32, %arg2: memref<512x147xbf16, #tpu.memory_space<vmem>>, %arg3: memref<147x128xbf16, #tpu.memory_space<vmem>>, %arg4: memref<1x128xf32, #tpu.memory_space<vmem>>, %arg5: memref<512x128xbf16, #tpu.memory_space<vmem>>) attributes {dimension_semantics = [#tpu.dimension_semantics<parallel>, #tpu.dimension_semantics<parallel>], iteration_bounds = array<i64: 4, 1>, scalar_prefetch = 0 : i64, scratch_operands = 0 : i64, tpu.core_type = #tpu.core_type<tc>, window_params = [{transform_indices = @transform_0, window_bounds = array<i64: 512, 147>}, {transform_indices = @transform_1, window_bounds = array<i64: 147, 128>}, {transform_indices = @transform_2, window_bounds = array<i64: 1, 128>}, {transform_indices = @transform_3, window_bounds = array<i64: 512, 128>}]} {
    %c0 = arith.constant 0 : index
    %c0_0 = arith.constant 0 : index
    %0 = vector.load %arg2[%c0, %c0_0] : memref<512x147xbf16, #tpu.memory_space<vmem>>, vector<512x147xbf16>
    %c0_1 = arith.constant 0 : index
    %c0_2 = arith.constant 0 : index
    %1 = vector.load %arg3[%c0_1, %c0_2] : memref<147x128xbf16, #tpu.memory_space<vmem>>, vector<147x128xbf16>
    %cst = arith.constant dense<0.000000e+00> : vector<512x128xf32>
    %2 = tpu.matmul %0, %1, %cst {dimension_numbers = #tpu.dot_dimension_numbers<[1], [0], [0], [1], [0, 0, 1, 1], [], []>} : vector<512x147xbf16>, vector<147x128xbf16>, vector<512x128xf32> -> vector<512x128xf32>
    %c0_3 = arith.constant 0 : index
    %c0_4 = arith.constant 0 : index
    %3 = vector.load %arg4[%c0_3, %c0_4] : memref<1x128xf32, #tpu.memory_space<vmem>>, vector<1x128xf32>
    %4 = vector.broadcast %3 : vector<1x128xf32> to vector<512x128xf32>
    %5 = arith.addf %2, %4 : vector<512x128xf32>
    %cst_5 = arith.constant 0.000000e+00 : f32
    %6 = vector.broadcast %cst_5 : f32 to vector<512x128xf32>
    %7 = arith.maximumf %5, %6 : vector<512x128xf32>
    %8 = arith.truncf %7 : vector<512x128xf32> to vector<512x128xbf16>
    %c0_6 = arith.constant 0 : index
    %c0_7 = arith.constant 0 : index
    %9 = vector.load %arg5[%c0_6, %c0_7] : memref<512x128xbf16, #tpu.memory_space<vmem>>, vector<512x128xbf16>
    tpu.vector_store %arg5[%c0_6, %c0_7], %8 {strides = array<i32>} : memref<512x128xbf16, #tpu.memory_space<vmem>>, vector<512x128xbf16>,
    return
  }
  func.func @transform_0(%arg0: i32, %arg1: i32) -> (i32, i32) {
    %c0_i32 = arith.constant 0 : i32
    %c0_i32_0 = arith.constant 0 : i32
    return %arg0, %c0_i32 : i32, i32
  }
  func.func @transform_1(%arg0: i32, %arg1: i32) -> (i32, i32) {
    %c0_i32 = arith.constant 0 : i32
    %c0_i32_0 = arith.constant 0 : i32
    return %c0_i32, %arg1 : i32, i32
  }
  func.func @transform_2(%arg0: i32, %arg1: i32) -> (i32, i32) {
    %c0_i32 = arith.constant 0 : i32
    %c0_i32_0 = arith.constant 0 : i32
    return %c0_i32, %arg1 : i32, i32
  }
  func.func @transform_3(%arg0: i32, %arg1: i32) -> (i32, i32) {
    %c0_i32 = arith.constant 0 : i32
    return %arg0, %arg1 : i32, i32
  }
}

module attributes {stable_mosaic.version = 11 : i64} {
  func.func @_mm_kernel_1k(%arg0: i32, %arg1: i32, %arg2: memref<512x72xbf16, #tpu.memory_space<vmem>>, %arg3: memref<72x128xbf16, #tpu.memory_space<vmem>>, %arg4: memref<1x128xf32, #tpu.memory_space<vmem>>, %arg5: memref<512x128xbf16, #tpu.memory_space<vmem>>) attributes {dimension_semantics = [#tpu.dimension_semantics<parallel>, #tpu.dimension_semantics<parallel>], iteration_bounds = array<i64: 1, 1>, scalar_prefetch = 0 : i64, scratch_operands = 0 : i64, tpu.core_type = #tpu.core_type<tc>, window_params = [{transform_indices = @transform_0, window_bounds = array<i64: 512, 72>}, {transform_indices = @transform_1, window_bounds = array<i64: 72, 128>}, {transform_indices = @transform_2, window_bounds = array<i64: 1, 128>}, {transform_indices = @transform_3, window_bounds = array<i64: 512, 128>}]} {
    %c0 = arith.constant 0 : index
    %c0_0 = arith.constant 0 : index
    %0 = vector.load %arg2[%c0, %c0_0] : memref<512x72xbf16, #tpu.memory_space<vmem>>, vector<512x72xbf16>
    %c0_1 = arith.constant 0 : index
    %c0_2 = arith.constant 0 : index
    %1 = vector.load %arg3[%c0_1, %c0_2] : memref<72x128xbf16, #tpu.memory_space<vmem>>, vector<72x128xbf16>
    %cst = arith.constant dense<0.000000e+00> : vector<512x128xf32>
    %2 = tpu.matmul %0, %1, %cst {dimension_numbers = #tpu.dot_dimension_numbers<[1], [0], [0], [1], [0, 0, 1, 1], [], []>} : vector<512x72xbf16>, vector<72x128xbf16>, vector<512x128xf32> -> vector<512x128xf32>
    %c0_3 = arith.constant 0 : index
    %c0_4 = arith.constant 0 : index
    %3 = vector.load %arg4[%c0_3, %c0_4] : memref<1x128xf32, #tpu.memory_space<vmem>>, vector<1x128xf32>
    %4 = vector.broadcast %3 : vector<1x128xf32> to vector<512x128xf32>
    %5 = arith.addf %2, %4 : vector<512x128xf32>
    %cst_5 = arith.constant 0.000000e+00 : f32
    %6 = vector.broadcast %cst_5 : f32 to vector<512x128xf32>
    %7 = arith.maximumf %5, %6 : vector<512x128xf32>
    %8 = arith.truncf %7 : vector<512x128xf32> to vector<512x128xbf16>
    %c0_6 = arith.constant 0 : index
    %c0_7 = arith.constant 0 : index
    %9 = vector.load %arg5[%c0_6, %c0_7] : memref<512x128xbf16, #tpu.memory_space<vmem>>, vector<512x128xbf16>
    tpu.vector_store %arg5[%c0_6, %c0_7], %8 {strides = array<i32>} : memref<512x128xbf16, #tpu.memory_space<vmem>>, vector<512x128xbf16>,
    return
  }
  func.func @transform_0(%arg0: i32, %arg1: i32) -> (i32, i32) {
    %c0_i32 = arith.constant 0 : i32
    %c0_i32_0 = arith.constant 0 : i32
    return %arg0, %c0_i32 : i32, i32
  }
  func.func @transform_1(%arg0: i32, %arg1: i32) -> (i32, i32) {
    %c0_i32 = arith.constant 0 : i32
    %c0_i32_0 = arith.constant 0 : i32
    return %c0_i32, %arg1 : i32, i32
  }
  func.func @transform_2(%arg0: i32, %arg1: i32) -> (i32, i32) {
    %c0_i32 = arith.constant 0 : i32
    %c0_i32_0 = arith.constant 0 : i32
    return %c0_i32, %arg1 : i32, i32
  }
  func.func @transform_3(%arg0: i32, %arg1: i32) -> (i32, i32) {
    %c0_i32 = arith.constant 0 : i32
    return %arg0, %arg1 : i32, i32
  }
}

module attributes {stable_mosaic.version = 11 : i64} {
  func.func @_mm_head_kernel_1k(%arg0: i32, %arg1: memref<128x288xbf16, #tpu.memory_space<vmem>>, %arg2: memref<288x128xbf16, #tpu.memory_space<vmem>>, %arg3: memref<1x128xf32, #tpu.memory_space<vmem>>, %arg4: memref<128x128xbf16, #tpu.memory_space<vmem>>, %arg5: memref<1x128xf32, #tpu.memory_space<vmem>>, %arg6: memref<128x128xbf16, #tpu.memory_space<vmem>>, %arg7: memref<128x128xbf16, #tpu.memory_space<vmem>>) attributes {dimension_semantics = [#tpu.dimension_semantics<parallel>], iteration_bounds = array<i64: 1>, scalar_prefetch = 0 : i64, scratch_operands = 0 : i64, tpu.core_type = #tpu.core_type<tc>, window_params = [{transform_indices = @transform_0, window_bounds = array<i64: 128, 288>}, {pipeline_mode = #tpu.pipeline_mode<synchronous>, transform_indices = @transform_1, window_bounds = array<i64: 288, 128>}, {pipeline_mode = #tpu.pipeline_mode<synchronous>, transform_indices = @transform_2, window_bounds = array<i64: 1, 128>}, {pipeline_mode = #tpu.pipeline_mode<synchronous>, transform_indices = @transform_3, window_bounds = array<i64: 128, 128>}, {pipeline_mode = #tpu.pipeline_mode<synchronous>, transform_indices = @transform_4, window_bounds = array<i64: 1, 128>}, {transform_indices = @transform_5, window_bounds = array<i64: 128, 128>}, {transform_indices = @transform_6, window_bounds = array<i64: 128, 128>}]} {
    %c0 = arith.constant 0 : index
    %c0_0 = arith.constant 0 : index
    %0 = vector.load %arg1[%c0, %c0_0] : memref<128x288xbf16, #tpu.memory_space<vmem>>, vector<128x288xbf16>
    %c0_1 = arith.constant 0 : index
    %c0_2 = arith.constant 0 : index
    %1 = vector.load %arg2[%c0_1, %c0_2] : memref<288x128xbf16, #tpu.memory_space<vmem>>, vector<288x128xbf16>
    %cst = arith.constant dense<0.000000e+00> : vector<128x128xf32>
    %2 = tpu.matmul %0, %1, %cst {dimension_numbers = #tpu.dot_dimension_numbers<[1], [0], [0], [1], [0, 0, 1, 1], [], []>} : vector<128x288xbf16>, vector<288x128xbf16>, vector<128x128xf32> -> vector<128x128xf32>
    %c0_3 = arith.constant 0 : index
    %c0_4 = arith.constant 0 : index
    %3 = vector.load %arg3[%c0_3, %c0_4] : memref<1x128xf32, #tpu.memory_space<vmem>>, vector<1x128xf32>
    %4 = vector.broadcast %3 : vector<1x128xf32> to vector<128x128xf32>
    %5 = arith.addf %2, %4 : vector<128x128xf32>
    %cst_5 = arith.constant 0.000000e+00 : f32
    %6 = vector.broadcast %cst_5 : f32 to vector<128x128xf32>
    %7 = arith.maximumf %5, %6 : vector<128x128xf32>
    %8 = arith.truncf %7 : vector<128x128xf32> to vector<128x128xbf16>
    %c0_6 = arith.constant 0 : index
    %c0_7 = arith.constant 0 : index
    %9 = vector.load %arg6[%c0_6, %c0_7] : memref<128x128xbf16, #tpu.memory_space<vmem>>, vector<128x128xbf16>
    tpu.vector_store %arg6[%c0_6, %c0_7], %8 {strides = array<i32>} : memref<128x128xbf16, #tpu.memory_space<vmem>>, vector<128x128xbf16>,
    %10 = arith.truncf %7 : vector<128x128xf32> to vector<128x128xbf16>
    %c0_8 = arith.constant 0 : index
    %c0_9 = arith.constant 0 : index
    %11 = vector.load %arg4[%c0_8, %c0_9] : memref<128x128xbf16, #tpu.memory_space<vmem>>, vector<128x128xbf16>
    %cst_10 = arith.constant dense<0.000000e+00> : vector<128x128xf32>
    %12 = tpu.matmul %10, %11, %cst_10 {dimension_numbers = #tpu.dot_dimension_numbers<[1], [0], [0], [1], [0, 0, 1, 1], [], []>} : vector<128x128xbf16>, vector<128x128xbf16>, vector<128x128xf32> -> vector<128x128xf32>
    %c0_11 = arith.constant 0 : index
    %c0_12 = arith.constant 0 : index
    %13 = vector.load %arg5[%c0_11, %c0_12] : memref<1x128xf32, #tpu.memory_space<vmem>>, vector<1x128xf32>
    %14 = vector.broadcast %13 : vector<1x128xf32> to vector<128x128xf32>
    %15 = arith.addf %12, %14 : vector<128x128xf32>
    %cst_13 = arith.constant 0.000000e+00 : f32
    %16 = vector.broadcast %cst_13 : f32 to vector<128x128xf32>
    %17 = arith.maximumf %15, %16 : vector<128x128xf32>
    %18 = arith.truncf %17 : vector<128x128xf32> to vector<128x128xbf16>
    %c0_14 = arith.constant 0 : index
    %c0_15 = arith.constant 0 : index
    %19 = vector.load %arg7[%c0_14, %c0_15] : memref<128x128xbf16, #tpu.memory_space<vmem>>, vector<128x128xbf16>
    tpu.vector_store %arg7[%c0_14, %c0_15], %18 {strides = array<i32>} : memref<128x128xbf16, #tpu.memory_space<vmem>>, vector<128x128xbf16>,
    return
  }
  func.func @transform_0(%arg0: i32) -> (i32, i32) {
    %c0_i32 = arith.constant 0 : i32
    %c0_i32_0 = arith.constant 0 : i32
    return %arg0, %c0_i32 : i32, i32
  }
  func.func @transform_1(%arg0: i32) -> (i32, i32) {
    %c0_i32 = arith.constant 0 : i32
    %c0_i32_0 = arith.constant 0 : i32
    %c0_i32_1 = arith.constant 0 : i32
    return %c0_i32, %c0_i32_0 : i32, i32
  }
  func.func @transform_2(%arg0: i32) -> (i32, i32) {
    %c0_i32 = arith.constant 0 : i32
    %c0_i32_0 = arith.constant 0 : i32
    %c0_i32_1 = arith.constant 0 : i32
    return %c0_i32, %c0_i32_0 : i32, i32
  }
  func.func @transform_3(%arg0: i32) -> (i32, i32) {
    %c0_i32 = arith.constant 0 : i32
    %c0_i32_0 = arith.constant 0 : i32
    %c0_i32_1 = arith.constant 0 : i32
    return %c0_i32, %c0_i32_0 : i32, i32
  }
  func.func @transform_4(%arg0: i32) -> (i32, i32) {
    %c0_i32 = arith.constant 0 : i32
    %c0_i32_0 = arith.constant 0 : i32
    %c0_i32_1 = arith.constant 0 : i32
    return %c0_i32, %c0_i32_0 : i32, i32
  }
  func.func @transform_5(%arg0: i32) -> (i32, i32) {
    %c0_i32 = arith.constant 0 : i32
    %c0_i32_0 = arith.constant 0 : i32
    return %arg0, %c0_i32 : i32, i32
  }
  func.func @transform_6(%arg0: i32) -> (i32, i32) {
    %c0_i32 = arith.constant 0 : i32
    %c0_i32_0 = arith.constant 0 : i32
    return %arg0, %c0_i32 : i32, i32
  }
}

module attributes {stable_mosaic.version = 11 : i64} {
  func.func @_mm_head_kernel_1k(%arg0: i32, %arg1: memref<32x576xbf16, #tpu.memory_space<vmem>>, %arg2: memref<576x128xbf16, #tpu.memory_space<vmem>>, %arg3: memref<1x128xf32, #tpu.memory_space<vmem>>, %arg4: memref<128x128xbf16, #tpu.memory_space<vmem>>, %arg5: memref<1x128xf32, #tpu.memory_space<vmem>>, %arg6: memref<32x128xbf16, #tpu.memory_space<vmem>>, %arg7: memref<32x128xbf16, #tpu.memory_space<vmem>>) attributes {dimension_semantics = [#tpu.dimension_semantics<parallel>], iteration_bounds = array<i64: 1>, scalar_prefetch = 0 : i64, scratch_operands = 0 : i64, tpu.core_type = #tpu.core_type<tc>, window_params = [{transform_indices = @transform_0, window_bounds = array<i64: 32, 576>}, {pipeline_mode = #tpu.pipeline_mode<synchronous>, transform_indices = @transform_1, window_bounds = array<i64: 576, 128>}, {pipeline_mode = #tpu.pipeline_mode<synchronous>, transform_indices = @transform_2, window_bounds = array<i64: 1, 128>}, {pipeline_mode = #tpu.pipeline_mode<synchronous>, transform_indices = @transform_3, window_bounds = array<i64: 128, 128>}, {pipeline_mode = #tpu.pipeline_mode<synchronous>, transform_indices = @transform_4, window_bounds = array<i64: 1, 128>}, {transform_indices = @transform_5, window_bounds = array<i64: 32, 128>}, {transform_indices = @transform_6, window_bounds = array<i64: 32, 128>}]} {
    %c0 = arith.constant 0 : index
    %c0_0 = arith.constant 0 : index
    %0 = vector.load %arg1[%c0, %c0_0] : memref<32x576xbf16, #tpu.memory_space<vmem>>, vector<32x576xbf16>
    %c0_1 = arith.constant 0 : index
    %c0_2 = arith.constant 0 : index
    %1 = vector.load %arg2[%c0_1, %c0_2] : memref<576x128xbf16, #tpu.memory_space<vmem>>, vector<576x128xbf16>
    %cst = arith.constant dense<0.000000e+00> : vector<32x128xf32>
    %2 = tpu.matmul %0, %1, %cst {dimension_numbers = #tpu.dot_dimension_numbers<[1], [0], [0], [1], [0, 0, 1, 1], [], []>} : vector<32x576xbf16>, vector<576x128xbf16>, vector<32x128xf32> -> vector<32x128xf32>
    %c0_3 = arith.constant 0 : index
    %c0_4 = arith.constant 0 : index
    %3 = vector.load %arg3[%c0_3, %c0_4] : memref<1x128xf32, #tpu.memory_space<vmem>>, vector<1x128xf32>
    %4 = vector.broadcast %3 : vector<1x128xf32> to vector<32x128xf32>
    %5 = arith.addf %2, %4 : vector<32x128xf32>
    %cst_5 = arith.constant 0.000000e+00 : f32
    %6 = vector.broadcast %cst_5 : f32 to vector<32x128xf32>
    %7 = arith.maximumf %5, %6 : vector<32x128xf32>
    %8 = arith.truncf %7 : vector<32x128xf32> to vector<32x128xbf16>
    %c0_6 = arith.constant 0 : index
    %c0_7 = arith.constant 0 : index
    %9 = vector.load %arg6[%c0_6, %c0_7] : memref<32x128xbf16, #tpu.memory_space<vmem>>, vector<32x128xbf16>
    tpu.vector_store %arg6[%c0_6, %c0_7], %8 {strides = array<i32>} : memref<32x128xbf16, #tpu.memory_space<vmem>>, vector<32x128xbf16>,
    %10 = arith.truncf %7 : vector<32x128xf32> to vector<32x128xbf16>
    %c0_8 = arith.constant 0 : index
    %c0_9 = arith.constant 0 : index
    %11 = vector.load %arg4[%c0_8, %c0_9] : memref<128x128xbf16, #tpu.memory_space<vmem>>, vector<128x128xbf16>
    %cst_10 = arith.constant dense<0.000000e+00> : vector<32x128xf32>
    %12 = tpu.matmul %10, %11, %cst_10 {dimension_numbers = #tpu.dot_dimension_numbers<[1], [0], [0], [1], [0, 0, 1, 1], [], []>} : vector<32x128xbf16>, vector<128x128xbf16>, vector<32x128xf32> -> vector<32x128xf32>
    %c0_11 = arith.constant 0 : index
    %c0_12 = arith.constant 0 : index
    %13 = vector.load %arg5[%c0_11, %c0_12] : memref<1x128xf32, #tpu.memory_space<vmem>>, vector<1x128xf32>
    %14 = vector.broadcast %13 : vector<1x128xf32> to vector<32x128xf32>
    %15 = arith.addf %12, %14 : vector<32x128xf32>
    %cst_13 = arith.constant 0.000000e+00 : f32
    %16 = vector.broadcast %cst_13 : f32 to vector<32x128xf32>
    %17 = arith.maximumf %15, %16 : vector<32x128xf32>
    %18 = arith.truncf %17 : vector<32x128xf32> to vector<32x128xbf16>
    %c0_14 = arith.constant 0 : index
    %c0_15 = arith.constant 0 : index
    %19 = vector.load %arg7[%c0_14, %c0_15] : memref<32x128xbf16, #tpu.memory_space<vmem>>, vector<32x128xbf16>
    tpu.vector_store %arg7[%c0_14, %c0_15], %18 {strides = array<i32>} : memref<32x128xbf16, #tpu.memory_space<vmem>>, vector<32x128xbf16>,
    return
  }
  func.func @transform_0(%arg0: i32) -> (i32, i32) {
    %c0_i32 = arith.constant 0 : i32
    %c0_i32_0 = arith.constant 0 : i32
    return %arg0, %c0_i32 : i32, i32
  }
  func.func @transform_1(%arg0: i32) -> (i32, i32) {
    %c0_i32 = arith.constant 0 : i32
    %c0_i32_0 = arith.constant 0 : i32
    %c0_i32_1 = arith.constant 0 : i32
    return %c0_i32, %c0_i32_0 : i32, i32
  }
  func.func @transform_2(%arg0: i32) -> (i32, i32) {
    %c0_i32 = arith.constant 0 : i32
    %c0_i32_0 = arith.constant 0 : i32
    %c0_i32_1 = arith.constant 0 : i32
    return %c0_i32, %c0_i32_0 : i32, i32
  }
  func.func @transform_3(%arg0: i32) -> (i32, i32) {
    %c0_i32 = arith.constant 0 : i32
    %c0_i32_0 = arith.constant 0 : i32
    %c0_i32_1 = arith.constant 0 : i32
    return %c0_i32, %c0_i32_0 : i32, i32
  }
  func.func @transform_4(%arg0: i32) -> (i32, i32) {
    %c0_i32 = arith.constant 0 : i32
    %c0_i32_0 = arith.constant 0 : i32
    %c0_i32_1 = arith.constant 0 : i32
    return %c0_i32, %c0_i32_0 : i32, i32
  }
  func.func @transform_5(%arg0: i32) -> (i32, i32) {
    %c0_i32 = arith.constant 0 : i32
    %c0_i32_0 = arith.constant 0 : i32
    return %arg0, %c0_i32 : i32, i32
  }
  func.func @transform_6(%arg0: i32) -> (i32, i32) {
    %c0_i32 = arith.constant 0 : i32
    %c0_i32_0 = arith.constant 0 : i32
    return %arg0, %c0_i32 : i32, i32
  }
}

module attributes {stable_mosaic.version = 11 : i64} {
  func.func @_mm_head_kernel_1k(%arg0: i32, %arg1: memref<32x1152xbf16, #tpu.memory_space<vmem>>, %arg2: memref<1152x256xbf16, #tpu.memory_space<vmem>>, %arg3: memref<1x256xf32, #tpu.memory_space<vmem>>, %arg4: memref<256x128xbf16, #tpu.memory_space<vmem>>, %arg5: memref<1x128xf32, #tpu.memory_space<vmem>>, %arg6: memref<32x256xbf16, #tpu.memory_space<vmem>>, %arg7: memref<32x128xbf16, #tpu.memory_space<vmem>>) attributes {dimension_semantics = [#tpu.dimension_semantics<parallel>], iteration_bounds = array<i64: 1>, scalar_prefetch = 0 : i64, scratch_operands = 0 : i64, tpu.core_type = #tpu.core_type<tc>, window_params = [{transform_indices = @transform_0, window_bounds = array<i64: 32, 1152>}, {pipeline_mode = #tpu.pipeline_mode<synchronous>, transform_indices = @transform_1, window_bounds = array<i64: 1152, 256>}, {pipeline_mode = #tpu.pipeline_mode<synchronous>, transform_indices = @transform_2, window_bounds = array<i64: 1, 256>}, {pipeline_mode = #tpu.pipeline_mode<synchronous>, transform_indices = @transform_3, window_bounds = array<i64: 256, 128>}, {pipeline_mode = #tpu.pipeline_mode<synchronous>, transform_indices = @transform_4, window_bounds = array<i64: 1, 128>}, {transform_indices = @transform_5, window_bounds = array<i64: 32, 256>}, {transform_indices = @transform_6, window_bounds = array<i64: 32, 128>}]} {
    %c0 = arith.constant 0 : index
    %c0_0 = arith.constant 0 : index
    %0 = vector.load %arg1[%c0, %c0_0] : memref<32x1152xbf16, #tpu.memory_space<vmem>>, vector<32x1152xbf16>
    %c0_1 = arith.constant 0 : index
    %c0_2 = arith.constant 0 : index
    %1 = vector.load %arg2[%c0_1, %c0_2] : memref<1152x256xbf16, #tpu.memory_space<vmem>>, vector<1152x256xbf16>
    %cst = arith.constant dense<0.000000e+00> : vector<32x256xf32>
    %2 = tpu.matmul %0, %1, %cst {dimension_numbers = #tpu.dot_dimension_numbers<[1], [0], [0], [1], [0, 0, 1, 1], [], []>} : vector<32x1152xbf16>, vector<1152x256xbf16>, vector<32x256xf32> -> vector<32x256xf32>
    %c0_3 = arith.constant 0 : index
    %c0_4 = arith.constant 0 : index
    %3 = vector.load %arg3[%c0_3, %c0_4] : memref<1x256xf32, #tpu.memory_space<vmem>>, vector<1x256xf32>
    %4 = vector.broadcast %3 : vector<1x256xf32> to vector<32x256xf32>
    %5 = arith.addf %2, %4 : vector<32x256xf32>
    %cst_5 = arith.constant 0.000000e+00 : f32
    %6 = vector.broadcast %cst_5 : f32 to vector<32x256xf32>
    %7 = arith.maximumf %5, %6 : vector<32x256xf32>
    %8 = arith.truncf %7 : vector<32x256xf32> to vector<32x256xbf16>
    %c0_6 = arith.constant 0 : index
    %c0_7 = arith.constant 0 : index
    %9 = vector.load %arg6[%c0_6, %c0_7] : memref<32x256xbf16, #tpu.memory_space<vmem>>, vector<32x256xbf16>
    tpu.vector_store %arg6[%c0_6, %c0_7], %8 {strides = array<i32>} : memref<32x256xbf16, #tpu.memory_space<vmem>>, vector<32x256xbf16>,
    %10 = arith.truncf %7 : vector<32x256xf32> to vector<32x256xbf16>
    %c0_8 = arith.constant 0 : index
    %c0_9 = arith.constant 0 : index
    %11 = vector.load %arg4[%c0_8, %c0_9] : memref<256x128xbf16, #tpu.memory_space<vmem>>, vector<256x128xbf16>
    %cst_10 = arith.constant dense<0.000000e+00> : vector<32x128xf32>
    %12 = tpu.matmul %10, %11, %cst_10 {dimension_numbers = #tpu.dot_dimension_numbers<[1], [0], [0], [1], [0, 0, 1, 1], [], []>} : vector<32x256xbf16>, vector<256x128xbf16>, vector<32x128xf32> -> vector<32x128xf32>
    %c0_11 = arith.constant 0 : index
    %c0_12 = arith.constant 0 : index
    %13 = vector.load %arg5[%c0_11, %c0_12] : memref<1x128xf32, #tpu.memory_space<vmem>>, vector<1x128xf32>
    %14 = vector.broadcast %13 : vector<1x128xf32> to vector<32x128xf32>
    %15 = arith.addf %12, %14 : vector<32x128xf32>
    %cst_13 = arith.constant 0.000000e+00 : f32
    %16 = vector.broadcast %cst_13 : f32 to vector<32x128xf32>
    %17 = arith.maximumf %15, %16 : vector<32x128xf32>
    %18 = arith.truncf %17 : vector<32x128xf32> to vector<32x128xbf16>
    %c0_14 = arith.constant 0 : index
    %c0_15 = arith.constant 0 : index
    %19 = vector.load %arg7[%c0_14, %c0_15] : memref<32x128xbf16, #tpu.memory_space<vmem>>, vector<32x128xbf16>
    tpu.vector_store %arg7[%c0_14, %c0_15], %18 {strides = array<i32>} : memref<32x128xbf16, #tpu.memory_space<vmem>>, vector<32x128xbf16>,
    return
  }
  func.func @transform_0(%arg0: i32) -> (i32, i32) {
    %c0_i32 = arith.constant 0 : i32
    %c0_i32_0 = arith.constant 0 : i32
    return %arg0, %c0_i32 : i32, i32
  }
  func.func @transform_1(%arg0: i32) -> (i32, i32) {
    %c0_i32 = arith.constant 0 : i32
    %c0_i32_0 = arith.constant 0 : i32
    %c0_i32_1 = arith.constant 0 : i32
    return %c0_i32, %c0_i32_0 : i32, i32
  }
  func.func @transform_2(%arg0: i32) -> (i32, i32) {
    %c0_i32 = arith.constant 0 : i32
    %c0_i32_0 = arith.constant 0 : i32
    %c0_i32_1 = arith.constant 0 : i32
    return %c0_i32, %c0_i32_0 : i32, i32
  }
  func.func @transform_3(%arg0: i32) -> (i32, i32) {
    %c0_i32 = arith.constant 0 : i32
    %c0_i32_0 = arith.constant 0 : i32
    %c0_i32_1 = arith.constant 0 : i32
    return %c0_i32, %c0_i32_0 : i32, i32
  }
  func.func @transform_4(%arg0: i32) -> (i32, i32) {
    %c0_i32 = arith.constant 0 : i32
    %c0_i32_0 = arith.constant 0 : i32
    %c0_i32_1 = arith.constant 0 : i32
    return %c0_i32, %c0_i32_0 : i32, i32
  }
  func.func @transform_5(%arg0: i32) -> (i32, i32) {
    %c0_i32 = arith.constant 0 : i32
    %c0_i32_0 = arith.constant 0 : i32
    return %arg0, %c0_i32 : i32, i32
  }
  func.func @transform_6(%arg0: i32) -> (i32, i32) {
    %c0_i32 = arith.constant 0 : i32
    %c0_i32_0 = arith.constant 0 : i32
    return %arg0, %c0_i32 : i32, i32
  }
}

module attributes {stable_mosaic.version = 11 : i64} {
  func.func @_mm_head_kernel_1k(%arg0: i32, %arg1: memref<128x864xbf16, #tpu.memory_space<vmem>>, %arg2: memref<864x128xbf16, #tpu.memory_space<vmem>>, %arg3: memref<1x128xf32, #tpu.memory_space<vmem>>, %arg4: memref<128x128xbf16, #tpu.memory_space<vmem>>, %arg5: memref<1x128xf32, #tpu.memory_space<vmem>>, %arg6: memref<128x128xbf16, #tpu.memory_space<vmem>>, %arg7: memref<128x128xbf16, #tpu.memory_space<vmem>>) attributes {dimension_semantics = [#tpu.dimension_semantics<parallel>], iteration_bounds = array<i64: 1>, scalar_prefetch = 0 : i64, scratch_operands = 0 : i64, tpu.core_type = #tpu.core_type<tc>, window_params = [{transform_indices = @transform_0, window_bounds = array<i64: 128, 864>}, {pipeline_mode = #tpu.pipeline_mode<synchronous>, transform_indices = @transform_1, window_bounds = array<i64: 864, 128>}, {pipeline_mode = #tpu.pipeline_mode<synchronous>, transform_indices = @transform_2, window_bounds = array<i64: 1, 128>}, {pipeline_mode = #tpu.pipeline_mode<synchronous>, transform_indices = @transform_3, window_bounds = array<i64: 128, 128>}, {pipeline_mode = #tpu.pipeline_mode<synchronous>, transform_indices = @transform_4, window_bounds = array<i64: 1, 128>}, {transform_indices = @transform_5, window_bounds = array<i64: 128, 128>}, {transform_indices = @transform_6, window_bounds = array<i64: 128, 128>}]} {
    %c0 = arith.constant 0 : index
    %c0_0 = arith.constant 0 : index
    %0 = vector.load %arg1[%c0, %c0_0] : memref<128x864xbf16, #tpu.memory_space<vmem>>, vector<128x864xbf16>
    %c0_1 = arith.constant 0 : index
    %c0_2 = arith.constant 0 : index
    %1 = vector.load %arg2[%c0_1, %c0_2] : memref<864x128xbf16, #tpu.memory_space<vmem>>, vector<864x128xbf16>
    %cst = arith.constant dense<0.000000e+00> : vector<128x128xf32>
    %2 = tpu.matmul %0, %1, %cst {dimension_numbers = #tpu.dot_dimension_numbers<[1], [0], [0], [1], [0, 0, 1, 1], [], []>} : vector<128x864xbf16>, vector<864x128xbf16>, vector<128x128xf32> -> vector<128x128xf32>
    %c0_3 = arith.constant 0 : index
    %c0_4 = arith.constant 0 : index
    %3 = vector.load %arg3[%c0_3, %c0_4] : memref<1x128xf32, #tpu.memory_space<vmem>>, vector<1x128xf32>
    %4 = vector.broadcast %3 : vector<1x128xf32> to vector<128x128xf32>
    %5 = arith.addf %2, %4 : vector<128x128xf32>
    %cst_5 = arith.constant 0.000000e+00 : f32
    %6 = vector.broadcast %cst_5 : f32 to vector<128x128xf32>
    %7 = arith.maximumf %5, %6 : vector<128x128xf32>
    %8 = arith.truncf %7 : vector<128x128xf32> to vector<128x128xbf16>
    %c0_6 = arith.constant 0 : index
    %c0_7 = arith.constant 0 : index
    %9 = vector.load %arg6[%c0_6, %c0_7] : memref<128x128xbf16, #tpu.memory_space<vmem>>, vector<128x128xbf16>
    tpu.vector_store %arg6[%c0_6, %c0_7], %8 {strides = array<i32>} : memref<128x128xbf16, #tpu.memory_space<vmem>>, vector<128x128xbf16>,
    %10 = arith.truncf %7 : vector<128x128xf32> to vector<128x128xbf16>
    %c0_8 = arith.constant 0 : index
    %c0_9 = arith.constant 0 : index
    %11 = vector.load %arg4[%c0_8, %c0_9] : memref<128x128xbf16, #tpu.memory_space<vmem>>, vector<128x128xbf16>
    %cst_10 = arith.constant dense<0.000000e+00> : vector<128x128xf32>
    %12 = tpu.matmul %10, %11, %cst_10 {dimension_numbers = #tpu.dot_dimension_numbers<[1], [0], [0], [1], [0, 0, 1, 1], [], []>} : vector<128x128xbf16>, vector<128x128xbf16>, vector<128x128xf32> -> vector<128x128xf32>
    %c0_11 = arith.constant 0 : index
    %c0_12 = arith.constant 0 : index
    %13 = vector.load %arg5[%c0_11, %c0_12] : memref<1x128xf32, #tpu.memory_space<vmem>>, vector<1x128xf32>
    %14 = vector.broadcast %13 : vector<1x128xf32> to vector<128x128xf32>
    %15 = arith.addf %12, %14 : vector<128x128xf32>
    %16 = arith.truncf %15 : vector<128x128xf32> to vector<128x128xbf16>
    %c0_13 = arith.constant 0 : index
    %c0_14 = arith.constant 0 : index
    %17 = vector.load %arg7[%c0_13, %c0_14] : memref<128x128xbf16, #tpu.memory_space<vmem>>, vector<128x128xbf16>
    tpu.vector_store %arg7[%c0_13, %c0_14], %16 {strides = array<i32>} : memref<128x128xbf16, #tpu.memory_space<vmem>>, vector<128x128xbf16>,
    return
  }
  func.func @transform_0(%arg0: i32) -> (i32, i32) {
    %c0_i32 = arith.constant 0 : i32
    %c0_i32_0 = arith.constant 0 : i32
    return %arg0, %c0_i32 : i32, i32
  }
  func.func @transform_1(%arg0: i32) -> (i32, i32) {
    %c0_i32 = arith.constant 0 : i32
    %c0_i32_0 = arith.constant 0 : i32
    %c0_i32_1 = arith.constant 0 : i32
    return %c0_i32, %c0_i32_0 : i32, i32
  }
  func.func @transform_2(%arg0: i32) -> (i32, i32) {
    %c0_i32 = arith.constant 0 : i32
    %c0_i32_0 = arith.constant 0 : i32
    %c0_i32_1 = arith.constant 0 : i32
    return %c0_i32, %c0_i32_0 : i32, i32
  }
  func.func @transform_3(%arg0: i32) -> (i32, i32) {
    %c0_i32 = arith.constant 0 : i32
    %c0_i32_0 = arith.constant 0 : i32
    %c0_i32_1 = arith.constant 0 : i32
    return %c0_i32, %c0_i32_0 : i32, i32
  }
  func.func @transform_4(%arg0: i32) -> (i32, i32) {
    %c0_i32 = arith.constant 0 : i32
    %c0_i32_0 = arith.constant 0 : i32
    %c0_i32_1 = arith.constant 0 : i32
    return %c0_i32, %c0_i32_0 : i32, i32
  }
  func.func @transform_5(%arg0: i32) -> (i32, i32) {
    %c0_i32 = arith.constant 0 : i32
    %c0_i32_0 = arith.constant 0 : i32
    return %arg0, %c0_i32 : i32, i32
  }
  func.func @transform_6(%arg0: i32) -> (i32, i32) {
    %c0_i32 = arith.constant 0 : i32
    %c0_i32_0 = arith.constant 0 : i32
    return %arg0, %c0_i32 : i32, i32
  }
}

module attributes {stable_mosaic.version = 11 : i64} {
  func.func @_mm_head_kernel_1k(%arg0: i32, %arg1: memref<32x576xbf16, #tpu.memory_space<vmem>>, %arg2: memref<576x128xbf16, #tpu.memory_space<vmem>>, %arg3: memref<1x128xf32, #tpu.memory_space<vmem>>, %arg4: memref<128x128xbf16, #tpu.memory_space<vmem>>, %arg5: memref<1x128xf32, #tpu.memory_space<vmem>>, %arg6: memref<32x128xbf16, #tpu.memory_space<vmem>>, %arg7: memref<32x128xbf16, #tpu.memory_space<vmem>>) attributes {dimension_semantics = [#tpu.dimension_semantics<parallel>], iteration_bounds = array<i64: 1>, scalar_prefetch = 0 : i64, scratch_operands = 0 : i64, tpu.core_type = #tpu.core_type<tc>, window_params = [{transform_indices = @transform_0, window_bounds = array<i64: 32, 576>}, {pipeline_mode = #tpu.pipeline_mode<synchronous>, transform_indices = @transform_1, window_bounds = array<i64: 576, 128>}, {pipeline_mode = #tpu.pipeline_mode<synchronous>, transform_indices = @transform_2, window_bounds = array<i64: 1, 128>}, {pipeline_mode = #tpu.pipeline_mode<synchronous>, transform_indices = @transform_3, window_bounds = array<i64: 128, 128>}, {pipeline_mode = #tpu.pipeline_mode<synchronous>, transform_indices = @transform_4, window_bounds = array<i64: 1, 128>}, {transform_indices = @transform_5, window_bounds = array<i64: 32, 128>}, {transform_indices = @transform_6, window_bounds = array<i64: 32, 128>}]} {
    %c0 = arith.constant 0 : index
    %c0_0 = arith.constant 0 : index
    %0 = vector.load %arg1[%c0, %c0_0] : memref<32x576xbf16, #tpu.memory_space<vmem>>, vector<32x576xbf16>
    %c0_1 = arith.constant 0 : index
    %c0_2 = arith.constant 0 : index
    %1 = vector.load %arg2[%c0_1, %c0_2] : memref<576x128xbf16, #tpu.memory_space<vmem>>, vector<576x128xbf16>
    %cst = arith.constant dense<0.000000e+00> : vector<32x128xf32>
    %2 = tpu.matmul %0, %1, %cst {dimension_numbers = #tpu.dot_dimension_numbers<[1], [0], [0], [1], [0, 0, 1, 1], [], []>} : vector<32x576xbf16>, vector<576x128xbf16>, vector<32x128xf32> -> vector<32x128xf32>
    %c0_3 = arith.constant 0 : index
    %c0_4 = arith.constant 0 : index
    %3 = vector.load %arg3[%c0_3, %c0_4] : memref<1x128xf32, #tpu.memory_space<vmem>>, vector<1x128xf32>
    %4 = vector.broadcast %3 : vector<1x128xf32> to vector<32x128xf32>
    %5 = arith.addf %2, %4 : vector<32x128xf32>
    %cst_5 = arith.constant 0.000000e+00 : f32
    %6 = vector.broadcast %cst_5 : f32 to vector<32x128xf32>
    %7 = arith.maximumf %5, %6 : vector<32x128xf32>
    %8 = arith.truncf %7 : vector<32x128xf32> to vector<32x128xbf16>
    %c0_6 = arith.constant 0 : index
    %c0_7 = arith.constant 0 : index
    %9 = vector.load %arg6[%c0_6, %c0_7] : memref<32x128xbf16, #tpu.memory_space<vmem>>, vector<32x128xbf16>
    tpu.vector_store %arg6[%c0_6, %c0_7], %8 {strides = array<i32>} : memref<32x128xbf16, #tpu.memory_space<vmem>>, vector<32x128xbf16>,
    %10 = arith.truncf %7 : vector<32x128xf32> to vector<32x128xbf16>
    %c0_8 = arith.constant 0 : index
    %c0_9 = arith.constant 0 : index
    %11 = vector.load %arg4[%c0_8, %c0_9] : memref<128x128xbf16, #tpu.memory_space<vmem>>, vector<128x128xbf16>
    %cst_10 = arith.constant dense<0.000000e+00> : vector<32x128xf32>
    %12 = tpu.matmul %10, %11, %cst_10 {dimension_numbers = #tpu.dot_dimension_numbers<[1], [0], [0], [1], [0, 0, 1, 1], [], []>} : vector<32x128xbf16>, vector<128x128xbf16>, vector<32x128xf32> -> vector<32x128xf32>
    %c0_11 = arith.constant 0 : index
    %c0_12 = arith.constant 0 : index
    %13 = vector.load %arg5[%c0_11, %c0_12] : memref<1x128xf32, #tpu.memory_space<vmem>>, vector<1x128xf32>
    %14 = vector.broadcast %13 : vector<1x128xf32> to vector<32x128xf32>
    %15 = arith.addf %12, %14 : vector<32x128xf32>
    %16 = arith.truncf %15 : vector<32x128xf32> to vector<32x128xbf16>
    %c0_13 = arith.constant 0 : index
    %c0_14 = arith.constant 0 : index
    %17 = vector.load %arg7[%c0_13, %c0_14] : memref<32x128xbf16, #tpu.memory_space<vmem>>, vector<32x128xbf16>
    tpu.vector_store %arg7[%c0_13, %c0_14], %16 {strides = array<i32>} : memref<32x128xbf16, #tpu.memory_space<vmem>>, vector<32x128xbf16>,
    return
  }
  func.func @transform_0(%arg0: i32) -> (i32, i32) {
    %c0_i32 = arith.constant 0 : i32
    %c0_i32_0 = arith.constant 0 : i32
    return %arg0, %c0_i32 : i32, i32
  }
  func.func @transform_1(%arg0: i32) -> (i32, i32) {
    %c0_i32 = arith.constant 0 : i32
    %c0_i32_0 = arith.constant 0 : i32
    %c0_i32_1 = arith.constant 0 : i32
    return %c0_i32, %c0_i32_0 : i32, i32
  }
  func.func @transform_2(%arg0: i32) -> (i32, i32) {
    %c0_i32 = arith.constant 0 : i32
    %c0_i32_0 = arith.constant 0 : i32
    %c0_i32_1 = arith.constant 0 : i32
    return %c0_i32, %c0_i32_0 : i32, i32
  }
  func.func @transform_3(%arg0: i32) -> (i32, i32) {
    %c0_i32 = arith.constant 0 : i32
    %c0_i32_0 = arith.constant 0 : i32
    %c0_i32_1 = arith.constant 0 : i32
    return %c0_i32, %c0_i32_0 : i32, i32
  }
  func.func @transform_4(%arg0: i32) -> (i32, i32) {
    %c0_i32 = arith.constant 0 : i32
    %c0_i32_0 = arith.constant 0 : i32
    %c0_i32_1 = arith.constant 0 : i32
    return %c0_i32, %c0_i32_0 : i32, i32
  }
  func.func @transform_5(%arg0: i32) -> (i32, i32) {
    %c0_i32 = arith.constant 0 : i32
    %c0_i32_0 = arith.constant 0 : i32
    return %arg0, %c0_i32 : i32, i32
  }
  func.func @transform_6(%arg0: i32) -> (i32, i32) {
    %c0_i32 = arith.constant 0 : i32
    %c0_i32_0 = arith.constant 0 : i32
    return %arg0, %c0_i32 : i32, i32
  }
}

module attributes {stable_mosaic.version = 11 : i64} {
  func.func @_mm_head_kernel_1k(%arg0: i32, %arg1: memref<128x576xbf16, #tpu.memory_space<vmem>>, %arg2: memref<576x128xbf16, #tpu.memory_space<vmem>>, %arg3: memref<1x128xf32, #tpu.memory_space<vmem>>, %arg4: memref<128x128xbf16, #tpu.memory_space<vmem>>, %arg5: memref<1x128xf32, #tpu.memory_space<vmem>>, %arg6: memref<128x128xbf16, #tpu.memory_space<vmem>>, %arg7: memref<128x128xbf16, #tpu.memory_space<vmem>>) attributes {dimension_semantics = [#tpu.dimension_semantics<parallel>], iteration_bounds = array<i64: 1>, scalar_prefetch = 0 : i64, scratch_operands = 0 : i64, tpu.core_type = #tpu.core_type<tc>, window_params = [{transform_indices = @transform_0, window_bounds = array<i64: 128, 576>}, {pipeline_mode = #tpu.pipeline_mode<synchronous>, transform_indices = @transform_1, window_bounds = array<i64: 576, 128>}, {pipeline_mode = #tpu.pipeline_mode<synchronous>, transform_indices = @transform_2, window_bounds = array<i64: 1, 128>}, {pipeline_mode = #tpu.pipeline_mode<synchronous>, transform_indices = @transform_3, window_bounds = array<i64: 128, 128>}, {pipeline_mode = #tpu.pipeline_mode<synchronous>, transform_indices = @transform_4, window_bounds = array<i64: 1, 128>}, {transform_indices = @transform_5, window_bounds = array<i64: 128, 128>}, {transform_indices = @transform_6, window_bounds = array<i64: 128, 128>}]} {
    %c0 = arith.constant 0 : index
    %c0_0 = arith.constant 0 : index
    %0 = vector.load %arg1[%c0, %c0_0] : memref<128x576xbf16, #tpu.memory_space<vmem>>, vector<128x576xbf16>
    %c0_1 = arith.constant 0 : index
    %c0_2 = arith.constant 0 : index
    %1 = vector.load %arg2[%c0_1, %c0_2] : memref<576x128xbf16, #tpu.memory_space<vmem>>, vector<576x128xbf16>
    %cst = arith.constant dense<0.000000e+00> : vector<128x128xf32>
    %2 = tpu.matmul %0, %1, %cst {dimension_numbers = #tpu.dot_dimension_numbers<[1], [0], [0], [1], [0, 0, 1, 1], [], []>} : vector<128x576xbf16>, vector<576x128xbf16>, vector<128x128xf32> -> vector<128x128xf32>
    %c0_3 = arith.constant 0 : index
    %c0_4 = arith.constant 0 : index
    %3 = vector.load %arg3[%c0_3, %c0_4] : memref<1x128xf32, #tpu.memory_space<vmem>>, vector<1x128xf32>
    %4 = vector.broadcast %3 : vector<1x128xf32> to vector<128x128xf32>
    %5 = arith.addf %2, %4 : vector<128x128xf32>
    %cst_5 = arith.constant 0.000000e+00 : f32
    %6 = vector.broadcast %cst_5 : f32 to vector<128x128xf32>
    %7 = arith.maximumf %5, %6 : vector<128x128xf32>
    %8 = arith.truncf %7 : vector<128x128xf32> to vector<128x128xbf16>
    %c0_6 = arith.constant 0 : index
    %c0_7 = arith.constant 0 : index
    %9 = vector.load %arg6[%c0_6, %c0_7] : memref<128x128xbf16, #tpu.memory_space<vmem>>, vector<128x128xbf16>
    tpu.vector_store %arg6[%c0_6, %c0_7], %8 {strides = array<i32>} : memref<128x128xbf16, #tpu.memory_space<vmem>>, vector<128x128xbf16>,
    %10 = arith.truncf %7 : vector<128x128xf32> to vector<128x128xbf16>
    %c0_8 = arith.constant 0 : index
    %c0_9 = arith.constant 0 : index
    %11 = vector.load %arg4[%c0_8, %c0_9] : memref<128x128xbf16, #tpu.memory_space<vmem>>, vector<128x128xbf16>
    %cst_10 = arith.constant dense<0.000000e+00> : vector<128x128xf32>
    %12 = tpu.matmul %10, %11, %cst_10 {dimension_numbers = #tpu.dot_dimension_numbers<[1], [0], [0], [1], [0, 0, 1, 1], [], []>} : vector<128x128xbf16>, vector<128x128xbf16>, vector<128x128xf32> -> vector<128x128xf32>
    %c0_11 = arith.constant 0 : index
    %c0_12 = arith.constant 0 : index
    %13 = vector.load %arg5[%c0_11, %c0_12] : memref<1x128xf32, #tpu.memory_space<vmem>>, vector<1x128xf32>
    %14 = vector.broadcast %13 : vector<1x128xf32> to vector<128x128xf32>
    %15 = arith.addf %12, %14 : vector<128x128xf32>
    %16 = arith.truncf %15 : vector<128x128xf32> to vector<128x128xbf16>
    %c0_13 = arith.constant 0 : index
    %c0_14 = arith.constant 0 : index
    %17 = vector.load %arg7[%c0_13, %c0_14] : memref<128x128xbf16, #tpu.memory_space<vmem>>, vector<128x128xbf16>
    tpu.vector_store %arg7[%c0_13, %c0_14], %16 {strides = array<i32>} : memref<128x128xbf16, #tpu.memory_space<vmem>>, vector<128x128xbf16>,
    return
  }
  func.func @transform_0(%arg0: i32) -> (i32, i32) {
    %c0_i32 = arith.constant 0 : i32
    %c0_i32_0 = arith.constant 0 : i32
    return %arg0, %c0_i32 : i32, i32
  }
  func.func @transform_1(%arg0: i32) -> (i32, i32) {
    %c0_i32 = arith.constant 0 : i32
    %c0_i32_0 = arith.constant 0 : i32
    %c0_i32_1 = arith.constant 0 : i32
    return %c0_i32, %c0_i32_0 : i32, i32
  }
  func.func @transform_2(%arg0: i32) -> (i32, i32) {
    %c0_i32 = arith.constant 0 : i32
    %c0_i32_0 = arith.constant 0 : i32
    %c0_i32_1 = arith.constant 0 : i32
    return %c0_i32, %c0_i32_0 : i32, i32
  }
  func.func @transform_3(%arg0: i32) -> (i32, i32) {
    %c0_i32 = arith.constant 0 : i32
    %c0_i32_0 = arith.constant 0 : i32
    %c0_i32_1 = arith.constant 0 : i32
    return %c0_i32, %c0_i32_0 : i32, i32
  }
  func.func @transform_4(%arg0: i32) -> (i32, i32) {
    %c0_i32 = arith.constant 0 : i32
    %c0_i32_0 = arith.constant 0 : i32
    %c0_i32_1 = arith.constant 0 : i32
    return %c0_i32, %c0_i32_0 : i32, i32
  }
  func.func @transform_5(%arg0: i32) -> (i32, i32) {
    %c0_i32 = arith.constant 0 : i32
    %c0_i32_0 = arith.constant 0 : i32
    return %arg0, %c0_i32 : i32, i32
  }
  func.func @transform_6(%arg0: i32) -> (i32, i32) {
    %c0_i32 = arith.constant 0 : i32
    %c0_i32_0 = arith.constant 0 : i32
    return %arg0, %c0_i32 : i32, i32
  }
}

module attributes {stable_mosaic.version = 11 : i64} {
  func.func @_structure_loss_sums_kernel(%arg0: i32, %arg1: memref<8x32x128xf32, #tpu.memory_space<vmem>>, %arg2: memref<2x32x128xf32, #tpu.memory_space<vmem>>, %arg3: memref<2x32x128xf32, #tpu.memory_space<vmem>>, %arg4: memref<8x128xf32, #tpu.memory_space<vmem>>) attributes {dimension_semantics = [#tpu.dimension_semantics<arbitrary>], iteration_bounds = array<i64: 1>, scalar_prefetch = 0 : i64, scratch_operands = 0 : i64, tpu.core_type = #tpu.core_type<tc>, window_params = [{pipeline_mode = #tpu.pipeline_mode<synchronous>, transform_indices = @transform_0, window_bounds = array<i64: 8, 32, 128>}, {pipeline_mode = #tpu.pipeline_mode<synchronous>, transform_indices = @transform_1, window_bounds = array<i64: 2, 32, 128>}, {pipeline_mode = #tpu.pipeline_mode<synchronous>, transform_indices = @transform_2, window_bounds = array<i64: 2, 32, 128>}, {pipeline_mode = #tpu.pipeline_mode<synchronous>, transform_indices = @transform_3, window_bounds = array<i64: 8, 128>}]} {
    %0 = tpu.iota {dimensions = array<i32: 0>} : vector<32x128xi32>
    %1 = tpu.iota {dimensions = array<i32: 1>} : vector<32x128xi32>
    %c128_i32 = arith.constant 128 : i32
    %2 = vector.broadcast %c128_i32 : i32 to vector<32x128xi32>
    %3 = arith.muli %0, %2 : vector<32x128xi32>
    %4 = arith.addi %3, %1 : vector<32x128xi32>
    %c4096_i32 = arith.constant 4096 : i32
    %5 = vector.broadcast %c4096_i32 : i32 to vector<32x128xi32>
    %6 = arith.cmpi slt, %4, %5 : vector<32x128xi32>
    %7 = arith.extui %6 : vector<32x128xi1> to vector<32x128xi32>
    %8 = arith.sitofp %7 : vector<32x128xi32> to vector<32x128xf32>
    %9 = tpu.iota {dimensions = array<i32: 1>} : vector<1x128xi32>
    %c0 = arith.constant 0 : index
    %c0_0 = arith.constant 0 : index
    %c0_1 = arith.constant 0 : index
    %10 = vector.load %arg2[%c0, %c0_0, %c0_1] : memref<2x32x128xf32, #tpu.memory_space<vmem>>, vector<1x32x128xf32>
    %11 = vector.shape_cast %10 : vector<1x32x128xf32> to vector<32x128xf32>
    %12 = arith.mulf %11, %8 : vector<32x128xf32>
    %c0_2 = arith.constant 0 : index
    %c0_3 = arith.constant 0 : index
    %c0_4 = arith.constant 0 : index
    %13 = vector.load %arg3[%c0_2, %c0_3, %c0_4] : memref<2x32x128xf32, #tpu.memory_space<vmem>>, vector<1x32x128xf32>
    %14 = vector.shape_cast %13 : vector<1x32x128xf32> to vector<32x128xf32>
    %15 = arith.mulf %14, %8 : vector<32x128xf32>
    %c0_5 = arith.constant 0 : index
    %c0_6 = arith.constant 0 : index
    %c0_7 = arith.constant 0 : index
    %16 = vector.load %arg1[%c0_5, %c0_6, %c0_7] : memref<8x32x128xf32, #tpu.memory_space<vmem>>, vector<1x32x128xf32>
    %17 = vector.shape_cast %16 : vector<1x32x128xf32> to vector<32x128xf32>
    %cst = arith.constant 0.000000e+00 : f32
    %18 = vector.broadcast %cst : f32 to vector<32x128xf32>
    %19 = arith.maximumf %17, %18 : vector<32x128xf32>
    %20 = arith.mulf %17, %12 : vector<32x128xf32>
    %21 = arith.subf %19, %20 : vector<32x128xf32>
    %22 = math.absf %17 : vector<32x128xf32>
    %cst_8 = arith.constant 0.000000e+00 : f32
    %23 = vector.broadcast %cst_8 : f32 to vector<32x128xf32>
    %24 = arith.subf %23, %22 : vector<32x128xf32>
    %25 = math.exp %24 : vector<32x128xf32>
    %26 = math.log1p %25 : vector<32x128xf32>
    %27 = arith.addf %21, %26 : vector<32x128xf32>
    %28 = arith.mulf %27, %8 : vector<32x128xf32>
    %cst_9 = arith.constant 0.000000e+00 : f32
    %29 = vector.broadcast %cst_9 : f32 to vector<32x128xf32>
    %30 = arith.subf %29, %17 : vector<32x128xf32>
    %31 = math.exp %30 : vector<32x128xf32>
    %cst_10 = arith.constant 1.000000e+00 : f32
    %32 = vector.broadcast %cst_10 : f32 to vector<32x128xf32>
    %33 = arith.addf %32, %31 : vector<32x128xf32>
    %cst_11 = arith.constant 1.000000e+00 : f32
    %34 = vector.broadcast %cst_11 : f32 to vector<32x128xf32>
    %35 = arith.divf %34, %33 : vector<32x128xf32>
    %cst_12 = arith.constant dense<0.000000e+00> : vector<32xf32>
    %36 = vector.multi_reduction <add>, %28, %cst_12 [1] : vector<32x128xf32> to vector<32xf32>
    %37 = vector.shape_cast %36 : vector<32xf32> to vector<32x1xf32>
    %cst_13 = arith.constant dense<0.000000e+00> : vector<1xf32>
    %38 = vector.multi_reduction <add>, %37, %cst_13 [0] : vector<32x1xf32> to vector<1xf32>
    %39 = vector.shape_cast %38 : vector<1xf32> to vector<1x1xf32>
    %40 = arith.mulf %35, %12 : vector<32x128xf32>
    %41 = arith.mulf %40, %15 : vector<32x128xf32>
    %cst_14 = arith.constant dense<0.000000e+00> : vector<32xf32>
    %42 = vector.multi_reduction <add>, %41, %cst_14 [1] : vector<32x128xf32> to vector<32xf32>
    %43 = vector.shape_cast %42 : vector<32xf32> to vector<32x1xf32>
    %cst_15 = arith.constant dense<0.000000e+00> : vector<1xf32>
    %44 = vector.multi_reduction <add>, %43, %cst_15 [0] : vector<32x1xf32> to vector<1xf32>
    %45 = vector.shape_cast %44 : vector<1xf32> to vector<1x1xf32>
    %46 = arith.addf %35, %12 : vector<32x128xf32>
    %47 = arith.mulf %46, %15 : vector<32x128xf32>
    %cst_16 = arith.constant dense<0.000000e+00> : vector<32xf32>
    %48 = vector.multi_reduction <add>, %47, %cst_16 [1] : vector<32x128xf32> to vector<32xf32>
    %49 = vector.shape_cast %48 : vector<32xf32> to vector<32x1xf32>
    %cst_17 = arith.constant dense<0.000000e+00> : vector<1xf32>
    %50 = vector.multi_reduction <add>, %49, %cst_17 [0] : vector<32x1xf32> to vector<1xf32>
    %51 = vector.shape_cast %50 : vector<1xf32> to vector<1x1xf32>
    %c0_i32 = arith.constant 0 : i32
    %52 = vector.broadcast %c0_i32 : i32 to vector<1x128xi32>
    %53 = arith.cmpi eq, %9, %52 : vector<1x128xi32>
    %cst_18 = arith.constant 0.000000e+00 : f32
    %54 = vector.shape_cast %39 : vector<1x1xf32> to vector<1x1xf32>
    %55 = vector.broadcast %54 : vector<1x1xf32> to vector<1x128xf32>
    %56 = vector.broadcast %cst_18 : f32 to vector<1x128xf32>
    %57 = arith.select %53, %55, %56 : vector<1x128xi1>, vector<1x128xf32>
    %c1_i32 = arith.constant 1 : i32
    %58 = vector.broadcast %c1_i32 : i32 to vector<1x128xi32>
    %59 = arith.cmpi eq, %9, %58 : vector<1x128xi32>
    %cst_19 = arith.constant 0.000000e+00 : f32
    %60 = vector.shape_cast %45 : vector<1x1xf32> to vector<1x1xf32>
    %61 = vector.broadcast %60 : vector<1x1xf32> to vector<1x128xf32>
    %62 = vector.broadcast %cst_19 : f32 to vector<1x128xf32>
    %63 = arith.select %59, %61, %62 : vector<1x128xi1>, vector<1x128xf32>
    %64 = arith.addf %57, %63 : vector<1x128xf32>
    %c2_i32 = arith.constant 2 : i32
    %65 = vector.broadcast %c2_i32 : i32 to vector<1x128xi32>
    %66 = arith.cmpi eq, %9, %65 : vector<1x128xi32>
    %cst_20 = arith.constant 0.000000e+00 : f32
    %67 = vector.shape_cast %51 : vector<1x1xf32> to vector<1x1xf32>
    %68 = vector.broadcast %67 : vector<1x1xf32> to vector<1x128xf32>
    %69 = vector.broadcast %cst_20 : f32 to vector<1x128xf32>
    %70 = arith.select %66, %68, %69 : vector<1x128xi1>, vector<1x128xf32>
    %71 = arith.addf %64, %70 : vector<1x128xf32>
    %c0_21 = arith.constant 0 : index
    %c0_22 = arith.constant 0 : index
    %72 = vector.load %arg4[%c0_21, %c0_22] : memref<8x128xf32, #tpu.memory_space<vmem>>, vector<1x128xf32>
    tpu.vector_store %arg4[%c0_21, %c0_22], %71 {strides = array<i32>} : memref<8x128xf32, #tpu.memory_space<vmem>>, vector<1x128xf32>,
    %c2 = arith.constant 2 : index
    %c0_23 = arith.constant 0 : index
    %c0_24 = arith.constant 0 : index
    %73 = vector.load %arg1[%c2, %c0_23, %c0_24] : memref<8x32x128xf32, #tpu.memory_space<vmem>>, vector<1x32x128xf32>
    %74 = vector.shape_cast %73 : vector<1x32x128xf32> to vector<32x128xf32>
    %cst_25 = arith.constant 0.000000e+00 : f32
    %75 = vector.broadcast %cst_25 : f32 to vector<32x128xf32>
    %76 = arith.maximumf %74, %75 : vector<32x128xf32>
    %77 = arith.mulf %74, %12 : vector<32x128xf32>
    %78 = arith.subf %76, %77 : vector<32x128xf32>
    %79 = math.absf %74 : vector<32x128xf32>
    %cst_26 = arith.constant 0.000000e+00 : f32
    %80 = vector.broadcast %cst_26 : f32 to vector<32x128xf32>
    %81 = arith.subf %80, %79 : vector<32x128xf32>
    %82 = math.exp %81 : vector<32x128xf32>
    %83 = math.log1p %82 : vector<32x128xf32>
    %84 = arith.addf %78, %83 : vector<32x128xf32>
    %85 = arith.mulf %84, %8 : vector<32x128xf32>
    %cst_27 = arith.constant 0.000000e+00 : f32
    %86 = vector.broadcast %cst_27 : f32 to vector<32x128xf32>
    %87 = arith.subf %86, %74 : vector<32x128xf32>
    %88 = math.exp %87 : vector<32x128xf32>
    %cst_28 = arith.constant 1.000000e+00 : f32
    %89 = vector.broadcast %cst_28 : f32 to vector<32x128xf32>
    %90 = arith.addf %89, %88 : vector<32x128xf32>
    %cst_29 = arith.constant 1.000000e+00 : f32
    %91 = vector.broadcast %cst_29 : f32 to vector<32x128xf32>
    %92 = arith.divf %91, %90 : vector<32x128xf32>
    %cst_30 = arith.constant dense<0.000000e+00> : vector<32xf32>
    %93 = vector.multi_reduction <add>, %85, %cst_30 [1] : vector<32x128xf32> to vector<32xf32>
    %94 = vector.shape_cast %93 : vector<32xf32> to vector<32x1xf32>
    %cst_31 = arith.constant dense<0.000000e+00> : vector<1xf32>
    %95 = vector.multi_reduction <add>, %94, %cst_31 [0] : vector<32x1xf32> to vector<1xf32>
    %96 = vector.shape_cast %95 : vector<1xf32> to vector<1x1xf32>
    %97 = arith.mulf %92, %12 : vector<32x128xf32>
    %98 = arith.mulf %97, %15 : vector<32x128xf32>
    %cst_32 = arith.constant dense<0.000000e+00> : vector<32xf32>
    %99 = vector.multi_reduction <add>, %98, %cst_32 [1] : vector<32x128xf32> to vector<32xf32>
    %100 = vector.shape_cast %99 : vector<32xf32> to vector<32x1xf32>
    %cst_33 = arith.constant dense<0.000000e+00> : vector<1xf32>
    %101 = vector.multi_reduction <add>, %100, %cst_33 [0] : vector<32x1xf32> to vector<1xf32>
    %102 = vector.shape_cast %101 : vector<1xf32> to vector<1x1xf32>
    %103 = arith.addf %92, %12 : vector<32x128xf32>
    %104 = arith.mulf %103, %15 : vector<32x128xf32>
    %cst_34 = arith.constant dense<0.000000e+00> : vector<32xf32>
    %105 = vector.multi_reduction <add>, %104, %cst_34 [1] : vector<32x128xf32> to vector<32xf32>
    %106 = vector.shape_cast %105 : vector<32xf32> to vector<32x1xf32>
    %cst_35 = arith.constant dense<0.000000e+00> : vector<1xf32>
    %107 = vector.multi_reduction <add>, %106, %cst_35 [0] : vector<32x1xf32> to vector<1xf32>
    %108 = vector.shape_cast %107 : vector<1xf32> to vector<1x1xf32>
    %c0_i32_36 = arith.constant 0 : i32
    %109 = vector.broadcast %c0_i32_36 : i32 to vector<1x128xi32>
    %110 = arith.cmpi eq, %9, %109 : vector<1x128xi32>
    %cst_37 = arith.constant 0.000000e+00 : f32
    %111 = vector.shape_cast %96 : vector<1x1xf32> to vector<1x1xf32>
    %112 = vector.broadcast %111 : vector<1x1xf32> to vector<1x128xf32>
    %113 = vector.broadcast %cst_37 : f32 to vector<1x128xf32>
    %114 = arith.select %110, %112, %113 : vector<1x128xi1>, vector<1x128xf32>
    %c1_i32_38 = arith.constant 1 : i32
    %115 = vector.broadcast %c1_i32_38 : i32 to vector<1x128xi32>
    %116 = arith.cmpi eq, %9, %115 : vector<1x128xi32>
    %cst_39 = arith.constant 0.000000e+00 : f32
    %117 = vector.shape_cast %102 : vector<1x1xf32> to vector<1x1xf32>
    %118 = vector.broadcast %117 : vector<1x1xf32> to vector<1x128xf32>
    %119 = vector.broadcast %cst_39 : f32 to vector<1x128xf32>
    %120 = arith.select %116, %118, %119 : vector<1x128xi1>, vector<1x128xf32>
    %121 = arith.addf %114, %120 : vector<1x128xf32>
    %c2_i32_40 = arith.constant 2 : i32
    %122 = vector.broadcast %c2_i32_40 : i32 to vector<1x128xi32>
    %123 = arith.cmpi eq, %9, %122 : vector<1x128xi32>
    %cst_41 = arith.constant 0.000000e+00 : f32
    %124 = vector.shape_cast %108 : vector<1x1xf32> to vector<1x1xf32>
    %125 = vector.broadcast %124 : vector<1x1xf32> to vector<1x128xf32>
    %126 = vector.broadcast %cst_41 : f32 to vector<1x128xf32>
    %127 = arith.select %123, %125, %126 : vector<1x128xi1>, vector<1x128xf32>
    %128 = arith.addf %121, %127 : vector<1x128xf32>
    %c2_42 = arith.constant 2 : index
    %c0_43 = arith.constant 0 : index
    %129 = vector.load %arg4[%c2_42, %c0_43] : memref<8x128xf32, #tpu.memory_space<vmem>>, vector<1x128xf32>
    tpu.vector_store %arg4[%c2_42, %c0_43], %128 {strides = array<i32>} : memref<8x128xf32, #tpu.memory_space<vmem>>, vector<1x128xf32>,
    %c4 = arith.constant 4 : index
    %c0_44 = arith.constant 0 : index
    %c0_45 = arith.constant 0 : index
    %130 = vector.load %arg1[%c4, %c0_44, %c0_45] : memref<8x32x128xf32, #tpu.memory_space<vmem>>, vector<1x32x128xf32>
    %131 = vector.shape_cast %130 : vector<1x32x128xf32> to vector<32x128xf32>
    %cst_46 = arith.constant 0.000000e+00 : f32
    %132 = vector.broadcast %cst_46 : f32 to vector<32x128xf32>
    %133 = arith.maximumf %131, %132 : vector<32x128xf32>
    %134 = arith.mulf %131, %12 : vector<32x128xf32>
    %135 = arith.subf %133, %134 : vector<32x128xf32>
    %136 = math.absf %131 : vector<32x128xf32>
    %cst_47 = arith.constant 0.000000e+00 : f32
    %137 = vector.broadcast %cst_47 : f32 to vector<32x128xf32>
    %138 = arith.subf %137, %136 : vector<32x128xf32>
    %139 = math.exp %138 : vector<32x128xf32>
    %140 = math.log1p %139 : vector<32x128xf32>
    %141 = arith.addf %135, %140 : vector<32x128xf32>
    %142 = arith.mulf %141, %8 : vector<32x128xf32>
    %cst_48 = arith.constant 0.000000e+00 : f32
    %143 = vector.broadcast %cst_48 : f32 to vector<32x128xf32>
    %144 = arith.subf %143, %131 : vector<32x128xf32>
    %145 = math.exp %144 : vector<32x128xf32>
    %cst_49 = arith.constant 1.000000e+00 : f32
    %146 = vector.broadcast %cst_49 : f32 to vector<32x128xf32>
    %147 = arith.addf %146, %145 : vector<32x128xf32>
    %cst_50 = arith.constant 1.000000e+00 : f32
    %148 = vector.broadcast %cst_50 : f32 to vector<32x128xf32>
    %149 = arith.divf %148, %147 : vector<32x128xf32>
    %cst_51 = arith.constant dense<0.000000e+00> : vector<32xf32>
    %150 = vector.multi_reduction <add>, %142, %cst_51 [1] : vector<32x128xf32> to vector<32xf32>
    %151 = vector.shape_cast %150 : vector<32xf32> to vector<32x1xf32>
    %cst_52 = arith.constant dense<0.000000e+00> : vector<1xf32>
    %152 = vector.multi_reduction <add>, %151, %cst_52 [0] : vector<32x1xf32> to vector<1xf32>
    %153 = vector.shape_cast %152 : vector<1xf32> to vector<1x1xf32>
    %154 = arith.mulf %149, %12 : vector<32x128xf32>
    %155 = arith.mulf %154, %15 : vector<32x128xf32>
    %cst_53 = arith.constant dense<0.000000e+00> : vector<32xf32>
    %156 = vector.multi_reduction <add>, %155, %cst_53 [1] : vector<32x128xf32> to vector<32xf32>
    %157 = vector.shape_cast %156 : vector<32xf32> to vector<32x1xf32>
    %cst_54 = arith.constant dense<0.000000e+00> : vector<1xf32>
    %158 = vector.multi_reduction <add>, %157, %cst_54 [0] : vector<32x1xf32> to vector<1xf32>
    %159 = vector.shape_cast %158 : vector<1xf32> to vector<1x1xf32>
    %160 = arith.addf %149, %12 : vector<32x128xf32>
    %161 = arith.mulf %160, %15 : vector<32x128xf32>
    %cst_55 = arith.constant dense<0.000000e+00> : vector<32xf32>
    %162 = vector.multi_reduction <add>, %161, %cst_55 [1] : vector<32x128xf32> to vector<32xf32>
    %163 = vector.shape_cast %162 : vector<32xf32> to vector<32x1xf32>
    %cst_56 = arith.constant dense<0.000000e+00> : vector<1xf32>
    %164 = vector.multi_reduction <add>, %163, %cst_56 [0] : vector<32x1xf32> to vector<1xf32>
    %165 = vector.shape_cast %164 : vector<1xf32> to vector<1x1xf32>
    %c0_i32_57 = arith.constant 0 : i32
    %166 = vector.broadcast %c0_i32_57 : i32 to vector<1x128xi32>
    %167 = arith.cmpi eq, %9, %166 : vector<1x128xi32>
    %cst_58 = arith.constant 0.000000e+00 : f32
    %168 = vector.shape_cast %153 : vector<1x1xf32> to vector<1x1xf32>
    %169 = vector.broadcast %168 : vector<1x1xf32> to vector<1x128xf32>
    %170 = vector.broadcast %cst_58 : f32 to vector<1x128xf32>
    %171 = arith.select %167, %169, %170 : vector<1x128xi1>, vector<1x128xf32>
    %c1_i32_59 = arith.constant 1 : i32
    %172 = vector.broadcast %c1_i32_59 : i32 to vector<1x128xi32>
    %173 = arith.cmpi eq, %9, %172 : vector<1x128xi32>
    %cst_60 = arith.constant 0.000000e+00 : f32
    %174 = vector.shape_cast %159 : vector<1x1xf32> to vector<1x1xf32>
    %175 = vector.broadcast %174 : vector<1x1xf32> to vector<1x128xf32>
    %176 = vector.broadcast %cst_60 : f32 to vector<1x128xf32>
    %177 = arith.select %173, %175, %176 : vector<1x128xi1>, vector<1x128xf32>
    %178 = arith.addf %171, %177 : vector<1x128xf32>
    %c2_i32_61 = arith.constant 2 : i32
    %179 = vector.broadcast %c2_i32_61 : i32 to vector<1x128xi32>
    %180 = arith.cmpi eq, %9, %179 : vector<1x128xi32>
    %cst_62 = arith.constant 0.000000e+00 : f32
    %181 = vector.shape_cast %165 : vector<1x1xf32> to vector<1x1xf32>
    %182 = vector.broadcast %181 : vector<1x1xf32> to vector<1x128xf32>
    %183 = vector.broadcast %cst_62 : f32 to vector<1x128xf32>
    %184 = arith.select %180, %182, %183 : vector<1x128xi1>, vector<1x128xf32>
    %185 = arith.addf %178, %184 : vector<1x128xf32>
    %c4_63 = arith.constant 4 : index
    %c0_64 = arith.constant 0 : index
    %186 = vector.load %arg4[%c4_63, %c0_64] : memref<8x128xf32, #tpu.memory_space<vmem>>, vector<1x128xf32>
    tpu.vector_store %arg4[%c4_63, %c0_64], %185 {strides = array<i32>} : memref<8x128xf32, #tpu.memory_space<vmem>>, vector<1x128xf32>,
    %c6 = arith.constant 6 : index
    %c0_65 = arith.constant 0 : index
    %c0_66 = arith.constant 0 : index
    %187 = vector.load %arg1[%c6, %c0_65, %c0_66] : memref<8x32x128xf32, #tpu.memory_space<vmem>>, vector<1x32x128xf32>
    %188 = vector.shape_cast %187 : vector<1x32x128xf32> to vector<32x128xf32>
    %cst_67 = arith.constant 0.000000e+00 : f32
    %189 = vector.broadcast %cst_67 : f32 to vector<32x128xf32>
    %190 = arith.maximumf %188, %189 : vector<32x128xf32>
    %191 = arith.mulf %188, %12 : vector<32x128xf32>
    %192 = arith.subf %190, %191 : vector<32x128xf32>
    %193 = math.absf %188 : vector<32x128xf32>
    %cst_68 = arith.constant 0.000000e+00 : f32
    %194 = vector.broadcast %cst_68 : f32 to vector<32x128xf32>
    %195 = arith.subf %194, %193 : vector<32x128xf32>
    %196 = math.exp %195 : vector<32x128xf32>
    %197 = math.log1p %196 : vector<32x128xf32>
    %198 = arith.addf %192, %197 : vector<32x128xf32>
    %199 = arith.mulf %198, %8 : vector<32x128xf32>
    %cst_69 = arith.constant 0.000000e+00 : f32
    %200 = vector.broadcast %cst_69 : f32 to vector<32x128xf32>
    %201 = arith.subf %200, %188 : vector<32x128xf32>
    %202 = math.exp %201 : vector<32x128xf32>
    %cst_70 = arith.constant 1.000000e+00 : f32
    %203 = vector.broadcast %cst_70 : f32 to vector<32x128xf32>
    %204 = arith.addf %203, %202 : vector<32x128xf32>
    %cst_71 = arith.constant 1.000000e+00 : f32
    %205 = vector.broadcast %cst_71 : f32 to vector<32x128xf32>
    %206 = arith.divf %205, %204 : vector<32x128xf32>
    %cst_72 = arith.constant dense<0.000000e+00> : vector<32xf32>
    %207 = vector.multi_reduction <add>, %199, %cst_72 [1] : vector<32x128xf32> to vector<32xf32>
    %208 = vector.shape_cast %207 : vector<32xf32> to vector<32x1xf32>
    %cst_73 = arith.constant dense<0.000000e+00> : vector<1xf32>
    %209 = vector.multi_reduction <add>, %208, %cst_73 [0] : vector<32x1xf32> to vector<1xf32>
    %210 = vector.shape_cast %209 : vector<1xf32> to vector<1x1xf32>
    %211 = arith.mulf %206, %12 : vector<32x128xf32>
    %212 = arith.mulf %211, %15 : vector<32x128xf32>
    %cst_74 = arith.constant dense<0.000000e+00> : vector<32xf32>
    %213 = vector.multi_reduction <add>, %212, %cst_74 [1] : vector<32x128xf32> to vector<32xf32>
    %214 = vector.shape_cast %213 : vector<32xf32> to vector<32x1xf32>
    %cst_75 = arith.constant dense<0.000000e+00> : vector<1xf32>
    %215 = vector.multi_reduction <add>, %214, %cst_75 [0] : vector<32x1xf32> to vector<1xf32>
    %216 = vector.shape_cast %215 : vector<1xf32> to vector<1x1xf32>
    %217 = arith.addf %206, %12 : vector<32x128xf32>
    %218 = arith.mulf %217, %15 : vector<32x128xf32>
    %cst_76 = arith.constant dense<0.000000e+00> : vector<32xf32>
    %219 = vector.multi_reduction <add>, %218, %cst_76 [1] : vector<32x128xf32> to vector<32xf32>
    %220 = vector.shape_cast %219 : vector<32xf32> to vector<32x1xf32>
    %cst_77 = arith.constant dense<0.000000e+00> : vector<1xf32>
    %221 = vector.multi_reduction <add>, %220, %cst_77 [0] : vector<32x1xf32> to vector<1xf32>
    %222 = vector.shape_cast %221 : vector<1xf32> to vector<1x1xf32>
    %c0_i32_78 = arith.constant 0 : i32
    %223 = vector.broadcast %c0_i32_78 : i32 to vector<1x128xi32>
    %224 = arith.cmpi eq, %9, %223 : vector<1x128xi32>
    %cst_79 = arith.constant 0.000000e+00 : f32
    %225 = vector.shape_cast %210 : vector<1x1xf32> to vector<1x1xf32>
    %226 = vector.broadcast %225 : vector<1x1xf32> to vector<1x128xf32>
    %227 = vector.broadcast %cst_79 : f32 to vector<1x128xf32>
    %228 = arith.select %224, %226, %227 : vector<1x128xi1>, vector<1x128xf32>
    %c1_i32_80 = arith.constant 1 : i32
    %229 = vector.broadcast %c1_i32_80 : i32 to vector<1x128xi32>
    %230 = arith.cmpi eq, %9, %229 : vector<1x128xi32>
    %cst_81 = arith.constant 0.000000e+00 : f32
    %231 = vector.shape_cast %216 : vector<1x1xf32> to vector<1x1xf32>
    %232 = vector.broadcast %231 : vector<1x1xf32> to vector<1x128xf32>
    %233 = vector.broadcast %cst_81 : f32 to vector<1x128xf32>
    %234 = arith.select %230, %232, %233 : vector<1x128xi1>, vector<1x128xf32>
    %235 = arith.addf %228, %234 : vector<1x128xf32>
    %c2_i32_82 = arith.constant 2 : i32
    %236 = vector.broadcast %c2_i32_82 : i32 to vector<1x128xi32>
    %237 = arith.cmpi eq, %9, %236 : vector<1x128xi32>
    %cst_83 = arith.constant 0.000000e+00 : f32
    %238 = vector.shape_cast %222 : vector<1x1xf32> to vector<1x1xf32>
    %239 = vector.broadcast %238 : vector<1x1xf32> to vector<1x128xf32>
    %240 = vector.broadcast %cst_83 : f32 to vector<1x128xf32>
    %241 = arith.select %237, %239, %240 : vector<1x128xi1>, vector<1x128xf32>
    %242 = arith.addf %235, %241 : vector<1x128xf32>
    %c6_84 = arith.constant 6 : index
    %c0_85 = arith.constant 0 : index
    %243 = vector.load %arg4[%c6_84, %c0_85] : memref<8x128xf32, #tpu.memory_space<vmem>>, vector<1x128xf32>
    tpu.vector_store %arg4[%c6_84, %c0_85], %242 {strides = array<i32>} : memref<8x128xf32, #tpu.memory_space<vmem>>, vector<1x128xf32>,
    %c1 = arith.constant 1 : index
    %c0_86 = arith.constant 0 : index
    %c0_87 = arith.constant 0 : index
    %244 = vector.load %arg2[%c1, %c0_86, %c0_87] : memref<2x32x128xf32, #tpu.memory_space<vmem>>, vector<1x32x128xf32>
    %245 = vector.shape_cast %244 : vector<1x32x128xf32> to vector<32x128xf32>
    %246 = arith.mulf %245, %8 : vector<32x128xf32>
    %c1_88 = arith.constant 1 : index
    %c0_89 = arith.constant 0 : index
    %c0_90 = arith.constant 0 : index
    %247 = vector.load %arg3[%c1_88, %c0_89, %c0_90] : memref<2x32x128xf32, #tpu.memory_space<vmem>>, vector<1x32x128xf32>
    %248 = vector.shape_cast %247 : vector<1x32x128xf32> to vector<32x128xf32>
    %249 = arith.mulf %248, %8 : vector<32x128xf32>
    %c1_91 = arith.constant 1 : index
    %c0_92 = arith.constant 0 : index
    %c0_93 = arith.constant 0 : index
    %250 = vector.load %arg1[%c1_91, %c0_92, %c0_93] : memref<8x32x128xf32, #tpu.memory_space<vmem>>, vector<1x32x128xf32>
    %251 = vector.shape_cast %250 : vector<1x32x128xf32> to vector<32x128xf32>
    %cst_94 = arith.constant 0.000000e+00 : f32
    %252 = vector.broadcast %cst_94 : f32 to vector<32x128xf32>
    %253 = arith.maximumf %251, %252 : vector<32x128xf32>
    %254 = arith.mulf %251, %246 : vector<32x128xf32>
    %255 = arith.subf %253, %254 : vector<32x128xf32>
    %256 = math.absf %251 : vector<32x128xf32>
    %cst_95 = arith.constant 0.000000e+00 : f32
    %257 = vector.broadcast %cst_95 : f32 to vector<32x128xf32>
    %258 = arith.subf %257, %256 : vector<32x128xf32>
    %259 = math.exp %258 : vector<32x128xf32>
    %260 = math.log1p %259 : vector<32x128xf32>
    %261 = arith.addf %255, %260 : vector<32x128xf32>
    %262 = arith.mulf %261, %8 : vector<32x128xf32>
    %cst_96 = arith.constant 0.000000e+00 : f32
    %263 = vector.broadcast %cst_96 : f32 to vector<32x128xf32>
    %264 = arith.subf %263, %251 : vector<32x128xf32>
    %265 = math.exp %264 : vector<32x128xf32>
    %cst_97 = arith.constant 1.000000e+00 : f32
    %266 = vector.broadcast %cst_97 : f32 to vector<32x128xf32>
    %267 = arith.addf %266, %265 : vector<32x128xf32>
    %cst_98 = arith.constant 1.000000e+00 : f32
    %268 = vector.broadcast %cst_98 : f32 to vector<32x128xf32>
    %269 = arith.divf %268, %267 : vector<32x128xf32>
    %cst_99 = arith.constant dense<0.000000e+00> : vector<32xf32>
    %270 = vector.multi_reduction <add>, %262, %cst_99 [1] : vector<32x128xf32> to vector<32xf32>
    %271 = vector.shape_cast %270 : vector<32xf32> to vector<32x1xf32>
    %cst_100 = arith.constant dense<0.000000e+00> : vector<1xf32>
    %272 = vector.multi_reduction <add>, %271, %cst_100 [0] : vector<32x1xf32> to vector<1xf32>
    %273 = vector.shape_cast %272 : vector<1xf32> to vector<1x1xf32>
    %274 = arith.mulf %269, %246 : vector<32x128xf32>
    %275 = arith.mulf %274, %249 : vector<32x128xf32>
    %cst_101 = arith.constant dense<0.000000e+00> : vector<32xf32>
    %276 = vector.multi_reduction <add>, %275, %cst_101 [1] : vector<32x128xf32> to vector<32xf32>
    %277 = vector.shape_cast %276 : vector<32xf32> to vector<32x1xf32>
    %cst_102 = arith.constant dense<0.000000e+00> : vector<1xf32>
    %278 = vector.multi_reduction <add>, %277, %cst_102 [0] : vector<32x1xf32> to vector<1xf32>
    %279 = vector.shape_cast %278 : vector<1xf32> to vector<1x1xf32>
    %280 = arith.addf %269, %246 : vector<32x128xf32>
    %281 = arith.mulf %280, %249 : vector<32x128xf32>
    %cst_103 = arith.constant dense<0.000000e+00> : vector<32xf32>
    %282 = vector.multi_reduction <add>, %281, %cst_103 [1] : vector<32x128xf32> to vector<32xf32>
    %283 = vector.shape_cast %282 : vector<32xf32> to vector<32x1xf32>
    %cst_104 = arith.constant dense<0.000000e+00> : vector<1xf32>
    %284 = vector.multi_reduction <add>, %283, %cst_104 [0] : vector<32x1xf32> to vector<1xf32>
    %285 = vector.shape_cast %284 : vector<1xf32> to vector<1x1xf32>
    %c0_i32_105 = arith.constant 0 : i32
    %286 = vector.broadcast %c0_i32_105 : i32 to vector<1x128xi32>
    %287 = arith.cmpi eq, %9, %286 : vector<1x128xi32>
    %cst_106 = arith.constant 0.000000e+00 : f32
    %288 = vector.shape_cast %273 : vector<1x1xf32> to vector<1x1xf32>
    %289 = vector.broadcast %288 : vector<1x1xf32> to vector<1x128xf32>
    %290 = vector.broadcast %cst_106 : f32 to vector<1x128xf32>
    %291 = arith.select %287, %289, %290 : vector<1x128xi1>, vector<1x128xf32>
    %c1_i32_107 = arith.constant 1 : i32
    %292 = vector.broadcast %c1_i32_107 : i32 to vector<1x128xi32>
    %293 = arith.cmpi eq, %9, %292 : vector<1x128xi32>
    %cst_108 = arith.constant 0.000000e+00 : f32
    %294 = vector.shape_cast %279 : vector<1x1xf32> to vector<1x1xf32>
    %295 = vector.broadcast %294 : vector<1x1xf32> to vector<1x128xf32>
    %296 = vector.broadcast %cst_108 : f32 to vector<1x128xf32>
    %297 = arith.select %293, %295, %296 : vector<1x128xi1>, vector<1x128xf32>
    %298 = arith.addf %291, %297 : vector<1x128xf32>
    %c2_i32_109 = arith.constant 2 : i32
    %299 = vector.broadcast %c2_i32_109 : i32 to vector<1x128xi32>
    %300 = arith.cmpi eq, %9, %299 : vector<1x128xi32>
    %cst_110 = arith.constant 0.000000e+00 : f32
    %301 = vector.shape_cast %285 : vector<1x1xf32> to vector<1x1xf32>
    %302 = vector.broadcast %301 : vector<1x1xf32> to vector<1x128xf32>
    %303 = vector.broadcast %cst_110 : f32 to vector<1x128xf32>
    %304 = arith.select %300, %302, %303 : vector<1x128xi1>, vector<1x128xf32>
    %305 = arith.addf %298, %304 : vector<1x128xf32>
    %c1_111 = arith.constant 1 : index
    %c0_112 = arith.constant 0 : index
    %306 = vector.load %arg4[%c1_111, %c0_112] : memref<8x128xf32, #tpu.memory_space<vmem>>, vector<1x128xf32>
    tpu.vector_store %arg4[%c1_111, %c0_112], %305 {strides = array<i32>} : memref<8x128xf32, #tpu.memory_space<vmem>>, vector<1x128xf32>,
    %c3 = arith.constant 3 : index
    %c0_113 = arith.constant 0 : index
    %c0_114 = arith.constant 0 : index
    %307 = vector.load %arg1[%c3, %c0_113, %c0_114] : memref<8x32x128xf32, #tpu.memory_space<vmem>>, vector<1x32x128xf32>
    %308 = vector.shape_cast %307 : vector<1x32x128xf32> to vector<32x128xf32>
    %cst_115 = arith.constant 0.000000e+00 : f32
    %309 = vector.broadcast %cst_115 : f32 to vector<32x128xf32>
    %310 = arith.maximumf %308, %309 : vector<32x128xf32>
    %311 = arith.mulf %308, %246 : vector<32x128xf32>
    %312 = arith.subf %310, %311 : vector<32x128xf32>
    %313 = math.absf %308 : vector<32x128xf32>
    %cst_116 = arith.constant 0.000000e+00 : f32
    %314 = vector.broadcast %cst_116 : f32 to vector<32x128xf32>
    %315 = arith.subf %314, %313 : vector<32x128xf32>
    %316 = math.exp %315 : vector<32x128xf32>
    %317 = math.log1p %316 : vector<32x128xf32>
    %318 = arith.addf %312, %317 : vector<32x128xf32>
    %319 = arith.mulf %318, %8 : vector<32x128xf32>
    %cst_117 = arith.constant 0.000000e+00 : f32
    %320 = vector.broadcast %cst_117 : f32 to vector<32x128xf32>
    %321 = arith.subf %320, %308 : vector<32x128xf32>
    %322 = math.exp %321 : vector<32x128xf32>
    %cst_118 = arith.constant 1.000000e+00 : f32
    %323 = vector.broadcast %cst_118 : f32 to vector<32x128xf32>
    %324 = arith.addf %323, %322 : vector<32x128xf32>
    %cst_119 = arith.constant 1.000000e+00 : f32
    %325 = vector.broadcast %cst_119 : f32 to vector<32x128xf32>
    %326 = arith.divf %325, %324 : vector<32x128xf32>
    %cst_120 = arith.constant dense<0.000000e+00> : vector<32xf32>
    %327 = vector.multi_reduction <add>, %319, %cst_120 [1] : vector<32x128xf32> to vector<32xf32>
    %328 = vector.shape_cast %327 : vector<32xf32> to vector<32x1xf32>
    %cst_121 = arith.constant dense<0.000000e+00> : vector<1xf32>
    %329 = vector.multi_reduction <add>, %328, %cst_121 [0] : vector<32x1xf32> to vector<1xf32>
    %330 = vector.shape_cast %329 : vector<1xf32> to vector<1x1xf32>
    %331 = arith.mulf %326, %246 : vector<32x128xf32>
    %332 = arith.mulf %331, %249 : vector<32x128xf32>
    %cst_122 = arith.constant dense<0.000000e+00> : vector<32xf32>
    %333 = vector.multi_reduction <add>, %332, %cst_122 [1] : vector<32x128xf32> to vector<32xf32>
    %334 = vector.shape_cast %333 : vector<32xf32> to vector<32x1xf32>
    %cst_123 = arith.constant dense<0.000000e+00> : vector<1xf32>
    %335 = vector.multi_reduction <add>, %334, %cst_123 [0] : vector<32x1xf32> to vector<1xf32>
    %336 = vector.shape_cast %335 : vector<1xf32> to vector<1x1xf32>
    %337 = arith.addf %326, %246 : vector<32x128xf32>
    %338 = arith.mulf %337, %249 : vector<32x128xf32>
    %cst_124 = arith.constant dense<0.000000e+00> : vector<32xf32>
    %339 = vector.multi_reduction <add>, %338, %cst_124 [1] : vector<32x128xf32> to vector<32xf32>
    %340 = vector.shape_cast %339 : vector<32xf32> to vector<32x1xf32>
    %cst_125 = arith.constant dense<0.000000e+00> : vector<1xf32>
    %341 = vector.multi_reduction <add>, %340, %cst_125 [0] : vector<32x1xf32> to vector<1xf32>
    %342 = vector.shape_cast %341 : vector<1xf32> to vector<1x1xf32>
    %c0_i32_126 = arith.constant 0 : i32
    %343 = vector.broadcast %c0_i32_126 : i32 to vector<1x128xi32>
    %344 = arith.cmpi eq, %9, %343 : vector<1x128xi32>
    %cst_127 = arith.constant 0.000000e+00 : f32
    %345 = vector.shape_cast %330 : vector<1x1xf32> to vector<1x1xf32>
    %346 = vector.broadcast %345 : vector<1x1xf32> to vector<1x128xf32>
    %347 = vector.broadcast %cst_127 : f32 to vector<1x128xf32>
    %348 = arith.select %344, %346, %347 : vector<1x128xi1>, vector<1x128xf32>
    %c1_i32_128 = arith.constant 1 : i32
    %349 = vector.broadcast %c1_i32_128 : i32 to vector<1x128xi32>
    %350 = arith.cmpi eq, %9, %349 : vector<1x128xi32>
    %cst_129 = arith.constant 0.000000e+00 : f32
    %351 = vector.shape_cast %336 : vector<1x1xf32> to vector<1x1xf32>
    %352 = vector.broadcast %351 : vector<1x1xf32> to vector<1x128xf32>
    %353 = vector.broadcast %cst_129 : f32 to vector<1x128xf32>
    %354 = arith.select %350, %352, %353 : vector<1x128xi1>, vector<1x128xf32>
    %355 = arith.addf %348, %354 : vector<1x128xf32>
    %c2_i32_130 = arith.constant 2 : i32
    %356 = vector.broadcast %c2_i32_130 : i32 to vector<1x128xi32>
    %357 = arith.cmpi eq, %9, %356 : vector<1x128xi32>
    %cst_131 = arith.constant 0.000000e+00 : f32
    %358 = vector.shape_cast %342 : vector<1x1xf32> to vector<1x1xf32>
    %359 = vector.broadcast %358 : vector<1x1xf32> to vector<1x128xf32>
    %360 = vector.broadcast %cst_131 : f32 to vector<1x128xf32>
    %361 = arith.select %357, %359, %360 : vector<1x128xi1>, vector<1x128xf32>
    %362 = arith.addf %355, %361 : vector<1x128xf32>
    %c3_132 = arith.constant 3 : index
    %c0_133 = arith.constant 0 : index
    %363 = vector.load %arg4[%c3_132, %c0_133] : memref<8x128xf32, #tpu.memory_space<vmem>>, vector<1x128xf32>
    tpu.vector_store %arg4[%c3_132, %c0_133], %362 {strides = array<i32>} : memref<8x128xf32, #tpu.memory_space<vmem>>, vector<1x128xf32>,
    %c5 = arith.constant 5 : index
    %c0_134 = arith.constant 0 : index
    %c0_135 = arith.constant 0 : index
    %364 = vector.load %arg1[%c5, %c0_134, %c0_135] : memref<8x32x128xf32, #tpu.memory_space<vmem>>, vector<1x32x128xf32>
    %365 = vector.shape_cast %364 : vector<1x32x128xf32> to vector<32x128xf32>
    %cst_136 = arith.constant 0.000000e+00 : f32
    %366 = vector.broadcast %cst_136 : f32 to vector<32x128xf32>
    %367 = arith.maximumf %365, %366 : vector<32x128xf32>
    %368 = arith.mulf %365, %246 : vector<32x128xf32>
    %369 = arith.subf %367, %368 : vector<32x128xf32>
    %370 = math.absf %365 : vector<32x128xf32>
    %cst_137 = arith.constant 0.000000e+00 : f32
    %371 = vector.broadcast %cst_137 : f32 to vector<32x128xf32>
    %372 = arith.subf %371, %370 : vector<32x128xf32>
    %373 = math.exp %372 : vector<32x128xf32>
    %374 = math.log1p %373 : vector<32x128xf32>
    %375 = arith.addf %369, %374 : vector<32x128xf32>
    %376 = arith.mulf %375, %8 : vector<32x128xf32>
    %cst_138 = arith.constant 0.000000e+00 : f32
    %377 = vector.broadcast %cst_138 : f32 to vector<32x128xf32>
    %378 = arith.subf %377, %365 : vector<32x128xf32>
    %379 = math.exp %378 : vector<32x128xf32>
    %cst_139 = arith.constant 1.000000e+00 : f32
    %380 = vector.broadcast %cst_139 : f32 to vector<32x128xf32>
    %381 = arith.addf %380, %379 : vector<32x128xf32>
    %cst_140 = arith.constant 1.000000e+00 : f32
    %382 = vector.broadcast %cst_140 : f32 to vector<32x128xf32>
    %383 = arith.divf %382, %381 : vector<32x128xf32>
    %cst_141 = arith.constant dense<0.000000e+00> : vector<32xf32>
    %384 = vector.multi_reduction <add>, %376, %cst_141 [1] : vector<32x128xf32> to vector<32xf32>
    %385 = vector.shape_cast %384 : vector<32xf32> to vector<32x1xf32>
    %cst_142 = arith.constant dense<0.000000e+00> : vector<1xf32>
    %386 = vector.multi_reduction <add>, %385, %cst_142 [0] : vector<32x1xf32> to vector<1xf32>
    %387 = vector.shape_cast %386 : vector<1xf32> to vector<1x1xf32>
    %388 = arith.mulf %383, %246 : vector<32x128xf32>
    %389 = arith.mulf %388, %249 : vector<32x128xf32>
    %cst_143 = arith.constant dense<0.000000e+00> : vector<32xf32>
    %390 = vector.multi_reduction <add>, %389, %cst_143 [1] : vector<32x128xf32> to vector<32xf32>
    %391 = vector.shape_cast %390 : vector<32xf32> to vector<32x1xf32>
    %cst_144 = arith.constant dense<0.000000e+00> : vector<1xf32>
    %392 = vector.multi_reduction <add>, %391, %cst_144 [0] : vector<32x1xf32> to vector<1xf32>
    %393 = vector.shape_cast %392 : vector<1xf32> to vector<1x1xf32>
    %394 = arith.addf %383, %246 : vector<32x128xf32>
    %395 = arith.mulf %394, %249 : vector<32x128xf32>
    %cst_145 = arith.constant dense<0.000000e+00> : vector<32xf32>
    %396 = vector.multi_reduction <add>, %395, %cst_145 [1] : vector<32x128xf32> to vector<32xf32>
    %397 = vector.shape_cast %396 : vector<32xf32> to vector<32x1xf32>
    %cst_146 = arith.constant dense<0.000000e+00> : vector<1xf32>
    %398 = vector.multi_reduction <add>, %397, %cst_146 [0] : vector<32x1xf32> to vector<1xf32>
    %399 = vector.shape_cast %398 : vector<1xf32> to vector<1x1xf32>
    %c0_i32_147 = arith.constant 0 : i32
    %400 = vector.broadcast %c0_i32_147 : i32 to vector<1x128xi32>
    %401 = arith.cmpi eq, %9, %400 : vector<1x128xi32>
    %cst_148 = arith.constant 0.000000e+00 : f32
    %402 = vector.shape_cast %387 : vector<1x1xf32> to vector<1x1xf32>
    %403 = vector.broadcast %402 : vector<1x1xf32> to vector<1x128xf32>
    %404 = vector.broadcast %cst_148 : f32 to vector<1x128xf32>
    %405 = arith.select %401, %403, %404 : vector<1x128xi1>, vector<1x128xf32>
    %c1_i32_149 = arith.constant 1 : i32
    %406 = vector.broadcast %c1_i32_149 : i32 to vector<1x128xi32>
    %407 = arith.cmpi eq, %9, %406 : vector<1x128xi32>
    %cst_150 = arith.constant 0.000000e+00 : f32
    %408 = vector.shape_cast %393 : vector<1x1xf32> to vector<1x1xf32>
    %409 = vector.broadcast %408 : vector<1x1xf32> to vector<1x128xf32>
    %410 = vector.broadcast %cst_150 : f32 to vector<1x128xf32>
    %411 = arith.select %407, %409, %410 : vector<1x128xi1>, vector<1x128xf32>
    %412 = arith.addf %405, %411 : vector<1x128xf32>
    %c2_i32_151 = arith.constant 2 : i32
    %413 = vector.broadcast %c2_i32_151 : i32 to vector<1x128xi32>
    %414 = arith.cmpi eq, %9, %413 : vector<1x128xi32>
    %cst_152 = arith.constant 0.000000e+00 : f32
    %415 = vector.shape_cast %399 : vector<1x1xf32> to vector<1x1xf32>
    %416 = vector.broadcast %415 : vector<1x1xf32> to vector<1x128xf32>
    %417 = vector.broadcast %cst_152 : f32 to vector<1x128xf32>
    %418 = arith.select %414, %416, %417 : vector<1x128xi1>, vector<1x128xf32>
    %419 = arith.addf %412, %418 : vector<1x128xf32>
    %c5_153 = arith.constant 5 : index
    %c0_154 = arith.constant 0 : index
    %420 = vector.load %arg4[%c5_153, %c0_154] : memref<8x128xf32, #tpu.memory_space<vmem>>, vector<1x128xf32>
    tpu.vector_store %arg4[%c5_153, %c0_154], %419 {strides = array<i32>} : memref<8x128xf32, #tpu.memory_space<vmem>>, vector<1x128xf32>,
    %c7 = arith.constant 7 : index
    %c0_155 = arith.constant 0 : index
    %c0_156 = arith.constant 0 : index
    %421 = vector.load %arg1[%c7, %c0_155, %c0_156] : memref<8x32x128xf32, #tpu.memory_space<vmem>>, vector<1x32x128xf32>
    %422 = vector.shape_cast %421 : vector<1x32x128xf32> to vector<32x128xf32>
    %cst_157 = arith.constant 0.000000e+00 : f32
    %423 = vector.broadcast %cst_157 : f32 to vector<32x128xf32>
    %424 = arith.maximumf %422, %423 : vector<32x128xf32>
    %425 = arith.mulf %422, %246 : vector<32x128xf32>
    %426 = arith.subf %424, %425 : vector<32x128xf32>
    %427 = math.absf %422 : vector<32x128xf32>
    %cst_158 = arith.constant 0.000000e+00 : f32
    %428 = vector.broadcast %cst_158 : f32 to vector<32x128xf32>
    %429 = arith.subf %428, %427 : vector<32x128xf32>
    %430 = math.exp %429 : vector<32x128xf32>
    %431 = math.log1p %430 : vector<32x128xf32>
    %432 = arith.addf %426, %431 : vector<32x128xf32>
    %433 = arith.mulf %432, %8 : vector<32x128xf32>
    %cst_159 = arith.constant 0.000000e+00 : f32
    %434 = vector.broadcast %cst_159 : f32 to vector<32x128xf32>
    %435 = arith.subf %434, %422 : vector<32x128xf32>
    %436 = math.exp %435 : vector<32x128xf32>
    %cst_160 = arith.constant 1.000000e+00 : f32
    %437 = vector.broadcast %cst_160 : f32 to vector<32x128xf32>
    %438 = arith.addf %437, %436 : vector<32x128xf32>
    %cst_161 = arith.constant 1.000000e+00 : f32
    %439 = vector.broadcast %cst_161 : f32 to vector<32x128xf32>
    %440 = arith.divf %439, %438 : vector<32x128xf32>
    %cst_162 = arith.constant dense<0.000000e+00> : vector<32xf32>
    %441 = vector.multi_reduction <add>, %433, %cst_162 [1] : vector<32x128xf32> to vector<32xf32>
    %442 = vector.shape_cast %441 : vector<32xf32> to vector<32x1xf32>
    %cst_163 = arith.constant dense<0.000000e+00> : vector<1xf32>
    %443 = vector.multi_reduction <add>, %442, %cst_163 [0] : vector<32x1xf32> to vector<1xf32>
    %444 = vector.shape_cast %443 : vector<1xf32> to vector<1x1xf32>
    %445 = arith.mulf %440, %246 : vector<32x128xf32>
    %446 = arith.mulf %445, %249 : vector<32x128xf32>
    %cst_164 = arith.constant dense<0.000000e+00> : vector<32xf32>
    %447 = vector.multi_reduction <add>, %446, %cst_164 [1] : vector<32x128xf32> to vector<32xf32>
    %448 = vector.shape_cast %447 : vector<32xf32> to vector<32x1xf32>
    %cst_165 = arith.constant dense<0.000000e+00> : vector<1xf32>
    %449 = vector.multi_reduction <add>, %448, %cst_165 [0] : vector<32x1xf32> to vector<1xf32>
    %450 = vector.shape_cast %449 : vector<1xf32> to vector<1x1xf32>
    %451 = arith.addf %440, %246 : vector<32x128xf32>
    %452 = arith.mulf %451, %249 : vector<32x128xf32>
    %cst_166 = arith.constant dense<0.000000e+00> : vector<32xf32>
    %453 = vector.multi_reduction <add>, %452, %cst_166 [1] : vector<32x128xf32> to vector<32xf32>
    %454 = vector.shape_cast %453 : vector<32xf32> to vector<32x1xf32>
    %cst_167 = arith.constant dense<0.000000e+00> : vector<1xf32>
    %455 = vector.multi_reduction <add>, %454, %cst_167 [0] : vector<32x1xf32> to vector<1xf32>
    %456 = vector.shape_cast %455 : vector<1xf32> to vector<1x1xf32>
    %c0_i32_168 = arith.constant 0 : i32
    %457 = vector.broadcast %c0_i32_168 : i32 to vector<1x128xi32>
    %458 = arith.cmpi eq, %9, %457 : vector<1x128xi32>
    %cst_169 = arith.constant 0.000000e+00 : f32
    %459 = vector.shape_cast %444 : vector<1x1xf32> to vector<1x1xf32>
    %460 = vector.broadcast %459 : vector<1x1xf32> to vector<1x128xf32>
    %461 = vector.broadcast %cst_169 : f32 to vector<1x128xf32>
    %462 = arith.select %458, %460, %461 : vector<1x128xi1>, vector<1x128xf32>
    %c1_i32_170 = arith.constant 1 : i32
    %463 = vector.broadcast %c1_i32_170 : i32 to vector<1x128xi32>
    %464 = arith.cmpi eq, %9, %463 : vector<1x128xi32>
    %cst_171 = arith.constant 0.000000e+00 : f32
    %465 = vector.shape_cast %450 : vector<1x1xf32> to vector<1x1xf32>
    %466 = vector.broadcast %465 : vector<1x1xf32> to vector<1x128xf32>
    %467 = vector.broadcast %cst_171 : f32 to vector<1x128xf32>
    %468 = arith.select %464, %466, %467 : vector<1x128xi1>, vector<1x128xf32>
    %469 = arith.addf %462, %468 : vector<1x128xf32>
    %c2_i32_172 = arith.constant 2 : i32
    %470 = vector.broadcast %c2_i32_172 : i32 to vector<1x128xi32>
    %471 = arith.cmpi eq, %9, %470 : vector<1x128xi32>
    %cst_173 = arith.constant 0.000000e+00 : f32
    %472 = vector.shape_cast %456 : vector<1x1xf32> to vector<1x1xf32>
    %473 = vector.broadcast %472 : vector<1x1xf32> to vector<1x128xf32>
    %474 = vector.broadcast %cst_173 : f32 to vector<1x128xf32>
    %475 = arith.select %471, %473, %474 : vector<1x128xi1>, vector<1x128xf32>
    %476 = arith.addf %469, %475 : vector<1x128xf32>
    %c7_174 = arith.constant 7 : index
    %c0_175 = arith.constant 0 : index
    %477 = vector.load %arg4[%c7_174, %c0_175] : memref<8x128xf32, #tpu.memory_space<vmem>>, vector<1x128xf32>
    tpu.vector_store %arg4[%c7_174, %c0_175], %476 {strides = array<i32>} : memref<8x128xf32, #tpu.memory_space<vmem>>, vector<1x128xf32>,
    return
  }
  func.func @transform_0(%arg0: i32) -> (i32, i32, i32) {
    %c0_i32 = arith.constant 0 : i32
    %c0_i32_0 = arith.constant 0 : i32
    %c0_i32_1 = arith.constant 0 : i32
    %c0_i32_2 = arith.constant 0 : i32
    return %c0_i32, %c0_i32_0, %c0_i32_1 : i32, i32, i32
  }
  func.func @transform_1(%arg0: i32) -> (i32, i32, i32) {
    %c0_i32 = arith.constant 0 : i32
    %c0_i32_0 = arith.constant 0 : i32
    %c0_i32_1 = arith.constant 0 : i32
    %c0_i32_2 = arith.constant 0 : i32
    return %c0_i32, %c0_i32_0, %c0_i32_1 : i32, i32, i32
  }
  func.func @transform_2(%arg0: i32) -> (i32, i32, i32) {
    %c0_i32 = arith.constant 0 : i32
    %c0_i32_0 = arith.constant 0 : i32
    %c0_i32_1 = arith.constant 0 : i32
    %c0_i32_2 = arith.constant 0 : i32
    return %c0_i32, %c0_i32_0, %c0_i32_1 : i32, i32, i32
  }
  func.func @transform_3(%arg0: i32) -> (i32, i32) {
    %c0_i32 = arith.constant 0 : i32
    %c0_i32_0 = arith.constant 0 : i32
    %c0_i32_1 = arith.constant 0 : i32
    return %c0_i32, %c0_i32_0 : i32, i32
  }
}

</mosaic_0001>

<llo_original>
// kernel: uacanet_forward.10
$region0: #{uacanet_forward.10}
  #allocation0 [shape = 'u32[]', space=smem, size = 0x4, offset = 0x4, fixed_abs, tag = 'smem constant byte address 0x4 - core index']
  #allocation1 [shape = 'u32[144,128]{1,0:T(1,128)}', space=vmem, size = 0x12000, scoped, tag = 'internal scratch']
  %s0 = inlined_call_operand.vmem [shape: bf16[2048,147], index: 0, kind: input, shape index: {}]
  %s1 = inlined_call_operand.vmem [shape: bf16[147,128], index: 1, kind: input, shape index: {}]
  %s2 = inlined_call_operand.vmem [shape: f32[1,128], index: 2, kind: input, shape index: {}]
  %s3 = inlined_call_operand.vmem [shape: bf16[2048,128], index: 3, kind: output, shape index: {}]
  %s4 = sld [smem:[#allocation0]]
  $region45: #{uacanet_forward.10} parent=0
    _
  %s6 = ssub.s32 1, %s4
  %s7 = scalar_select 0, %s6, %s4
  loop: start=0, step=1, limit=6
  $region2: #{uacanet_forward.10} parent=0 // loop_pre_header
    _
  $region3: #{uacanet_forward.10} parent=0 // loop_header
    %s9 = sphi 0, %s13
    %p10 = scmp.ge.s32.totalorder %s9, 6
    %s16 = sphi 0, %s28
    %s17 = sphi 0, %s24
    %s18 = sphi 0, %s16
    %s19 = sphi 0, %s17
    %s20 = sphi 0, %s18
    %s21 = sphi 0, %s19
    %s31 = sphi 0, %s33
    %s34 = sphi 0, %s31
    %s35 = sphi 0, %s34
    %s51 = sphi 0, %s35
    %s57 = sphi 0, %s59
    %s60 = sphi 0, %s57
    %s61 = sphi 0, %s60
    %s77 = sphi 0, %s61
    %s83 = sphi 0, %s85
    %s86 = sphi 0, %s83
    %s87 = sphi 0, %s86
    %s103 = sphi 0, %s87
    %s111 = sphi 0, %s113
    %s114 = sphi 0, %s111
    %s115 = sphi 0, %s114
    %s131 = sphi 0, %s115
  $region4: #{uacanet_forward.10} parent=0 // loop_header_branch
    %12 = sbr.rel (%p10) target = $region8
  $region5: #{uacanet_forward.10} parent=0 // loop_body
    %s14 = ssub.s32 %s9, 1
    %s15 = ssub.s32 %s9, 2
    %s22 = sadd.s32 1, %s17
    %p23 = scmp.ge.s32.totalorder %s22, 1
    %s24 = scalar_select %p23, 0, %s22
    %s25 = sadd.s32 1, %s16
    %s26 = scalar_select %p23, %s25, %s16
    %p27 = scmp.ge.s32.totalorder %s26, 4
    %s28 = scalar_select %p27, 0, %s26
    %s29 = ssub.s32 %s16, %s28
    %p30 = scmp.eq.s32.totalorder %s29, 0
    %s32 = sadd.s32 %s31, 1
    %s33 = scalar_select %p30, %s31, %s32
    %p36 = pneg %p30
    %p37 = scmp.eq.s32.totalorder %s9, 3
    %p38 = por %p36, %p37
    %p39 = scmp.ne.s32.totalorder %s31, %s34
    %p40 = scmp.eq.s32.totalorder %s9, 0
    %p41 = por %p39, %p40
    %p42 = scmp.ne.s32.totalorder %s31, %s34
    %p43 = scmp.eq.s32.totalorder %s14, 3
    %p44 = por %p42, %p43
    %p45 = scmp.ne.s32.totalorder %s34, %s35
    %p46 = scmp.eq.s32.totalorder %s14, 0
    %p47 = por %p45, %p46
    %p48 = scmp.ne.s32.totalorder %s34, %s35
    %p49 = scmp.eq.s32.totalorder %s15, 3
    %p50 = por %p48, %p49
    %p52 = scmp.ne.s32.totalorder %s35, %s51
    %p53 = scmp.eq.s32.totalorder %s15, 0
    %p54 = por %p52, %p53
    %s55 = ssub.s32 %s17, %s24
    %p56 = scmp.eq.s32.totalorder %s55, 0
    %s58 = sadd.s32 %s57, 1
    %s59 = scalar_select %p56, %s57, %s58
    %p62 = pneg %p56
    %p63 = scmp.eq.s32.totalorder %s9, 3
    %p64 = por %p62, %p63
    %p65 = scmp.ne.s32.totalorder %s57, %s60
    %p66 = scmp.eq.s32.totalorder %s9, 0
    %p67 = por %p65, %p66
    %p68 = scmp.ne.s32.totalorder %s57, %s60
    %p69 = scmp.eq.s32.totalorder %s14, 3
    %p70 = por %p68, %p69
    %p71 = scmp.ne.s32.totalorder %s60, %s61
    %p72 = scmp.eq.s32.totalorder %s14, 0
    %p73 = por %p71, %p72
    %p74 = scmp.ne.s32.totalorder %s60, %s61
    %p75 = scmp.eq.s32.totalorder %s15, 3
    %p76 = por %p74, %p75
    %p78 = scmp.ne.s32.totalorder %s61, %s77
    %p79 = scmp.eq.s32.totalorder %s15, 0
    %p80 = por %p78, %p79
    %s81 = ssub.s32 %s17, %s24
    %p82 = scmp.eq.s32.totalorder %s81, 0
    %s84 = sadd.s32 %s83, 1
    %s85 = scalar_select %p82, %s83, %s84
    %p88 = pneg %p82
    %p89 = scmp.eq.s32.totalorder %s9, 3
    %p90 = por %p88, %p89
    %p91 = scmp.ne.s32.totalorder %s83, %s86
    %p92 = scmp.eq.s32.totalorder %s9, 0
    %p93 = por %p91, %p92
    %p94 = scmp.ne.s32.totalorder %s83, %s86
    %p95 = scmp.eq.s32.totalorder %s14, 3
    %p96 = por %p94, %p95
    %p97 = scmp.ne.s32.totalorder %s86, %s87
    %p98 = scmp.eq.s32.totalorder %s14, 0
    %p99 = por %p97, %p98
    %p100 = scmp.ne.s32.totalorder %s86, %s87
    %p101 = scmp.eq.s32.totalorder %s15, 3
    %p102 = por %p100, %p101
    %p104 = scmp.ne.s32.totalorder %s87, %s103
    %p105 = scmp.eq.s32.totalorder %s15, 0
    %p106 = por %p104, %p105
    %s107 = ssub.s32 %s16, %s28
    %s108 = ssub.s32 %s17, %s24
    %s109 = sor.u32 %s107, %s108
    %p110 = scmp.eq.s32.totalorder %s109, 0
    %s112 = sadd.s32 %s111, 1
    %s113 = scalar_select %p110, %s111, %s112
    %p116 = pneg %p110
    %p117 = scmp.eq.s32.totalorder %s9, 3
    %p118 = por %p116, %p117
    %p119 = scmp.ne.s32.totalorder %s111, %s114
    %p120 = scmp.eq.s32.totalorder %s9, 0
    %p121 = por %p119, %p120
    %p122 = scmp.ne.s32.totalorder %s111, %s114
    %p123 = scmp.eq.s32.totalorder %s14, 3
    %p124 = por %p122, %p123
    %p125 = scmp.ne.s32.totalorder %s114, %s115
    %p126 = scmp.eq.s32.totalorder %s14, 0
    %p127 = por %p125, %p126
    %p128 = scmp.ne.s32.totalorder %s114, %s115
    %p129 = scmp.eq.s32.totalorder %s15, 3
    %p130 = por %p128, %p129
    %p132 = scmp.ne.s32.totalorder %s115, %s131
    %p133 = scmp.eq.s32.totalorder %s15, 0
    %p134 = por %p132, %p133
    %p135 = scmp.le.s32.totalorder 1, %s9
    %p136 = scmp.lt.s32.totalorder %s9, 5
    %p137 = pnand %p135, %p136
    %p138 = pneg %p137
    // Predicated region
    $region9: #{uacanet_forward.10} parent=5 // pred_check
      _
    $region10: #{uacanet_forward.10} parent=5 // pred_check_branch
      %140 = sbr.rel (%p137) target = $region12
    $region11: #{uacanet_forward.10} parent=5 // pred_region
      %s141 = ssub.s32 %s9, 1
      // Predicated region
      $region13: #{uacanet_forward.10} parent=11 // pred_check
        %p142 = pneg %p73
      $region14: #{uacanet_forward.10} parent=11 // pred_check_branch
        %144 = sbr.rel (%p142) target = $region16
      $region15: #{uacanet_forward.10} parent=11 // pred_region
        %p145 = scmp.lt.s32.totalorder %s19, 0
        %s146 = scalar_select %p145, %s19, 0
        %s147 = smul.addr %s146, 4
        %s148 = scalar_lea.vmem %s1, %s147
      $region16: #{uacanet_forward.10} parent=11 // pred_fallthru
        _
      // Predicated region
      $region17: #{uacanet_forward.10} parent=11 // pred_check
        %p149 = pneg %p99
      $region18: #{uacanet_forward.10} parent=11 // pred_check_branch
        %151 = sbr.rel (%p149) target = $region20
      $region19: #{uacanet_forward.10} parent=11 // pred_region
        %p152 = scmp.lt.s32.totalorder %s19, 0
        %s153 = scalar_select %p152, %s19, 0
        %s154 = scalar_lea.vmem %s2, %s153
      $region20: #{uacanet_forward.10} parent=11 // pred_fallthru
        _
    $region12: #{uacanet_forward.10} parent=5 // pred_fallthru
      _
    %p155 = scmp.lt.s32.totalorder %s9, 4
    // Predicated region
    $region21: #{uacanet_forward.10} parent=5 // pred_check
      %p156 = pneg %p155
    $region22: #{uacanet_forward.10} parent=5 // pred_check_branch
      %158 = sbr.rel (%p156) target = $region24
    $region23: #{uacanet_forward.10} parent=5 // pred_region
      // Predicated region
      $region25: #{uacanet_forward.10} parent=23 // pred_check
        %p159 = pneg %p41
      $region26: #{uacanet_forward.10} parent=23 // pred_check_branch
        %161 = sbr.rel (%p159) target = $region28
      $region27: #{uacanet_forward.10} parent=23 // pred_region
        %s162 = smul.u32 64, %s16
        %p163 = scmp.lt.s32.totalorder %s162, 255
        %s164 = scalar_select %p163, %s162, 255
        %s165 = smul.addr %s164, 2
        %s166 = smul.addr %s165, 4
        %s167 = scalar_lea.vmem %s0, %s166
        %s168 = smul.u32 64, %s16
      $region28: #{uacanet_forward.10} parent=23 // pred_fallthru
        _
    $region24: #{uacanet_forward.10} parent=5 // pred_fallthru
      _
    %p169 = scmp.le.s32.totalorder 1, %s9
    %p170 = scmp.lt.s32.totalorder %s9, 5
    %p171 = pnand %p169, %p170
    %p172 = pneg %p171
    // Predicated region
    $region29: #{uacanet_forward.10} parent=5 // pred_check
      _
    $region30: #{uacanet_forward.10} parent=5 // pred_check_branch
      %174 = sbr.rel (%p171) target = $region32
    $region31: #{uacanet_forward.10} parent=5 // pred_region
      %s175 = ssub.s32 %s9, 1
      %s176 = smul.u32 64, %s18
      %p177 = scmp.lt.s32.totalorder %s176, 255
      %s178 = scalar_select %p177, %s176, 255
      %s179 = smul.addr %s178, 2
      %s180 = smul.addr %s179, 4
      %s181 = scalar_lea.vmem %s0, %s180
      %p182 = pneg %p47
      %p183 = pneg %p44
      %p184 = scmp.lt.s32.totalorder %s19, 0
      %s185 = scalar_select %p184, %s19, 0
      %s186 = smul.addr %s185, 4
      %s187 = scalar_lea.vmem %s1, %s186
      %p188 = pneg %p73
      %p189 = pneg %p70
      %p190 = scmp.lt.s32.totalorder %s19, 0
      %s191 = scalar_select %p190, %s19, 0
      %s192 = scalar_lea.vmem %s2, %s191
      %p193 = pneg %p99
      %p194 = pneg %p96
      %p195 = pneg %p127
      %p196 = pneg %p124
      %s197 = smul.u32 64, %s18
      %p198 = scmp.lt.s32.totalorder %s197, 255
      %s199 = scalar_select %p198, %s197, 255
      %p200 = scmp.lt.s32.totalorder %s19, 0
      %s201 = scalar_select %p200, %s19, 0
      %s202 = sadd.s32 %s201, %s199
      %s203 = smul.addr %s202, 4
      %s204 = scalar_lea.vmem %s3, %s203
      %s205 = smul.u32 64, %s18
      %p206 = scmp.lt.s32.totalorder %s205, 255
      %s207 = scalar_select %p206, %s205, 255
      %s208 = smul.addr %s207, 2
      %s209 = smul.addr %s208, 4
      %s210 = scalar_lea.vmem %s0, %s209
      %s211 = smul.u32 64, %s18
      %p212 = scmp.lt.s32.totalorder %s19, 0
      %s213 = scalar_select %p212, %s19, 0
      %s214 = smul.addr %s213, 4
      %s215 = scalar_lea.vmem %s1, %s214
      %p216 = scmp.lt.s32.totalorder %s19, 0
      %s217 = scalar_select %p216, %s19, 0
      %s218 = scalar_lea.vmem %s2, %s217
      %s219 = smul.u32 64, %s18
      %p220 = scmp.lt.s32.totalorder %s219, 255
      %s221 = scalar_select %p220, %s219, 255
      %p222 = scmp.lt.s32.totalorder %s19, 0
      %s223 = scalar_select %p222, %s19, 0
      %s224 = sadd.s32 %s223, %s221
      %s225 = smul.addr %s224, 4
      %s226 = scalar_lea.vmem %s3, %s225
      %s227 = smul.u32 64, %s18
      %v229 = vld [vmem:[%s210] sm:$0xff]
      %v230 = vld [vmem:[%s210 + $0x8] sm:$0xff]
      %v231 = vld [vmem:[%s210 + $0x10] sm:$0xff]
      %v232 = vld [vmem:[%s210 + $0x18] sm:$0xff]
      %v233 = vld [vmem:[%s210 + $0x20] sm:$0xff]
      %v234 = vld [vmem:[%s210 + $0x28] sm:$0xff]
      %v235 = vld [vmem:[%s210 + $0x30] sm:$0xff]
      %v236 = vld [vmem:[%s210 + $0x38] sm:$0xff]
      %v237 = vld [vmem:[%s210 + $0x40] sm:$0xff]
      %v238 = vld [vmem:[%s210 + $0x48] sm:$0xff]
      %v239 = vld [vmem:[%s210 + $0x50] sm:$0xff]
      %v240 = vld [vmem:[%s210 + $0x58] sm:$0xff]
      %v241 = vld [vmem:[%s210 + $0x60] sm:$0xff]
      %v242 = vld [vmem:[%s210 + $0x68] sm:$0xff]
      %v243 = vld [vmem:[%s210 + $0x70] sm:$0xff]
      %v244 = vld [vmem:[%s210 + $0x78] sm:$0xff]
      %v245 = vld [vmem:[%s210 + $0x80] sm:$0xff]
      %v246 = vld [vmem:[%s210 + $0x88] sm:$0xff]
      %v247 = vld [vmem:[%s210 + $0x90] sm:$0xff]
      %v248 = vld [vmem:[%s210 + $0x98] sm:$0xff]
      %v249 = vld [vmem:[%s210 + $0xa0] sm:$0xff]
      %v250 = vld [vmem:[%s210 + $0xa8] sm:$0xff]
      %v251 = vld [vmem:[%s210 + $0xb0] sm:$0xff]
      %v252 = vld [vmem:[%s210 + $0xb8] sm:$0xff]
      %v253 = vld [vmem:[%s210 + $0xc0] sm:$0xff]
      %v254 = vld [vmem:[%s210 + $0xc8] sm:$0xff]
      %v255 = vld [vmem:[%s210 + $0xd0] sm:$0xff]
      %v256 = vld [vmem:[%s210 + $0xd8] sm:$0xff]
      %v257 = vld [vmem:[%s210 + $0xe0] sm:$0xff]
      %v258 = vld [vmem:[%s210 + $0xe8] sm:$0xff]
      %v259 = vld [vmem:[%s210 + $0xf0] sm:$0xff]
      %v260 = vld [vmem:[%s210 + $0xf8] sm:$0xff]
      %v261 = vld [vmem:[%s210 + $0x100] sm:$0xff]
      %v262 = vld [vmem:[%s210 + $0x108] sm:$0xff]
      %v263 = vld [vmem:[%s210 + $0x110] sm:$0xff]
      %v264 = vld [vmem:[%s210 + $0x118] sm:$0xff]
      %v265 = vld [vmem:[%s210 + $0x120] sm:$0xff]
      %v266 = vld [vmem:[%s210 + $0x128] sm:$0xff]
      %v267 = vld [vmem:[%s210 + $0x130] sm:$0xff]
      %v268 = vld [vmem:[%s210 + $0x138] sm:$0xff]
      %v269 = vld [vmem:[%s210 + $0x140] sm:$0xff]
      %v270 = vld [vmem:[%s210 + $0x148] sm:$0xff]
      %v271 = vld [vmem:[%s210 + $0x150] sm:$0xff]
      %v272 = vld [vmem:[%s210 + $0x158] sm:$0xff]
      %v273 = vld [vmem:[%s210 + $0x160] sm:$0xff]
      %v274 = vld [vmem:[%s210 + $0x168] sm:$0xff]
      %v275 = vld [vmem:[%s210 + $0x170] sm:$0xff]
      %v276 = vld [vmem:[%s210 + $0x178] sm:$0xff]
      %v277 = vld [vmem:[%s210 + $0x180] sm:$0xff]
      %v278 = vld [vmem:[%s210 + $0x188] sm:$0xff]
      %v279 = vld [vmem:[%s210 + $0x190] sm:$0xff]
      %v280 = vld [vmem:[%s210 + $0x198] sm:$0xff]
      %v281 = vld [vmem:[%s210 + $0x1a0] sm:$0xff]
      %v282 = vld [vmem:[%s210 + $0x1a8] sm:$0xff]
      %v283 = vld [vmem:[%s210 + $0x1b0] sm:$0xff]
      %v284 = vld [vmem:[%s210 + $0x1b8] sm:$0xff]
      %v285 = vld [vmem:[%s210 + $0x1c0] sm:$0xff]
      %v286 = vld [vmem:[%s210 + $0x1c8] sm:$0xff]
      %v287 = vld [vmem:[%s210 + $0x1d0] sm:$0xff]
      %v288 = vld [vmem:[%s210 + $0x1d8] sm:$0xff]
      %v289 = vld [vmem:[%s210 + $0x1e0] sm:$0xff]
      %v290 = vld [vmem:[%s210 + $0x1e8] sm:$0xff]
      %v291 = vld [vmem:[%s210 + $0x1f0] sm:$0xff]
      %v292 = vld [vmem:[%s210 + $0x1f8] sm:$0xff]
      %v293 = vld [vmem:[%s215] sm:$0xf]
      %v294 = vld [vmem:[%s215 + $0x4] sm:$0xf]
      %v295 = vld [vmem:[%s215 + $0x8] sm:$0xf]
      %v296 = vld [vmem:[%s215 + $0xc] sm:$0xf]
      %v297 = vld [vmem:[%s215 + $0x10] sm:$0xf]
      %v298 = vld [vmem:[%s215 + $0x14] sm:$0xf]
      %v299 = vld [vmem:[%s215 + $0x18] sm:$0xf]
      %v300 = vld [vmem:[%s215 + $0x1c] sm:$0xf]
      %v301 = vld [vmem:[%s215 + $0x20] sm:$0xf]
      %v302 = vld [vmem:[%s215 + $0x24] sm:$0xf]
      %v303 = vld [vmem:[%s215 + $0x28] sm:$0xf]
      %v304 = vld [vmem:[%s215 + $0x2c] sm:$0xf]
      %v305 = vld [vmem:[%s215 + $0x30] sm:$0xf]
      %v306 = vld [vmem:[%s215 + $0x34] sm:$0xf]
      %v307 = vld [vmem:[%s215 + $0x38] sm:$0xf]
      %v308 = vld [vmem:[%s215 + $0x3c] sm:$0xf]
      %v309 = vld [vmem:[%s215 + $0x40] sm:$0xf]
      %v310 = vld [vmem:[%s215 + $0x44] sm:$0xf]
      %v311 = vld [vmem:[%s215 + $0x48] sm:$0x3]
      %v312 = vld [vmem:[%s218] sm:$0x1]
      %v314 = vlaneseq
      %v315 = vshrl.u32 %v314, 7
      %v316 = vsub.s32 0, %v315
      %v317 = vrot.slane %v312, %v316
      %v383 = vunpack.c.l.b16 %v229
      %v384 = vunpack.c.h.b16 %v229
      %v385 = vunpack.c.l.b16 %v230
      %v386 = vunpack.c.h.b16 %v230
      %v387 = vunpack.c.l.b16 %v231
      %v388 = vunpack.c.h.b16 %v231
      %v389 = vunpack.c.l.b16 %v232
      %v390 = vunpack.c.h.b16 %v232
      %v391 = vunpack.c.l.b16 %v233
      %v392 = vunpack.c.h.b16 %v233
      %v393 = vunpack.c.l.b16 %v234
      %v394 = vunpack.c.h.b16 %v234
      %v395 = vunpack.c.l.b16 %v235
      %v396 = vunpack.c.h.b16 %v235
      %v397 = vunpack.c.l.b16 %v236
      %v398 = vunpack.c.h.b16 %v236
      %v399 = vunpack.c.l.b16 %v237
      %v400 = vunpack.c.h.b16 %v237
      %v401 = vunpack.c.l.b16 %v238
      %v402 = vunpack.c.h.b16 %v238
      %v403 = vunpack.c.l.b16 %v239
      %v404 = vunpack.c.h.b16 %v239
      %v405 = vunpack.c.l.b16 %v240
      %v406 = vunpack.c.h.b16 %v240
      %v407 = vunpack.c.l.b16 %v241
      %v408 = vunpack.c.h.b16 %v241
      %v409 = vunpack.c.l.b16 %v242
      %v410 = vunpack.c.h.b16 %v242
      %v411 = vunpack.c.l.b16 %v243
      %v412 = vunpack.c.h.b16 %v243
      %v413 = vunpack.c.l.b16 %v244
      %v414 = vunpack.c.h.b16 %v244
      %v415 = vunpack.c.l.b16 %v245
      %v416 = vunpack.c.h.b16 %v245
      %v417 = vunpack.c.l.b16 %v246
      %v418 = vunpack.c.h.b16 %v246
      %v419 = vunpack.c.l.b16 %v247
      %v420 = vunpack.c.h.b16 %v247
      %v421 = vunpack.c.l.b16 %v248
      %v422 = vunpack.c.h.b16 %v248
      %v423 = vunpack.c.l.b16 %v249
      %v424 = vunpack.c.h.b16 %v249
      %v425 = vunpack.c.l.b16 %v250
      %v426 = vunpack.c.h.b16 %v250
      %v427 = vunpack.c.l.b16 %v251
      %v428 = vunpack.c.h.b16 %v251
      %v429 = vunpack.c.l.b16 %v252
      %v430 = vunpack.c.h.b16 %v252
      %v431 = vunpack.c.l.b16 %v253
      %v432 = vunpack.c.h.b16 %v253
      %v433 = vunpack.c.l.b16 %v254
      %v434 = vunpack.c.h.b16 %v254
      %v435 = vunpack.c.l.b16 %v255
      %v436 = vunpack.c.h.b16 %v255
      %v437 = vunpack.c.l.b16 %v256
      %v438 = vunpack.c.h.b16 %v256
      %v439 = vunpack.c.l.b16 %v257
      %v440 = vunpack.c.h.b16 %v257
      %v441 = vunpack.c.l.b16 %v258
      %v442 = vunpack.c.h.b16 %v258
      %v443 = vunpack.c.l.b16 %v259
      %v444 = vunpack.c.h.b16 %v259
      %v445 = vunpack.c.l.b16 %v260
      %v446 = vunpack.c.h.b16 %v260
      %v447 = vunpack.c.l.b16 %v261
      %v448 = vunpack.c.h.b16 %v261
      %v449 = vunpack.c.l.b16 %v262
      %v450 = vunpack.c.h.b16 %v262
      %v451 = vunpack.c.l.b16 %v263
      %v452 = vunpack.c.h.b16 %v263
      %v453 = vunpack.c.l.b16 %v264
      %v454 = vunpack.c.h.b16 %v264
      %v455 = vunpack.c.l.b16 %v265
      %v456 = vunpack.c.h.b16 %v265
      %v457 = vunpack.c.l.b16 %v266
      %v458 = vunpack.c.h.b16 %v266
      %v459 = vunpack.c.l.b16 %v267
      %v460 = vunpack.c.h.b16 %v267
      %v461 = vunpack.c.l.b16 %v268
      %v462 = vunpack.c.h.b16 %v268
      %v463 = vunpack.c.l.b16 %v269
      %v464 = vunpack.c.h.b16 %v269
      %v465 = vunpack.c.l.b16 %v270
      %v466 = vunpack.c.h.b16 %v270
      %v467 = vunpack.c.l.b16 %v271
      %v468 = vunpack.c.h.b16 %v271
      %v469 = vunpack.c.l.b16 %v272
      %v470 = vunpack.c.h.b16 %v272
      %v471 = vunpack.c.l.b16 %v273
      %v472 = vunpack.c.h.b16 %v273
      %v473 = vunpack.c.l.b16 %v274
      %v474 = vunpack.c.h.b16 %v274
      %v475 = vunpack.c.l.b16 %v275
      %v476 = vunpack.c.h.b16 %v275
      %v477 = vunpack.c.l.b16 %v276
      %v478 = vunpack.c.h.b16 %v276
      %v479 = vunpack.c.l.b16 %v277
      %v480 = vunpack.c.h.b16 %v277
      %v481 = vunpack.c.l.b16 %v278
      %v482 = vunpack.c.h.b16 %v278
      %v483 = vunpack.c.l.b16 %v279
      %v484 = vunpack.c.h.b16 %v279
      %v485 = vunpack.c.l.b16 %v280
      %v486 = vunpack.c.h.b16 %v280
      %v487 = vunpack.c.l.b16 %v281
      %v488 = vunpack.c.h.b16 %v281
      %v489 = vunpack.c.l.b16 %v282
      %v490 = vunpack.c.h.b16 %v282
      %v491 = vunpack.c.l.b16 %v283
      %v492 = vunpack.c.h.b16 %v283
      %v493 = vunpack.c.l.b16 %v284
      %v494 = vunpack.c.h.b16 %v284
      %v495 = vunpack.c.l.b16 %v285
      %v496 = vunpack.c.h.b16 %v285
      %v497 = vunpack.c.l.b16 %v286
      %v498 = vunpack.c.h.b16 %v286
      %v499 = vunpack.c.l.b16 %v287
      %v500 = vunpack.c.h.b16 %v287
      %v501 = vunpack.c.l.b16 %v288
      %v502 = vunpack.c.h.b16 %v288
      %v503 = vunpack.c.l.b16 %v289
      %v504 = vunpack.c.h.b16 %v289
      %v505 = vunpack.c.l.b16 %v290
      %v506 = vunpack.c.h.b16 %v290
      %v507 = vunpack.c.l.b16 %v291
      %v508 = vunpack.c.h.b16 %v291
      %v509 = vunpack.c.l.b16 %v292
      %v510 = vunpack.c.h.b16 %v292
      %v511 = vpack.c.b16 %v385, %v383
      %v512 = vpack.c.b16 %v386, %v384
      %v513 = vpack.c.b16 %v389, %v387
      %v514 = vpack.c.b16 %v390, %v388
      %v515 = vpack.c.b16 %v393, %v391
      %v516 = vpack.c.b16 %v394, %v392
      %v517 = vpack.c.b16 %v397, %v395
      %v518 = vpack.c.b16 %v398, %v396
      %v519 = vpack.c.b16 %v401, %v399
      %v520 = vpack.c.b16 %v402, %v400
      %v521 = vpack.c.b16 %v405, %v403
      %v522 = vpack.c.b16 %v406, %v404
      %v523 = vpack.c.b16 %v409, %v407
      %v524 = vpack.c.b16 %v410, %v408
      %v525 = vpack.c.b16 %v413, %v411
      %v526 = vpack.c.b16 %v414, %v412
      %v527 = vpack.c.b16 %v417, %v415
      %v528 = vpack.c.b16 %v418, %v416
      %v529 = vpack.c.b16 %v421, %v419
      %v530 = vpack.c.b16 %v422, %v420
      %v531 = vpack.c.b16 %v425, %v423
      %v532 = vpack.c.b16 %v426, %v424
      %v533 = vpack.c.b16 %v429, %v427
      %v534 = vpack.c.b16 %v430, %v428
      %v535 = vpack.c.b16 %v433, %v431
      %v536 = vpack.c.b16 %v434, %v432
      %v537 = vpack.c.b16 %v437, %v435
      %v538 = vpack.c.b16 %v438, %v436
      %v539 = vpack.c.b16 %v441, %v439
      %v540 = vpack.c.b16 %v442, %v440
      %v541 = vpack.c.b16 %v445, %v443
      %v542 = vpack.c.b16 %v446, %v444
      %v543 = vpack.c.b16 %v449, %v447
      %v544 = vpack.c.b16 %v450, %v448
      %v545 = vpack.c.b16 %v453, %v451
      %v546 = vpack.c.b16 %v454, %v452
      %v547 = vpack.c.b16 %v457, %v455
      %v548 = vpack.c.b16 %v458, %v456
      %v549 = vpack.c.b16 %v461, %v459
      %v550 = vpack.c.b16 %v462, %v460
      %v551 = vpack.c.b16 %v465, %v463
      %v552 = vpack.c.b16 %v466, %v464
      %v553 = vpack.c.b16 %v469, %v467
      %v554 = vpack.c.b16 %v470, %v468
      %v555 = vpack.c.b16 %v473, %v471
      %v556 = vpack.c.b16 %v474, %v472
      %v557 = vpack.c.b16 %v477, %v475
      %v558 = vpack.c.b16 %v478, %v476
      %v559 = vpack.c.b16 %v481, %v479
      %v560 = vpack.c.b16 %v482, %v480
      %v561 = vpack.c.b16 %v485, %v483
      %v562 = vpack.c.b16 %v486, %v484
      %v563 = vpack.c.b16 %v489, %v487
      %v564 = vpack.c.b16 %v490, %v488
      %v565 = vpack.c.b16 %v493, %v491
      %v566 = vpack.c.b16 %v494, %v492
      %v567 = vpack.c.b16 %v497, %v495
      %v568 = vpack.c.b16 %v498, %v496
      %v569 = vpack.c.b16 %v501, %v499
      %v570 = vpack.c.b16 %v502, %v500
      %v571 = vpack.c.b16 %v505, %v503
      %v572 = vpack.c.b16 %v506, %v504
      %v573 = vpack.c.b16 %v509, %v507
      %v574 = vpack.c.b16 %v510, %v508
      %v626 = vunpack.c.l.b16 %v293
      %v627 = vunpack.c.l.b16 %v294
      %v628 = vunpack.c.l.b16 %v295
      %v629 = vunpack.c.l.b16 %v296
      %v630 = vunpack.c.l.b16 %v297
      %v631 = vunpack.c.l.b16 %v298
      %v632 = vunpack.c.l.b16 %v299
      %v633 = vunpack.c.l.b16 %v300
      %v634 = vunpack.c.l.b16 %v301
      %v635 = vunpack.c.l.b16 %v302
      %v636 = vunpack.c.l.b16 %v303
      %v637 = vunpack.c.l.b16 %v304
      %v638 = vunpack.c.l.b16 %v305
      %v639 = vunpack.c.l.b16 %v306
      %v640 = vunpack.c.l.b16 %v307
      %v641 = vunpack.c.l.b16 %v308
      %v642 = vunpack.c.l.b16 %v309
      %v643 = vunpack.c.l.b16 %v310
      %v644 = vunpack.c.l.b16 %v311
      %v645 = vpack.c.b16 %v627, %v626
      %v646 = vpack.c.b16 %v629, %v628
      %v647 = vpack.c.b16 %v631, %v630
      %v648 = vpack.c.b16 %v633, %v632
      %v649 = vpack.c.b16 %v635, %v634
      %v650 = vpack.c.b16 %v637, %v636
      %v651 = vpack.c.b16 %v639, %v638
      %v652 = vpack.c.b16 %v641, %v640
      %v653 = vpack.c.b16 %v643, %v642
      %v654 = vpack.c.b16 %v644, %v644
      %vm664 = vcmask 154624
      %v666 = vsel %vm664, %v512, 0
      %v669 = vsel %vm664, %v514, 0
      %v672 = vsel %vm664, %v516, 0
      %v675 = vsel %vm664, %v518, 0
      %v678 = vsel %vm664, %v520, 0
      %v681 = vsel %vm664, %v522, 0
      %v684 = vsel %vm664, %v524, 0
      %v687 = vsel %vm664, %v526, 0
      %v690 = vsel %vm664, %v528, 0
      %v693 = vsel %vm664, %v530, 0
      %v696 = vsel %vm664, %v532, 0
      %v699 = vsel %vm664, %v534, 0
      %v702 = vsel %vm664, %v536, 0
      %v705 = vsel %vm664, %v538, 0
      %v708 = vsel %vm664, %v540, 0
      %v711 = vsel %vm664, %v542, 0
      %v714 = vsel %vm664, %v544, 0
      %v717 = vsel %vm664, %v546, 0
      %v720 = vsel %vm664, %v548, 0
      %v723 = vsel %vm664, %v550, 0
      %v726 = vsel %vm664, %v552, 0
      %v729 = vsel %vm664, %v554, 0
      %v732 = vsel %vm664, %v556, 0
      %v735 = vsel %vm664, %v558, 0
      %v738 = vsel %vm664, %v560, 0
      %v741 = vsel %vm664, %v562, 0
      %v744 = vsel %vm664, %v564, 0
      %v747 = vsel %vm664, %v566, 0
      %v750 = vsel %vm664, %v568, 0
      %v753 = vsel %vm664, %v570, 0
      %v756 = vsel %vm664, %v572, 0
      %v759 = vsel %vm664, %v574, 0
      %vm761 = vcmask 1040384
      %vm762 = vcmask 1041408
      %v763 = vsel %vm761, 4294967295, 65535
      %v764 = vsel %vm762, %v763, 0
      %v766 = vand.u32 %v654, %v764
      %768 = vmatprep.subr.bf16.mxu0 0
      %769 = vmatpush1.bf16.msra.mxu0 %v652
      %770 = vmatprep.subr.bf16.mxu0 0
      %771 = vmatpush1.bf16.msra.mxu0 %v651
      %772 = vmatprep.subr.bf16.mxu0 0
      %773 = vmatpush1.bf16.msra.mxu0 %v650
      %774 = vmatprep.subr.bf16.mxu0 0
      %775 = vmatpush1.bf16.msra.mxu0 %v649
      %776 = vmatprep.subr.bf16.mxu0 0
      %777 = vmatpush1.bf16.msra.mxu0 %v648
      %778 = vmatprep.subr.bf16.mxu0 0
      %779 = vmatpush1.bf16.msra.mxu0 %v647
      %780 = vmatprep.subr.bf16.mxu0 0
      %781 = vmatpush1.bf16.msra.mxu0 %v646
      %782 = vmatprep.subr.bf16.mxu0 0
      %783 = vmatpush1.bf16.msra.mxu0 %v645
      %784 = vmatprep.subr.bf16.mxu0 0
      %785 = vmatpush2.bf16.msra.mxu0 0
      %786 = vmatprep.subr.bf16.mxu0 0
      %787 = vmatpush2.bf16.msra.mxu0 0
      %788 = vmatprep.subr.bf16.mxu0 0
      %789 = vmatpush2.bf16.msra.mxu0 0
      %790 = vmatprep.subr.bf16.mxu0 0
      %791 = vmatpush2.bf16.msra.mxu0 0
      %792 = vmatprep.subr.bf16.mxu0 0
      %793 = vmatpush2.bf16.msra.mxu0 0
      %794 = vmatprep.subr.bf16.mxu0 0
      %795 = vmatpush2.bf16.msra.mxu0 0
      %796 = vmatprep.subr.bf16.mxu0 0
      %797 = vmatpush2.bf16.msra.mxu0 %v766
      %798 = vmatprep.subr.bf16.mxu0 0
      %799 = vmatpush2.bf16.msra.mxu0 %v653
      %800 = vmatprep.mubr.bf16.mxu0 %v666
      %801 = vmatmul.mubr.bf16.gmra.mxu0 %v511
      %v802 = vpop.f32.mrf.mxu0
      %v803 = vadd.f32 %v317, %v802
      %v804 = vpop.f32.mrf.mxu0
      %v805 = vpop.f32.mrf.mxu0
      %v806 = vadd.f32 %v317, %v805
      %v807 = vpop.f32.mrf.mxu0
      %808 = vmatprep.mubr.bf16.mxu0 %v669
      %809 = vmatmul.mubr.bf16.gmra.mxu0 %v513
      %v810 = vpop.f32.mrf.mxu0
      %v811 = vadd.f32 %v317, %v810
      %v812 = vpop.f32.mrf.mxu0
      %v813 = vpop.f32.mrf.mxu0
      %v814 = vadd.f32 %v317, %v813
      %v815 = vpop.f32.mrf.mxu0
      %816 = vmatprep.mubr.bf16.mxu0 %v672
      %817 = vmatmul.mubr.bf16.gmra.mxu0 %v515
      %v818 = vpop.f32.mrf.mxu0
      %v819 = vadd.f32 %v317, %v818
      %v820 = vpop.f32.mrf.mxu0
      %v821 = vpop.f32.mrf.mxu0
      %v822 = vadd.f32 %v317, %v821
      %v823 = vpop.f32.mrf.mxu0
      %824 = vmatprep.mubr.bf16.mxu0 %v675
      %825 = vmatmul.mubr.bf16.gmra.mxu0 %v517
      %v826 = vpop.f32.mrf.mxu0
      %v827 = vadd.f32 %v317, %v826
      %v828 = vpop.f32.mrf.mxu0
      %v829 = vpop.f32.mrf.mxu0
      %v830 = vadd.f32 %v317, %v829
      %v831 = vpop.f32.mrf.mxu0
      %832 = vmatprep.mubr.bf16.mxu0 %v678
      %833 = vmatmul.mubr.bf16.gmra.mxu0 %v519
      %v834 = vpop.f32.mrf.mxu0
      %v835 = vadd.f32 %v317, %v834
      %v836 = vpop.f32.mrf.mxu0
      %v837 = vpop.f32.mrf.mxu0
      %v838 = vadd.f32 %v317, %v837
      %v839 = vpop.f32.mrf.mxu0
      %840 = vmatprep.mubr.bf16.mxu0 %v681
      %841 = vmatmul.mubr.bf16.gmra.mxu0 %v521
      %v842 = vpop.f32.mrf.mxu0
      %v843 = vadd.f32 %v317, %v842
      %v844 = vpop.f32.mrf.mxu0
      %v845 = vpop.f32.mrf.mxu0
      %v846 = vadd.f32 %v317, %v845
      %v847 = vpop.f32.mrf.mxu0
      %848 = vmatprep.mubr.bf16.mxu0 %v684
      %849 = vmatmul.mubr.bf16.gmra.mxu0 %v523
      %v850 = vpop.f32.mrf.mxu0
      %v851 = vadd.f32 %v317, %v850
      %v852 = vpop.f32.mrf.mxu0
      %v853 = vpop.f32.mrf.mxu0
      %v854 = vadd.f32 %v317, %v853
      %v855 = vpop.f32.mrf.mxu0
      %856 = vmatprep.mubr.bf16.mxu0 %v687
      %857 = vmatmul.mubr.bf16.gmra.mxu0 %v525
      %v858 = vpop.f32.mrf.mxu0
      %v859 = vadd.f32 %v317, %v858
      %v860 = vpop.f32.mrf.mxu0
      %v861 = vpop.f32.mrf.mxu0
      %v862 = vadd.f32 %v317, %v861
      %v863 = vpop.f32.mrf.mxu0
      %864 = vmatprep.mubr.bf16.mxu0 %v690
      %865 = vmatmul.mubr.bf16.gmra.mxu0 %v527
      %v866 = vpop.f32.mrf.mxu0
      %v867 = vadd.f32 %v317, %v866
      %v868 = vpop.f32.mrf.mxu0
      %v869 = vpop.f32.mrf.mxu0
      %v870 = vadd.f32 %v317, %v869
      %v871 = vpop.f32.mrf.mxu0
      %872 = vmatprep.mubr.bf16.mxu0 %v693
      %873 = vmatmul.mubr.bf16.gmra.mxu0 %v529
      %v874 = vpop.f32.mrf.mxu0
      %v875 = vadd.f32 %v317, %v874
      %v876 = vpop.f32.mrf.mxu0
      %v877 = vpop.f32.mrf.mxu0
      %v878 = vadd.f32 %v317, %v877
      %v879 = vpop.f32.mrf.mxu0
      %880 = vmatprep.mubr.bf16.mxu0 %v696
      %881 = vmatmul.mubr.bf16.gmra.mxu0 %v531
      %v882 = vpop.f32.mrf.mxu0
      %v883 = vadd.f32 %v317, %v882
      %v884 = vpop.f32.mrf.mxu0
      %v885 = vpop.f32.mrf.mxu0
      %v886 = vadd.f32 %v317, %v885
      %v887 = vpop.f32.mrf.mxu0
      %888 = vmatprep.mubr.bf16.mxu0 %v699
      %889 = vmatmul.mubr.bf16.gmra.mxu0 %v533
      %v890 = vpop.f32.mrf.mxu0
      %v891 = vadd.f32 %v317, %v890
      %v892 = vpop.f32.mrf.mxu0
      %v893 = vpop.f32.mrf.mxu0
      %v894 = vadd.f32 %v317, %v893
      %v895 = vpop.f32.mrf.mxu0
      %896 = vmatprep.mubr.bf16.mxu0 %v702
      %897 = vmatmul.mubr.bf16.gmra.mxu0 %v535
      %v898 = vpop.f32.mrf.mxu0
      %v899 = vadd.f32 %v317, %v898
      %v900 = vpop.f32.mrf.mxu0
      %v901 = vpop.f32.mrf.mxu0
      %v902 = vadd.f32 %v317, %v901
      %v903 = vpop.f32.mrf.mxu0
      %904 = vmatprep.mubr.bf16.mxu0 %v705
      %905 = vmatmul.mubr.bf16.gmra.mxu0 %v537
      %v906 = vpop.f32.mrf.mxu0
      %v907 = vadd.f32 %v317, %v906
      %v908 = vpop.f32.mrf.mxu0
      %v909 = vpop.f32.mrf.mxu0
      %v910 = vadd.f32 %v317, %v909
      %v911 = vpop.f32.mrf.mxu0
      %912 = vmatprep.mubr.bf16.mxu0 %v708
      %913 = vmatmul.mubr.bf16.gmra.mxu0 %v539
      %v914 = vpop.f32.mrf.mxu0
      %v915 = vadd.f32 %v317, %v914
      %v916 = vpop.f32.mrf.mxu0
      %v917 = vpop.f32.mrf.mxu0
      %v918 = vadd.f32 %v317, %v917
      %v919 = vpop.f32.mrf.mxu0
      %920 = vmatprep.mubr.bf16.mxu0 %v711
      %921 = vmatmul.mubr.bf16.gmra.mxu0 %v541
      %v922 = vpop.f32.mrf.mxu0
      %v923 = vadd.f32 %v317, %v922
      %v924 = vpop.f32.mrf.mxu0
      %v925 = vpop.f32.mrf.mxu0
      %v926 = vadd.f32 %v317, %v925
      %v927 = vpop.f32.mrf.mxu0
      %928 = vmatprep.mubr.bf16.mxu0 %v714
      %929 = vmatmul.mubr.bf16.gmra.mxu0 %v543
      %v930 = vpop.f32.mrf.mxu0
      %v931 = vadd.f32 %v317, %v930
      %v932 = vpop.f32.mrf.mxu0
      %v933 = vpop.f32.mrf.mxu0
      %v934 = vadd.f32 %v317, %v933
      %v935 = vpop.f32.mrf.mxu0
      %936 = vmatprep.mubr.bf16.mxu0 %v717
      %937 = vmatmul.mubr.bf16.gmra.mxu0 %v545
      %v938 = vpop.f32.mrf.mxu0
      %v939 = vadd.f32 %v317, %v938
      %v940 = vpop.f32.mrf.mxu0
      %v941 = vpop.f32.mrf.mxu0
      %v942 = vadd.f32 %v317, %v941
      %v943 = vpop.f32.mrf.mxu0
      %944 = vmatprep.mubr.bf16.mxu0 %v720
      %945 = vmatmul.mubr.bf16.gmra.mxu0 %v547
      %v946 = vpop.f32.mrf.mxu0
      %v947 = vadd.f32 %v317, %v946
      %v948 = vpop.f32.mrf.mxu0
      %v949 = vpop.f32.mrf.mxu0
      %v950 = vadd.f32 %v317, %v949
      %v951 = vpop.f32.mrf.mxu0
      %952 = vmatprep.mubr.bf16.mxu0 %v723
      %953 = vmatmul.mubr.bf16.gmra.mxu0 %v549
      %v954 = vpop.f32.mrf.mxu0
      %v955 = vadd.f32 %v317, %v954
      %v956 = vpop.f32.mrf.mxu0
      %v957 = vpop.f32.mrf.mxu0
      %v958 = vadd.f32 %v317, %v957
      %v959 = vpop.f32.mrf.mxu0
      %960 = vmatprep.mubr.bf16.mxu0 %v726
      %961 = vmatmul.mubr.bf16.gmra.mxu0 %v551
      %v962 = vpop.f32.mrf.mxu0
      %v963 = vadd.f32 %v317, %v962
      %v964 = vpop.f32.mrf.mxu0
      %v965 = vpop.f32.mrf.mxu0
      %v966 = vadd.f32 %v317, %v965
      %v967 = vpop.f32.mrf.mxu0
      %968 = vmatprep.mubr.bf16.mxu0 %v729
      %969 = vmatmul.mubr.bf16.gmra.mxu0 %v553
      %v970 = vpop.f32.mrf.mxu0
      %v971 = vadd.f32 %v317, %v970
      %v972 = vpop.f32.mrf.mxu0
      %v973 = vpop.f32.mrf.mxu0
      %v974 = vadd.f32 %v317, %v973
      %v975 = vpop.f32.mrf.mxu0
      %976 = vmatprep.mubr.bf16.mxu0 %v732
      %977 = vmatmul.mubr.bf16.gmra.mxu0 %v555
      %v978 = vpop.f32.mrf.mxu0
      %v979 = vadd.f32 %v317, %v978
      %v980 = vpop.f32.mrf.mxu0
      %v981 = vpop.f32.mrf.mxu0
      %v982 = vadd.f32 %v317, %v981
      %v983 = vpop.f32.mrf.mxu0
      %984 = vmatprep.mubr.bf16.mxu0 %v735
      %985 = vmatmul.mubr.bf16.gmra.mxu0 %v557
      %v986 = vpop.f32.mrf.mxu0
      %v987 = vadd.f32 %v317, %v986
      %v988 = vpop.f32.mrf.mxu0
      %v989 = vpop.f32.mrf.mxu0
      %v990 = vadd.f32 %v317, %v989
      %v991 = vpop.f32.mrf.mxu0
      %992 = vmatprep.mubr.bf16.mxu0 %v738
      %993 = vmatmul.mubr.bf16.gmra.mxu0 %v559
      %v994 = vpop.f32.mrf.mxu0
      %v995 = vadd.f32 %v317, %v994
      %v996 = vpop.f32.mrf.mxu0
      %v997 = vpop.f32.mrf.mxu0
      %v998 = vadd.f32 %v317, %v997
      %v999 = vpop.f32.mrf.mxu0
      %1000 = vmatprep.mubr.bf16.mxu0 %v741
      %1001 = vmatmul.mubr.bf16.gmra.mxu0 %v561
      %v1002 = vpop.f32.mrf.mxu0
      %v1003 = vadd.f32 %v317, %v1002
      %v1004 = vpop.f32.mrf.mxu0
      %v1005 = vpop.f32.mrf.mxu0
      %v1006 = vadd.f32 %v317, %v1005
      %v1007 = vpop.f32.mrf.mxu0
      %1008 = vmatprep.mubr.bf16.mxu0 %v744
      %1009 = vmatmul.mubr.bf16.gmra.mxu0 %v563
      %v1010 = vpop.f32.mrf.mxu0
      %v1011 = vadd.f32 %v317, %v1010
      %v1012 = vpop.f32.mrf.mxu0
      %v1013 = vpop.f32.mrf.mxu0
      %v1014 = vadd.f32 %v317, %v1013
      %v1015 = vpop.f32.mrf.mxu0
      %1016 = vmatprep.mubr.bf16.mxu0 %v747
      %1017 = vmatmul.mubr.bf16.gmra.mxu0 %v565
      %v1018 = vpop.f32.mrf.mxu0
      %v1019 = vadd.f32 %v317, %v1018
      %v1020 = vpop.f32.mrf.mxu0
      %v1021 = vpop.f32.mrf.mxu0
      %v1022 = vadd.f32 %v317, %v1021
      %v1023 = vpop.f32.mrf.mxu0
      %1024 = vmatprep.mubr.bf16.mxu0 %v750
      %1025 = vmatmul.mubr.bf16.gmra.mxu0 %v567
      %v1026 = vpop.f32.mrf.mxu0
      %v1027 = vadd.f32 %v317, %v1026
      %v1028 = vpop.f32.mrf.mxu0
      %v1029 = vpop.f32.mrf.mxu0
      %v1030 = vadd.f32 %v317, %v1029
      %v1031 = vpop.f32.mrf.mxu0
      %1032 = vmatprep.mubr.bf16.mxu0 %v753
      %1033 = vmatmul.mubr.bf16.gmra.mxu0 %v569
      %v1034 = vpop.f32.mrf.mxu0
      %v1035 = vadd.f32 %v317, %v1034
      %v1036 = vpop.f32.mrf.mxu0
      %v1037 = vpop.f32.mrf.mxu0
      %v1038 = vadd.f32 %v317, %v1037
      %v1039 = vpop.f32.mrf.mxu0
      %1040 = vmatprep.mubr.bf16.mxu0 %v756
      %1041 = vmatmul.mubr.bf16.gmra.mxu0 %v571
      %v1042 = vpop.f32.mrf.mxu0
      %v1043 = vadd.f32 %v317, %v1042
      %v1044 = vpop.f32.mrf.mxu0
      %v1045 = vpop.f32.mrf.mxu0
      %v1046 = vadd.f32 %v317, %v1045
      %v1047 = vpop.f32.mrf.mxu0
      %1048 = vmatprep.mubr.bf16.mxu0 %v759
      %1049 = vmatmul.mubr.bf16.gmra.mxu0 %v573
      %v1050 = vpop.f32.mrf.mxu0
      %v1051 = vadd.f32 %v317, %v1050
      %v1052 = vpop.f32.mrf.mxu0
      %v1053 = vpop.f32.mrf.mxu0
      %v1054 = vadd.f32 %v317, %v1053
      %v1055 = vpop.f32.mrf.mxu0
      %1056 = vdwg.mxu0
      %v1057 = vmax.f32 %v803, 0.0
      %v1058 = vmax.f32 %v806, 0.0
      %v1059 = vmax.f32 %v811, 0.0
      %v1060 = vmax.f32 %v814, 0.0
      %v1061 = vmax.f32 %v819, 0.0
      %v1062 = vmax.f32 %v822, 0.0
      %v1063 = vmax.f32 %v827, 0.0
      %v1064 = vmax.f32 %v830, 0.0
      %v1065 = vmax.f32 %v835, 0.0
      %v1066 = vmax.f32 %v838, 0.0
      %v1067 = vmax.f32 %v843, 0.0
      %v1068 = vmax.f32 %v846, 0.0
      %v1069 = vmax.f32 %v851, 0.0
      %v1070 = vmax.f32 %v854, 0.0
      %v1071 = vmax.f32 %v859, 0.0
      %v1072 = vmax.f32 %v862, 0.0
      %v1073 = vmax.f32 %v867, 0.0
      %v1074 = vmax.f32 %v870, 0.0
      %v1075 = vmax.f32 %v875, 0.0
      %v1076 = vmax.f32 %v878, 0.0
      %v1077 = vmax.f32 %v883, 0.0
      %v1078 = vmax.f32 %v886, 0.0
      %v1079 = vmax.f32 %v891, 0.0
      %v1080 = vmax.f32 %v894, 0.0
      %v1081 = vmax.f32 %v899, 0.0
      %v1082 = vmax.f32 %v902, 0.0
      %v1083 = vmax.f32 %v907, 0.0
      %v1084 = vmax.f32 %v910, 0.0
      %v1085 = vmax.f32 %v915, 0.0
      %v1086 = vmax.f32 %v918, 0.0
      %v1087 = vmax.f32 %v923, 0.0
      %v1088 = vmax.f32 %v926, 0.0
      %v1089 = vmax.f32 %v931, 0.0
      %v1090 = vmax.f32 %v934, 0.0
      %v1091 = vmax.f32 %v939, 0.0
      %v1092 = vmax.f32 %v942, 0.0
      %v1093 = vmax.f32 %v947, 0.0
      %v1094 = vmax.f32 %v950, 0.0
      %v1095 = vmax.f32 %v955, 0.0
      %v1096 = vmax.f32 %v958, 0.0
      %v1097 = vmax.f32 %v963, 0.0
      %v1098 = vmax.f32 %v966, 0.0
      %v1099 = vmax.f32 %v971, 0.0
      %v1100 = vmax.f32 %v974, 0.0
      %v1101 = vmax.f32 %v979, 0.0
      %v1102 = vmax.f32 %v982, 0.0
      %v1103 = vmax.f32 %v987, 0.0
      %v1104 = vmax.f32 %v990, 0.0
      %v1105 = vmax.f32 %v995, 0.0
      %v1106 = vmax.f32 %v998, 0.0
      %v1107 = vmax.f32 %v1003, 0.0
      %v1108 = vmax.f32 %v1006, 0.0
      %v1109 = vmax.f32 %v1011, 0.0
      %v1110 = vmax.f32 %v1014, 0.0
      %v1111 = vmax.f32 %v1019, 0.0
      %v1112 = vmax.f32 %v1022, 0.0
      %v1113 = vmax.f32 %v1027, 0.0
      %v1114 = vmax.f32 %v1030, 0.0
      %v1115 = vmax.f32 %v1035, 0.0
      %v1116 = vmax.f32 %v1038, 0.0
      %v1117 = vmax.f32 %v1043, 0.0
      %v1118 = vmax.f32 %v1046, 0.0
      %v1119 = vmax.f32 %v1051, 0.0
      %v1120 = vmax.f32 %v1054, 0.0
      %v1121 = vpack.c.bf16 %v1058, %v1057
      %v1122 = vpack.c.bf16 %v1060, %v1059
      %v1123 = vpack.c.bf16 %v1062, %v1061
      %v1124 = vpack.c.bf16 %v1064, %v1063
      %v1125 = vpack.c.bf16 %v1066, %v1065
      %v1126 = vpack.c.bf16 %v1068, %v1067
      %v1127 = vpack.c.bf16 %v1070, %v1069
      %v1128 = vpack.c.bf16 %v1072, %v1071
      %v1129 = vpack.c.bf16 %v1074, %v1073
      %v1130 = vpack.c.bf16 %v1076, %v1075
      %v1131 = vpack.c.bf16 %v1078, %v1077
      %v1132 = vpack.c.bf16 %v1080, %v1079
      %v1133 = vpack.c.bf16 %v1082, %v1081
      %v1134 = vpack.c.bf16 %v1084, %v1083
      %v1135 = vpack.c.bf16 %v1086, %v1085
      %v1136 = vpack.c.bf16 %v1088, %v1087
      %v1137 = vpack.c.bf16 %v1090, %v1089
      %v1138 = vpack.c.bf16 %v1092, %v1091
      %v1139 = vpack.c.bf16 %v1094, %v1093
      %v1140 = vpack.c.bf16 %v1096, %v1095
      %v1141 = vpack.c.bf16 %v1098, %v1097
      %v1142 = vpack.c.bf16 %v1100, %v1099
      %v1143 = vpack.c.bf16 %v1102, %v1101
      %v1144 = vpack.c.bf16 %v1104, %v1103
      %v1145 = vpack.c.bf16 %v1106, %v1105
      %v1146 = vpack.c.bf16 %v1108, %v1107
      %v1147 = vpack.c.bf16 %v1110, %v1109
      %v1148 = vpack.c.bf16 %v1112, %v1111
      %v1149 = vpack.c.bf16 %v1114, %v1113
      %v1150 = vpack.c.bf16 %v1116, %v1115
      %v1151 = vpack.c.bf16 %v1118, %v1117
      %v1152 = vpack.c.bf16 %v1120, %v1119
      %v1185 = vunpack.c.l.b16 %v1121
      %v1186 = vunpack.c.h.b16 %v1121
      %v1187 = vunpack.c.l.b16 %v1122
      %v1188 = vunpack.c.h.b16 %v1122
      %v1189 = vunpack.c.l.b16 %v1123
      %v1190 = vunpack.c.h.b16 %v1123
      %v1191 = vunpack.c.l.b16 %v1124
      %v1192 = vunpack.c.h.b16 %v1124
      %v1193 = vunpack.c.l.b16 %v1125
      %v1194 = vunpack.c.h.b16 %v1125
      %v1195 = vunpack.c.l.b16 %v1126
      %v1196 = vunpack.c.h.b16 %v1126
      %v1197 = vunpack.c.l.b16 %v1127
      %v1198 = vunpack.c.h.b16 %v1127
      %v1199 = vunpack.c.l.b16 %v1128
      %v1200 = vunpack.c.h.b16 %v1128
      %v1201 = vunpack.c.l.b16 %v1129
      %v1202 = vunpack.c.h.b16 %v1129
      %v1203 = vunpack.c.l.b16 %v1130
      %v1204 = vunpack.c.h.b16 %v1130
      %v1205 = vunpack.c.l.b16 %v1131
      %v1206 = vunpack.c.h.b16 %v1131
      %v1207 = vunpack.c.l.b16 %v1132
      %v1208 = vunpack.c.h.b16 %v1132
      %v1209 = vunpack.c.l.b16 %v1133
      %v1210 = vunpack.c.h.b16 %v1133
      %v1211 = vunpack.c.l.b16 %v1134
      %v1212 = vunpack.c.h.b16 %v1134
      %v1213 = vunpack.c.l.b16 %v1135
      %v1214 = vunpack.c.h.b16 %v1135
      %v1215 = vunpack.c.l.b16 %v1136
      %v1216 = vunpack.c.h.b16 %v1136
      %v1217 = vunpack.c.l.b16 %v1137
      %v1218 = vunpack.c.h.b16 %v1137
      %v1219 = vunpack.c.l.b16 %v1138
      %v1220 = vunpack.c.h.b16 %v1138
      %v1221 = vunpack.c.l.b16 %v1139
      %v1222 = vunpack.c.h.b16 %v1139
      %v1223 = vunpack.c.l.b16 %v1140
      %v1224 = vunpack.c.h.b16 %v1140
      %v1225 = vunpack.c.l.b16 %v1141
      %v1226 = vunpack.c.h.b16 %v1141
      %v1227 = vunpack.c.l.b16 %v1142
      %v1228 = vunpack.c.h.b16 %v1142
      %v1229 = vunpack.c.l.b16 %v1143
      %v1230 = vunpack.c.h.b16 %v1143
      %v1231 = vunpack.c.l.b16 %v1144
      %v1232 = vunpack.c.h.b16 %v1144
      %v1233 = vunpack.c.l.b16 %v1145
      %v1234 = vunpack.c.h.b16 %v1145
      %v1235 = vunpack.c.l.b16 %v1146
      %v1236 = vunpack.c.h.b16 %v1146
      %v1237 = vunpack.c.l.b16 %v1147
      %v1238 = vunpack.c.h.b16 %v1147
      %v1239 = vunpack.c.l.b16 %v1148
      %v1240 = vunpack.c.h.b16 %v1148
      %v1241 = vunpack.c.l.b16 %v1149
      %v1242 = vunpack.c.h.b16 %v1149
      %v1243 = vunpack.c.l.b16 %v1150
      %v1244 = vunpack.c.h.b16 %v1150
      %v1245 = vunpack.c.l.b16 %v1151
      %v1246 = vunpack.c.h.b16 %v1151
      %v1247 = vunpack.c.l.b16 %v1152
      %v1248 = vunpack.c.h.b16 %v1152
      %v1249 = vpack.c.b16 %v1185, %v1185
      %v1250 = vpack.c.b16 %v1186, %v1186
      %v1251 = vpack.c.b16 %v1187, %v1187
      %v1252 = vpack.c.b16 %v1188, %v1188
      %v1253 = vpack.c.b16 %v1189, %v1189
      %v1254 = vpack.c.b16 %v1190, %v1190
      %v1255 = vpack.c.b16 %v1191, %v1191
      %v1256 = vpack.c.b16 %v1192, %v1192
      %v1257 = vpack.c.b16 %v1193, %v1193
      %v1258 = vpack.c.b16 %v1194, %v1194
      %v1259 = vpack.c.b16 %v1195, %v1195
      %v1260 = vpack.c.b16 %v1196, %v1196
      %v1261 = vpack.c.b16 %v1197, %v1197
      %v1262 = vpack.c.b16 %v1198, %v1198
      %v1263 = vpack.c.b16 %v1199, %v1199
      %v1264 = vpack.c.b16 %v1200, %v1200
      %v1265 = vpack.c.b16 %v1201, %v1201
      %v1266 = vpack.c.b16 %v1202, %v1202
      %v1267 = vpack.c.b16 %v1203, %v1203
      %v1268 = vpack.c.b16 %v1204, %v1204
      %v1269 = vpack.c.b16 %v1205, %v1205
      %v1270 = vpack.c.b16 %v1206, %v1206
      %v1271 = vpack.c.b16 %v1207, %v1207
      %v1272 = vpack.c.b16 %v1208, %v1208
      %v1273 = vpack.c.b16 %v1209, %v1209
      %v1274 = vpack.c.b16 %v1210, %v1210
      %v1275 = vpack.c.b16 %v1211, %v1211
      %v1276 = vpack.c.b16 %v1212, %v1212
      %v1277 = vpack.c.b16 %v1213, %v1213
      %v1278 = vpack.c.b16 %v1214, %v1214
      %v1279 = vpack.c.b16 %v1215, %v1215
      %v1280 = vpack.c.b16 %v1216, %v1216
      %v1281 = vpack.c.b16 %v1217, %v1217
      %v1282 = vpack.c.b16 %v1218, %v1218
      %v1283 = vpack.c.b16 %v1219, %v1219
      %v1284 = vpack.c.b16 %v1220, %v1220
      %v1285 = vpack.c.b16 %v1221, %v1221
      %v1286 = vpack.c.b16 %v1222, %v1222
      %v1287 = vpack.c.b16 %v1223, %v1223
      %v1288 = vpack.c.b16 %v1224, %v1224
      %v1289 = vpack.c.b16 %v1225, %v1225
      %v1290 = vpack.c.b16 %v1226, %v1226
      %v1291 = vpack.c.b16 %v1227, %v1227
      %v1292 = vpack.c.b16 %v1228, %v1228
      %v1293 = vpack.c.b16 %v1229, %v1229
      %v1294 = vpack.c.b16 %v1230, %v1230
      %v1295 = vpack.c.b16 %v1231, %v1231
      %v1296 = vpack.c.b16 %v1232, %v1232
      %v1297 = vpack.c.b16 %v1233, %v1233
      %v1298 = vpack.c.b16 %v1234, %v1234
      %v1299 = vpack.c.b16 %v1235, %v1235
      %v1300 = vpack.c.b16 %v1236, %v1236
      %v1301 = vpack.c.b16 %v1237, %v1237
      %v1302 = vpack.c.b16 %v1238, %v1238
      %v1303 = vpack.c.b16 %v1239, %v1239
      %v1304 = vpack.c.b16 %v1240, %v1240
      %v1305 = vpack.c.b16 %v1241, %v1241
      %v1306 = vpack.c.b16 %v1242, %v1242
      %v1307 = vpack.c.b16 %v1243, %v1243
      %v1308 = vpack.c.b16 %v1244, %v1244
      %v1309 = vpack.c.b16 %v1245, %v1245
      %v1310 = vpack.c.b16 %v1246, %v1246
      %v1311 = vpack.c.b16 %v1247, %v1247
      %v1312 = vpack.c.b16 %v1248, %v1248
      %1377 = vst [vmem:[%s226] sm:$0xf] %v1249
      %1378 = vst [vmem:[%s226 + $0x4] sm:$0xf] %v1250
      %1379 = vst [vmem:[%s226 + $0x8] sm:$0xf] %v1251
      %1380 = vst [vmem:[%s226 + $0xc] sm:$0xf] %v1252
      %1381 = vst [vmem:[%s226 + $0x10] sm:$0xf] %v1253
      %1382 = vst [vmem:[%s226 + $0x14] sm:$0xf] %v1254
      %1383 = vst [vmem:[%s226 + $0x18] sm:$0xf] %v1255
      %1384 = vst [vmem:[%s226 + $0x1c] sm:$0xf] %v1256
      %1385 = vst [vmem:[%s226 + $0x20] sm:$0xf] %v1257
      %1386 = vst [vmem:[%s226 + $0x24] sm:$0xf] %v1258
      %1387 = vst [vmem:[%s226 + $0x28] sm:$0xf] %v1259
      %1388 = vst [vmem:[%s226 + $0x2c] sm:$0xf] %v1260
      %1389 = vst [vmem:[%s226 + $0x30] sm:$0xf] %v1261
      %1390 = vst [vmem:[%s226 + $0x34] sm:$0xf] %v1262
      %1391 = vst [vmem:[%s226 + $0x38] sm:$0xf] %v1263
      %1392 = vst [vmem:[%s226 + $0x3c] sm:$0xf] %v1264
      %1393 = vst [vmem:[%s226 + $0x40] sm:$0xf] %v1265
      %1394 = vst [vmem:[%s226 + $0x44] sm:$0xf] %v1266
      %1395 = vst [vmem:[%s226 + $0x48] sm:$0xf] %v1267
      %1396 = vst [vmem:[%s226 + $0x4c] sm:$0xf] %v1268
      %1397 = vst [vmem:[%s226 + $0x50] sm:$0xf] %v1269
      %1398 = vst [vmem:[%s226 + $0x54] sm:$0xf] %v1270
      %1399 = vst [vmem:[%s226 + $0x58] sm:$0xf] %v1271
      %1400 = vst [vmem:[%s226 + $0x5c] sm:$0xf] %v1272
      %1401 = vst [vmem:[%s226 + $0x60] sm:$0xf] %v1273
      %1402 = vst [vmem:[%s226 + $0x64] sm:$0xf] %v1274
      %1403 = vst [vmem:[%s226 + $0x68] sm:$0xf] %v1275
      %1404 = vst [vmem:[%s226 + $0x6c] sm:$0xf] %v1276
      %1405 = vst [vmem:[%s226 + $0x70] sm:$0xf] %v1277
      %1406 = vst [vmem:[%s226 + $0x74] sm:$0xf] %v1278
      %1407 = vst [vmem:[%s226 + $0x78] sm:$0xf] %v1279
      %1408 = vst [vmem:[%s226 + $0x7c] sm:$0xf] %v1280
      %1409 = vst [vmem:[%s226 + $0x80] sm:$0xf] %v1281
      %1410 = vst [vmem:[%s226 + $0x84] sm:$0xf] %v1282
      %1411 = vst [vmem:[%s226 + $0x88] sm:$0xf] %v1283
      %1412 = vst [vmem:[%s226 + $0x8c] sm:$0xf] %v1284
      %1413 = vst [vmem:[%s226 + $0x90] sm:$0xf] %v1285
      %1414 = vst [vmem:[%s226 + $0x94] sm:$0xf] %v1286
      %1415 = vst [vmem:[%s226 + $0x98] sm:$0xf] %v1287
      %1416 = vst [vmem:[%s226 + $0x9c] sm:$0xf] %v1288
      %1417 = vst [vmem:[%s226 + $0xa0] sm:$0xf] %v1289
      %1418 = vst [vmem:[%s226 + $0xa4] sm:$0xf] %v1290
      %1419 = vst [vmem:[%s226 + $0xa8] sm:$0xf] %v1291
      %1420 = vst [vmem:[%s226 + $0xac] sm:$0xf] %v1292
      %1421 = vst [vmem:[%s226 + $0xb0] sm:$0xf] %v1293
      %1422 = vst [vmem:[%s226 + $0xb4] sm:$0xf] %v1294
      %1423 = vst [vmem:[%s226 + $0xb8] sm:$0xf] %v1295
      %1424 = vst [vmem:[%s226 + $0xbc] sm:$0xf] %v1296
      %1425 = vst [vmem:[%s226 + $0xc0] sm:$0xf] %v1297
      %1426 = vst [vmem:[%s226 + $0xc4] sm:$0xf] %v1298
      %1427 = vst [vmem:[%s226 + $0xc8] sm:$0xf] %v1299
      %1428 = vst [vmem:[%s226 + $0xcc] sm:$0xf] %v1300
      %1429 = vst [vmem:[%s226 + $0xd0] sm:$0xf] %v1301
      %1430 = vst [vmem:[%s226 + $0xd4] sm:$0xf] %v1302
      %1431 = vst [vmem:[%s226 + $0xd8] sm:$0xf] %v1303
      %1432 = vst [vmem:[%s226 + $0xdc] sm:$0xf] %v1304
      %1433 = vst [vmem:[%s226 + $0xe0] sm:$0xf] %v1305
      %1434 = vst [vmem:[%s226 + $0xe4] sm:$0xf] %v1306
      %1435 = vst [vmem:[%s226 + $0xe8] sm:$0xf] %v1307
      %1436 = vst [vmem:[%s226 + $0xec] sm:$0xf] %v1308
      %1437 = vst [vmem:[%s226 + $0xf0] sm:$0xf] %v1309
      %1438 = vst [vmem:[%s226 + $0xf4] sm:$0xf] %v1310
      %1439 = vst [vmem:[%s226 + $0xf8] sm:$0xf] %v1311
      %1440 = vst [vmem:[%s226 + $0xfc] sm:$0xf] %v1312
      %s1441 = smul.u32 64, %s18
      %p1442 = scmp.lt.s32.totalorder %s1441, 255
      %s1443 = scalar_select %p1442, %s1441, 255
      %p1444 = scmp.lt.s32.totalorder %s19, 0
      %s1445 = scalar_select %p1444, %s19, 0
      %s1446 = sadd.s32 %s1445, %s1443
      %s1447 = smul.addr %s1446, 4
      %s1448 = scalar_lea.vmem %s3, %s1447
      // Predicated region
      $region33: #{uacanet_forward.10} parent=31 // pred_check
        %p1449 = pneg %p124
      $region34: #{uacanet_forward.10} parent=31 // pred_check_branch
        %1451 = sbr.rel (%p1449) target = $region36
      $region35: #{uacanet_forward.10} parent=31 // pred_region
        %s1452 = smul.u32 64, %s18
      $region36: #{uacanet_forward.10} parent=31 // pred_fallthru
        _
    $region32: #{uacanet_forward.10} parent=5 // pred_fallthru
      _
    %p1453 = scmp.le.s32.totalorder 2, %s9
    // Predicated region
    $region37: #{uacanet_forward.10} parent=5 // pred_check
      %p1454 = pneg %p1453
    $region38: #{uacanet_forward.10} parent=5 // pred_check_branch
      %1456 = sbr.rel (%p1454) target = $region40
    $region39: #{uacanet_forward.10} parent=5 // pred_region
      %s1457 = ssub.s32 %s9, 2
      // Predicated region
      $region41: #{uacanet_forward.10} parent=39 // pred_check
        %p1458 = pneg %p130
      $region42: #{uacanet_forward.10} parent=39 // pred_check_branch
        %1460 = sbr.rel (%p1458) target = $region44
      $region43: #{uacanet_forward.10} parent=39 // pred_region
        %s1461 = smul.u32 64, %s20
        %p1462 = scmp.lt.s32.totalorder %s1461, 255
        %s1463 = scalar_select %p1462, %s1461, 255
        %p1464 = scmp.lt.s32.totalorder %s21, 0
        %s1465 = scalar_select %p1464, %s21, 0
        %s1466 = sadd.s32 %s1465, %s1463
        %s1467 = smul.addr %s1466, 4
        %s1468 = scalar_lea.vmem %s3, %s1467
      $region44: #{uacanet_forward.10} parent=39 // pred_fallthru
        _
    $region40: #{uacanet_forward.10} parent=5 // pred_fallthru
      _
  $region6: #{uacanet_forward.10} parent=0 // loop_footer
    %s13 = sadd.s32 1, %s9
  $region7: #{uacanet_forward.10} parent=0 // loop_footer_branch
    %8 = sbr.rel target = $region3
  $region8: #{uacanet_forward.10} parent=0 // loop_exit
    _

// kernel: uacanet_forward.11
$region0: #{uacanet_forward.11}
  #allocation0 [shape = 'u32[]', space=smem, size = 0x4, offset = 0x4, fixed_abs, tag = 'smem constant byte address 0x4 - core index']
  #allocation1 [shape = 'u32[144,128]{1,0:T(1,128)}', space=vmem, size = 0x12000, scoped, tag = 'internal scratch']
  %s0 = inlined_call_operand.vmem [shape: bf16[512,72], index: 0, kind: input, shape index: {}]
  %s1 = inlined_call_operand.vmem [shape: bf16[72,128], index: 1, kind: input, shape index: {}]
  %s2 = inlined_call_operand.vmem [shape: f32[1,128], index: 2, kind: input, shape index: {}]
  %s3 = inlined_call_operand.vmem [shape: bf16[512,128], index: 3, kind: output, shape index: {}]
  %s4 = sld [smem:[#allocation0]]
  $region22: #{uacanet_forward.11} parent=0
    _
  %s6 = ssub.s32 1, %s4
  %s7 = scalar_select 0, %s6, %s4
  // Predicated region
  $region2: #{uacanet_forward.11} parent=0 // pred_check
    _
  $region3: #{uacanet_forward.11} parent=0 // pred_check_branch
    %9 = sbr.rel (0) target = $region5
  $region4: #{uacanet_forward.11} parent=0 // pred_region
    _
  $region5: #{uacanet_forward.11} parent=0 // pred_fallthru
    _
  // Predicated region
  $region6: #{uacanet_forward.11} parent=0 // pred_check
    _
  $region7: #{uacanet_forward.11} parent=0 // pred_check_branch
    %11 = sbr.rel (0) target = $region9
  $region8: #{uacanet_forward.11} parent=0 // pred_region
    _
  $region9: #{uacanet_forward.11} parent=0 // pred_fallthru
    _
  // Predicated region
  $region10: #{uacanet_forward.11} parent=0 // pred_check
    _
  $region11: #{uacanet_forward.11} parent=0 // pred_check_branch
    %13 = sbr.rel (0) target = $region13
  $region12: #{uacanet_forward.11} parent=0 // pred_region
    _
  $region13: #{uacanet_forward.11} parent=0 // pred_fallthru
    _
  %v15 = vld [vmem:[%s0] sm:$0xf]
  %v16 = vld [vmem:[%s0 + $0x4] sm:$0xf]
  %v17 = vld [vmem:[%s0 + $0x8] sm:$0xf]
  %v18 = vld [vmem:[%s0 + $0xc] sm:$0xf]
  %v19 = vld [vmem:[%s0 + $0x10] sm:$0xf]
  %v20 = vld [vmem:[%s0 + $0x14] sm:$0xf]
  %v21 = vld [vmem:[%s0 + $0x18] sm:$0xf]
  %v22 = vld [vmem:[%s0 + $0x1c] sm:$0xf]
  %v23 = vld [vmem:[%s0 + $0x20] sm:$0xf]
  %v24 = vld [vmem:[%s0 + $0x24] sm:$0xf]
  %v25 = vld [vmem:[%s0 + $0x28] sm:$0xf]
  %v26 = vld [vmem:[%s0 + $0x2c] sm:$0xf]
  %v27 = vld [vmem:[%s0 + $0x30] sm:$0xf]
  %v28 = vld [vmem:[%s0 + $0x34] sm:$0xf]
  %v29 = vld [vmem:[%s0 + $0x38] sm:$0xf]
  %v30 = vld [vmem:[%s0 + $0x3c] sm:$0xf]
  %v31 = vld [vmem:[%s0 + $0x40] sm:$0xf]
  %v32 = vld [vmem:[%s0 + $0x44] sm:$0xf]
  %v33 = vld [vmem:[%s0 + $0x48] sm:$0xf]
  %v34 = vld [vmem:[%s0 + $0x4c] sm:$0xf]
  %v35 = vld [vmem:[%s0 + $0x50] sm:$0xf]
  %v36 = vld [vmem:[%s0 + $0x54] sm:$0xf]
  %v37 = vld [vmem:[%s0 + $0x58] sm:$0xf]
  %v38 = vld [vmem:[%s0 + $0x5c] sm:$0xf]
  %v39 = vld [vmem:[%s0 + $0x60] sm:$0xf]
  %v40 = vld [vmem:[%s0 + $0x64] sm:$0xf]
  %v41 = vld [vmem:[%s0 + $0x68] sm:$0xf]
  %v42 = vld [vmem:[%s0 + $0x6c] sm:$0xf]
  %v43 = vld [vmem:[%s0 + $0x70] sm:$0xf]
  %v44 = vld [vmem:[%s0 + $0x74] sm:$0xf]
  %v45 = vld [vmem:[%s0 + $0x78] sm:$0xf]
  %v46 = vld [vmem:[%s0 + $0x7c] sm:$0xf]
  %v47 = vld [vmem:[%s0 + $0x80] sm:$0xf]
  %v48 = vld [vmem:[%s0 + $0x84] sm:$0xf]
  %v49 = vld [vmem:[%s0 + $0x88] sm:$0xf]
  %v50 = vld [vmem:[%s0 + $0x8c] sm:$0xf]
  %v51 = vld [vmem:[%s0 + $0x90] sm:$0xf]
  %v52 = vld [vmem:[%s0 + $0x94] sm:$0xf]
  %v53 = vld [vmem:[%s0 + $0x98] sm:$0xf]
  %v54 = vld [vmem:[%s0 + $0x9c] sm:$0xf]
  %v55 = vld [vmem:[%s0 + $0xa0] sm:$0xf]
  %v56 = vld [vmem:[%s0 + $0xa4] sm:$0xf]
  %v57 = vld [vmem:[%s0 + $0xa8] sm:$0xf]
  %v58 = vld [vmem:[%s0 + $0xac] sm:$0xf]
  %v59 = vld [vmem:[%s0 + $0xb0] sm:$0xf]
  %v60 = vld [vmem:[%s0 + $0xb4] sm:$0xf]
  %v61 = vld [vmem:[%s0 + $0xb8] sm:$0xf]
  %v62 = vld [vmem:[%s0 + $0xbc] sm:$0xf]
  %v63 = vld [vmem:[%s0 + $0xc0] sm:$0xf]
  %v64 = vld [vmem:[%s0 + $0xc4] sm:$0xf]
  %v65 = vld [vmem:[%s0 + $0xc8] sm:$0xf]
  %v66 = vld [vmem:[%s0 + $0xcc] sm:$0xf]
  %v67 = vld [vmem:[%s0 + $0xd0] sm:$0xf]
  %v68 = vld [vmem:[%s0 + $0xd4] sm:$0xf]
  %v69 = vld [vmem:[%s0 + $0xd8] sm:$0xf]
  %v70 = vld [vmem:[%s0 + $0xdc] sm:$0xf]
  %v71 = vld [vmem:[%s0 + $0xe0] sm:$0xf]
  %v72 = vld [vmem:[%s0 + $0xe4] sm:$0xf]
  %v73 = vld [vmem:[%s0 + $0xe8] sm:$0xf]
  %v74 = vld [vmem:[%s0 + $0xec] sm:$0xf]
  %v75 = vld [vmem:[%s0 + $0xf0] sm:$0xf]
  %v76 = vld [vmem:[%s0 + $0xf4] sm:$0xf]
  %v77 = vld [vmem:[%s0 + $0xf8] sm:$0xf]
  %v78 = vld [vmem:[%s0 + $0xfc] sm:$0xf]
  %v79 = vld [vmem:[%s1] sm:$0xf]
  %v80 = vld [vmem:[%s1 + $0x4] sm:$0xf]
  %v81 = vld [vmem:[%s1 + $0x8] sm:$0xf]
  %v82 = vld [vmem:[%s1 + $0xc] sm:$0xf]
  %v83 = vld [vmem:[%s1 + $0x10] sm:$0xf]
  %v84 = vld [vmem:[%s1 + $0x14] sm:$0xf]
  %v85 = vld [vmem:[%s1 + $0x18] sm:$0xf]
  %v86 = vld [vmem:[%s1 + $0x1c] sm:$0xf]
  %v87 = vld [vmem:[%s1 + $0x20] sm:$0xf]
  %v88 = vld [vmem:[%s2] sm:$0x1]
  %v90 = vlaneseq
  %v91 = vshrl.u32 %v90, 7
  %v92 = vsub.s32 0, %v91
  %v93 = vrot.slane %v88, %v92
  %v159 = vunpack.c.l.b16 %v15
  %v160 = vunpack.c.l.b16 %v16
  %v161 = vunpack.c.l.b16 %v17
  %v162 = vunpack.c.l.b16 %v18
  %v163 = vunpack.c.l.b16 %v19
  %v164 = vunpack.c.l.b16 %v20
  %v165 = vunpack.c.l.b16 %v21
  %v166 = vunpack.c.l.b16 %v22
  %v167 = vunpack.c.l.b16 %v23
  %v168 = vunpack.c.l.b16 %v24
  %v169 = vunpack.c.l.b16 %v25
  %v170 = vunpack.c.l.b16 %v26
  %v171 = vunpack.c.l.b16 %v27
  %v172 = vunpack.c.l.b16 %v28
  %v173 = vunpack.c.l.b16 %v29
  %v174 = vunpack.c.l.b16 %v30
  %v175 = vunpack.c.l.b16 %v31
  %v176 = vunpack.c.l.b16 %v32
  %v177 = vunpack.c.l.b16 %v33
  %v178 = vunpack.c.l.b16 %v34
  %v179 = vunpack.c.l.b16 %v35
  %v180 = vunpack.c.l.b16 %v36
  %v181 = vunpack.c.l.b16 %v37
  %v182 = vunpack.c.l.b16 %v38
  %v183 = vunpack.c.l.b16 %v39
  %v184 = vunpack.c.l.b16 %v40
  %v185 = vunpack.c.l.b16 %v41
  %v186 = vunpack.c.l.b16 %v42
  %v187 = vunpack.c.l.b16 %v43
  %v188 = vunpack.c.l.b16 %v44
  %v189 = vunpack.c.l.b16 %v45
  %v190 = vunpack.c.l.b16 %v46
  %v191 = vunpack.c.l.b16 %v47
  %v192 = vunpack.c.l.b16 %v48
  %v193 = vunpack.c.l.b16 %v49
  %v194 = vunpack.c.l.b16 %v50
  %v195 = vunpack.c.l.b16 %v51
  %v196 = vunpack.c.l.b16 %v52
  %v197 = vunpack.c.l.b16 %v53
  %v198 = vunpack.c.l.b16 %v54
  %v199 = vunpack.c.l.b16 %v55
  %v200 = vunpack.c.l.b16 %v56
  %v201 = vunpack.c.l.b16 %v57
  %v202 = vunpack.c.l.b16 %v58
  %v203 = vunpack.c.l.b16 %v59
  %v204 = vunpack.c.l.b16 %v60
  %v205 = vunpack.c.l.b16 %v61
  %v206 = vunpack.c.l.b16 %v62
  %v207 = vunpack.c.l.b16 %v63
  %v208 = vunpack.c.l.b16 %v64
  %v209 = vunpack.c.l.b16 %v65
  %v210 = vunpack.c.l.b16 %v66
  %v211 = vunpack.c.l.b16 %v67
  %v212 = vunpack.c.l.b16 %v68
  %v213 = vunpack.c.l.b16 %v69
  %v214 = vunpack.c.l.b16 %v70
  %v215 = vunpack.c.l.b16 %v71
  %v216 = vunpack.c.l.b16 %v72
  %v217 = vunpack.c.l.b16 %v73
  %v218 = vunpack.c.l.b16 %v74
  %v219 = vunpack.c.l.b16 %v75
  %v220 = vunpack.c.l.b16 %v76
  %v221 = vunpack.c.l.b16 %v77
  %v222 = vunpack.c.l.b16 %v78
  %v223 = vpack.c.b16 %v160, %v159
  %v224 = vpack.c.b16 %v162, %v161
  %v225 = vpack.c.b16 %v164, %v163
  %v226 = vpack.c.b16 %v166, %v165
  %v227 = vpack.c.b16 %v168, %v167
  %v228 = vpack.c.b16 %v170, %v169
  %v229 = vpack.c.b16 %v172, %v171
  %v230 = vpack.c.b16 %v174, %v173
  %v231 = vpack.c.b16 %v176, %v175
  %v232 = vpack.c.b16 %v178, %v177
  %v233 = vpack.c.b16 %v180, %v179
  %v234 = vpack.c.b16 %v182, %v181
  %v235 = vpack.c.b16 %v184, %v183
  %v236 = vpack.c.b16 %v186, %v185
  %v237 = vpack.c.b16 %v188, %v187
  %v238 = vpack.c.b16 %v190, %v189
  %v239 = vpack.c.b16 %v192, %v191
  %v240 = vpack.c.b16 %v194, %v193
  %v241 = vpack.c.b16 %v196, %v195
  %v242 = vpack.c.b16 %v198, %v197
  %v243 = vpack.c.b16 %v200, %v199
  %v244 = vpack.c.b16 %v202, %v201
  %v245 = vpack.c.b16 %v204, %v203
  %v246 = vpack.c.b16 %v206, %v205
  %v247 = vpack.c.b16 %v208, %v207
  %v248 = vpack.c.b16 %v210, %v209
  %v249 = vpack.c.b16 %v212, %v211
  %v250 = vpack.c.b16 %v214, %v213
  %v251 = vpack.c.b16 %v216, %v215
  %v252 = vpack.c.b16 %v218, %v217
  %v253 = vpack.c.b16 %v220, %v219
  %v254 = vpack.c.b16 %v222, %v221
  %v264 = vunpack.c.l.b16 %v79
  %v265 = vunpack.c.l.b16 %v80
  %v266 = vunpack.c.l.b16 %v81
  %v267 = vunpack.c.l.b16 %v82
  %v268 = vunpack.c.l.b16 %v83
  %v269 = vunpack.c.l.b16 %v84
  %v270 = vunpack.c.l.b16 %v85
  %v271 = vunpack.c.l.b16 %v86
  %v272 = vunpack.c.l.b16 %v87
  %v273 = vpack.c.b16 %v265, %v264
  %v274 = vpack.c.b16 %v267, %v266
  %v275 = vpack.c.b16 %v269, %v268
  %v276 = vpack.c.b16 %v271, %v270
  %v277 = vpack.c.b16 %v272, %v272
  %vm282 = vcmask 588800
  %v284 = vsel %vm282, %v223, 0
  %v287 = vsel %vm282, %v224, 0
  %v290 = vsel %vm282, %v225, 0
  %v293 = vsel %vm282, %v226, 0
  %v296 = vsel %vm282, %v227, 0
  %v299 = vsel %vm282, %v228, 0
  %v302 = vsel %vm282, %v229, 0
  %v305 = vsel %vm282, %v230, 0
  %v308 = vsel %vm282, %v231, 0
  %v311 = vsel %vm282, %v232, 0
  %v314 = vsel %vm282, %v233, 0
  %v317 = vsel %vm282, %v234, 0
  %v320 = vsel %vm282, %v235, 0
  %v323 = vsel %vm282, %v236, 0
  %v326 = vsel %vm282, %v237, 0
  %v329 = vsel %vm282, %v238, 0
  %v332 = vsel %vm282, %v239, 0
  %v335 = vsel %vm282, %v240, 0
  %v338 = vsel %vm282, %v241, 0
  %v341 = vsel %vm282, %v242, 0
  %v344 = vsel %vm282, %v243, 0
  %v347 = vsel %vm282, %v244, 0
  %v350 = vsel %vm282, %v245, 0
  %v353 = vsel %vm282, %v246, 0
  %v356 = vsel %vm282, %v247, 0
  %v359 = vsel %vm282, %v248, 0
  %v362 = vsel %vm282, %v249, 0
  %v365 = vsel %vm282, %v250, 0
  %v368 = vsel %vm282, %v251, 0
  %v371 = vsel %vm282, %v252, 0
  %v374 = vsel %vm282, %v253, 0
  %v377 = vsel %vm282, %v254, 0
  %vm379 = vcmask 1043456
  %v381 = vsel %vm379, %v277, 0
  %383 = vmatprep.subr.bf16.mxu0 0
  %384 = vmatpush1.bf16.msra.mxu0 0
  %385 = vmatprep.subr.bf16.mxu0 0
  %386 = vmatpush1.bf16.msra.mxu0 0
  %387 = vmatprep.subr.bf16.mxu0 0
  %388 = vmatpush1.bf16.msra.mxu0 0
  %389 = vmatprep.subr.bf16.mxu0 0
  %390 = vmatpush1.bf16.msra.mxu0 %v381
  %391 = vmatprep.subr.bf16.mxu0 0
  %392 = vmatpush1.bf16.msra.mxu0 %v276
  %393 = vmatprep.subr.bf16.mxu0 0
  %394 = vmatpush1.bf16.msra.mxu0 %v275
  %395 = vmatprep.subr.bf16.mxu0 0
  %396 = vmatpush1.bf16.msra.mxu0 %v274
  %397 = vmatprep.subr.bf16.mxu0 0
  %398 = vmatpush1.bf16.msra.mxu0 %v273
  %399 = vmatprep.subr.bf16.mxu0 0
  %400 = vmatpush2.bf16.msra.mxu0 0
  %401 = vmatprep.subr.bf16.mxu0 0
  %402 = vmatpush2.bf16.msra.mxu0 0
  %403 = vmatprep.subr.bf16.mxu0 0
  %404 = vmatpush2.bf16.msra.mxu0 0
  %405 = vmatprep.subr.bf16.mxu0 0
  %406 = vmatpush2.bf16.msra.mxu0 0
  %407 = vmatprep.subr.bf16.mxu0 0
  %408 = vmatpush2.bf16.msra.mxu0 0
  %409 = vmatprep.subr.bf16.mxu0 0
  %410 = vmatpush2.bf16.msra.mxu0 0
  %411 = vmatprep.subr.bf16.mxu0 0
  %412 = vmatpush2.bf16.msra.mxu0 0
  %413 = vmatprep.subr.bf16.mxu0 0
  %414 = vmatpush2.bf16.msra.mxu0 0
  %415 = vmatprep.mubr.bf16.mxu0 0
  %416 = vmatmul.mubr.bf16.gmra.mxu0 %v284
  %v417 = vpop.f32.mrf.mxu0
  %v418 = vadd.f32 %v93, %v417
  %v419 = vpop.f32.mrf.mxu0
  %v420 = vpop.f32.mrf.mxu0
  %v421 = vadd.f32 %v93, %v420
  %v422 = vpop.f32.mrf.mxu0
  %423 = vmatprep.mubr.bf16.mxu0 0
  %424 = vmatmul.mubr.bf16.gmra.mxu0 %v287
  %v425 = vpop.f32.mrf.mxu0
  %v426 = vadd.f32 %v93, %v425
  %v427 = vpop.f32.mrf.mxu0
  %v428 = vpop.f32.mrf.mxu0
  %v429 = vadd.f32 %v93, %v428
  %v430 = vpop.f32.mrf.mxu0
  %431 = vmatprep.mubr.bf16.mxu0 0
  %432 = vmatmul.mubr.bf16.gmra.mxu0 %v290
  %v433 = vpop.f32.mrf.mxu0
  %v434 = vadd.f32 %v93, %v433
  %v435 = vpop.f32.mrf.mxu0
  %v436 = vpop.f32.mrf.mxu0
  %v437 = vadd.f32 %v93, %v436
  %v438 = vpop.f32.mrf.mxu0
  %439 = vmatprep.mubr.bf16.mxu0 0
  %440 = vmatmul.mubr.bf16.gmra.mxu0 %v293
  %v441 = vpop.f32.mrf.mxu0
  %v442 = vadd.f32 %v93, %v441
  %v443 = vpop.f32.mrf.mxu0
  %v444 = vpop.f32.mrf.mxu0
  %v445 = vadd.f32 %v93, %v444
  %v446 = vpop.f32.mrf.mxu0
  %447 = vmatprep.mubr.bf16.mxu0 0
  %448 = vmatmul.mubr.bf16.gmra.mxu0 %v296
  %v449 = vpop.f32.mrf.mxu0
  %v450 = vadd.f32 %v93, %v449
  %v451 = vpop.f32.mrf.mxu0
  %v452 = vpop.f32.mrf.mxu0
  %v453 = vadd.f32 %v93, %v452
  %v454 = vpop.f32.mrf.mxu0
  %455 = vmatprep.mubr.bf16.mxu0 0
  %456 = vmatmul.mubr.bf16.gmra.mxu0 %v299
  %v457 = vpop.f32.mrf.mxu0
  %v458 = vadd.f32 %v93, %v457
  %v459 = vpop.f32.mrf.mxu0
  %v460 = vpop.f32.mrf.mxu0
  %v461 = vadd.f32 %v93, %v460
  %v462 = vpop.f32.mrf.mxu0
  %463 = vmatprep.mubr.bf16.mxu0 0
  %464 = vmatmul.mubr.bf16.gmra.mxu0 %v302
  %v465 = vpop.f32.mrf.mxu0
  %v466 = vadd.f32 %v93, %v465
  %v467 = vpop.f32.mrf.mxu0
  %v468 = vpop.f32.mrf.mxu0
  %v469 = vadd.f32 %v93, %v468
  %v470 = vpop.f32.mrf.mxu0
  %471 = vmatprep.mubr.bf16.mxu0 0
  %472 = vmatmul.mubr.bf16.gmra.mxu0 %v305
  %v473 = vpop.f32.mrf.mxu0
  %v474 = vadd.f32 %v93, %v473
  %v475 = vpop.f32.mrf.mxu0
  %v476 = vpop.f32.mrf.mxu0
  %v477 = vadd.f32 %v93, %v476
  %v478 = vpop.f32.mrf.mxu0
  %479 = vmatprep.mubr.bf16.mxu0 0
  %480 = vmatmul.mubr.bf16.gmra.mxu0 %v308
  %v481 = vpop.f32.mrf.mxu0
  %v482 = vadd.f32 %v93, %v481
  %v483 = vpop.f32.mrf.mxu0
  %v484 = vpop.f32.mrf.mxu0
  %v485 = vadd.f32 %v93, %v484
  %v486 = vpop.f32.mrf.mxu0
  %487 = vmatprep.mubr.bf16.mxu0 0
  %488 = vmatmul.mubr.bf16.gmra.mxu0 %v311
  %v489 = vpop.f32.mrf.mxu0
  %v490 = vadd.f32 %v93, %v489
  %v491 = vpop.f32.mrf.mxu0
  %v492 = vpop.f32.mrf.mxu0
  %v493 = vadd.f32 %v93, %v492
  %v494 = vpop.f32.mrf.mxu0
  %495 = vmatprep.mubr.bf16.mxu0 0
  %496 = vmatmul.mubr.bf16.gmra.mxu0 %v314
  %v497 = vpop.f32.mrf.mxu0
  %v498 = vadd.f32 %v93, %v497
  %v499 = vpop.f32.mrf.mxu0
  %v500 = vpop.f32.mrf.mxu0
  %v501 = vadd.f32 %v93, %v500
  %v502 = vpop.f32.mrf.mxu0
  %503 = vmatprep.mubr.bf16.mxu0 0
  %504 = vmatmul.mubr.bf16.gmra.mxu0 %v317
  %v505 = vpop.f32.mrf.mxu0
  %v506 = vadd.f32 %v93, %v505
  %v507 = vpop.f32.mrf.mxu0
  %v508 = vpop.f32.mrf.mxu0
  %v509 = vadd.f32 %v93, %v508
  %v510 = vpop.f32.mrf.mxu0
  %511 = vmatprep.mubr.bf16.mxu0 0
  %512 = vmatmul.mubr.bf16.gmra.mxu0 %v320
  %v513 = vpop.f32.mrf.mxu0
  %v514 = vadd.f32 %v93, %v513
  %v515 = vpop.f32.mrf.mxu0
  %v516 = vpop.f32.mrf.mxu0
  %v517 = vadd.f32 %v93, %v516
  %v518 = vpop.f32.mrf.mxu0
  %519 = vmatprep.mubr.bf16.mxu0 0
  %520 = vmatmul.mubr.bf16.gmra.mxu0 %v323
  %v521 = vpop.f32.mrf.mxu0
  %v522 = vadd.f32 %v93, %v521
  %v523 = vpop.f32.mrf.mxu0
  %v524 = vpop.f32.mrf.mxu0
  %v525 = vadd.f32 %v93, %v524
  %v526 = vpop.f32.mrf.mxu0
  %527 = vmatprep.mubr.bf16.mxu0 0
  %528 = vmatmul.mubr.bf16.gmra.mxu0 %v326
  %v529 = vpop.f32.mrf.mxu0
  %v530 = vadd.f32 %v93, %v529
  %v531 = vpop.f32.mrf.mxu0
  %v532 = vpop.f32.mrf.mxu0
  %v533 = vadd.f32 %v93, %v532
  %v534 = vpop.f32.mrf.mxu0
  %535 = vmatprep.mubr.bf16.mxu0 0
  %536 = vmatmul.mubr.bf16.gmra.mxu0 %v329
  %v537 = vpop.f32.mrf.mxu0
  %v538 = vadd.f32 %v93, %v537
  %v539 = vpop.f32.mrf.mxu0
  %v540 = vpop.f32.mrf.mxu0
  %v541 = vadd.f32 %v93, %v540
  %v542 = vpop.f32.mrf.mxu0
  %543 = vmatprep.mubr.bf16.mxu0 0
  %544 = vmatmul.mubr.bf16.gmra.mxu0 %v332
  %v545 = vpop.f32.mrf.mxu0
  %v546 = vadd.f32 %v93, %v545
  %v547 = vpop.f32.mrf.mxu0
  %v548 = vpop.f32.mrf.mxu0
  %v549 = vadd.f32 %v93, %v548
  %v550 = vpop.f32.mrf.mxu0
  %551 = vmatprep.mubr.bf16.mxu0 0
  %552 = vmatmul.mubr.bf16.gmra.mxu0 %v335
  %v553 = vpop.f32.mrf.mxu0
  %v554 = vadd.f32 %v93, %v553
  %v555 = vpop.f32.mrf.mxu0
  %v556 = vpop.f32.mrf.mxu0
  %v557 = vadd.f32 %v93, %v556
  %v558 = vpop.f32.mrf.mxu0
  %559 = vmatprep.mubr.bf16.mxu0 0
  %560 = vmatmul.mubr.bf16.gmra.mxu0 %v338
  %v561 = vpop.f32.mrf.mxu0
  %v562 = vadd.f32 %v93, %v561
  %v563 = vpop.f32.mrf.mxu0
  %v564 = vpop.f32.mrf.mxu0
  %v565 = vadd.f32 %v93, %v564
  %v566 = vpop.f32.mrf.mxu0
  %567 = vmatprep.mubr.bf16.mxu0 0
  %568 = vmatmul.mubr.bf16.gmra.mxu0 %v341
  %v569 = vpop.f32.mrf.mxu0
  %v570 = vadd.f32 %v93, %v569
  %v571 = vpop.f32.mrf.mxu0
  %v572 = vpop.f32.mrf.mxu0
  %v573 = vadd.f32 %v93, %v572
  %v574 = vpop.f32.mrf.mxu0
  %575 = vmatprep.mubr.bf16.mxu0 0
  %576 = vmatmul.mubr.bf16.gmra.mxu0 %v344
  %v577 = vpop.f32.mrf.mxu0
  %v578 = vadd.f32 %v93, %v577
  %v579 = vpop.f32.mrf.mxu0
  %v580 = vpop.f32.mrf.mxu0
  %v581 = vadd.f32 %v93, %v580
  %v582 = vpop.f32.mrf.mxu0
  %583 = vmatprep.mubr.bf16.mxu0 0
  %584 = vmatmul.mubr.bf16.gmra.mxu0 %v347
  %v585 = vpop.f32.mrf.mxu0
  %v586 = vadd.f32 %v93, %v585
  %v587 = vpop.f32.mrf.mxu0
  %v588 = vpop.f32.mrf.mxu0
  %v589 = vadd.f32 %v93, %v588
  %v590 = vpop.f32.mrf.mxu0
  %591 = vmatprep.mubr.bf16.mxu0 0
  %592 = vmatmul.mubr.bf16.gmra.mxu0 %v350
  %v593 = vpop.f32.mrf.mxu0
  %v594 = vadd.f32 %v93, %v593
  %v595 = vpop.f32.mrf.mxu0
  %v596 = vpop.f32.mrf.mxu0
  %v597 = vadd.f32 %v93, %v596
  %v598 = vpop.f32.mrf.mxu0
  %599 = vmatprep.mubr.bf16.mxu0 0
  %600 = vmatmul.mubr.bf16.gmra.mxu0 %v353
  %v601 = vpop.f32.mrf.mxu0
  %v602 = vadd.f32 %v93, %v601
  %v603 = vpop.f32.mrf.mxu0
  %v604 = vpop.f32.mrf.mxu0
  %v605 = vadd.f32 %v93, %v604
  %v606 = vpop.f32.mrf.mxu0
  %607 = vmatprep.mubr.bf16.mxu0 0
  %608 = vmatmul.mubr.bf16.gmra.mxu0 %v356
  %v609 = vpop.f32.mrf.mxu0
  %v610 = vadd.f32 %v93, %v609
  %v611 = vpop.f32.mrf.mxu0
  %v612 = vpop.f32.mrf.mxu0
  %v613 = vadd.f32 %v93, %v612
  %v614 = vpop.f32.mrf.mxu0
  %615 = vmatprep.mubr.bf16.mxu0 0
  %616 = vmatmul.mubr.bf16.gmra.mxu0 %v359
  %v617 = vpop.f32.mrf.mxu0
  %v618 = vadd.f32 %v93, %v617
  %v619 = vpop.f32.mrf.mxu0
  %v620 = vpop.f32.mrf.mxu0
  %v621 = vadd.f32 %v93, %v620
  %v622 = vpop.f32.mrf.mxu0
  %623 = vmatprep.mubr.bf16.mxu0 0
  %624 = vmatmul.mubr.bf16.gmra.mxu0 %v362
  %v625 = vpop.f32.mrf.mxu0
  %v626 = vadd.f32 %v93, %v625
  %v627 = vpop.f32.mrf.mxu0
  %v628 = vpop.f32.mrf.mxu0
  %v629 = vadd.f32 %v93, %v628
  %v630 = vpop.f32.mrf.mxu0
  %631 = vmatprep.mubr.bf16.mxu0 0
  %632 = vmatmul.mubr.bf16.gmra.mxu0 %v365
  %v633 = vpop.f32.mrf.mxu0
  %v634 = vadd.f32 %v93, %v633
  %v635 = vpop.f32.mrf.mxu0
  %v636 = vpop.f32.mrf.mxu0
  %v637 = vadd.f32 %v93, %v636
  %v638 = vpop.f32.mrf.mxu0
  %639 = vmatprep.mubr.bf16.mxu0 0
  %640 = vmatmul.mubr.bf16.gmra.mxu0 %v368
  %v641 = vpop.f32.mrf.mxu0
  %v642 = vadd.f32 %v93, %v641
  %v643 = vpop.f32.mrf.mxu0
  %v644 = vpop.f32.mrf.mxu0
  %v645 = vadd.f32 %v93, %v644
  %v646 = vpop.f32.mrf.mxu0
  %647 = vmatprep.mubr.bf16.mxu0 0
  %648 = vmatmul.mubr.bf16.gmra.mxu0 %v371
  %v649 = vpop.f32.mrf.mxu0
  %v650 = vadd.f32 %v93, %v649
  %v651 = vpop.f32.mrf.mxu0
  %v652 = vpop.f32.mrf.mxu0
  %v653 = vadd.f32 %v93, %v652
  %v654 = vpop.f32.mrf.mxu0
  %655 = vmatprep.mubr.bf16.mxu0 0
  %656 = vmatmul.mubr.bf16.gmra.mxu0 %v374
  %v657 = vpop.f32.mrf.mxu0
  %v658 = vadd.f32 %v93, %v657
  %v659 = vpop.f32.mrf.mxu0
  %v660 = vpop.f32.mrf.mxu0
  %v661 = vadd.f32 %v93, %v660
  %v662 = vpop.f32.mrf.mxu0
  %663 = vmatprep.mubr.bf16.mxu0 0
  %664 = vmatmul.mubr.bf16.gmra.mxu0 %v377
  %v665 = vpop.f32.mrf.mxu0
  %v666 = vadd.f32 %v93, %v665
  %v667 = vpop.f32.mrf.mxu0
  %v668 = vpop.f32.mrf.mxu0
  %v669 = vadd.f32 %v93, %v668
  %v670 = vpop.f32.mrf.mxu0
  %671 = vdwg.mxu0
  %v672 = vmax.f32 %v418, 0.0
  %v673 = vmax.f32 %v421, 0.0
  %v674 = vmax.f32 %v426, 0.0
  %v675 = vmax.f32 %v429, 0.0
  %v676 = vmax.f32 %v434, 0.0
  %v677 = vmax.f32 %v437, 0.0
  %v678 = vmax.f32 %v442, 0.0
  %v679 = vmax.f32 %v445, 0.0
  %v680 = vmax.f32 %v450, 0.0
  %v681 = vmax.f32 %v453, 0.0
  %v682 = vmax.f32 %v458, 0.0
  %v683 = vmax.f32 %v461, 0.0
  %v684 = vmax.f32 %v466, 0.0
  %v685 = vmax.f32 %v469, 0.0
  %v686 = vmax.f32 %v474, 0.0
  %v687 = vmax.f32 %v477, 0.0
  %v688 = vmax.f32 %v482, 0.0
  %v689 = vmax.f32 %v485, 0.0
  %v690 = vmax.f32 %v490, 0.0
  %v691 = vmax.f32 %v493, 0.0
  %v692 = vmax.f32 %v498, 0.0
  %v693 = vmax.f32 %v501, 0.0
  %v694 = vmax.f32 %v506, 0.0
  %v695 = vmax.f32 %v509, 0.0
  %v696 = vmax.f32 %v514, 0.0
  %v697 = vmax.f32 %v517, 0.0
  %v698 = vmax.f32 %v522, 0.0
  %v699 = vmax.f32 %v525, 0.0
  %v700 = vmax.f32 %v530, 0.0
  %v701 = vmax.f32 %v533, 0.0
  %v702 = vmax.f32 %v538, 0.0
  %v703 = vmax.f32 %v541, 0.0
  %v704 = vmax.f32 %v546, 0.0
  %v705 = vmax.f32 %v549, 0.0
  %v706 = vmax.f32 %v554, 0.0
  %v707 = vmax.f32 %v557, 0.0
  %v708 = vmax.f32 %v562, 0.0
  %v709 = vmax.f32 %v565, 0.0
  %v710 = vmax.f32 %v570, 0.0
  %v711 = vmax.f32 %v573, 0.0
  %v712 = vmax.f32 %v578, 0.0
  %v713 = vmax.f32 %v581, 0.0
  %v714 = vmax.f32 %v586, 0.0
  %v715 = vmax.f32 %v589, 0.0
  %v716 = vmax.f32 %v594, 0.0
  %v717 = vmax.f32 %v597, 0.0
  %v718 = vmax.f32 %v602, 0.0
  %v719 = vmax.f32 %v605, 0.0
  %v720 = vmax.f32 %v610, 0.0
  %v721 = vmax.f32 %v613, 0.0
  %v722 = vmax.f32 %v618, 0.0
  %v723 = vmax.f32 %v621, 0.0
  %v724 = vmax.f32 %v626, 0.0
  %v725 = vmax.f32 %v629, 0.0
  %v726 = vmax.f32 %v634, 0.0
  %v727 = vmax.f32 %v637, 0.0
  %v728 = vmax.f32 %v642, 0.0
  %v729 = vmax.f32 %v645, 0.0
  %v730 = vmax.f32 %v650, 0.0
  %v731 = vmax.f32 %v653, 0.0
  %v732 = vmax.f32 %v658, 0.0
  %v733 = vmax.f32 %v661, 0.0
  %v734 = vmax.f32 %v666, 0.0
  %v735 = vmax.f32 %v669, 0.0
  %v736 = vpack.c.bf16 %v673, %v672
  %v737 = vpack.c.bf16 %v675, %v674
  %v738 = vpack.c.bf16 %v677, %v676
  %v739 = vpack.c.bf16 %v679, %v678
  %v740 = vpack.c.bf16 %v681, %v680
  %v741 = vpack.c.bf16 %v683, %v682
  %v742 = vpack.c.bf16 %v685, %v684
  %v743 = vpack.c.bf16 %v687, %v686
  %v744 = vpack.c.bf16 %v689, %v688
  %v745 = vpack.c.bf16 %v691, %v690
  %v746 = vpack.c.bf16 %v693, %v692
  %v747 = vpack.c.bf16 %v695, %v694
  %v748 = vpack.c.bf16 %v697, %v696
  %v749 = vpack.c.bf16 %v699, %v698
  %v750 = vpack.c.bf16 %v701, %v700
  %v751 = vpack.c.bf16 %v703, %v702
  %v752 = vpack.c.bf16 %v705, %v704
  %v753 = vpack.c.bf16 %v707, %v706
  %v754 = vpack.c.bf16 %v709, %v708
  %v755 = vpack.c.bf16 %v711, %v710
  %v756 = vpack.c.bf16 %v713, %v712
  %v757 = vpack.c.bf16 %v715, %v714
  %v758 = vpack.c.bf16 %v717, %v716
  %v759 = vpack.c.bf16 %v719, %v718
  %v760 = vpack.c.bf16 %v721, %v720
  %v761 = vpack.c.bf16 %v723, %v722
  %v762 = vpack.c.bf16 %v725, %v724
  %v763 = vpack.c.bf16 %v727, %v726
  %v764 = vpack.c.bf16 %v729, %v728
  %v765 = vpack.c.bf16 %v731, %v730
  %v766 = vpack.c.bf16 %v733, %v732
  %v767 = vpack.c.bf16 %v735, %v734
  %v800 = vunpack.c.l.b16 %v736
  %v801 = vunpack.c.h.b16 %v736
  %v802 = vunpack.c.l.b16 %v737
  %v803 = vunpack.c.h.b16 %v737
  %v804 = vunpack.c.l.b16 %v738
  %v805 = vunpack.c.h.b16 %v738
  %v806 = vunpack.c.l.b16 %v739
  %v807 = vunpack.c.h.b16 %v739
  %v808 = vunpack.c.l.b16 %v740
  %v809 = vunpack.c.h.b16 %v740
  %v810 = vunpack.c.l.b16 %v741
  %v811 = vunpack.c.h.b16 %v741
  %v812 = vunpack.c.l.b16 %v742
  %v813 = vunpack.c.h.b16 %v742
  %v814 = vunpack.c.l.b16 %v743
  %v815 = vunpack.c.h.b16 %v743
  %v816 = vunpack.c.l.b16 %v744
  %v817 = vunpack.c.h.b16 %v744
  %v818 = vunpack.c.l.b16 %v745
  %v819 = vunpack.c.h.b16 %v745
  %v820 = vunpack.c.l.b16 %v746
  %v821 = vunpack.c.h.b16 %v746
  %v822 = vunpack.c.l.b16 %v747
  %v823 = vunpack.c.h.b16 %v747
  %v824 = vunpack.c.l.b16 %v748
  %v825 = vunpack.c.h.b16 %v748
  %v826 = vunpack.c.l.b16 %v749
  %v827 = vunpack.c.h.b16 %v749
  %v828 = vunpack.c.l.b16 %v750
  %v829 = vunpack.c.h.b16 %v750
  %v830 = vunpack.c.l.b16 %v751
  %v831 = vunpack.c.h.b16 %v751
  %v832 = vunpack.c.l.b16 %v752
  %v833 = vunpack.c.h.b16 %v752
  %v834 = vunpack.c.l.b16 %v753
  %v835 = vunpack.c.h.b16 %v753
  %v836 = vunpack.c.l.b16 %v754
  %v837 = vunpack.c.h.b16 %v754
  %v838 = vunpack.c.l.b16 %v755
  %v839 = vunpack.c.h.b16 %v755
  %v840 = vunpack.c.l.b16 %v756
  %v841 = vunpack.c.h.b16 %v756
  %v842 = vunpack.c.l.b16 %v757
  %v843 = vunpack.c.h.b16 %v757
  %v844 = vunpack.c.l.b16 %v758
  %v845 = vunpack.c.h.b16 %v758
  %v846 = vunpack.c.l.b16 %v759
  %v847 = vunpack.c.h.b16 %v759
  %v848 = vunpack.c.l.b16 %v760
  %v849 = vunpack.c.h.b16 %v760
  %v850 = vunpack.c.l.b16 %v761
  %v851 = vunpack.c.h.b16 %v761
  %v852 = vunpack.c.l.b16 %v762
  %v853 = vunpack.c.h.b16 %v762
  %v854 = vunpack.c.l.b16 %v763
  %v855 = vunpack.c.h.b16 %v763
  %v856 = vunpack.c.l.b16 %v764
  %v857 = vunpack.c.h.b16 %v764
  %v858 = vunpack.c.l.b16 %v765
  %v859 = vunpack.c.h.b16 %v765
  %v860 = vunpack.c.l.b16 %v766
  %v861 = vunpack.c.h.b16 %v766
  %v862 = vunpack.c.l.b16 %v767
  %v863 = vunpack.c.h.b16 %v767
  %v864 = vpack.c.b16 %v800, %v800
  %v865 = vpack.c.b16 %v801, %v801
  %v866 = vpack.c.b16 %v802, %v802
  %v867 = vpack.c.b16 %v803, %v803
  %v868 = vpack.c.b16 %v804, %v804
  %v869 = vpack.c.b16 %v805, %v805
  %v870 = vpack.c.b16 %v806, %v806
  %v871 = vpack.c.b16 %v807, %v807
  %v872 = vpack.c.b16 %v808, %v808
  %v873 = vpack.c.b16 %v809, %v809
  %v874 = vpack.c.b16 %v810, %v810
  %v875 = vpack.c.b16 %v811, %v811
  %v876 = vpack.c.b16 %v812, %v812
  %v877 = vpack.c.b16 %v813, %v813
  %v878 = vpack.c.b16 %v814, %v814
  %v879 = vpack.c.b16 %v815, %v815
  %v880 = vpack.c.b16 %v816, %v816
  %v881 = vpack.c.b16 %v817, %v817
  %v882 = vpack.c.b16 %v818, %v818
  %v883 = vpack.c.b16 %v819, %v819
  %v884 = vpack.c.b16 %v820, %v820
  %v885 = vpack.c.b16 %v821, %v821
  %v886 = vpack.c.b16 %v822, %v822
  %v887 = vpack.c.b16 %v823, %v823
  %v888 = vpack.c.b16 %v824, %v824
  %v889 = vpack.c.b16 %v825, %v825
  %v890 = vpack.c.b16 %v826, %v826
  %v891 = vpack.c.b16 %v827, %v827
  %v892 = vpack.c.b16 %v828, %v828
  %v893 = vpack.c.b16 %v829, %v829
  %v894 = vpack.c.b16 %v830, %v830
  %v895 = vpack.c.b16 %v831, %v831
  %v896 = vpack.c.b16 %v832, %v832
  %v897 = vpack.c.b16 %v833, %v833
  %v898 = vpack.c.b16 %v834, %v834
  %v899 = vpack.c.b16 %v835, %v835
  %v900 = vpack.c.b16 %v836, %v836
  %v901 = vpack.c.b16 %v837, %v837
  %v902 = vpack.c.b16 %v838, %v838
  %v903 = vpack.c.b16 %v839, %v839
  %v904 = vpack.c.b16 %v840, %v840
  %v905 = vpack.c.b16 %v841, %v841
  %v906 = vpack.c.b16 %v842, %v842
  %v907 = vpack.c.b16 %v843, %v843
  %v908 = vpack.c.b16 %v844, %v844
  %v909 = vpack.c.b16 %v845, %v845
  %v910 = vpack.c.b16 %v846, %v846
  %v911 = vpack.c.b16 %v847, %v847
  %v912 = vpack.c.b16 %v848, %v848
  %v913 = vpack.c.b16 %v849, %v849
  %v914 = vpack.c.b16 %v850, %v850
  %v915 = vpack.c.b16 %v851, %v851
  %v916 = vpack.c.b16 %v852, %v852
  %v917 = vpack.c.b16 %v853, %v853
  %v918 = vpack.c.b16 %v854, %v854
  %v919 = vpack.c.b16 %v855, %v855
  %v920 = vpack.c.b16 %v856, %v856
  %v921 = vpack.c.b16 %v857, %v857
  %v922 = vpack.c.b16 %v858, %v858
  %v923 = vpack.c.b16 %v859, %v859
  %v924 = vpack.c.b16 %v860, %v860
  %v925 = vpack.c.b16 %v861, %v861
  %v926 = vpack.c.b16 %v862, %v862
  %v927 = vpack.c.b16 %v863, %v863
  %992 = vst [vmem:[%s3] sm:$0xf] %v864
  %993 = vst [vmem:[%s3 + $0x4] sm:$0xf] %v865
  %994 = vst [vmem:[%s3 + $0x8] sm:$0xf] %v866
  %995 = vst [vmem:[%s3 + $0xc] sm:$0xf] %v867
  %996 = vst [vmem:[%s3 + $0x10] sm:$0xf] %v868
  %997 = vst [vmem:[%s3 + $0x14] sm:$0xf] %v869
  %998 = vst [vmem:[%s3 + $0x18] sm:$0xf] %v870
  %999 = vst [vmem:[%s3 + $0x1c] sm:$0xf] %v871
  %1000 = vst [vmem:[%s3 + $0x20] sm:$0xf] %v872
  %1001 = vst [vmem:[%s3 + $0x24] sm:$0xf] %v873
  %1002 = vst [vmem:[%s3 + $0x28] sm:$0xf] %v874
  %1003 = vst [vmem:[%s3 + $0x2c] sm:$0xf] %v875
  %1004 = vst [vmem:[%s3 + $0x30] sm:$0xf] %v876
  %1005 = vst [vmem:[%s3 + $0x34] sm:$0xf] %v877
  %1006 = vst [vmem:[%s3 + $0x38] sm:$0xf] %v878
  %1007 = vst [vmem:[%s3 + $0x3c] sm:$0xf] %v879
  %1008 = vst [vmem:[%s3 + $0x40] sm:$0xf] %v880
  %1009 = vst [vmem:[%s3 + $0x44] sm:$0xf] %v881
  %1010 = vst [vmem:[%s3 + $0x48] sm:$0xf] %v882
  %1011 = vst [vmem:[%s3 + $0x4c] sm:$0xf] %v883
  %1012 = vst [vmem:[%s3 + $0x50] sm:$0xf] %v884
  %1013 = vst [vmem:[%s3 + $0x54] sm:$0xf] %v885
  %1014 = vst [vmem:[%s3 + $0x58] sm:$0xf] %v886
  %1015 = vst [vmem:[%s3 + $0x5c] sm:$0xf] %v887
  %1016 = vst [vmem:[%s3 + $0x60] sm:$0xf] %v888
  %1017 = vst [vmem:[%s3 + $0x64] sm:$0xf] %v889
  %1018 = vst [vmem:[%s3 + $0x68] sm:$0xf] %v890
  %1019 = vst [vmem:[%s3 + $0x6c] sm:$0xf] %v891
  %1020 = vst [vmem:[%s3 + $0x70] sm:$0xf] %v892
  %1021 = vst [vmem:[%s3 + $0x74] sm:$0xf] %v893
  %1022 = vst [vmem:[%s3 + $0x78] sm:$0xf] %v894
  %1023 = vst [vmem:[%s3 + $0x7c] sm:$0xf] %v895
  %1024 = vst [vmem:[%s3 + $0x80] sm:$0xf] %v896
  %1025 = vst [vmem:[%s3 + $0x84] sm:$0xf] %v897
  %1026 = vst [vmem:[%s3 + $0x88] sm:$0xf] %v898
  %1027 = vst [vmem:[%s3 + $0x8c] sm:$0xf] %v899
  %1028 = vst [vmem:[%s3 + $0x90] sm:$0xf] %v900
  %1029 = vst [vmem:[%s3 + $0x94] sm:$0xf] %v901
  %1030 = vst [vmem:[%s3 + $0x98] sm:$0xf] %v902
  %1031 = vst [vmem:[%s3 + $0x9c] sm:$0xf] %v903
  %1032 = vst [vmem:[%s3 + $0xa0] sm:$0xf] %v904
  %1033 = vst [vmem:[%s3 + $0xa4] sm:$0xf] %v905
  %1034 = vst [vmem:[%s3 + $0xa8] sm:$0xf] %v906
  %1035 = vst [vmem:[%s3 + $0xac] sm:$0xf] %v907
  %1036 = vst [vmem:[%s3 + $0xb0] sm:$0xf] %v908
  %1037 = vst [vmem:[%s3 + $0xb4] sm:$0xf] %v909
  %1038 = vst [vmem:[%s3 + $0xb8] sm:$0xf] %v910
  %1039 = vst [vmem:[%s3 + $0xbc] sm:$0xf] %v911
  %1040 = vst [vmem:[%s3 + $0xc0] sm:$0xf] %v912
  %1041 = vst [vmem:[%s3 + $0xc4] sm:$0xf] %v913
  %1042 = vst [vmem:[%s3 + $0xc8] sm:$0xf] %v914
  %1043 = vst [vmem:[%s3 + $0xcc] sm:$0xf] %v915
  %1044 = vst [vmem:[%s3 + $0xd0] sm:$0xf] %v916
  %1045 = vst [vmem:[%s3 + $0xd4] sm:$0xf] %v917
  %1046 = vst [vmem:[%s3 + $0xd8] sm:$0xf] %v918
  %1047 = vst [vmem:[%s3 + $0xdc] sm:$0xf] %v919
  %1048 = vst [vmem:[%s3 + $0xe0] sm:$0xf] %v920
  %1049 = vst [vmem:[%s3 + $0xe4] sm:$0xf] %v921
  %1050 = vst [vmem:[%s3 + $0xe8] sm:$0xf] %v922
  %1051 = vst [vmem:[%s3 + $0xec] sm:$0xf] %v923
  %1052 = vst [vmem:[%s3 + $0xf0] sm:$0xf] %v924
  %1053 = vst [vmem:[%s3 + $0xf4] sm:$0xf] %v925
  %1054 = vst [vmem:[%s3 + $0xf8] sm:$0xf] %v926
  %1055 = vst [vmem:[%s3 + $0xfc] sm:$0xf] %v927
  // Predicated region
  $region14: #{uacanet_forward.11} parent=0 // pred_check
    _
  $region15: #{uacanet_forward.11} parent=0 // pred_check_branch
    %1057 = sbr.rel (0) target = $region17
  $region16: #{uacanet_forward.11} parent=0 // pred_region
    _
  $region17: #{uacanet_forward.11} parent=0 // pred_fallthru
    _
  // Predicated region
  $region18: #{uacanet_forward.11} parent=0 // pred_check
    _
  $region19: #{uacanet_forward.11} parent=0 // pred_check_branch
    %1059 = sbr.rel (0) target = $region21
  $region20: #{uacanet_forward.11} parent=0 // pred_region
    _
  $region21: #{uacanet_forward.11} parent=0 // pred_fallthru
    _

// kernel: uacanet_forward.12
$region0: #{uacanet_forward.12}
  #allocation0 [shape = 'u32[]', space=smem, size = 0x4, offset = 0x4, fixed_abs, tag = 'smem constant byte address 0x4 - core index']
  #allocation1 [shape = 'u32[144,128]{1,0:T(1,128)}', space=vmem, size = 0x12000, scoped, tag = 'internal scratch']
  %s0 = inlined_call_operand.vmem [shape: bf16[128,288], index: 0, kind: input, shape index: {}]
  %s1 = inlined_call_operand.vmem [shape: bf16[288,128], index: 1, kind: input, shape index: {}]
  %s2 = inlined_call_operand.vmem [shape: f32[1,128], index: 2, kind: input, shape index: {}]
  %s3 = inlined_call_operand.vmem [shape: bf16[128,128], index: 3, kind: input, shape index: {}]
  %s4 = inlined_call_operand.vmem [shape: f32[1,128], index: 4, kind: input, shape index: {}]
  %s5 = inlined_call_operand.vmem [shape: bf16[128,128], index: 5, kind: output, shape index: {0}]
  %s6 = inlined_call_operand.vmem [shape: bf16[128,128], index: 6, kind: output, shape index: {1}]
  %7 = xla_tuple %s5, %s6
  %s8 = sld [smem:[#allocation0]]
  $region38: #{uacanet_forward.12} parent=0
    _
  %s10 = ssub.s32 1, %s8
  %s11 = scalar_select 0, %s10, %s8
  // Predicated region
  $region2: #{uacanet_forward.12} parent=0 // pred_check
    _
  $region3: #{uacanet_forward.12} parent=0 // pred_check_branch
    %13 = sbr.rel (0) target = $region5
  $region4: #{uacanet_forward.12} parent=0 // pred_region
    _
  $region5: #{uacanet_forward.12} parent=0 // pred_fallthru
    _
  // Predicated region
  $region6: #{uacanet_forward.12} parent=0 // pred_check
    _
  $region7: #{uacanet_forward.12} parent=0 // pred_check_branch
    %15 = sbr.rel (0) target = $region9
  $region8: #{uacanet_forward.12} parent=0 // pred_region
    _
  $region9: #{uacanet_forward.12} parent=0 // pred_fallthru
    _
  // Predicated region
  $region10: #{uacanet_forward.12} parent=0 // pred_check
    _
  $region11: #{uacanet_forward.12} parent=0 // pred_check_branch
    %17 = sbr.rel (0) target = $region13
  $region12: #{uacanet_forward.12} parent=0 // pred_region
    _
  $region13: #{uacanet_forward.12} parent=0 // pred_fallthru
    _
  // Predicated region
  $region14: #{uacanet_forward.12} parent=0 // pred_check
    _
  $region15: #{uacanet_forward.12} parent=0 // pred_check_branch
    %19 = sbr.rel (0) target = $region17
  $region16: #{uacanet_forward.12} parent=0 // pred_region
    _
  $region17: #{uacanet_forward.12} parent=0 // pred_fallthru
    _
  // Predicated region
  $region18: #{uacanet_forward.12} parent=0 // pred_check
    _
  $region19: #{uacanet_forward.12} parent=0 // pred_check_branch
    %21 = sbr.rel (0) target = $region21
  $region20: #{uacanet_forward.12} parent=0 // pred_region
    _
  $region21: #{uacanet_forward.12} parent=0 // pred_fallthru
    _
  %v23 = vld [vmem:[%s0] sm:$0xff]
  %v24 = vld [vmem:[%s0 + $0x8] sm:$0xf]
  %v25 = vld [vmem:[%s0 + $0xc] sm:$0xff]
  %v26 = vld [vmem:[%s0 + $0x14] sm:$0xf]
  %v27 = vld [vmem:[%s0 + $0x18] sm:$0xff]
  %v28 = vld [vmem:[%s0 + $0x20] sm:$0xf]
  %v29 = vld [vmem:[%s0 + $0x24] sm:$0xff]
  %v30 = vld [vmem:[%s0 + $0x2c] sm:$0xf]
  %v31 = vld [vmem:[%s0 + $0x30] sm:$0xff]
  %v32 = vld [vmem:[%s0 + $0x38] sm:$0xf]
  %v33 = vld [vmem:[%s0 + $0x3c] sm:$0xff]
  %v34 = vld [vmem:[%s0 + $0x44] sm:$0xf]
  %v35 = vld [vmem:[%s0 + $0x48] sm:$0xff]
  %v36 = vld [vmem:[%s0 + $0x50] sm:$0xf]
  %v37 = vld [vmem:[%s0 + $0x54] sm:$0xff]
  %v38 = vld [vmem:[%s0 + $0x5c] sm:$0xf]
  %v39 = vld [vmem:[%s0 + $0x60] sm:$0xff]
  %v40 = vld [vmem:[%s0 + $0x68] sm:$0xf]
  %v41 = vld [vmem:[%s0 + $0x6c] sm:$0xff]
  %v42 = vld [vmem:[%s0 + $0x74] sm:$0xf]
  %v43 = vld [vmem:[%s0 + $0x78] sm:$0xff]
  %v44 = vld [vmem:[%s0 + $0x80] sm:$0xf]
  %v45 = vld [vmem:[%s0 + $0x84] sm:$0xff]
  %v46 = vld [vmem:[%s0 + $0x8c] sm:$0xf]
  %v47 = vld [vmem:[%s0 + $0x90] sm:$0xff]
  %v48 = vld [vmem:[%s0 + $0x98] sm:$0xf]
  %v49 = vld [vmem:[%s0 + $0x9c] sm:$0xff]
  %v50 = vld [vmem:[%s0 + $0xa4] sm:$0xf]
  %v51 = vld [vmem:[%s0 + $0xa8] sm:$0xff]
  %v52 = vld [vmem:[%s0 + $0xb0] sm:$0xf]
  %v53 = vld [vmem:[%s0 + $0xb4] sm:$0xff]
  %v54 = vld [vmem:[%s0 + $0xbc] sm:$0xf]
  %v55 = vld [vmem:[%s1] sm:$0xf]
  %v56 = vld [vmem:[%s1 + $0x4] sm:$0xf]
  %v57 = vld [vmem:[%s1 + $0x8] sm:$0xf]
  %v58 = vld [vmem:[%s1 + $0xc] sm:$0xf]
  %v59 = vld [vmem:[%s1 + $0x10] sm:$0xf]
  %v60 = vld [vmem:[%s1 + $0x14] sm:$0xf]
  %v61 = vld [vmem:[%s1 + $0x18] sm:$0xf]
  %v62 = vld [vmem:[%s1 + $0x1c] sm:$0xf]
  %v63 = vld [vmem:[%s1 + $0x20] sm:$0xf]
  %v64 = vld [vmem:[%s1 + $0x24] sm:$0xf]
  %v65 = vld [vmem:[%s1 + $0x28] sm:$0xf]
  %v66 = vld [vmem:[%s1 + $0x2c] sm:$0xf]
  %v67 = vld [vmem:[%s1 + $0x30] sm:$0xf]
  %v68 = vld [vmem:[%s1 + $0x34] sm:$0xf]
  %v69 = vld [vmem:[%s1 + $0x38] sm:$0xf]
  %v70 = vld [vmem:[%s1 + $0x3c] sm:$0xf]
  %v71 = vld [vmem:[%s1 + $0x40] sm:$0xf]
  %v72 = vld [vmem:[%s1 + $0x44] sm:$0xf]
  %v73 = vld [vmem:[%s1 + $0x48] sm:$0xf]
  %v74 = vld [vmem:[%s1 + $0x4c] sm:$0xf]
  %v75 = vld [vmem:[%s1 + $0x50] sm:$0xf]
  %v76 = vld [vmem:[%s1 + $0x54] sm:$0xf]
  %v77 = vld [vmem:[%s1 + $0x58] sm:$0xf]
  %v78 = vld [vmem:[%s1 + $0x5c] sm:$0xf]
  %v79 = vld [vmem:[%s1 + $0x60] sm:$0xf]
  %v80 = vld [vmem:[%s1 + $0x64] sm:$0xf]
  %v81 = vld [vmem:[%s1 + $0x68] sm:$0xf]
  %v82 = vld [vmem:[%s1 + $0x6c] sm:$0xf]
  %v83 = vld [vmem:[%s1 + $0x70] sm:$0xf]
  %v84 = vld [vmem:[%s1 + $0x74] sm:$0xf]
  %v85 = vld [vmem:[%s1 + $0x78] sm:$0xf]
  %v86 = vld [vmem:[%s1 + $0x7c] sm:$0xf]
  %v87 = vld [vmem:[%s1 + $0x80] sm:$0xf]
  %v88 = vld [vmem:[%s1 + $0x84] sm:$0xf]
  %v89 = vld [vmem:[%s1 + $0x88] sm:$0xf]
  %v90 = vld [vmem:[%s1 + $0x8c] sm:$0xf]
  %v91 = vld [vmem:[%s2] sm:$0x1]
  %v93 = vlaneseq
  %v94 = vshrl.u32 %v93, 7
  %v95 = vsub.s32 0, %v94
  %v96 = vrot.slane %v91, %v95
  %v130 = vunpack.c.l.b16 %v23
  %v131 = vunpack.c.h.b16 %v23
  %v132 = vunpack.c.l.b16 %v24
  %v133 = vunpack.c.l.b16 %v25
  %v134 = vunpack.c.h.b16 %v25
  %v135 = vunpack.c.l.b16 %v26
  %v136 = vunpack.c.l.b16 %v27
  %v137 = vunpack.c.h.b16 %v27
  %v138 = vunpack.c.l.b16 %v28
  %v139 = vunpack.c.l.b16 %v29
  %v140 = vunpack.c.h.b16 %v29
  %v141 = vunpack.c.l.b16 %v30
  %v142 = vunpack.c.l.b16 %v31
  %v143 = vunpack.c.h.b16 %v31
  %v144 = vunpack.c.l.b16 %v32
  %v145 = vunpack.c.l.b16 %v33
  %v146 = vunpack.c.h.b16 %v33
  %v147 = vunpack.c.l.b16 %v34
  %v148 = vunpack.c.l.b16 %v35
  %v149 = vunpack.c.h.b16 %v35
  %v150 = vunpack.c.l.b16 %v36
  %v151 = vunpack.c.l.b16 %v37
  %v152 = vunpack.c.h.b16 %v37
  %v153 = vunpack.c.l.b16 %v38
  %v154 = vunpack.c.l.b16 %v39
  %v155 = vunpack.c.h.b16 %v39
  %v156 = vunpack.c.l.b16 %v40
  %v157 = vunpack.c.l.b16 %v41
  %v158 = vunpack.c.h.b16 %v41
  %v159 = vunpack.c.l.b16 %v42
  %v160 = vunpack.c.l.b16 %v43
  %v161 = vunpack.c.h.b16 %v43
  %v162 = vunpack.c.l.b16 %v44
  %v163 = vunpack.c.l.b16 %v45
  %v164 = vunpack.c.h.b16 %v45
  %v165 = vunpack.c.l.b16 %v46
  %v166 = vunpack.c.l.b16 %v47
  %v167 = vunpack.c.h.b16 %v47
  %v168 = vunpack.c.l.b16 %v48
  %v169 = vunpack.c.l.b16 %v49
  %v170 = vunpack.c.h.b16 %v49
  %v171 = vunpack.c.l.b16 %v50
  %v172 = vunpack.c.l.b16 %v51
  %v173 = vunpack.c.h.b16 %v51
  %v174 = vunpack.c.l.b16 %v52
  %v175 = vunpack.c.l.b16 %v53
  %v176 = vunpack.c.h.b16 %v53
  %v177 = vunpack.c.l.b16 %v54
  %v178 = vpack.c.b16 %v133, %v130
  %v179 = vpack.c.b16 %v134, %v131
  %v180 = vpack.c.b16 %v135, %v132
  %v181 = vpack.c.b16 %v139, %v136
  %v182 = vpack.c.b16 %v140, %v137
  %v183 = vpack.c.b16 %v141, %v138
  %v184 = vpack.c.b16 %v145, %v142
  %v185 = vpack.c.b16 %v146, %v143
  %v186 = vpack.c.b16 %v147, %v144
  %v187 = vpack.c.b16 %v151, %v148
  %v188 = vpack.c.b16 %v152, %v149
  %v189 = vpack.c.b16 %v153, %v150
  %v190 = vpack.c.b16 %v157, %v154
  %v191 = vpack.c.b16 %v158, %v155
  %v192 = vpack.c.b16 %v159, %v156
  %v193 = vpack.c.b16 %v163, %v160
  %v194 = vpack.c.b16 %v164, %v161
  %v195 = vpack.c.b16 %v165, %v162
  %v196 = vpack.c.b16 %v169, %v166
  %v197 = vpack.c.b16 %v170, %v167
  %v198 = vpack.c.b16 %v171, %v168
  %v199 = vpack.c.b16 %v175, %v172
  %v200 = vpack.c.b16 %v176, %v173
  %v201 = vpack.c.b16 %v177, %v174
  %v254 = vunpack.c.l.b16 %v55
  %v255 = vunpack.c.l.b16 %v56
  %v256 = vunpack.c.l.b16 %v57
  %v257 = vunpack.c.l.b16 %v58
  %v258 = vunpack.c.l.b16 %v59
  %v259 = vunpack.c.l.b16 %v60
  %v260 = vunpack.c.l.b16 %v61
  %v261 = vunpack.c.l.b16 %v62
  %v262 = vunpack.c.l.b16 %v63
  %v263 = vunpack.c.l.b16 %v64
  %v264 = vunpack.c.l.b16 %v65
  %v265 = vunpack.c.l.b16 %v66
  %v266 = vunpack.c.l.b16 %v67
  %v267 = vunpack.c.l.b16 %v68
  %v268 = vunpack.c.l.b16 %v69
  %v269 = vunpack.c.l.b16 %v70
  %v270 = vunpack.c.l.b16 %v71
  %v271 = vunpack.c.l.b16 %v72
  %v272 = vunpack.c.l.b16 %v73
  %v273 = vunpack.c.l.b16 %v74
  %v274 = vunpack.c.l.b16 %v75
  %v275 = vunpack.c.l.b16 %v76
  %v276 = vunpack.c.l.b16 %v77
  %v277 = vunpack.c.l.b16 %v78
  %v278 = vunpack.c.l.b16 %v79
  %v279 = vunpack.c.l.b16 %v80
  %v280 = vunpack.c.l.b16 %v81
  %v281 = vunpack.c.l.b16 %v82
  %v282 = vunpack.c.l.b16 %v83
  %v283 = vunpack.c.l.b16 %v84
  %v284 = vunpack.c.l.b16 %v85
  %v285 = vunpack.c.l.b16 %v86
  %v286 = vunpack.c.l.b16 %v87
  %v287 = vunpack.c.l.b16 %v88
  %v288 = vunpack.c.l.b16 %v89
  %v289 = vunpack.c.l.b16 %v90
  %v290 = vpack.c.b16 %v255, %v254
  %v291 = vpack.c.b16 %v257, %v256
  %v292 = vpack.c.b16 %v259, %v258
  %v293 = vpack.c.b16 %v261, %v260
  %v294 = vpack.c.b16 %v263, %v262
  %v295 = vpack.c.b16 %v265, %v264
  %v296 = vpack.c.b16 %v267, %v266
  %v297 = vpack.c.b16 %v269, %v268
  %v298 = vpack.c.b16 %v271, %v270
  %v299 = vpack.c.b16 %v273, %v272
  %v300 = vpack.c.b16 %v275, %v274
  %v301 = vpack.c.b16 %v277, %v276
  %v302 = vpack.c.b16 %v279, %v278
  %v303 = vpack.c.b16 %v281, %v280
  %v304 = vpack.c.b16 %v283, %v282
  %v305 = vpack.c.b16 %v285, %v284
  %v306 = vpack.c.b16 %v287, %v286
  %v307 = vpack.c.b16 %v289, %v288
  %vm326 = vcmask 261120
  %v328 = vsel %vm326, %v180, 0
  %v331 = vsel %vm326, %v183, 0
  %v334 = vsel %vm326, %v186, 0
  %v337 = vsel %vm326, %v189, 0
  %v340 = vsel %vm326, %v192, 0
  %v343 = vsel %vm326, %v195, 0
  %v346 = vsel %vm326, %v198, 0
  %v349 = vsel %vm326, %v201, 0
  %351 = vmatprep.subr.bf16.mxu0 0
  %352 = vmatpush1.bf16.msra.mxu0 %v297
  %353 = vmatprep.subr.bf16.mxu0 0
  %354 = vmatpush1.bf16.msra.mxu0 %v296
  %355 = vmatprep.subr.bf16.mxu0 0
  %356 = vmatpush1.bf16.msra.mxu0 %v295
  %357 = vmatprep.subr.bf16.mxu0 0
  %358 = vmatpush1.bf16.msra.mxu0 %v294
  %359 = vmatprep.subr.bf16.mxu0 0
  %360 = vmatpush1.bf16.msra.mxu0 %v293
  %361 = vmatprep.subr.bf16.mxu0 0
  %362 = vmatpush1.bf16.msra.mxu0 %v292
  %363 = vmatprep.subr.bf16.mxu0 0
  %364 = vmatpush1.bf16.msra.mxu0 %v291
  %365 = vmatprep.subr.bf16.mxu0 0
  %366 = vmatpush1.bf16.msra.mxu0 %v290
  %367 = vmatprep.subr.bf16.mxu0 0
  %368 = vmatpush2.bf16.msra.mxu0 %v305
  %369 = vmatprep.subr.bf16.mxu0 0
  %370 = vmatpush2.bf16.msra.mxu0 %v304
  %371 = vmatprep.subr.bf16.mxu0 0
  %372 = vmatpush2.bf16.msra.mxu0 %v303
  %373 = vmatprep.subr.bf16.mxu0 0
  %374 = vmatpush2.bf16.msra.mxu0 %v302
  %375 = vmatprep.subr.bf16.mxu0 0
  %376 = vmatpush2.bf16.msra.mxu0 %v301
  %377 = vmatprep.subr.bf16.mxu0 0
  %378 = vmatpush2.bf16.msra.mxu0 %v300
  %379 = vmatprep.subr.bf16.mxu0 0
  %380 = vmatpush2.bf16.msra.mxu0 %v299
  %381 = vmatprep.subr.bf16.mxu0 0
  %382 = vmatpush2.bf16.msra.mxu0 %v298
  %383 = vmatprep.mubr.bf16.mxu0 %v179
  %384 = vmatmul.mubr.bf16.gmra.mxu0 %v178
  %v385 = vpop.f32.mrf.mxu0
  %v386 = vadd.f32 %v96, %v385
  %v387 = vpop.f32.mrf.mxu0
  %v388 = vpop.f32.mrf.mxu0
  %v389 = vadd.f32 %v96, %v388
  %v390 = vpop.f32.mrf.mxu0
  %391 = vmatprep.mubr.bf16.mxu0 %v182
  %392 = vmatmul.mubr.bf16.gmra.mxu0 %v181
  %v393 = vpop.f32.mrf.mxu0
  %v394 = vadd.f32 %v96, %v393
  %v395 = vpop.f32.mrf.mxu0
  %v396 = vpop.f32.mrf.mxu0
  %v397 = vadd.f32 %v96, %v396
  %v398 = vpop.f32.mrf.mxu0
  %399 = vmatprep.mubr.bf16.mxu0 %v185
  %400 = vmatmul.mubr.bf16.gmra.mxu0 %v184
  %v401 = vpop.f32.mrf.mxu0
  %v402 = vadd.f32 %v96, %v401
  %v403 = vpop.f32.mrf.mxu0
  %v404 = vpop.f32.mrf.mxu0
  %v405 = vadd.f32 %v96, %v404
  %v406 = vpop.f32.mrf.mxu0
  %407 = vmatprep.mubr.bf16.mxu0 %v188
  %408 = vmatmul.mubr.bf16.gmra.mxu0 %v187
  %v409 = vpop.f32.mrf.mxu0
  %v410 = vadd.f32 %v96, %v409
  %v411 = vpop.f32.mrf.mxu0
  %v412 = vpop.f32.mrf.mxu0
  %v413 = vadd.f32 %v96, %v412
  %v414 = vpop.f32.mrf.mxu0
  %415 = vmatprep.mubr.bf16.mxu0 %v191
  %416 = vmatmul.mubr.bf16.gmra.mxu0 %v190
  %v417 = vpop.f32.mrf.mxu0
  %v418 = vadd.f32 %v96, %v417
  %v419 = vpop.f32.mrf.mxu0
  %v420 = vpop.f32.mrf.mxu0
  %v421 = vadd.f32 %v96, %v420
  %v422 = vpop.f32.mrf.mxu0
  %423 = vmatprep.mubr.bf16.mxu0 %v194
  %424 = vmatmul.mubr.bf16.gmra.mxu0 %v193
  %v425 = vpop.f32.mrf.mxu0
  %v426 = vadd.f32 %v96, %v425
  %v427 = vpop.f32.mrf.mxu0
  %v428 = vpop.f32.mrf.mxu0
  %v429 = vadd.f32 %v96, %v428
  %v430 = vpop.f32.mrf.mxu0
  %431 = vmatprep.mubr.bf16.mxu0 %v197
  %432 = vmatmul.mubr.bf16.gmra.mxu0 %v196
  %v433 = vpop.f32.mrf.mxu0
  %v434 = vadd.f32 %v96, %v433
  %v435 = vpop.f32.mrf.mxu0
  %v436 = vpop.f32.mrf.mxu0
  %v437 = vadd.f32 %v96, %v436
  %v438 = vpop.f32.mrf.mxu0
  %439 = vmatprep.mubr.bf16.mxu0 %v200
  %440 = vmatmul.mubr.bf16.gmra.mxu0 %v199
  %v441 = vpop.f32.mrf.mxu0
  %v442 = vadd.f32 %v96, %v441
  %v443 = vpop.f32.mrf.mxu0
  %v444 = vpop.f32.mrf.mxu0
  %v445 = vadd.f32 %v96, %v444
  %v446 = vpop.f32.mrf.mxu0
  %447 = vdwg.mxu0
  %448 = vmatprep.subr.bf16.mxu0 0
  %449 = vmatpush1.bf16.msra.mxu0 0
  %450 = vmatprep.subr.bf16.mxu0 0
  %451 = vmatpush1.bf16.msra.mxu0 0
  %452 = vmatprep.subr.bf16.mxu0 0
  %453 = vmatpush1.bf16.msra.mxu0 0
  %454 = vmatprep.subr.bf16.mxu0 0
  %455 = vmatpush1.bf16.msra.mxu0 0
  %456 = vmatprep.subr.bf16.mxu0 0
  %457 = vmatpush1.bf16.msra.mxu0 0
  %458 = vmatprep.subr.bf16.mxu0 0
  %459 = vmatpush1.bf16.msra.mxu0 0
  %460 = vmatprep.subr.bf16.mxu0 0
  %461 = vmatpush1.bf16.msra.mxu0 %v307
  %462 = vmatprep.subr.bf16.mxu0 0
  %463 = vmatpush1.bf16.msra.mxu0 %v306
  %464 = vmatprep.subr.bf16.mxu0 0
  %465 = vmatpush2.bf16.msra.mxu0 0
  %466 = vmatprep.subr.bf16.mxu0 0
  %467 = vmatpush2.bf16.msra.mxu0 0
  %468 = vmatprep.subr.bf16.mxu0 0
  %469 = vmatpush2.bf16.msra.mxu0 0
  %470 = vmatprep.subr.bf16.mxu0 0
  %471 = vmatpush2.bf16.msra.mxu0 0
  %472 = vmatprep.subr.bf16.mxu0 0
  %473 = vmatpush2.bf16.msra.mxu0 0
  %474 = vmatprep.subr.bf16.mxu0 0
  %475 = vmatpush2.bf16.msra.mxu0 0
  %476 = vmatprep.subr.bf16.mxu0 0
  %477 = vmatpush2.bf16.msra.mxu0 0
  %478 = vmatprep.subr.bf16.mxu0 0
  %479 = vmatpush2.bf16.msra.mxu0 0
  %480 = vmatprep.mubr.bf16.mxu0 0
  %481 = vmatmul.mubr.bf16.gmra.mxu0 %v328
  %v482 = vpop.f32.mrf.mxu0
  %v483 = vadd.f32 %v386, %v482
  %v484 = vpop.f32.mrf.mxu0
  %v485 = vpop.f32.mrf.mxu0
  %v486 = vadd.f32 %v389, %v485
  %v487 = vpop.f32.mrf.mxu0
  %488 = vmatprep.mubr.bf16.mxu0 0
  %489 = vmatmul.mubr.bf16.gmra.mxu0 %v331
  %v490 = vpop.f32.mrf.mxu0
  %v491 = vadd.f32 %v394, %v490
  %v492 = vpop.f32.mrf.mxu0
  %v493 = vpop.f32.mrf.mxu0
  %v494 = vadd.f32 %v397, %v493
  %v495 = vpop.f32.mrf.mxu0
  %496 = vmatprep.mubr.bf16.mxu0 0
  %497 = vmatmul.mubr.bf16.gmra.mxu0 %v334
  %v498 = vpop.f32.mrf.mxu0
  %v499 = vadd.f32 %v402, %v498
  %v500 = vpop.f32.mrf.mxu0
  %v501 = vpop.f32.mrf.mxu0
  %v502 = vadd.f32 %v405, %v501
  %v503 = vpop.f32.mrf.mxu0
  %504 = vmatprep.mubr.bf16.mxu0 0
  %505 = vmatmul.mubr.bf16.gmra.mxu0 %v337
  %v506 = vpop.f32.mrf.mxu0
  %v507 = vadd.f32 %v410, %v506
  %v508 = vpop.f32.mrf.mxu0
  %v509 = vpop.f32.mrf.mxu0
  %v510 = vadd.f32 %v413, %v509
  %v511 = vpop.f32.mrf.mxu0
  %512 = vmatprep.mubr.bf16.mxu0 0
  %513 = vmatmul.mubr.bf16.gmra.mxu0 %v340
  %v514 = vpop.f32.mrf.mxu0
  %v515 = vadd.f32 %v418, %v514
  %v516 = vpop.f32.mrf.mxu0
  %v517 = vpop.f32.mrf.mxu0
  %v518 = vadd.f32 %v421, %v517
  %v519 = vpop.f32.mrf.mxu0
  %520 = vmatprep.mubr.bf16.mxu0 0
  %521 = vmatmul.mubr.bf16.gmra.mxu0 %v343
  %v522 = vpop.f32.mrf.mxu0
  %v523 = vadd.f32 %v426, %v522
  %v524 = vpop.f32.mrf.mxu0
  %v525 = vpop.f32.mrf.mxu0
  %v526 = vadd.f32 %v429, %v525
  %v527 = vpop.f32.mrf.mxu0
  %528 = vmatprep.mubr.bf16.mxu0 0
  %529 = vmatmul.mubr.bf16.gmra.mxu0 %v346
  %v530 = vpop.f32.mrf.mxu0
  %v531 = vadd.f32 %v434, %v530
  %v532 = vpop.f32.mrf.mxu0
  %v533 = vpop.f32.mrf.mxu0
  %v534 = vadd.f32 %v437, %v533
  %v535 = vpop.f32.mrf.mxu0
  %536 = vmatprep.mubr.bf16.mxu0 0
  %537 = vmatmul.mubr.bf16.gmra.mxu0 %v349
  %v538 = vpop.f32.mrf.mxu0
  %v539 = vadd.f32 %v442, %v538
  %v540 = vpop.f32.mrf.mxu0
  %v541 = vpop.f32.mrf.mxu0
  %v542 = vadd.f32 %v445, %v541
  %v543 = vpop.f32.mrf.mxu0
  %544 = vdwg.mxu0
  %v545 = vmax.f32 %v483, 0.0
  %v546 = vmax.f32 %v486, 0.0
  %v547 = vmax.f32 %v491, 0.0
  %v548 = vmax.f32 %v494, 0.0
  %v549 = vmax.f32 %v499, 0.0
  %v550 = vmax.f32 %v502, 0.0
  %v551 = vmax.f32 %v507, 0.0
  %v552 = vmax.f32 %v510, 0.0
  %v553 = vmax.f32 %v515, 0.0
  %v554 = vmax.f32 %v518, 0.0
  %v555 = vmax.f32 %v523, 0.0
  %v556 = vmax.f32 %v526, 0.0
  %v557 = vmax.f32 %v531, 0.0
  %v558 = vmax.f32 %v534, 0.0
  %v559 = vmax.f32 %v539, 0.0
  %v560 = vmax.f32 %v542, 0.0
  %v561 = vpack.c.bf16 %v546, %v545
  %v562 = vpack.c.bf16 %v548, %v547
  %v563 = vpack.c.bf16 %v550, %v549
  %v564 = vpack.c.bf16 %v552, %v551
  %v565 = vpack.c.bf16 %v554, %v553
  %v566 = vpack.c.bf16 %v556, %v555
  %v567 = vpack.c.bf16 %v558, %v557
  %v568 = vpack.c.bf16 %v560, %v559
  %v577 = vunpack.c.l.b16 %v561
  %v578 = vunpack.c.h.b16 %v561
  %v579 = vunpack.c.l.b16 %v562
  %v580 = vunpack.c.h.b16 %v562
  %v581 = vunpack.c.l.b16 %v563
  %v582 = vunpack.c.h.b16 %v563
  %v583 = vunpack.c.l.b16 %v564
  %v584 = vunpack.c.h.b16 %v564
  %v585 = vunpack.c.l.b16 %v565
  %v586 = vunpack.c.h.b16 %v565
  %v587 = vunpack.c.l.b16 %v566
  %v588 = vunpack.c.h.b16 %v566
  %v589 = vunpack.c.l.b16 %v567
  %v590 = vunpack.c.h.b16 %v567
  %v591 = vunpack.c.l.b16 %v568
  %v592 = vunpack.c.h.b16 %v568
  %v593 = vpack.c.b16 %v577, %v577
  %v594 = vpack.c.b16 %v578, %v578
  %v595 = vpack.c.b16 %v579, %v579
  %v596 = vpack.c.b16 %v580, %v580
  %v597 = vpack.c.b16 %v581, %v581
  %v598 = vpack.c.b16 %v582, %v582
  %v599 = vpack.c.b16 %v583, %v583
  %v600 = vpack.c.b16 %v584, %v584
  %v601 = vpack.c.b16 %v585, %v585
  %v602 = vpack.c.b16 %v586, %v586
  %v603 = vpack.c.b16 %v587, %v587
  %v604 = vpack.c.b16 %v588, %v588
  %v605 = vpack.c.b16 %v589, %v589
  %v606 = vpack.c.b16 %v590, %v590
  %v607 = vpack.c.b16 %v591, %v591
  %v608 = vpack.c.b16 %v592, %v592
  %625 = vst [vmem:[%s5] sm:$0xf] %v593
  %626 = vst [vmem:[%s5 + $0x4] sm:$0xf] %v594
  %627 = vst [vmem:[%s5 + $0x8] sm:$0xf] %v595
  %628 = vst [vmem:[%s5 + $0xc] sm:$0xf] %v596
  %629 = vst [vmem:[%s5 + $0x10] sm:$0xf] %v597
  %630 = vst [vmem:[%s5 + $0x14] sm:$0xf] %v598
  %631 = vst [vmem:[%s5 + $0x18] sm:$0xf] %v599
  %632 = vst [vmem:[%s5 + $0x1c] sm:$0xf] %v600
  %633 = vst [vmem:[%s5 + $0x20] sm:$0xf] %v601
  %634 = vst [vmem:[%s5 + $0x24] sm:$0xf] %v602
  %635 = vst [vmem:[%s5 + $0x28] sm:$0xf] %v603
  %636 = vst [vmem:[%s5 + $0x2c] sm:$0xf] %v604
  %637 = vst [vmem:[%s5 + $0x30] sm:$0xf] %v605
  %638 = vst [vmem:[%s5 + $0x34] sm:$0xf] %v606
  %639 = vst [vmem:[%s5 + $0x38] sm:$0xf] %v607
  %640 = vst [vmem:[%s5 + $0x3c] sm:$0xf] %v608
  %v641 = vld [vmem:[%s3] sm:$0xf]
  %v642 = vld [vmem:[%s3 + $0x4] sm:$0xf]
  %v643 = vld [vmem:[%s3 + $0x8] sm:$0xf]
  %v644 = vld [vmem:[%s3 + $0xc] sm:$0xf]
  %v645 = vld [vmem:[%s3 + $0x10] sm:$0xf]
  %v646 = vld [vmem:[%s3 + $0x14] sm:$0xf]
  %v647 = vld [vmem:[%s3 + $0x18] sm:$0xf]
  %v648 = vld [vmem:[%s3 + $0x1c] sm:$0xf]
  %v649 = vld [vmem:[%s3 + $0x20] sm:$0xf]
  %v650 = vld [vmem:[%s3 + $0x24] sm:$0xf]
  %v651 = vld [vmem:[%s3 + $0x28] sm:$0xf]
  %v652 = vld [vmem:[%s3 + $0x2c] sm:$0xf]
  %v653 = vld [vmem:[%s3 + $0x30] sm:$0xf]
  %v654 = vld [vmem:[%s3 + $0x34] sm:$0xf]
  %v655 = vld [vmem:[%s3 + $0x38] sm:$0xf]
  %v656 = vld [vmem:[%s3 + $0x3c] sm:$0xf]
  %v657 = vld [vmem:[%s4] sm:$0x1]
  %v659 = vlaneseq
  %v660 = vshrl.u32 %v659, 7
  %v661 = vsub.s32 0, %v660
  %v662 = vrot.slane %v657, %v661
  %v680 = vunpack.c.l.b16 %v641
  %v681 = vunpack.c.l.b16 %v642
  %v682 = vunpack.c.l.b16 %v643
  %v683 = vunpack.c.l.b16 %v644
  %v684 = vunpack.c.l.b16 %v645
  %v685 = vunpack.c.l.b16 %v646
  %v686 = vunpack.c.l.b16 %v647
  %v687 = vunpack.c.l.b16 %v648
  %v688 = vunpack.c.l.b16 %v649
  %v689 = vunpack.c.l.b16 %v650
  %v690 = vunpack.c.l.b16 %v651
  %v691 = vunpack.c.l.b16 %v652
  %v692 = vunpack.c.l.b16 %v653
  %v693 = vunpack.c.l.b16 %v654
  %v694 = vunpack.c.l.b16 %v655
  %v695 = vunpack.c.l.b16 %v656
  %v696 = vpack.c.b16 %v681, %v680
  %v697 = vpack.c.b16 %v683, %v682
  %v698 = vpack.c.b16 %v685, %v684
  %v699 = vpack.c.b16 %v687, %v686
  %v700 = vpack.c.b16 %v689, %v688
  %v701 = vpack.c.b16 %v691, %v690
  %v702 = vpack.c.b16 %v693, %v692
  %v703 = vpack.c.b16 %v695, %v694
  %712 = vmatprep.subr.bf16.mxu0 0
  %713 = vmatpush1.bf16.msra.mxu0 %v703
  %714 = vmatprep.subr.bf16.mxu0 0
  %715 = vmatpush1.bf16.msra.mxu0 %v702
  %716 = vmatprep.subr.bf16.mxu0 0
  %717 = vmatpush1.bf16.msra.mxu0 %v701
  %718 = vmatprep.subr.bf16.mxu0 0
  %719 = vmatpush1.bf16.msra.mxu0 %v700
  %720 = vmatprep.subr.bf16.mxu0 0
  %721 = vmatpush1.bf16.msra.mxu0 %v699
  %722 = vmatprep.subr.bf16.mxu0 0
  %723 = vmatpush1.bf16.msra.mxu0 %v698
  %724 = vmatprep.subr.bf16.mxu0 0
  %725 = vmatpush1.bf16.msra.mxu0 %v697
  %726 = vmatprep.subr.bf16.mxu0 0
  %727 = vmatpush1.bf16.msra.mxu0 %v696
  %728 = vmatprep.subr.bf16.mxu0 0
  %729 = vmatpush2.bf16.msra.mxu0 0
  %730 = vmatprep.subr.bf16.mxu0 0
  %731 = vmatpush2.bf16.msra.mxu0 0
  %732 = vmatprep.subr.bf16.mxu0 0
  %733 = vmatpush2.bf16.msra.mxu0 0
  %734 = vmatprep.subr.bf16.mxu0 0
  %735 = vmatpush2.bf16.msra.mxu0 0
  %736 = vmatprep.subr.bf16.mxu0 0
  %737 = vmatpush2.bf16.msra.mxu0 0
  %738 = vmatprep.subr.bf16.mxu0 0
  %739 = vmatpush2.bf16.msra.mxu0 0
  %740 = vmatprep.subr.bf16.mxu0 0
  %741 = vmatpush2.bf16.msra.mxu0 0
  %742 = vmatprep.subr.bf16.mxu0 0
  %743 = vmatpush2.bf16.msra.mxu0 0
  %744 = vmatprep.mubr.bf16.mxu0 0
  %745 = vmatmul.mubr.bf16.gmra.mxu0 %v561
  %v746 = vpop.f32.mrf.mxu0
  %v747 = vadd.f32 %v662, %v746
  %v748 = vpop.f32.mrf.mxu0
  %v749 = vpop.f32.mrf.mxu0
  %v750 = vadd.f32 %v662, %v749
  %v751 = vpop.f32.mrf.mxu0
  %752 = vmatprep.mubr.bf16.mxu0 0
  %753 = vmatmul.mubr.bf16.gmra.mxu0 %v562
  %v754 = vpop.f32.mrf.mxu0
  %v755 = vadd.f32 %v662, %v754
  %v756 = vpop.f32.mrf.mxu0
  %v757 = vpop.f32.mrf.mxu0
  %v758 = vadd.f32 %v662, %v757
  %v759 = vpop.f32.mrf.mxu0
  %760 = vmatprep.mubr.bf16.mxu0 0
  %761 = vmatmul.mubr.bf16.gmra.mxu0 %v563
  %v762 = vpop.f32.mrf.mxu0
  %v763 = vadd.f32 %v662, %v762
  %v764 = vpop.f32.mrf.mxu0
  %v765 = vpop.f32.mrf.mxu0
  %v766 = vadd.f32 %v662, %v765
  %v767 = vpop.f32.mrf.mxu0
  %768 = vmatprep.mubr.bf16.mxu0 0
  %769 = vmatmul.mubr.bf16.gmra.mxu0 %v564
  %v770 = vpop.f32.mrf.mxu0
  %v771 = vadd.f32 %v662, %v770
  %v772 = vpop.f32.mrf.mxu0
  %v773 = vpop.f32.mrf.mxu0
  %v774 = vadd.f32 %v662, %v773
  %v775 = vpop.f32.mrf.mxu0
  %776 = vmatprep.mubr.bf16.mxu0 0
  %777 = vmatmul.mubr.bf16.gmra.mxu0 %v565
  %v778 = vpop.f32.mrf.mxu0
  %v779 = vadd.f32 %v662, %v778
  %v780 = vpop.f32.mrf.mxu0
  %v781 = vpop.f32.mrf.mxu0
  %v782 = vadd.f32 %v662, %v781
  %v783 = vpop.f32.mrf.mxu0
  %784 = vmatprep.mubr.bf16.mxu0 0
  %785 = vmatmul.mubr.bf16.gmra.mxu0 %v566
  %v786 = vpop.f32.mrf.mxu0
  %v787 = vadd.f32 %v662, %v786
  %v788 = vpop.f32.mrf.mxu0
  %v789 = vpop.f32.mrf.mxu0
  %v790 = vadd.f32 %v662, %v789
  %v791 = vpop.f32.mrf.mxu0
  %792 = vmatprep.mubr.bf16.mxu0 0
  %793 = vmatmul.mubr.bf16.gmra.mxu0 %v567
  %v794 = vpop.f32.mrf.mxu0
  %v795 = vadd.f32 %v662, %v794
  %v796 = vpop.f32.mrf.mxu0
  %v797 = vpop.f32.mrf.mxu0
  %v798 = vadd.f32 %v662, %v797
  %v799 = vpop.f32.mrf.mxu0
  %800 = vmatprep.mubr.bf16.mxu0 0
  %801 = vmatmul.mubr.bf16.gmra.mxu0 %v568
  %v802 = vpop.f32.mrf.mxu0
  %v803 = vadd.f32 %v662, %v802
  %v804 = vpop.f32.mrf.mxu0
  %v805 = vpop.f32.mrf.mxu0
  %v806 = vadd.f32 %v662, %v805
  %v807 = vpop.f32.mrf.mxu0
  %808 = vdwg.mxu0
  %v809 = vmax.f32 %v747, 0.0
  %v810 = vmax.f32 %v750, 0.0
  %v811 = vmax.f32 %v755, 0.0
  %v812 = vmax.f32 %v758, 0.0
  %v813 = vmax.f32 %v763, 0.0
  %v814 = vmax.f32 %v766, 0.0
  %v815 = vmax.f32 %v771, 0.0
  %v816 = vmax.f32 %v774, 0.0
  %v817 = vmax.f32 %v779, 0.0
  %v818 = vmax.f32 %v782, 0.0
  %v819 = vmax.f32 %v787, 0.0
  %v820 = vmax.f32 %v790, 0.0
  %v821 = vmax.f32 %v795, 0.0
  %v822 = vmax.f32 %v798, 0.0
  %v823 = vmax.f32 %v803, 0.0
  %v824 = vmax.f32 %v806, 0.0
  %v825 = vpack.c.bf16 %v810, %v809
  %v826 = vpack.c.bf16 %v812, %v811
  %v827 = vpack.c.bf16 %v814, %v813
  %v828 = vpack.c.bf16 %v816, %v815
  %v829 = vpack.c.bf16 %v818, %v817
  %v830 = vpack.c.bf16 %v820, %v819
  %v831 = vpack.c.bf16 %v822, %v821
  %v832 = vpack.c.bf16 %v824, %v823
  %v841 = vunpack.c.l.b16 %v825
  %v842 = vunpack.c.h.b16 %v825
  %v843 = vunpack.c.l.b16 %v826
  %v844 = vunpack.c.h.b16 %v826
  %v845 = vunpack.c.l.b16 %v827
  %v846 = vunpack.c.h.b16 %v827
  %v847 = vunpack.c.l.b16 %v828
  %v848 = vunpack.c.h.b16 %v828
  %v849 = vunpack.c.l.b16 %v829
  %v850 = vunpack.c.h.b16 %v829
  %v851 = vunpack.c.l.b16 %v830
  %v852 = vunpack.c.h.b16 %v830
  %v853 = vunpack.c.l.b16 %v831
  %v854 = vunpack.c.h.b16 %v831
  %v855 = vunpack.c.l.b16 %v832
  %v856 = vunpack.c.h.b16 %v832
  %v857 = vpack.c.b16 %v841, %v841
  %v858 = vpack.c.b16 %v842, %v842
  %v859 = vpack.c.b16 %v843, %v843
  %v860 = vpack.c.b16 %v844, %v844
  %v861 = vpack.c.b16 %v845, %v845
  %v862 = vpack.c.b16 %v846, %v846
  %v863 = vpack.c.b16 %v847, %v847
  %v864 = vpack.c.b16 %v848, %v848
  %v865 = vpack.c.b16 %v849, %v849
  %v866 = vpack.c.b16 %v850, %v850
  %v867 = vpack.c.b16 %v851, %v851
  %v868 = vpack.c.b16 %v852, %v852
  %v869 = vpack.c.b16 %v853, %v853
  %v870 = vpack.c.b16 %v854, %v854
  %v871 = vpack.c.b16 %v855, %v855
  %v872 = vpack.c.b16 %v856, %v856
  %889 = vst [vmem:[%s6] sm:$0xf] %v857
  %890 = vst [vmem:[%s6 + $0x4] sm:$0xf] %v858
  %891 = vst [vmem:[%s6 + $0x8] sm:$0xf] %v859
  %892 = vst [vmem:[%s6 + $0xc] sm:$0xf] %v860
  %893 = vst [vmem:[%s6 + $0x10] sm:$0xf] %v861
  %894 = vst [vmem:[%s6 + $0x14] sm:$0xf] %v862
  %895 = vst [vmem:[%s6 + $0x18] sm:$0xf] %v863
  %896 = vst [vmem:[%s6 + $0x1c] sm:$0xf] %v864
  %897 = vst [vmem:[%s6 + $0x20] sm:$0xf] %v865
  %898 = vst [vmem:[%s6 + $0x24] sm:$0xf] %v866
  %899 = vst [vmem:[%s6 + $0x28] sm:$0xf] %v867
  %900 = vst [vmem:[%s6 + $0x2c] sm:$0xf] %v868
  %901 = vst [vmem:[%s6 + $0x30] sm:$0xf] %v869
  %902 = vst [vmem:[%s6 + $0x34] sm:$0xf] %v870
  %903 = vst [vmem:[%s6 + $0x38] sm:$0xf] %v871
  %904 = vst [vmem:[%s6 + $0x3c] sm:$0xf] %v872
  // Predicated region
  $region22: #{uacanet_forward.12} parent=0 // pred_check
    _
  $region23: #{uacanet_forward.12} parent=0 // pred_check_branch
    %906 = sbr.rel (0) target = $region25
  $region24: #{uacanet_forward.12} parent=0 // pred_region
    _
  $region25: #{uacanet_forward.12} parent=0 // pred_fallthru
    _
  // Predicated region
  $region26: #{uacanet_forward.12} parent=0 // pred_check
    _
  $region27: #{uacanet_forward.12} parent=0 // pred_check_branch
    %908 = sbr.rel (0) target = $region29
  $region28: #{uacanet_forward.12} parent=0 // pred_region
    _
  $region29: #{uacanet_forward.12} parent=0 // pred_fallthru
    _
  // Predicated region
  $region30: #{uacanet_forward.12} parent=0 // pred_check
    _
  $region31: #{uacanet_forward.12} parent=0 // pred_check_branch
    %910 = sbr.rel (0) target = $region33
  $region32: #{uacanet_forward.12} parent=0 // pred_region
    _
  $region33: #{uacanet_forward.12} parent=0 // pred_fallthru
    _
  // Predicated region
  $region34: #{uacanet_forward.12} parent=0 // pred_check
    _
  $region35: #{uacanet_forward.12} parent=0 // pred_check_branch
    %912 = sbr.rel (0) target = $region37
  $region36: #{uacanet_forward.12} parent=0 // pred_region
    _
  $region37: #{uacanet_forward.12} parent=0 // pred_fallthru
    _

// kernel: uacanet_forward.13
$region0: #{uacanet_forward.13}
  #allocation0 [shape = 'u32[]', space=smem, size = 0x4, offset = 0x4, fixed_abs, tag = 'smem constant byte address 0x4 - core index']
  #allocation1 [shape = 'u32[144,128]{1,0:T(1,128)}', space=vmem, size = 0x12000, scoped, tag = 'internal scratch']
  %s0 = inlined_call_operand.vmem [shape: bf16[32,576], index: 0, kind: input, shape index: {}]
  %s1 = inlined_call_operand.vmem [shape: bf16[576,128], index: 1, kind: input, shape index: {}]
  %s2 = inlined_call_operand.vmem [shape: f32[1,128], index: 2, kind: input, shape index: {}]
  %s3 = inlined_call_operand.vmem [shape: bf16[128,128], index: 3, kind: input, shape index: {}]
  %s4 = inlined_call_operand.vmem [shape: f32[1,128], index: 4, kind: input, shape index: {}]
  %s5 = inlined_call_operand.vmem [shape: bf16[32,128], index: 5, kind: output, shape index: {0}]
  %s6 = inlined_call_operand.vmem [shape: bf16[32,128], index: 6, kind: output, shape index: {1}]
  %7 = xla_tuple %s5, %s6
  %s8 = sld [smem:[#allocation0]]
  $region38: #{uacanet_forward.13} parent=0
    _
  %s10 = ssub.s32 1, %s8
  %s11 = scalar_select 0, %s10, %s8
  // Predicated region
  $region2: #{uacanet_forward.13} parent=0 // pred_check
    _
  $region3: #{uacanet_forward.13} parent=0 // pred_check_branch
    %13 = sbr.rel (0) target = $region5
  $region4: #{uacanet_forward.13} parent=0 // pred_region
    _
  $region5: #{uacanet_forward.13} parent=0 // pred_fallthru
    _
  // Predicated region
  $region6: #{uacanet_forward.13} parent=0 // pred_check
    _
  $region7: #{uacanet_forward.13} parent=0 // pred_check_branch
    %15 = sbr.rel (0) target = $region9
  $region8: #{uacanet_forward.13} parent=0 // pred_region
    _
  $region9: #{uacanet_forward.13} parent=0 // pred_fallthru
    _
  // Predicated region
  $region10: #{uacanet_forward.13} parent=0 // pred_check
    _
  $region11: #{uacanet_forward.13} parent=0 // pred_check_branch
    %17 = sbr.rel (0) target = $region13
  $region12: #{uacanet_forward.13} parent=0 // pred_region
    _
  $region13: #{uacanet_forward.13} parent=0 // pred_fallthru
    _
  // Predicated region
  $region14: #{uacanet_forward.13} parent=0 // pred_check
    _
  $region15: #{uacanet_forward.13} parent=0 // pred_check_branch
    %19 = sbr.rel (0) target = $region17
  $region16: #{uacanet_forward.13} parent=0 // pred_region
    _
  $region17: #{uacanet_forward.13} parent=0 // pred_fallthru
    _
  // Predicated region
  $region18: #{uacanet_forward.13} parent=0 // pred_check
    _
  $region19: #{uacanet_forward.13} parent=0 // pred_check_branch
    %21 = sbr.rel (0) target = $region21
  $region20: #{uacanet_forward.13} parent=0 // pred_region
    _
  $region21: #{uacanet_forward.13} parent=0 // pred_fallthru
    _
  %v23 = vld [vmem:[%s0] sm:$0xff]
  %v24 = vld [vmem:[%s0 + $0x8] sm:$0xff]
  %v25 = vld [vmem:[%s0 + $0x10] sm:$0xf]
  %v26 = vld [vmem:[%s0 + $0x14] sm:$0xff]
  %v27 = vld [vmem:[%s0 + $0x1c] sm:$0xff]
  %v28 = vld [vmem:[%s0 + $0x24] sm:$0xf]
  %v29 = vld [vmem:[%s0 + $0x28] sm:$0xff]
  %v30 = vld [vmem:[%s0 + $0x30] sm:$0xff]
  %v31 = vld [vmem:[%s0 + $0x38] sm:$0xf]
  %v32 = vld [vmem:[%s0 + $0x3c] sm:$0xff]
  %v33 = vld [vmem:[%s0 + $0x44] sm:$0xff]
  %v34 = vld [vmem:[%s0 + $0x4c] sm:$0xf]
  %v35 = vld [vmem:[%s1] sm:$0xf]
  %v36 = vld [vmem:[%s1 + $0x4] sm:$0xf]
  %v37 = vld [vmem:[%s1 + $0x8] sm:$0xf]
  %v38 = vld [vmem:[%s1 + $0xc] sm:$0xf]
  %v39 = vld [vmem:[%s1 + $0x10] sm:$0xf]
  %v40 = vld [vmem:[%s1 + $0x14] sm:$0xf]
  %v41 = vld [vmem:[%s1 + $0x18] sm:$0xf]
  %v42 = vld [vmem:[%s1 + $0x1c] sm:$0xf]
  %v43 = vld [vmem:[%s1 + $0x20] sm:$0xf]
  %v44 = vld [vmem:[%s1 + $0x24] sm:$0xf]
  %v45 = vld [vmem:[%s1 + $0x28] sm:$0xf]
  %v46 = vld [vmem:[%s1 + $0x2c] sm:$0xf]
  %v47 = vld [vmem:[%s1 + $0x30] sm:$0xf]
  %v48 = vld [vmem:[%s1 + $0x34] sm:$0xf]
  %v49 = vld [vmem:[%s1 + $0x38] sm:$0xf]
  %v50 = vld [vmem:[%s1 + $0x3c] sm:$0xf]
  %v51 = vld [vmem:[%s1 + $0x40] sm:$0xf]
  %v52 = vld [vmem:[%s1 + $0x44] sm:$0xf]
  %v53 = vld [vmem:[%s1 + $0x48] sm:$0xf]
  %v54 = vld [vmem:[%s1 + $0x4c] sm:$0xf]
  %v55 = vld [vmem:[%s1 + $0x50] sm:$0xf]
  %v56 = vld [vmem:[%s1 + $0x54] sm:$0xf]
  %v57 = vld [vmem:[%s1 + $0x58] sm:$0xf]
  %v58 = vld [vmem:[%s1 + $0x5c] sm:$0xf]
  %v59 = vld [vmem:[%s1 + $0x60] sm:$0xf]
  %v60 = vld [vmem:[%s1 + $0x64] sm:$0xf]
  %v61 = vld [vmem:[%s1 + $0x68] sm:$0xf]
  %v62 = vld [vmem:[%s1 + $0x6c] sm:$0xf]
  %v63 = vld [vmem:[%s1 + $0x70] sm:$0xf]
  %v64 = vld [vmem:[%s1 + $0x74] sm:$0xf]
  %v65 = vld [vmem:[%s1 + $0x78] sm:$0xf]
  %v66 = vld [vmem:[%s1 + $0x7c] sm:$0xf]
  %v67 = vld [vmem:[%s1 + $0x80] sm:$0xf]
  %v68 = vld [vmem:[%s1 + $0x84] sm:$0xf]
  %v69 = vld [vmem:[%s1 + $0x88] sm:$0xf]
  %v70 = vld [vmem:[%s1 + $0x8c] sm:$0xf]
  %v71 = vld [vmem:[%s1 + $0x90] sm:$0xf]
  %v72 = vld [vmem:[%s1 + $0x94] sm:$0xf]
  %v73 = vld [vmem:[%s1 + $0x98] sm:$0xf]
  %v74 = vld [vmem:[%s1 + $0x9c] sm:$0xf]
  %v75 = vld [vmem:[%s1 + $0xa0] sm:$0xf]
  %v76 = vld [vmem:[%s1 + $0xa4] sm:$0xf]
  %v77 = vld [vmem:[%s1 + $0xa8] sm:$0xf]
  %v78 = vld [vmem:[%s1 + $0xac] sm:$0xf]
  %v79 = vld [vmem:[%s1 + $0xb0] sm:$0xf]
  %v80 = vld [vmem:[%s1 + $0xb4] sm:$0xf]
  %v81 = vld [vmem:[%s1 + $0xb8] sm:$0xf]
  %v82 = vld [vmem:[%s1 + $0xbc] sm:$0xf]
  %v83 = vld [vmem:[%s1 + $0xc0] sm:$0xf]
  %v84 = vld [vmem:[%s1 + $0xc4] sm:$0xf]
  %v85 = vld [vmem:[%s1 + $0xc8] sm:$0xf]
  %v86 = vld [vmem:[%s1 + $0xcc] sm:$0xf]
  %v87 = vld [vmem:[%s1 + $0xd0] sm:$0xf]
  %v88 = vld [vmem:[%s1 + $0xd4] sm:$0xf]
  %v89 = vld [vmem:[%s1 + $0xd8] sm:$0xf]
  %v90 = vld [vmem:[%s1 + $0xdc] sm:$0xf]
  %v91 = vld [vmem:[%s1 + $0xe0] sm:$0xf]
  %v92 = vld [vmem:[%s1 + $0xe4] sm:$0xf]
  %v93 = vld [vmem:[%s1 + $0xe8] sm:$0xf]
  %v94 = vld [vmem:[%s1 + $0xec] sm:$0xf]
  %v95 = vld [vmem:[%s1 + $0xf0] sm:$0xf]
  %v96 = vld [vmem:[%s1 + $0xf4] sm:$0xf]
  %v97 = vld [vmem:[%s1 + $0xf8] sm:$0xf]
  %v98 = vld [vmem:[%s1 + $0xfc] sm:$0xf]
  %v99 = vld [vmem:[%s1 + $0x100] sm:$0xf]
  %v100 = vld [vmem:[%s1 + $0x104] sm:$0xf]
  %v101 = vld [vmem:[%s1 + $0x108] sm:$0xf]
  %v102 = vld [vmem:[%s1 + $0x10c] sm:$0xf]
  %v103 = vld [vmem:[%s1 + $0x110] sm:$0xf]
  %v104 = vld [vmem:[%s1 + $0x114] sm:$0xf]
  %v105 = vld [vmem:[%s1 + $0x118] sm:$0xf]
  %v106 = vld [vmem:[%s1 + $0x11c] sm:$0xf]
  %v107 = vld [vmem:[%s2] sm:$0x1]
  %v109 = vlaneseq
  %v110 = vshrl.u32 %v109, 7
  %v111 = vsub.s32 0, %v110
  %v112 = vrot.slane %v107, %v111
  %v126 = vunpack.c.l.b16 %v23
  %v127 = vunpack.c.h.b16 %v23
  %v128 = vunpack.c.l.b16 %v24
  %v129 = vunpack.c.h.b16 %v24
  %v130 = vunpack.c.l.b16 %v25
  %v131 = vunpack.c.l.b16 %v26
  %v132 = vunpack.c.h.b16 %v26
  %v133 = vunpack.c.l.b16 %v27
  %v134 = vunpack.c.h.b16 %v27
  %v135 = vunpack.c.l.b16 %v28
  %v136 = vunpack.c.l.b16 %v29
  %v137 = vunpack.c.h.b16 %v29
  %v138 = vunpack.c.l.b16 %v30
  %v139 = vunpack.c.h.b16 %v30
  %v140 = vunpack.c.l.b16 %v31
  %v141 = vunpack.c.l.b16 %v32
  %v142 = vunpack.c.h.b16 %v32
  %v143 = vunpack.c.l.b16 %v33
  %v144 = vunpack.c.h.b16 %v33
  %v145 = vunpack.c.l.b16 %v34
  %v146 = vpack.c.b16 %v131, %v126
  %v147 = vpack.c.b16 %v132, %v127
  %v148 = vpack.c.b16 %v133, %v128
  %v149 = vpack.c.b16 %v134, %v129
  %v150 = vpack.c.b16 %v135, %v130
  %v151 = vpack.c.b16 %v141, %v136
  %v152 = vpack.c.b16 %v142, %v137
  %v153 = vpack.c.b16 %v143, %v138
  %v154 = vpack.c.b16 %v144, %v139
  %v155 = vpack.c.b16 %v145, %v140
  %v236 = vunpack.c.l.b16 %v35
  %v237 = vunpack.c.l.b16 %v36
  %v238 = vunpack.c.l.b16 %v37
  %v239 = vunpack.c.l.b16 %v38
  %v240 = vunpack.c.l.b16 %v39
  %v241 = vunpack.c.l.b16 %v40
  %v242 = vunpack.c.l.b16 %v41
  %v243 = vunpack.c.l.b16 %v42
  %v244 = vunpack.c.l.b16 %v43
  %v245 = vunpack.c.l.b16 %v44
  %v246 = vunpack.c.l.b16 %v45
  %v247 = vunpack.c.l.b16 %v46
  %v248 = vunpack.c.l.b16 %v47
  %v249 = vunpack.c.l.b16 %v48
  %v250 = vunpack.c.l.b16 %v49
  %v251 = vunpack.c.l.b16 %v50
  %v252 = vunpack.c.l.b16 %v51
  %v253 = vunpack.c.l.b16 %v52
  %v254 = vunpack.c.l.b16 %v53
  %v255 = vunpack.c.l.b16 %v54
  %v256 = vunpack.c.l.b16 %v55
  %v257 = vunpack.c.l.b16 %v56
  %v258 = vunpack.c.l.b16 %v57
  %v259 = vunpack.c.l.b16 %v58
  %v260 = vunpack.c.l.b16 %v59
  %v261 = vunpack.c.l.b16 %v60
  %v262 = vunpack.c.l.b16 %v61
  %v263 = vunpack.c.l.b16 %v62
  %v264 = vunpack.c.l.b16 %v63
  %v265 = vunpack.c.l.b16 %v64
  %v266 = vunpack.c.l.b16 %v65
  %v267 = vunpack.c.l.b16 %v66
  %v268 = vunpack.c.l.b16 %v67
  %v269 = vunpack.c.l.b16 %v68
  %v270 = vunpack.c.l.b16 %v69
  %v271 = vunpack.c.l.b16 %v70
  %v272 = vunpack.c.l.b16 %v71
  %v273 = vunpack.c.l.b16 %v72
  %v274 = vunpack.c.l.b16 %v73
  %v275 = vunpack.c.l.b16 %v74
  %v276 = vunpack.c.l.b16 %v75
  %v277 = vunpack.c.l.b16 %v76
  %v278 = vunpack.c.l.b16 %v77
  %v279 = vunpack.c.l.b16 %v78
  %v280 = vunpack.c.l.b16 %v79
  %v281 = vunpack.c.l.b16 %v80
  %v282 = vunpack.c.l.b16 %v81
  %v283 = vunpack.c.l.b16 %v82
  %v284 = vunpack.c.l.b16 %v83
  %v285 = vunpack.c.l.b16 %v84
  %v286 = vunpack.c.l.b16 %v85
  %v287 = vunpack.c.l.b16 %v86
  %v288 = vunpack.c.l.b16 %v87
  %v289 = vunpack.c.l.b16 %v88
  %v290 = vunpack.c.l.b16 %v89
  %v291 = vunpack.c.l.b16 %v90
  %v292 = vunpack.c.l.b16 %v91
  %v293 = vunpack.c.l.b16 %v92
  %v294 = vunpack.c.l.b16 %v93
  %v295 = vunpack.c.l.b16 %v94
  %v296 = vunpack.c.l.b16 %v95
  %v297 = vunpack.c.l.b16 %v96
  %v298 = vunpack.c.l.b16 %v97
  %v299 = vunpack.c.l.b16 %v98
  %v300 = vunpack.c.l.b16 %v99
  %v301 = vunpack.c.l.b16 %v100
  %v302 = vunpack.c.l.b16 %v101
  %v303 = vunpack.c.l.b16 %v102
  %v304 = vunpack.c.l.b16 %v103
  %v305 = vunpack.c.l.b16 %v104
  %v306 = vunpack.c.l.b16 %v105
  %v307 = vunpack.c.l.b16 %v106
  %v308 = vpack.c.b16 %v237, %v236
  %v309 = vpack.c.b16 %v239, %v238
  %v310 = vpack.c.b16 %v241, %v240
  %v311 = vpack.c.b16 %v243, %v242
  %v312 = vpack.c.b16 %v245, %v244
  %v313 = vpack.c.b16 %v247, %v246
  %v314 = vpack.c.b16 %v249, %v248
  %v315 = vpack.c.b16 %v251, %v250
  %v316 = vpack.c.b16 %v253, %v252
  %v317 = vpack.c.b16 %v255, %v254
  %v318 = vpack.c.b16 %v257, %v256
  %v319 = vpack.c.b16 %v259, %v258
  %v320 = vpack.c.b16 %v261, %v260
  %v321 = vpack.c.b16 %v263, %v262
  %v322 = vpack.c.b16 %v265, %v264
  %v323 = vpack.c.b16 %v267, %v266
  %v324 = vpack.c.b16 %v269, %v268
  %v325 = vpack.c.b16 %v271, %v270
  %v326 = vpack.c.b16 %v273, %v272
  %v327 = vpack.c.b16 %v275, %v274
  %v328 = vpack.c.b16 %v277, %v276
  %v329 = vpack.c.b16 %v279, %v278
  %v330 = vpack.c.b16 %v281, %v280
  %v331 = vpack.c.b16 %v283, %v282
  %v332 = vpack.c.b16 %v285, %v284
  %v333 = vpack.c.b16 %v287, %v286
  %v334 = vpack.c.b16 %v289, %v288
  %v335 = vpack.c.b16 %v291, %v290
  %v336 = vpack.c.b16 %v293, %v292
  %v337 = vpack.c.b16 %v295, %v294
  %v338 = vpack.c.b16 %v297, %v296
  %v339 = vpack.c.b16 %v299, %v298
  %v340 = vpack.c.b16 %v301, %v300
  %v341 = vpack.c.b16 %v303, %v302
  %v342 = vpack.c.b16 %v305, %v304
  %v343 = vpack.c.b16 %v307, %v306
  %vm380 = vcmask 523264
  %v382 = vsel %vm380, %v150, 0
  %v385 = vsel %vm380, %v155, 0
  %387 = vmatprep.subr.bf16.mxu0 0
  %388 = vmatpush1.bf16.msra.mxu0 %v315
  %389 = vmatprep.subr.bf16.mxu0 0
  %390 = vmatpush1.bf16.msra.mxu0 %v314
  %391 = vmatprep.subr.bf16.mxu0 0
  %392 = vmatpush1.bf16.msra.mxu0 %v313
  %393 = vmatprep.subr.bf16.mxu0 0
  %394 = vmatpush1.bf16.msra.mxu0 %v312
  %395 = vmatprep.subr.bf16.mxu0 0
  %396 = vmatpush1.bf16.msra.mxu0 %v311
  %397 = vmatprep.subr.bf16.mxu0 0
  %398 = vmatpush1.bf16.msra.mxu0 %v310
  %399 = vmatprep.subr.bf16.mxu0 0
  %400 = vmatpush1.bf16.msra.mxu0 %v309
  %401 = vmatprep.subr.bf16.mxu0 0
  %402 = vmatpush1.bf16.msra.mxu0 %v308
  %403 = vmatprep.subr.bf16.mxu0 0
  %404 = vmatpush2.bf16.msra.mxu0 %v323
  %405 = vmatprep.subr.bf16.mxu0 0
  %406 = vmatpush2.bf16.msra.mxu0 %v322
  %407 = vmatprep.subr.bf16.mxu0 0
  %408 = vmatpush2.bf16.msra.mxu0 %v321
  %409 = vmatprep.subr.bf16.mxu0 0
  %410 = vmatpush2.bf16.msra.mxu0 %v320
  %411 = vmatprep.subr.bf16.mxu0 0
  %412 = vmatpush2.bf16.msra.mxu0 %v319
  %413 = vmatprep.subr.bf16.mxu0 0
  %414 = vmatpush2.bf16.msra.mxu0 %v318
  %415 = vmatprep.subr.bf16.mxu0 0
  %416 = vmatpush2.bf16.msra.mxu0 %v317
  %417 = vmatprep.subr.bf16.mxu0 0
  %418 = vmatpush2.bf16.msra.mxu0 %v316
  %419 = vmatprep.mubr.bf16.mxu0 %v147
  %420 = vmatmul.mubr.bf16.gmra.mxu0 %v146
  %v421 = vpop.f32.mrf.mxu0
  %v422 = vadd.f32 %v112, %v421
  %v423 = vpop.f32.mrf.mxu0
  %v424 = vpop.f32.mrf.mxu0
  %v425 = vadd.f32 %v112, %v424
  %v426 = vpop.f32.mrf.mxu0
  %427 = vmatprep.mubr.bf16.mxu0 %v152
  %428 = vmatmul.mubr.bf16.gmra.mxu0 %v151
  %v429 = vpop.f32.mrf.mxu0
  %v430 = vadd.f32 %v112, %v429
  %v431 = vpop.f32.mrf.mxu0
  %v432 = vpop.f32.mrf.mxu0
  %v433 = vadd.f32 %v112, %v432
  %v434 = vpop.f32.mrf.mxu0
  %435 = vdwg.mxu0
  %436 = vmatprep.subr.bf16.mxu0 0
  %437 = vmatpush1.bf16.msra.mxu0 %v331
  %438 = vmatprep.subr.bf16.mxu0 0
  %439 = vmatpush1.bf16.msra.mxu0 %v330
  %440 = vmatprep.subr.bf16.mxu0 0
  %441 = vmatpush1.bf16.msra.mxu0 %v329
  %442 = vmatprep.subr.bf16.mxu0 0
  %443 = vmatpush1.bf16.msra.mxu0 %v328
  %444 = vmatprep.subr.bf16.mxu0 0
  %445 = vmatpush1.bf16.msra.mxu0 %v327
  %446 = vmatprep.subr.bf16.mxu0 0
  %447 = vmatpush1.bf16.msra.mxu0 %v326
  %448 = vmatprep.subr.bf16.mxu0 0
  %449 = vmatpush1.bf16.msra.mxu0 %v325
  %450 = vmatprep.subr.bf16.mxu0 0
  %451 = vmatpush1.bf16.msra.mxu0 %v324
  %452 = vmatprep.subr.bf16.mxu0 0
  %453 = vmatpush2.bf16.msra.mxu0 %v339
  %454 = vmatprep.subr.bf16.mxu0 0
  %455 = vmatpush2.bf16.msra.mxu0 %v338
  %456 = vmatprep.subr.bf16.mxu0 0
  %457 = vmatpush2.bf16.msra.mxu0 %v337
  %458 = vmatprep.subr.bf16.mxu0 0
  %459 = vmatpush2.bf16.msra.mxu0 %v336
  %460 = vmatprep.subr.bf16.mxu0 0
  %461 = vmatpush2.bf16.msra.mxu0 %v335
  %462 = vmatprep.subr.bf16.mxu0 0
  %463 = vmatpush2.bf16.msra.mxu0 %v334
  %464 = vmatprep.subr.bf16.mxu0 0
  %465 = vmatpush2.bf16.msra.mxu0 %v333
  %466 = vmatprep.subr.bf16.mxu0 0
  %467 = vmatpush2.bf16.msra.mxu0 %v332
  %468 = vmatprep.mubr.bf16.mxu0 %v149
  %469 = vmatmul.mubr.bf16.gmra.mxu0 %v148
  %v470 = vpop.f32.mrf.mxu0
  %v471 = vadd.f32 %v422, %v470
  %v472 = vpop.f32.mrf.mxu0
  %v473 = vpop.f32.mrf.mxu0
  %v474 = vadd.f32 %v425, %v473
  %v475 = vpop.f32.mrf.mxu0
  %476 = vmatprep.mubr.bf16.mxu0 %v154
  %477 = vmatmul.mubr.bf16.gmra.mxu0 %v153
  %v478 = vpop.f32.mrf.mxu0
  %v479 = vadd.f32 %v430, %v478
  %v480 = vpop.f32.mrf.mxu0
  %v481 = vpop.f32.mrf.mxu0
  %v482 = vadd.f32 %v433, %v481
  %v483 = vpop.f32.mrf.mxu0
  %484 = vdwg.mxu0
  %485 = vmatprep.subr.bf16.mxu0 0
  %486 = vmatpush1.bf16.msra.mxu0 0
  %487 = vmatprep.subr.bf16.mxu0 0
  %488 = vmatpush1.bf16.msra.mxu0 0
  %489 = vmatprep.subr.bf16.mxu0 0
  %490 = vmatpush1.bf16.msra.mxu0 0
  %491 = vmatprep.subr.bf16.mxu0 0
  %492 = vmatpush1.bf16.msra.mxu0 0
  %493 = vmatprep.subr.bf16.mxu0 0
  %494 = vmatpush1.bf16.msra.mxu0 %v343
  %495 = vmatprep.subr.bf16.mxu0 0
  %496 = vmatpush1.bf16.msra.mxu0 %v342
  %497 = vmatprep.subr.bf16.mxu0 0
  %498 = vmatpush1.bf16.msra.mxu0 %v341
  %499 = vmatprep.subr.bf16.mxu0 0
  %500 = vmatpush1.bf16.msra.mxu0 %v340
  %501 = vmatprep.subr.bf16.mxu0 0
  %502 = vmatpush2.bf16.msra.mxu0 0
  %503 = vmatprep.subr.bf16.mxu0 0
  %504 = vmatpush2.bf16.msra.mxu0 0
  %505 = vmatprep.subr.bf16.mxu0 0
  %506 = vmatpush2.bf16.msra.mxu0 0
  %507 = vmatprep.subr.bf16.mxu0 0
  %508 = vmatpush2.bf16.msra.mxu0 0
  %509 = vmatprep.subr.bf16.mxu0 0
  %510 = vmatpush2.bf16.msra.mxu0 0
  %511 = vmatprep.subr.bf16.mxu0 0
  %512 = vmatpush2.bf16.msra.mxu0 0
  %513 = vmatprep.subr.bf16.mxu0 0
  %514 = vmatpush2.bf16.msra.mxu0 0
  %515 = vmatprep.subr.bf16.mxu0 0
  %516 = vmatpush2.bf16.msra.mxu0 0
  %517 = vmatprep.mubr.bf16.mxu0 0
  %518 = vmatmul.mubr.bf16.gmra.mxu0 %v382
  %v519 = vpop.f32.mrf.mxu0
  %v520 = vadd.f32 %v471, %v519
  %v521 = vpop.f32.mrf.mxu0
  %v522 = vpop.f32.mrf.mxu0
  %v523 = vadd.f32 %v474, %v522
  %v524 = vpop.f32.mrf.mxu0
  %525 = vmatprep.mubr.bf16.mxu0 0
  %526 = vmatmul.mubr.bf16.gmra.mxu0 %v385
  %v527 = vpop.f32.mrf.mxu0
  %v528 = vadd.f32 %v479, %v527
  %v529 = vpop.f32.mrf.mxu0
  %v530 = vpop.f32.mrf.mxu0
  %v531 = vadd.f32 %v482, %v530
  %v532 = vpop.f32.mrf.mxu0
  %533 = vdwg.mxu0
  %v534 = vmax.f32 %v520, 0.0
  %v535 = vmax.f32 %v523, 0.0
  %v536 = vmax.f32 %v528, 0.0
  %v537 = vmax.f32 %v531, 0.0
  %v538 = vpack.c.bf16 %v535, %v534
  %v539 = vpack.c.bf16 %v537, %v536
  %v542 = vunpack.c.l.b16 %v538
  %v543 = vunpack.c.h.b16 %v538
  %v544 = vunpack.c.l.b16 %v539
  %v545 = vunpack.c.h.b16 %v539
  %v546 = vpack.c.b16 %v542, %v542
  %v547 = vpack.c.b16 %v543, %v543
  %v548 = vpack.c.b16 %v544, %v544
  %v549 = vpack.c.b16 %v545, %v545
  %554 = vst [vmem:[%s5] sm:$0xf] %v546
  %555 = vst [vmem:[%s5 + $0x4] sm:$0xf] %v547
  %556 = vst [vmem:[%s5 + $0x8] sm:$0xf] %v548
  %557 = vst [vmem:[%s5 + $0xc] sm:$0xf] %v549
  %v558 = vld [vmem:[%s3] sm:$0xf]
  %v559 = vld [vmem:[%s3 + $0x4] sm:$0xf]
  %v560 = vld [vmem:[%s3 + $0x8] sm:$0xf]
  %v561 = vld [vmem:[%s3 + $0xc] sm:$0xf]
  %v562 = vld [vmem:[%s3 + $0x10] sm:$0xf]
  %v563 = vld [vmem:[%s3 + $0x14] sm:$0xf]
  %v564 = vld [vmem:[%s3 + $0x18] sm:$0xf]
  %v565 = vld [vmem:[%s3 + $0x1c] sm:$0xf]
  %v566 = vld [vmem:[%s3 + $0x20] sm:$0xf]
  %v567 = vld [vmem:[%s3 + $0x24] sm:$0xf]
  %v568 = vld [vmem:[%s3 + $0x28] sm:$0xf]
  %v569 = vld [vmem:[%s3 + $0x2c] sm:$0xf]
  %v570 = vld [vmem:[%s3 + $0x30] sm:$0xf]
  %v571 = vld [vmem:[%s3 + $0x34] sm:$0xf]
  %v572 = vld [vmem:[%s3 + $0x38] sm:$0xf]
  %v573 = vld [vmem:[%s3 + $0x3c] sm:$0xf]
  %v574 = vld [vmem:[%s4] sm:$0x1]
  %v576 = vlaneseq
  %v577 = vshrl.u32 %v576, 7
  %v578 = vsub.s32 0, %v577
  %v579 = vrot.slane %v574, %v578
  %v597 = vunpack.c.l.b16 %v558
  %v598 = vunpack.c.l.b16 %v559
  %v599 = vunpack.c.l.b16 %v560
  %v600 = vunpack.c.l.b16 %v561
  %v601 = vunpack.c.l.b16 %v562
  %v602 = vunpack.c.l.b16 %v563
  %v603 = vunpack.c.l.b16 %v564
  %v604 = vunpack.c.l.b16 %v565
  %v605 = vunpack.c.l.b16 %v566
  %v606 = vunpack.c.l.b16 %v567
  %v607 = vunpack.c.l.b16 %v568
  %v608 = vunpack.c.l.b16 %v569
  %v609 = vunpack.c.l.b16 %v570
  %v610 = vunpack.c.l.b16 %v571
  %v611 = vunpack.c.l.b16 %v572
  %v612 = vunpack.c.l.b16 %v573
  %v613 = vpack.c.b16 %v598, %v597
  %v614 = vpack.c.b16 %v600, %v599
  %v615 = vpack.c.b16 %v602, %v601
  %v616 = vpack.c.b16 %v604, %v603
  %v617 = vpack.c.b16 %v606, %v605
  %v618 = vpack.c.b16 %v608, %v607
  %v619 = vpack.c.b16 %v610, %v609
  %v620 = vpack.c.b16 %v612, %v611
  %629 = vmatprep.subr.bf16.mxu0 0
  %630 = vmatpush1.bf16.msra.mxu0 %v620
  %631 = vmatprep.subr.bf16.mxu0 0
  %632 = vmatpush1.bf16.msra.mxu0 %v619
  %633 = vmatprep.subr.bf16.mxu0 0
  %634 = vmatpush1.bf16.msra.mxu0 %v618
  %635 = vmatprep.subr.bf16.mxu0 0
  %636 = vmatpush1.bf16.msra.mxu0 %v617
  %637 = vmatprep.subr.bf16.mxu0 0
  %638 = vmatpush1.bf16.msra.mxu0 %v616
  %639 = vmatprep.subr.bf16.mxu0 0
  %640 = vmatpush1.bf16.msra.mxu0 %v615
  %641 = vmatprep.subr.bf16.mxu0 0
  %642 = vmatpush1.bf16.msra.mxu0 %v614
  %643 = vmatprep.subr.bf16.mxu0 0
  %644 = vmatpush1.bf16.msra.mxu0 %v613
  %645 = vmatprep.subr.bf16.mxu0 0
  %646 = vmatpush2.bf16.msra.mxu0 0
  %647 = vmatprep.subr.bf16.mxu0 0
  %648 = vmatpush2.bf16.msra.mxu0 0
  %649 = vmatprep.subr.bf16.mxu0 0
  %650 = vmatpush2.bf16.msra.mxu0 0
  %651 = vmatprep.subr.bf16.mxu0 0
  %652 = vmatpush2.bf16.msra.mxu0 0
  %653 = vmatprep.subr.bf16.mxu0 0
  %654 = vmatpush2.bf16.msra.mxu0 0
  %655 = vmatprep.subr.bf16.mxu0 0
  %656 = vmatpush2.bf16.msra.mxu0 0
  %657 = vmatprep.subr.bf16.mxu0 0
  %658 = vmatpush2.bf16.msra.mxu0 0
  %659 = vmatprep.subr.bf16.mxu0 0
  %660 = vmatpush2.bf16.msra.mxu0 0
  %661 = vmatprep.mubr.bf16.mxu0 0
  %662 = vmatmul.mubr.bf16.gmra.mxu0 %v538
  %v663 = vpop.f32.mrf.mxu0
  %v664 = vadd.f32 %v579, %v663
  %v665 = vpop.f32.mrf.mxu0
  %v666 = vpop.f32.mrf.mxu0
  %v667 = vadd.f32 %v579, %v666
  %v668 = vpop.f32.mrf.mxu0
  %669 = vmatprep.mubr.bf16.mxu0 0
  %670 = vmatmul.mubr.bf16.gmra.mxu0 %v539
  %v671 = vpop.f32.mrf.mxu0
  %v672 = vadd.f32 %v579, %v671
  %v673 = vpop.f32.mrf.mxu0
  %v674 = vpop.f32.mrf.mxu0
  %v675 = vadd.f32 %v579, %v674
  %v676 = vpop.f32.mrf.mxu0
  %677 = vdwg.mxu0
  %v678 = vmax.f32 %v664, 0.0
  %v679 = vmax.f32 %v667, 0.0
  %v680 = vmax.f32 %v672, 0.0
  %v681 = vmax.f32 %v675, 0.0
  %v682 = vpack.c.bf16 %v679, %v678
  %v683 = vpack.c.bf16 %v681, %v680
  %v686 = vunpack.c.l.b16 %v682
  %v687 = vunpack.c.h.b16 %v682
  %v688 = vunpack.c.l.b16 %v683
  %v689 = vunpack.c.h.b16 %v683
  %v690 = vpack.c.b16 %v686, %v686
  %v691 = vpack.c.b16 %v687, %v687
  %v692 = vpack.c.b16 %v688, %v688
  %v693 = vpack.c.b16 %v689, %v689
  %698 = vst [vmem:[%s6] sm:$0xf] %v690
  %699 = vst [vmem:[%s6 + $0x4] sm:$0xf] %v691
  %700 = vst [vmem:[%s6 + $0x8] sm:$0xf] %v692
  %701 = vst [vmem:[%s6 + $0xc] sm:$0xf] %v693
  // Predicated region
  $region22: #{uacanet_forward.13} parent=0 // pred_check
    _
  $region23: #{uacanet_forward.13} parent=0 // pred_check_branch
    %703 = sbr.rel (0) target = $region25
  $region24: #{uacanet_forward.13} parent=0 // pred_region
    _
  $region25: #{uacanet_forward.13} parent=0 // pred_fallthru
    _
  // Predicated region
  $region26: #{uacanet_forward.13} parent=0 // pred_check
    _
  $region27: #{uacanet_forward.13} parent=0 // pred_check_branch
    %705 = sbr.rel (0) target = $region29
  $region28: #{uacanet_forward.13} parent=0 // pred_region
    _
  $region29: #{uacanet_forward.13} parent=0 // pred_fallthru
    _
  // Predicated region
  $region30: #{uacanet_forward.13} parent=0 // pred_check
    _
  $region31: #{uacanet_forward.13} parent=0 // pred_check_branch
    %707 = sbr.rel (0) target = $region33
  $region32: #{uacanet_forward.13} parent=0 // pred_region
    _
  $region33: #{uacanet_forward.13} parent=0 // pred_fallthru
    _
  // Predicated region
  $region34: #{uacanet_forward.13} parent=0 // pred_check
    _
  $region35: #{uacanet_forward.13} parent=0 // pred_check_branch
    %709 = sbr.rel (0) target = $region37
  $region36: #{uacanet_forward.13} parent=0 // pred_region
    _
  $region37: #{uacanet_forward.13} parent=0 // pred_fallthru
    _

// kernel: uacanet_forward.14
$region0: #{uacanet_forward.14}
  #allocation0 [shape = 'u32[]', space=smem, size = 0x4, offset = 0x4, fixed_abs, tag = 'smem constant byte address 0x4 - core index']
  #allocation1 [shape = 'u32[144,128]{1,0:T(1,128)}', space=vmem, size = 0x12000, scoped, tag = 'internal scratch']
  %s0 = inlined_call_operand.vmem [shape: bf16[32,1152], index: 0, kind: input, shape index: {}]
  %s1 = inlined_call_operand.vmem [shape: bf16[1152,256], index: 1, kind: input, shape index: {}]
  %s2 = inlined_call_operand.vmem [shape: f32[1,256], index: 2, kind: input, shape index: {}]
  %s3 = inlined_call_operand.vmem [shape: bf16[256,128], index: 3, kind: input, shape index: {}]
  %s4 = inlined_call_operand.vmem [shape: f32[1,128], index: 4, kind: input, shape index: {}]
  %s5 = inlined_call_operand.hbm [shape: bf16[32,256], index: 5, kind: output, shape index: {0}]
  %s6 = inlined_call_operand.vmem [shape: bf16[32,128], index: 6, kind: output, shape index: {1}]
  %7 = xla_tuple %s5, %s6
  %s8 = sld [smem:[#allocation0]]
  $region38: #{uacanet_forward.14} parent=0
    _
  %s10 = ssub.s32 1, %s8
  %s11 = scalar_select 0, %s10, %s8
  $region1: #{uacanet_forward.14} parent=0
    #allocation2 [shape = 'u8[16384]{0}', space=vmem, size = 0x4000, scoped, tag = 'output window, operand 0, single buffered']
    #allocation3 [shape = 's32[1]{0}', space=sflag, size = 0x4, scoped, tag = 'scoped memory for uacanet_forward.14']
    %12 = vsyncpa [#allocation3], 0
    // Predicated region
    $region2: #{uacanet_forward.14} parent=1 // pred_check
      _
    $region3: #{uacanet_forward.14} parent=1 // pred_check_branch
      %14 = sbr.rel (0) target = $region5
    $region4: #{uacanet_forward.14} parent=1 // pred_region
      _
    $region5: #{uacanet_forward.14} parent=1 // pred_fallthru
      _
    // Predicated region
    $region6: #{uacanet_forward.14} parent=1 // pred_check
      _
    $region7: #{uacanet_forward.14} parent=1 // pred_check_branch
      %16 = sbr.rel (0) target = $region9
    $region8: #{uacanet_forward.14} parent=1 // pred_region
      _
    $region9: #{uacanet_forward.14} parent=1 // pred_fallthru
      _
    // Predicated region
    $region10: #{uacanet_forward.14} parent=1 // pred_check
      _
    $region11: #{uacanet_forward.14} parent=1 // pred_check_branch
      %18 = sbr.rel (0) target = $region13
    $region12: #{uacanet_forward.14} parent=1 // pred_region
      _
    $region13: #{uacanet_forward.14} parent=1 // pred_fallthru
      _
    // Predicated region
    $region14: #{uacanet_forward.14} parent=1 // pred_check
      _
    $region15: #{uacanet_forward.14} parent=1 // pred_check_branch
      %20 = sbr.rel (0) target = $region17
    $region16: #{uacanet_forward.14} parent=1 // pred_region
      _
    $region17: #{uacanet_forward.14} parent=1 // pred_fallthru
      _
    // Predicated region
    $region18: #{uacanet_forward.14} parent=1 // pred_check
      _
    $region19: #{uacanet_forward.14} parent=1 // pred_check_branch
      %22 = sbr.rel (0) target = $region21
    $region20: #{uacanet_forward.14} parent=1 // pred_region
      _
    $region21: #{uacanet_forward.14} parent=1 // pred_fallthru
      _
    %v24 = vld [vmem:[%s0] sm:$0xff]
    %v25 = vld [vmem:[%s0 + $0x8] sm:$0xff]
    %v26 = vld [vmem:[%s0 + $0x10] sm:$0xff]
    %v27 = vld [vmem:[%s0 + $0x18] sm:$0xff]
    %v28 = vld [vmem:[%s0 + $0x20] sm:$0xf]
    %v29 = vld [vmem:[%s0 + $0x24] sm:$0xff]
    %v30 = vld [vmem:[%s0 + $0x2c] sm:$0xff]
    %v31 = vld [vmem:[%s0 + $0x34] sm:$0xff]
    %v32 = vld [vmem:[%s0 + $0x3c] sm:$0xff]
    %v33 = vld [vmem:[%s0 + $0x44] sm:$0xf]
    %v34 = vld [vmem:[%s0 + $0x48] sm:$0xff]
    %v35 = vld [vmem:[%s0 + $0x50] sm:$0xff]
    %v36 = vld [vmem:[%s0 + $0x58] sm:$0xff]
    %v37 = vld [vmem:[%s0 + $0x60] sm:$0xff]
    %v38 = vld [vmem:[%s0 + $0x68] sm:$0xf]
    %v39 = vld [vmem:[%s0 + $0x6c] sm:$0xff]
    %v40 = vld [vmem:[%s0 + $0x74] sm:$0xff]
    %v41 = vld [vmem:[%s0 + $0x7c] sm:$0xff]
    %v42 = vld [vmem:[%s0 + $0x84] sm:$0xff]
    %v43 = vld [vmem:[%s0 + $0x8c] sm:$0xf]
    %v44 = vld [vmem:[%s1] sm:$0xff]
    %v45 = vld [vmem:[%s1 + $0x8] sm:$0xff]
    %v46 = vld [vmem:[%s1 + $0x10] sm:$0xff]
    %v47 = vld [vmem:[%s1 + $0x18] sm:$0xff]
    %v48 = vld [vmem:[%s1 + $0x20] sm:$0xff]
    %v49 = vld [vmem:[%s1 + $0x28] sm:$0xff]
    %v50 = vld [vmem:[%s1 + $0x30] sm:$0xff]
    %v51 = vld [vmem:[%s1 + $0x38] sm:$0xff]
    %v52 = vld [vmem:[%s1 + $0x40] sm:$0xff]
    %v53 = vld [vmem:[%s1 + $0x48] sm:$0xff]
    %v54 = vld [vmem:[%s1 + $0x50] sm:$0xff]
    %v55 = vld [vmem:[%s1 + $0x58] sm:$0xff]
    %v56 = vld [vmem:[%s1 + $0x60] sm:$0xff]
    %v57 = vld [vmem:[%s1 + $0x68] sm:$0xff]
    %v58 = vld [vmem:[%s1 + $0x70] sm:$0xff]
    %v59 = vld [vmem:[%s1 + $0x78] sm:$0xff]
    %v60 = vld [vmem:[%s1 + $0x80] sm:$0xff]
    %v61 = vld [vmem:[%s1 + $0x88] sm:$0xff]
    %v62 = vld [vmem:[%s1 + $0x90] sm:$0xff]
    %v63 = vld [vmem:[%s1 + $0x98] sm:$0xff]
    %v64 = vld [vmem:[%s1 + $0xa0] sm:$0xff]
    %v65 = vld [vmem:[%s1 + $0xa8] sm:$0xff]
    %v66 = vld [vmem:[%s1 + $0xb0] sm:$0xff]
    %v67 = vld [vmem:[%s1 + $0xb8] sm:$0xff]
    %v68 = vld [vmem:[%s1 + $0xc0] sm:$0xff]
    %v69 = vld [vmem:[%s1 + $0xc8] sm:$0xff]
    %v70 = vld [vmem:[%s1 + $0xd0] sm:$0xff]
    %v71 = vld [vmem:[%s1 + $0xd8] sm:$0xff]
    %v72 = vld [vmem:[%s1 + $0xe0] sm:$0xff]
    %v73 = vld [vmem:[%s1 + $0xe8] sm:$0xff]
    %v74 = vld [vmem:[%s1 + $0xf0] sm:$0xff]
    %v75 = vld [vmem:[%s1 + $0xf8] sm:$0xff]
    %v76 = vld [vmem:[%s1 + $0x100] sm:$0xff]
    %v77 = vld [vmem:[%s1 + $0x108] sm:$0xff]
    %v78 = vld [vmem:[%s1 + $0x110] sm:$0xff]
    %v79 = vld [vmem:[%s1 + $0x118] sm:$0xff]
    %v80 = vld [vmem:[%s1 + $0x120] sm:$0xff]
    %v81 = vld [vmem:[%s1 + $0x128] sm:$0xff]
    %v82 = vld [vmem:[%s1 + $0x130] sm:$0xff]
    %v83 = vld [vmem:[%s1 + $0x138] sm:$0xff]
    %v84 = vld [vmem:[%s1 + $0x140] sm:$0xff]
    %v85 = vld [vmem:[%s1 + $0x148] sm:$0xff]
    %v86 = vld [vmem:[%s1 + $0x150] sm:$0xff]
    %v87 = vld [vmem:[%s1 + $0x158] sm:$0xff]
    %v88 = vld [vmem:[%s1 + $0x160] sm:$0xff]
    %v89 = vld [vmem:[%s1 + $0x168] sm:$0xff]
    %v90 = vld [vmem:[%s1 + $0x170] sm:$0xff]
    %v91 = vld [vmem:[%s1 + $0x178] sm:$0xff]
    %v92 = vld [vmem:[%s1 + $0x180] sm:$0xff]
    %v93 = vld [vmem:[%s1 + $0x188] sm:$0xff]
    %v94 = vld [vmem:[%s1 + $0x190] sm:$0xff]
    %v95 = vld [vmem:[%s1 + $0x198] sm:$0xff]
    %v96 = vld [vmem:[%s1 + $0x1a0] sm:$0xff]
    %v97 = vld [vmem:[%s1 + $0x1a8] sm:$0xff]
    %v98 = vld [vmem:[%s1 + $0x1b0] sm:$0xff]
    %v99 = vld [vmem:[%s1 + $0x1b8] sm:$0xff]
    %v100 = vld [vmem:[%s1 + $0x1c0] sm:$0xff]
    %v101 = vld [vmem:[%s1 + $0x1c8] sm:$0xff]
    %v102 = vld [vmem:[%s1 + $0x1d0] sm:$0xff]
    %v103 = vld [vmem:[%s1 + $0x1d8] sm:$0xff]
    %v104 = vld [vmem:[%s1 + $0x1e0] sm:$0xff]
    %v105 = vld [vmem:[%s1 + $0x1e8] sm:$0xff]
    %v106 = vld [vmem:[%s1 + $0x1f0] sm:$0xff]
    %v107 = vld [vmem:[%s1 + $0x1f8] sm:$0xff]
    %v108 = vld [vmem:[%s1 + $0x200] sm:$0xff]
    %v109 = vld [vmem:[%s1 + $0x208] sm:$0xff]
    %v110 = vld [vmem:[%s1 + $0x210] sm:$0xff]
    %v111 = vld [vmem:[%s1 + $0x218] sm:$0xff]
    %v112 = vld [vmem:[%s1 + $0x220] sm:$0xff]
    %v113 = vld [vmem:[%s1 + $0x228] sm:$0xff]
    %v114 = vld [vmem:[%s1 + $0x230] sm:$0xff]
    %v115 = vld [vmem:[%s1 + $0x238] sm:$0xff]
    %v116 = vld [vmem:[%s1 + $0x240] sm:$0xff]
    %v117 = vld [vmem:[%s1 + $0x248] sm:$0xff]
    %v118 = vld [vmem:[%s1 + $0x250] sm:$0xff]
    %v119 = vld [vmem:[%s1 + $0x258] sm:$0xff]
    %v120 = vld [vmem:[%s1 + $0x260] sm:$0xff]
    %v121 = vld [vmem:[%s1 + $0x268] sm:$0xff]
    %v122 = vld [vmem:[%s1 + $0x270] sm:$0xff]
    %v123 = vld [vmem:[%s1 + $0x278] sm:$0xff]
    %v124 = vld [vmem:[%s1 + $0x280] sm:$0xff]
    %v125 = vld [vmem:[%s1 + $0x288] sm:$0xff]
    %v126 = vld [vmem:[%s1 + $0x290] sm:$0xff]
    %v127 = vld [vmem:[%s1 + $0x298] sm:$0xff]
    %v128 = vld [vmem:[%s1 + $0x2a0] sm:$0xff]
    %v129 = vld [vmem:[%s1 + $0x2a8] sm:$0xff]
    %v130 = vld [vmem:[%s1 + $0x2b0] sm:$0xff]
    %v131 = vld [vmem:[%s1 + $0x2b8] sm:$0xff]
    %v132 = vld [vmem:[%s1 + $0x2c0] sm:$0xff]
    %v133 = vld [vmem:[%s1 + $0x2c8] sm:$0xff]
    %v134 = vld [vmem:[%s1 + $0x2d0] sm:$0xff]
    %v135 = vld [vmem:[%s1 + $0x2d8] sm:$0xff]
    %v136 = vld [vmem:[%s1 + $0x2e0] sm:$0xff]
    %v137 = vld [vmem:[%s1 + $0x2e8] sm:$0xff]
    %v138 = vld [vmem:[%s1 + $0x2f0] sm:$0xff]
    %v139 = vld [vmem:[%s1 + $0x2f8] sm:$0xff]
    %v140 = vld [vmem:[%s1 + $0x300] sm:$0xff]
    %v141 = vld [vmem:[%s1 + $0x308] sm:$0xff]
    %v142 = vld [vmem:[%s1 + $0x310] sm:$0xff]
    %v143 = vld [vmem:[%s1 + $0x318] sm:$0xff]
    %v144 = vld [vmem:[%s1 + $0x320] sm:$0xff]
    %v145 = vld [vmem:[%s1 + $0x328] sm:$0xff]
    %v146 = vld [vmem:[%s1 + $0x330] sm:$0xff]
    %v147 = vld [vmem:[%s1 + $0x338] sm:$0xff]
    %v148 = vld [vmem:[%s1 + $0x340] sm:$0xff]
    %v149 = vld [vmem:[%s1 + $0x348] sm:$0xff]
    %v150 = vld [vmem:[%s1 + $0x350] sm:$0xff]
    %v151 = vld [vmem:[%s1 + $0x358] sm:$0xff]
    %v152 = vld [vmem:[%s1 + $0x360] sm:$0xff]
    %v153 = vld [vmem:[%s1 + $0x368] sm:$0xff]
    %v154 = vld [vmem:[%s1 + $0x370] sm:$0xff]
    %v155 = vld [vmem:[%s1 + $0x378] sm:$0xff]
    %v156 = vld [vmem:[%s1 + $0x380] sm:$0xff]
    %v157 = vld [vmem:[%s1 + $0x388] sm:$0xff]
    %v158 = vld [vmem:[%s1 + $0x390] sm:$0xff]
    %v159 = vld [vmem:[%s1 + $0x398] sm:$0xff]
    %v160 = vld [vmem:[%s1 + $0x3a0] sm:$0xff]
    %v161 = vld [vmem:[%s1 + $0x3a8] sm:$0xff]
    %v162 = vld [vmem:[%s1 + $0x3b0] sm:$0xff]
    %v163 = vld [vmem:[%s1 + $0x3b8] sm:$0xff]
    %v164 = vld [vmem:[%s1 + $0x3c0] sm:$0xff]
    %v165 = vld [vmem:[%s1 + $0x3c8] sm:$0xff]
    %v166 = vld [vmem:[%s1 + $0x3d0] sm:$0xff]
    %v167 = vld [vmem:[%s1 + $0x3d8] sm:$0xff]
    %v168 = vld [vmem:[%s1 + $0x3e0] sm:$0xff]
    %v169 = vld [vmem:[%s1 + $0x3e8] sm:$0xff]
    %v170 = vld [vmem:[%s1 + $0x3f0] sm:$0xff]
    %v171 = vld [vmem:[%s1 + $0x3f8] sm:$0xff]
    %v172 = vld [vmem:[%s1 + $0x400] sm:$0xff]
    %v173 = vld [vmem:[%s1 + $0x408] sm:$0xff]
    %v174 = vld [vmem:[%s1 + $0x410] sm:$0xff]
    %v175 = vld [vmem:[%s1 + $0x418] sm:$0xff]
    %v176 = vld [vmem:[%s1 + $0x420] sm:$0xff]
    %v177 = vld [vmem:[%s1 + $0x428] sm:$0xff]
    %v178 = vld [vmem:[%s1 + $0x430] sm:$0xff]
    %v179 = vld [vmem:[%s1 + $0x438] sm:$0xff]
    %v180 = vld [vmem:[%s1 + $0x440] sm:$0xff]
    %v181 = vld [vmem:[%s1 + $0x448] sm:$0xff]
    %v182 = vld [vmem:[%s1 + $0x450] sm:$0xff]
    %v183 = vld [vmem:[%s1 + $0x458] sm:$0xff]
    %v184 = vld [vmem:[%s1 + $0x460] sm:$0xff]
    %v185 = vld [vmem:[%s1 + $0x468] sm:$0xff]
    %v186 = vld [vmem:[%s1 + $0x470] sm:$0xff]
    %v187 = vld [vmem:[%s1 + $0x478] sm:$0xff]
    %v188 = vld [vmem:[%s2] sm:$0x3]
    %v190 = vlaneseq
    %v191 = vshrl.u32 %v190, 7
    %v192 = vsub.s32 0, %v191
    %v193 = vrot.slane %v188, %v192
    %v194 = vlaneseq
    %v195 = vshrl.u32 %v194, 7
    %v196 = vsub.s32 1, %v195
    %v197 = vrot.slane %v188, %v196
    %v220 = vunpack.c.l.b16 %v24
    %v221 = vunpack.c.h.b16 %v24
    %v222 = vunpack.c.l.b16 %v25
    %v223 = vunpack.c.h.b16 %v25
    %v224 = vunpack.c.l.b16 %v26
    %v225 = vunpack.c.h.b16 %v26
    %v226 = vunpack.c.l.b16 %v27
    %v227 = vunpack.c.h.b16 %v27
    %v228 = vunpack.c.l.b16 %v28
    %v229 = vunpack.c.l.b16 %v29
    %v230 = vunpack.c.h.b16 %v29
    %v231 = vunpack.c.l.b16 %v30
    %v232 = vunpack.c.h.b16 %v30
    %v233 = vunpack.c.l.b16 %v31
    %v234 = vunpack.c.h.b16 %v31
    %v235 = vunpack.c.l.b16 %v32
    %v236 = vunpack.c.h.b16 %v32
    %v237 = vunpack.c.l.b16 %v33
    %v238 = vunpack.c.l.b16 %v34
    %v239 = vunpack.c.h.b16 %v34
    %v240 = vunpack.c.l.b16 %v35
    %v241 = vunpack.c.h.b16 %v35
    %v242 = vunpack.c.l.b16 %v36
    %v243 = vunpack.c.h.b16 %v36
    %v244 = vunpack.c.l.b16 %v37
    %v245 = vunpack.c.h.b16 %v37
    %v246 = vunpack.c.l.b16 %v38
    %v247 = vunpack.c.l.b16 %v39
    %v248 = vunpack.c.h.b16 %v39
    %v249 = vunpack.c.l.b16 %v40
    %v250 = vunpack.c.h.b16 %v40
    %v251 = vunpack.c.l.b16 %v41
    %v252 = vunpack.c.h.b16 %v41
    %v253 = vunpack.c.l.b16 %v42
    %v254 = vunpack.c.h.b16 %v42
    %v255 = vunpack.c.l.b16 %v43
    %v256 = vpack.c.b16 %v229, %v220
    %v257 = vpack.c.b16 %v230, %v221
    %v258 = vpack.c.b16 %v231, %v222
    %v259 = vpack.c.b16 %v232, %v223
    %v260 = vpack.c.b16 %v233, %v224
    %v261 = vpack.c.b16 %v234, %v225
    %v262 = vpack.c.b16 %v235, %v226
    %v263 = vpack.c.b16 %v236, %v227
    %v264 = vpack.c.b16 %v237, %v228
    %v265 = vpack.c.b16 %v247, %v238
    %v266 = vpack.c.b16 %v248, %v239
    %v267 = vpack.c.b16 %v249, %v240
    %v268 = vpack.c.b16 %v250, %v241
    %v269 = vpack.c.b16 %v251, %v242
    %v270 = vpack.c.b16 %v252, %v243
    %v271 = vpack.c.b16 %v253, %v244
    %v272 = vpack.c.b16 %v254, %v245
    %v273 = vpack.c.b16 %v255, %v246
    %v436 = vunpack.c.l.b16 %v44
    %v437 = vunpack.c.h.b16 %v44
    %v438 = vunpack.c.l.b16 %v45
    %v439 = vunpack.c.h.b16 %v45
    %v440 = vunpack.c.l.b16 %v46
    %v441 = vunpack.c.h.b16 %v46
    %v442 = vunpack.c.l.b16 %v47
    %v443 = vunpack.c.h.b16 %v47
    %v444 = vunpack.c.l.b16 %v48
    %v445 = vunpack.c.h.b16 %v48
    %v446 = vunpack.c.l.b16 %v49
    %v447 = vunpack.c.h.b16 %v49
    %v448 = vunpack.c.l.b16 %v50
    %v449 = vunpack.c.h.b16 %v50
    %v450 = vunpack.c.l.b16 %v51
    %v451 = vunpack.c.h.b16 %v51
    %v452 = vunpack.c.l.b16 %v52
    %v453 = vunpack.c.h.b16 %v52
    %v454 = vunpack.c.l.b16 %v53
    %v455 = vunpack.c.h.b16 %v53
    %v456 = vunpack.c.l.b16 %v54
    %v457 = vunpack.c.h.b16 %v54
    %v458 = vunpack.c.l.b16 %v55
    %v459 = vunpack.c.h.b16 %v55
    %v460 = vunpack.c.l.b16 %v56
    %v461 = vunpack.c.h.b16 %v56
    %v462 = vunpack.c.l.b16 %v57
    %v463 = vunpack.c.h.b16 %v57
    %v464 = vunpack.c.l.b16 %v58
    %v465 = vunpack.c.h.b16 %v58
    %v466 = vunpack.c.l.b16 %v59
    %v467 = vunpack.c.h.b16 %v59
    %v468 = vunpack.c.l.b16 %v60
    %v469 = vunpack.c.h.b16 %v60
    %v470 = vunpack.c.l.b16 %v61
    %v471 = vunpack.c.h.b16 %v61
    %v472 = vunpack.c.l.b16 %v62
    %v473 = vunpack.c.h.b16 %v62
    %v474 = vunpack.c.l.b16 %v63
    %v475 = vunpack.c.h.b16 %v63
    %v476 = vunpack.c.l.b16 %v64
    %v477 = vunpack.c.h.b16 %v64
    %v478 = vunpack.c.l.b16 %v65
    %v479 = vunpack.c.h.b16 %v65
    %v480 = vunpack.c.l.b16 %v66
    %v481 = vunpack.c.h.b16 %v66
    %v482 = vunpack.c.l.b16 %v67
    %v483 = vunpack.c.h.b16 %v67
    %v484 = vunpack.c.l.b16 %v68
    %v485 = vunpack.c.h.b16 %v68
    %v486 = vunpack.c.l.b16 %v69
    %v487 = vunpack.c.h.b16 %v69
    %v488 = vunpack.c.l.b16 %v70
    %v489 = vunpack.c.h.b16 %v70
    %v490 = vunpack.c.l.b16 %v71
    %v491 = vunpack.c.h.b16 %v71
    %v492 = vunpack.c.l.b16 %v72
    %v493 = vunpack.c.h.b16 %v72
    %v494 = vunpack.c.l.b16 %v73
    %v495 = vunpack.c.h.b16 %v73
    %v496 = vunpack.c.l.b16 %v74
    %v497 = vunpack.c.h.b16 %v74
    %v498 = vunpack.c.l.b16 %v75
    %v499 = vunpack.c.h.b16 %v75
    %v500 = vunpack.c.l.b16 %v76
    %v501 = vunpack.c.h.b16 %v76
    %v502 = vunpack.c.l.b16 %v77
    %v503 = vunpack.c.h.b16 %v77
    %v504 = vunpack.c.l.b16 %v78
    %v505 = vunpack.c.h.b16 %v78
    %v506 = vunpack.c.l.b16 %v79
    %v507 = vunpack.c.h.b16 %v79
    %v508 = vunpack.c.l.b16 %v80
    %v509 = vunpack.c.h.b16 %v80
    %v510 = vunpack.c.l.b16 %v81
    %v511 = vunpack.c.h.b16 %v81
    %v512 = vunpack.c.l.b16 %v82
    %v513 = vunpack.c.h.b16 %v82
    %v514 = vunpack.c.l.b16 %v83
    %v515 = vunpack.c.h.b16 %v83
    %v516 = vunpack.c.l.b16 %v84
    %v517 = vunpack.c.h.b16 %v84
    %v518 = vunpack.c.l.b16 %v85
    %v519 = vunpack.c.h.b16 %v85
    %v520 = vunpack.c.l.b16 %v86
    %v521 = vunpack.c.h.b16 %v86
    %v522 = vunpack.c.l.b16 %v87
    %v523 = vunpack.c.h.b16 %v87
    %v524 = vunpack.c.l.b16 %v88
    %v525 = vunpack.c.h.b16 %v88
    %v526 = vunpack.c.l.b16 %v89
    %v527 = vunpack.c.h.b16 %v89
    %v528 = vunpack.c.l.b16 %v90
    %v529 = vunpack.c.h.b16 %v90
    %v530 = vunpack.c.l.b16 %v91
    %v531 = vunpack.c.h.b16 %v91
    %v532 = vunpack.c.l.b16 %v92
    %v533 = vunpack.c.h.b16 %v92
    %v534 = vunpack.c.l.b16 %v93
    %v535 = vunpack.c.h.b16 %v93
    %v536 = vunpack.c.l.b16 %v94
    %v537 = vunpack.c.h.b16 %v94
    %v538 = vunpack.c.l.b16 %v95
    %v539 = vunpack.c.h.b16 %v95
    %v540 = vunpack.c.l.b16 %v96
    %v541 = vunpack.c.h.b16 %v96
    %v542 = vunpack.c.l.b16 %v97
    %v543 = vunpack.c.h.b16 %v97
    %v544 = vunpack.c.l.b16 %v98
    %v545 = vunpack.c.h.b16 %v98
    %v546 = vunpack.c.l.b16 %v99
    %v547 = vunpack.c.h.b16 %v99
    %v548 = vunpack.c.l.b16 %v100
    %v549 = vunpack.c.h.b16 %v100
    %v550 = vunpack.c.l.b16 %v101
    %v551 = vunpack.c.h.b16 %v101
    %v552 = vunpack.c.l.b16 %v102
    %v553 = vunpack.c.h.b16 %v102
    %v554 = vunpack.c.l.b16 %v103
    %v555 = vunpack.c.h.b16 %v103
    %v556 = vunpack.c.l.b16 %v104
    %v557 = vunpack.c.h.b16 %v104
    %v558 = vunpack.c.l.b16 %v105
    %v559 = vunpack.c.h.b16 %v105
    %v560 = vunpack.c.l.b16 %v106
    %v561 = vunpack.c.h.b16 %v106
    %v562 = vunpack.c.l.b16 %v107
    %v563 = vunpack.c.h.b16 %v107
    %v564 = vunpack.c.l.b16 %v108
    %v565 = vunpack.c.h.b16 %v108
    %v566 = vunpack.c.l.b16 %v109
    %v567 = vunpack.c.h.b16 %v109
    %v568 = vunpack.c.l.b16 %v110
    %v569 = vunpack.c.h.b16 %v110
    %v570 = vunpack.c.l.b16 %v111
    %v571 = vunpack.c.h.b16 %v111
    %v572 = vunpack.c.l.b16 %v112
    %v573 = vunpack.c.h.b16 %v112
    %v574 = vunpack.c.l.b16 %v113
    %v575 = vunpack.c.h.b16 %v113
    %v576 = vunpack.c.l.b16 %v114
    %v577 = vunpack.c.h.b16 %v114
    %v578 = vunpack.c.l.b16 %v115
    %v579 = vunpack.c.h.b16 %v115
    %v580 = vunpack.c.l.b16 %v116
    %v581 = vunpack.c.h.b16 %v116
    %v582 = vunpack.c.l.b16 %v117
    %v583 = vunpack.c.h.b16 %v117
    %v584 = vunpack.c.l.b16 %v118
    %v585 = vunpack.c.h.b16 %v118
    %v586 = vunpack.c.l.b16 %v119
    %v587 = vunpack.c.h.b16 %v119
    %v588 = vunpack.c.l.b16 %v120
    %v589 = vunpack.c.h.b16 %v120
    %v590 = vunpack.c.l.b16 %v121
    %v591 = vunpack.c.h.b16 %v121
    %v592 = vunpack.c.l.b16 %v122
    %v593 = vunpack.c.h.b16 %v122
    %v594 = vunpack.c.l.b16 %v123
    %v595 = vunpack.c.h.b16 %v123
    %v596 = vunpack.c.l.b16 %v124
    %v597 = vunpack.c.h.b16 %v124
    %v598 = vunpack.c.l.b16 %v125
    %v599 = vunpack.c.h.b16 %v125
    %v600 = vunpack.c.l.b16 %v126
    %v601 = vunpack.c.h.b16 %v126
    %v602 = vunpack.c.l.b16 %v127
    %v603 = vunpack.c.h.b16 %v127
    %v604 = vunpack.c.l.b16 %v128
    %v605 = vunpack.c.h.b16 %v128
    %v606 = vunpack.c.l.b16 %v129
    %v607 = vunpack.c.h.b16 %v129
    %v608 = vunpack.c.l.b16 %v130
    %v609 = vunpack.c.h.b16 %v130
    %v610 = vunpack.c.l.b16 %v131
    %v611 = vunpack.c.h.b16 %v131
    %v612 = vunpack.c.l.b16 %v132
    %v613 = vunpack.c.h.b16 %v132
    %v614 = vunpack.c.l.b16 %v133
    %v615 = vunpack.c.h.b16 %v133
    %v616 = vunpack.c.l.b16 %v134
    %v617 = vunpack.c.h.b16 %v134
    %v618 = vunpack.c.l.b16 %v135
    %v619 = vunpack.c.h.b16 %v135
    %v620 = vunpack.c.l.b16 %v136
    %v621 = vunpack.c.h.b16 %v136
    %v622 = vunpack.c.l.b16 %v137
    %v623 = vunpack.c.h.b16 %v137
    %v624 = vunpack.c.l.b16 %v138
    %v625 = vunpack.c.h.b16 %v138
    %v626 = vunpack.c.l.b16 %v139
    %v627 = vunpack.c.h.b16 %v139
    %v628 = vunpack.c.l.b16 %v140
    %v629 = vunpack.c.h.b16 %v140
    %v630 = vunpack.c.l.b16 %v141
    %v631 = vunpack.c.h.b16 %v141
    %v632 = vunpack.c.l.b16 %v142
    %v633 = vunpack.c.h.b16 %v142
    %v634 = vunpack.c.l.b16 %v143
    %v635 = vunpack.c.h.b16 %v143
    %v636 = vunpack.c.l.b16 %v144
    %v637 = vunpack.c.h.b16 %v144
    %v638 = vunpack.c.l.b16 %v145
    %v639 = vunpack.c.h.b16 %v145
    %v640 = vunpack.c.l.b16 %v146
    %v641 = vunpack.c.h.b16 %v146
    %v642 = vunpack.c.l.b16 %v147
    %v643 = vunpack.c.h.b16 %v147
    %v644 = vunpack.c.l.b16 %v148
    %v645 = vunpack.c.h.b16 %v148
    %v646 = vunpack.c.l.b16 %v149
    %v647 = vunpack.c.h.b16 %v149
    %v648 = vunpack.c.l.b16 %v150
    %v649 = vunpack.c.h.b16 %v150
    %v650 = vunpack.c.l.b16 %v151
    %v651 = vunpack.c.h.b16 %v151
    %v652 = vunpack.c.l.b16 %v152
    %v653 = vunpack.c.h.b16 %v152
    %v654 = vunpack.c.l.b16 %v153
    %v655 = vunpack.c.h.b16 %v153
    %v656 = vunpack.c.l.b16 %v154
    %v657 = vunpack.c.h.b16 %v154
    %v658 = vunpack.c.l.b16 %v155
    %v659 = vunpack.c.h.b16 %v155
    %v660 = vunpack.c.l.b16 %v156
    %v661 = vunpack.c.h.b16 %v156
    %v662 = vunpack.c.l.b16 %v157
    %v663 = vunpack.c.h.b16 %v157
    %v664 = vunpack.c.l.b16 %v158
    %v665 = vunpack.c.h.b16 %v158
    %v666 = vunpack.c.l.b16 %v159
    %v667 = vunpack.c.h.b16 %v159
    %v668 = vunpack.c.l.b16 %v160
    %v669 = vunpack.c.h.b16 %v160
    %v670 = vunpack.c.l.b16 %v161
    %v671 = vunpack.c.h.b16 %v161
    %v672 = vunpack.c.l.b16 %v162
    %v673 = vunpack.c.h.b16 %v162
    %v674 = vunpack.c.l.b16 %v163
    %v675 = vunpack.c.h.b16 %v163
    %v676 = vunpack.c.l.b16 %v164
    %v677 = vunpack.c.h.b16 %v164
    %v678 = vunpack.c.l.b16 %v165
    %v679 = vunpack.c.h.b16 %v165
    %v680 = vunpack.c.l.b16 %v166
    %v681 = vunpack.c.h.b16 %v166
    %v682 = vunpack.c.l.b16 %v167
    %v683 = vunpack.c.h.b16 %v167
    %v684 = vunpack.c.l.b16 %v168
    %v685 = vunpack.c.h.b16 %v168
    %v686 = vunpack.c.l.b16 %v169
    %v687 = vunpack.c.h.b16 %v169
    %v688 = vunpack.c.l.b16 %v170
    %v689 = vunpack.c.h.b16 %v170
    %v690 = vunpack.c.l.b16 %v171
    %v691 = vunpack.c.h.b16 %v171
    %v692 = vunpack.c.l.b16 %v172
    %v693 = vunpack.c.h.b16 %v172
    %v694 = vunpack.c.l.b16 %v173
    %v695 = vunpack.c.h.b16 %v173
    %v696 = vunpack.c.l.b16 %v174
    %v697 = vunpack.c.h.b16 %v174
    %v698 = vunpack.c.l.b16 %v175
    %v699 = vunpack.c.h.b16 %v175
    %v700 = vunpack.c.l.b16 %v176
    %v701 = vunpack.c.h.b16 %v176
    %v702 = vunpack.c.l.b16 %v177
    %v703 = vunpack.c.h.b16 %v177
    %v704 = vunpack.c.l.b16 %v178
    %v705 = vunpack.c.h.b16 %v178
    %v706 = vunpack.c.l.b16 %v179
    %v707 = vunpack.c.h.b16 %v179
    %v708 = vunpack.c.l.b16 %v180
    %v709 = vunpack.c.h.b16 %v180
    %v710 = vunpack.c.l.b16 %v181
    %v711 = vunpack.c.h.b16 %v181
    %v712 = vunpack.c.l.b16 %v182
    %v713 = vunpack.c.h.b16 %v182
    %v714 = vunpack.c.l.b16 %v183
    %v715 = vunpack.c.h.b16 %v183
    %v716 = vunpack.c.l.b16 %v184
    %v717 = vunpack.c.h.b16 %v184
    %v718 = vunpack.c.l.b16 %v185
    %v719 = vunpack.c.h.b16 %v185
    %v720 = vunpack.c.l.b16 %v186
    %v721 = vunpack.c.h.b16 %v186
    %v722 = vunpack.c.l.b16 %v187
    %v723 = vunpack.c.h.b16 %v187
    %v724 = vpack.c.b16 %v438, %v436
    %v725 = vpack.c.b16 %v439, %v437
    %v726 = vpack.c.b16 %v442, %v440
    %v727 = vpack.c.b16 %v443, %v441
    %v728 = vpack.c.b16 %v446, %v444
    %v729 = vpack.c.b16 %v447, %v445
    %v730 = vpack.c.b16 %v450, %v448
    %v731 = vpack.c.b16 %v451, %v449
    %v732 = vpack.c.b16 %v454, %v452
    %v733 = vpack.c.b16 %v455, %v453
    %v734 = vpack.c.b16 %v458, %v456
    %v735 = vpack.c.b16 %v459, %v457
    %v736 = vpack.c.b16 %v462, %v460
    %v737 = vpack.c.b16 %v463, %v461
    %v738 = vpack.c.b16 %v466, %v464
    %v739 = vpack.c.b16 %v467, %v465
    %v740 = vpack.c.b16 %v470, %v468
    %v741 = vpack.c.b16 %v471, %v469
    %v742 = vpack.c.b16 %v474, %v472
    %v743 = vpack.c.b16 %v475, %v473
    %v744 = vpack.c.b16 %v478, %v476
    %v745 = vpack.c.b16 %v479, %v477
    %v746 = vpack.c.b16 %v482, %v480
    %v747 = vpack.c.b16 %v483, %v481
    %v748 = vpack.c.b16 %v486, %v484
    %v749 = vpack.c.b16 %v487, %v485
    %v750 = vpack.c.b16 %v490, %v488
    %v751 = vpack.c.b16 %v491, %v489
    %v752 = vpack.c.b16 %v494, %v492
    %v753 = vpack.c.b16 %v495, %v493
    %v754 = vpack.c.b16 %v498, %v496
    %v755 = vpack.c.b16 %v499, %v497
    %v756 = vpack.c.b16 %v502, %v500
    %v757 = vpack.c.b16 %v503, %v501
    %v758 = vpack.c.b16 %v506, %v504
    %v759 = vpack.c.b16 %v507, %v505
    %v760 = vpack.c.b16 %v510, %v508
    %v761 = vpack.c.b16 %v511, %v509
    %v762 = vpack.c.b16 %v514, %v512
    %v763 = vpack.c.b16 %v515, %v513
    %v764 = vpack.c.b16 %v518, %v516
    %v765 = vpack.c.b16 %v519, %v517
    %v766 = vpack.c.b16 %v522, %v520
    %v767 = vpack.c.b16 %v523, %v521
    %v768 = vpack.c.b16 %v526, %v524
    %v769 = vpack.c.b16 %v527, %v525
    %v770 = vpack.c.b16 %v530, %v528
    %v771 = vpack.c.b16 %v531, %v529
    %v772 = vpack.c.b16 %v534, %v532
    %v773 = vpack.c.b16 %v535, %v533
    %v774 = vpack.c.b16 %v538, %v536
    %v775 = vpack.c.b16 %v539, %v537
    %v776 = vpack.c.b16 %v542, %v540
    %v777 = vpack.c.b16 %v543, %v541
    %v778 = vpack.c.b16 %v546, %v544
    %v779 = vpack.c.b16 %v547, %v545
    %v780 = vpack.c.b16 %v550, %v548
    %v781 = vpack.c.b16 %v551, %v549
    %v782 = vpack.c.b16 %v554, %v552
    %v783 = vpack.c.b16 %v555, %v553
    %v784 = vpack.c.b16 %v558, %v556
    %v785 = vpack.c.b16 %v559, %v557
    %v786 = vpack.c.b16 %v562, %v560
    %v787 = vpack.c.b16 %v563, %v561
    %v788 = vpack.c.b16 %v566, %v564
    %v789 = vpack.c.b16 %v567, %v565
    %v790 = vpack.c.b16 %v570, %v568
    %v791 = vpack.c.b16 %v571, %v569
    %v792 = vpack.c.b16 %v574, %v572
    %v793 = vpack.c.b16 %v575, %v573
    %v794 = vpack.c.b16 %v578, %v576
    %v795 = vpack.c.b16 %v579, %v577
    %v796 = vpack.c.b16 %v582, %v580
    %v797 = vpack.c.b16 %v583, %v581
    %v798 = vpack.c.b16 %v586, %v584
    %v799 = vpack.c.b16 %v587, %v585
    %v800 = vpack.c.b16 %v590, %v588
    %v801 = vpack.c.b16 %v591, %v589
    %v802 = vpack.c.b16 %v594, %v592
    %v803 = vpack.c.b16 %v595, %v593
    %v804 = vpack.c.b16 %v598, %v596
    %v805 = vpack.c.b16 %v599, %v597
    %v806 = vpack.c.b16 %v602, %v600
    %v807 = vpack.c.b16 %v603, %v601
    %v808 = vpack.c.b16 %v606, %v604
    %v809 = vpack.c.b16 %v607, %v605
    %v810 = vpack.c.b16 %v610, %v608
    %v811 = vpack.c.b16 %v611, %v609
    %v812 = vpack.c.b16 %v614, %v612
    %v813 = vpack.c.b16 %v615, %v613
    %v814 = vpack.c.b16 %v618, %v616
    %v815 = vpack.c.b16 %v619, %v617
    %v816 = vpack.c.b16 %v622, %v620
    %v817 = vpack.c.b16 %v623, %v621
    %v818 = vpack.c.b16 %v626, %v624
    %v819 = vpack.c.b16 %v627, %v625
    %v820 = vpack.c.b16 %v630, %v628
    %v821 = vpack.c.b16 %v631, %v629
    %v822 = vpack.c.b16 %v634, %v632
    %v823 = vpack.c.b16 %v635, %v633
    %v824 = vpack.c.b16 %v638, %v636
    %v825 = vpack.c.b16 %v639, %v637
    %v826 = vpack.c.b16 %v642, %v640
    %v827 = vpack.c.b16 %v643, %v641
    %v828 = vpack.c.b16 %v646, %v644
    %v829 = vpack.c.b16 %v647, %v645
    %v830 = vpack.c.b16 %v650, %v648
    %v831 = vpack.c.b16 %v651, %v649
    %v832 = vpack.c.b16 %v654, %v652
    %v833 = vpack.c.b16 %v655, %v653
    %v834 = vpack.c.b16 %v658, %v656
    %v835 = vpack.c.b16 %v659, %v657
    %v836 = vpack.c.b16 %v662, %v660
    %v837 = vpack.c.b16 %v663, %v661
    %v838 = vpack.c.b16 %v666, %v664
    %v839 = vpack.c.b16 %v667, %v665
    %v840 = vpack.c.b16 %v670, %v668
    %v841 = vpack.c.b16 %v671, %v669
    %v842 = vpack.c.b16 %v674, %v672
    %v843 = vpack.c.b16 %v675, %v673
    %v844 = vpack.c.b16 %v678, %v676
    %v845 = vpack.c.b16 %v679, %v677
    %v846 = vpack.c.b16 %v682, %v680
    %v847 = vpack.c.b16 %v683, %v681
    %v848 = vpack.c.b16 %v686, %v684
    %v849 = vpack.c.b16 %v687, %v685
    %v850 = vpack.c.b16 %v690, %v688
    %v851 = vpack.c.b16 %v691, %v689
    %v852 = vpack.c.b16 %v694, %v692
    %v853 = vpack.c.b16 %v695, %v693
    %v854 = vpack.c.b16 %v698, %v696
    %v855 = vpack.c.b16 %v699, %v697
    %v856 = vpack.c.b16 %v702, %v700
    %v857 = vpack.c.b16 %v703, %v701
    %v858 = vpack.c.b16 %v706, %v704
    %v859 = vpack.c.b16 %v707, %v705
    %v860 = vpack.c.b16 %v710, %v708
    %v861 = vpack.c.b16 %v711, %v709
    %v862 = vpack.c.b16 %v714, %v712
    %v863 = vpack.c.b16 %v715, %v713
    %v864 = vpack.c.b16 %v718, %v716
    %v865 = vpack.c.b16 %v719, %v717
    %v866 = vpack.c.b16 %v722, %v720
    %v867 = vpack.c.b16 %v723, %v721
    %1012 = vmatprep.subr.bf16.mxu0 %v739
    %1013 = vmatpush1.bf16.msra.mxu0 %v738
    %1014 = vmatprep.subr.bf16.mxu0 %v737
    %1015 = vmatpush1.bf16.msra.mxu0 %v736
    %1016 = vmatprep.subr.bf16.mxu0 %v735
    %1017 = vmatpush1.bf16.msra.mxu0 %v734
    %1018 = vmatprep.subr.bf16.mxu0 %v733
    %1019 = vmatpush1.bf16.msra.mxu0 %v732
    %1020 = vmatprep.subr.bf16.mxu0 %v731
    %1021 = vmatpush1.bf16.msra.mxu0 %v730
    %1022 = vmatprep.subr.bf16.mxu0 %v729
    %1023 = vmatpush1.bf16.msra.mxu0 %v728
    %1024 = vmatprep.subr.bf16.mxu0 %v727
    %1025 = vmatpush1.bf16.msra.mxu0 %v726
    %1026 = vmatprep.subr.bf16.mxu0 %v725
    %1027 = vmatpush1.bf16.msra.mxu0 %v724
    %1028 = vmatprep.subr.bf16.mxu0 %v755
    %1029 = vmatpush2.bf16.msra.mxu0 %v754
    %1030 = vmatprep.subr.bf16.mxu0 %v753
    %1031 = vmatpush2.bf16.msra.mxu0 %v752
    %1032 = vmatprep.subr.bf16.mxu0 %v751
    %1033 = vmatpush2.bf16.msra.mxu0 %v750
    %1034 = vmatprep.subr.bf16.mxu0 %v749
    %1035 = vmatpush2.bf16.msra.mxu0 %v748
    %1036 = vmatprep.subr.bf16.mxu0 %v747
    %1037 = vmatpush2.bf16.msra.mxu0 %v746
    %1038 = vmatprep.subr.bf16.mxu0 %v745
    %1039 = vmatpush2.bf16.msra.mxu0 %v744
    %1040 = vmatprep.subr.bf16.mxu0 %v743
    %1041 = vmatpush2.bf16.msra.mxu0 %v742
    %1042 = vmatprep.subr.bf16.mxu0 %v741
    %1043 = vmatpush2.bf16.msra.mxu0 %v740
    %1044 = vmatprep.mubr.bf16.mxu0 %v257
    %1045 = vmatmul.mubr.bf16.gmra.mxu0 %v256
    %v1046 = vpop.f32.mrf.mxu0
    %v1047 = vadd.f32 %v193, %v1046
    %v1048 = vpop.f32.mrf.mxu0
    %v1049 = vadd.f32 %v197, %v1048
    %v1050 = vpop.f32.mrf.mxu0
    %v1051 = vadd.f32 %v193, %v1050
    %v1052 = vpop.f32.mrf.mxu0
    %v1053 = vadd.f32 %v197, %v1052
    %1054 = vmatprep.mubr.bf16.mxu0 %v266
    %1055 = vmatmul.mubr.bf16.gmra.mxu0 %v265
    %v1056 = vpop.f32.mrf.mxu0
    %v1057 = vadd.f32 %v193, %v1056
    %v1058 = vpop.f32.mrf.mxu0
    %v1059 = vadd.f32 %v197, %v1058
    %v1060 = vpop.f32.mrf.mxu0
    %v1061 = vadd.f32 %v193, %v1060
    %v1062 = vpop.f32.mrf.mxu0
    %v1063 = vadd.f32 %v197, %v1062
    %1064 = vdwg.mxu0
    %1065 = vmatprep.subr.bf16.mxu0 %v771
    %1066 = vmatpush1.bf16.msra.mxu0 %v770
    %1067 = vmatprep.subr.bf16.mxu0 %v769
    %1068 = vmatpush1.bf16.msra.mxu0 %v768
    %1069 = vmatprep.subr.bf16.mxu0 %v767
    %1070 = vmatpush1.bf16.msra.mxu0 %v766
    %1071 = vmatprep.subr.bf16.mxu0 %v765
    %1072 = vmatpush1.bf16.msra.mxu0 %v764
    %1073 = vmatprep.subr.bf16.mxu0 %v763
    %1074 = vmatpush1.bf16.msra.mxu0 %v762
    %1075 = vmatprep.subr.bf16.mxu0 %v761
    %1076 = vmatpush1.bf16.msra.mxu0 %v760
    %1077 = vmatprep.subr.bf16.mxu0 %v759
    %1078 = vmatpush1.bf16.msra.mxu0 %v758
    %1079 = vmatprep.subr.bf16.mxu0 %v757
    %1080 = vmatpush1.bf16.msra.mxu0 %v756
    %1081 = vmatprep.subr.bf16.mxu0 %v787
    %1082 = vmatpush2.bf16.msra.mxu0 %v786
    %1083 = vmatprep.subr.bf16.mxu0 %v785
    %1084 = vmatpush2.bf16.msra.mxu0 %v784
    %1085 = vmatprep.subr.bf16.mxu0 %v783
    %1086 = vmatpush2.bf16.msra.mxu0 %v782
    %1087 = vmatprep.subr.bf16.mxu0 %v781
    %1088 = vmatpush2.bf16.msra.mxu0 %v780
    %1089 = vmatprep.subr.bf16.mxu0 %v779
    %1090 = vmatpush2.bf16.msra.mxu0 %v778
    %1091 = vmatprep.subr.bf16.mxu0 %v777
    %1092 = vmatpush2.bf16.msra.mxu0 %v776
    %1093 = vmatprep.subr.bf16.mxu0 %v775
    %1094 = vmatpush2.bf16.msra.mxu0 %v774
    %1095 = vmatprep.subr.bf16.mxu0 %v773
    %1096 = vmatpush2.bf16.msra.mxu0 %v772
    %1097 = vmatprep.mubr.bf16.mxu0 %v259
    %1098 = vmatmul.mubr.bf16.gmra.mxu0 %v258
    %v1099 = vpop.f32.mrf.mxu0
    %v1100 = vadd.f32 %v1047, %v1099
    %v1101 = vpop.f32.mrf.mxu0
    %v1102 = vadd.f32 %v1049, %v1101
    %v1103 = vpop.f32.mrf.mxu0
    %v1104 = vadd.f32 %v1051, %v1103
    %v1105 = vpop.f32.mrf.mxu0
    %v1106 = vadd.f32 %v1053, %v1105
    %1107 = vmatprep.mubr.bf16.mxu0 %v268
    %1108 = vmatmul.mubr.bf16.gmra.mxu0 %v267
    %v1109 = vpop.f32.mrf.mxu0
    %v1110 = vadd.f32 %v1057, %v1109
    %v1111 = vpop.f32.mrf.mxu0
    %v1112 = vadd.f32 %v1059, %v1111
    %v1113 = vpop.f32.mrf.mxu0
    %v1114 = vadd.f32 %v1061, %v1113
    %v1115 = vpop.f32.mrf.mxu0
    %v1116 = vadd.f32 %v1063, %v1115
    %1117 = vdwg.mxu0
    %1118 = vmatprep.subr.bf16.mxu0 %v803
    %1119 = vmatpush1.bf16.msra.mxu0 %v802
    %1120 = vmatprep.subr.bf16.mxu0 %v801
    %1121 = vmatpush1.bf16.msra.mxu0 %v800
    %1122 = vmatprep.subr.bf16.mxu0 %v799
    %1123 = vmatpush1.bf16.msra.mxu0 %v798
    %1124 = vmatprep.subr.bf16.mxu0 %v797
    %1125 = vmatpush1.bf16.msra.mxu0 %v796
    %1126 = vmatprep.subr.bf16.mxu0 %v795
    %1127 = vmatpush1.bf16.msra.mxu0 %v794
    %1128 = vmatprep.subr.bf16.mxu0 %v793
    %1129 = vmatpush1.bf16.msra.mxu0 %v792
    %1130 = vmatprep.subr.bf16.mxu0 %v791
    %1131 = vmatpush1.bf16.msra.mxu0 %v790
    %1132 = vmatprep.subr.bf16.mxu0 %v789
    %1133 = vmatpush1.bf16.msra.mxu0 %v788
    %1134 = vmatprep.subr.bf16.mxu0 %v819
    %1135 = vmatpush2.bf16.msra.mxu0 %v818
    %1136 = vmatprep.subr.bf16.mxu0 %v817
    %1137 = vmatpush2.bf16.msra.mxu0 %v816
    %1138 = vmatprep.subr.bf16.mxu0 %v815
    %1139 = vmatpush2.bf16.msra.mxu0 %v814
    %1140 = vmatprep.subr.bf16.mxu0 %v813
    %1141 = vmatpush2.bf16.msra.mxu0 %v812
    %1142 = vmatprep.subr.bf16.mxu0 %v811
    %1143 = vmatpush2.bf16.msra.mxu0 %v810
    %1144 = vmatprep.subr.bf16.mxu0 %v809
    %1145 = vmatpush2.bf16.msra.mxu0 %v808
    %1146 = vmatprep.subr.bf16.mxu0 %v807
    %1147 = vmatpush2.bf16.msra.mxu0 %v806
    %1148 = vmatprep.subr.bf16.mxu0 %v805
    %1149 = vmatpush2.bf16.msra.mxu0 %v804
    %1150 = vmatprep.mubr.bf16.mxu0 %v261
    %1151 = vmatmul.mubr.bf16.gmra.mxu0 %v260
    %v1152 = vpop.f32.mrf.mxu0
    %v1153 = vadd.f32 %v1100, %v1152
    %v1154 = vpop.f32.mrf.mxu0
    %v1155 = vadd.f32 %v1102, %v1154
    %v1156 = vpop.f32.mrf.mxu0
    %v1157 = vadd.f32 %v1104, %v1156
    %v1158 = vpop.f32.mrf.mxu0
    %v1159 = vadd.f32 %v1106, %v1158
    %1160 = vmatprep.mubr.bf16.mxu0 %v270
    %1161 = vmatmul.mubr.bf16.gmra.mxu0 %v269
    %v1162 = vpop.f32.mrf.mxu0
    %v1163 = vadd.f32 %v1110, %v1162
    %v1164 = vpop.f32.mrf.mxu0
    %v1165 = vadd.f32 %v1112, %v1164
    %v1166 = vpop.f32.mrf.mxu0
    %v1167 = vadd.f32 %v1114, %v1166
    %v1168 = vpop.f32.mrf.mxu0
    %v1169 = vadd.f32 %v1116, %v1168
    %1170 = vdwg.mxu0
    %1171 = vmatprep.subr.bf16.mxu0 %v835
    %1172 = vmatpush1.bf16.msra.mxu0 %v834
    %1173 = vmatprep.subr.bf16.mxu0 %v833
    %1174 = vmatpush1.bf16.msra.mxu0 %v832
    %1175 = vmatprep.subr.bf16.mxu0 %v831
    %1176 = vmatpush1.bf16.msra.mxu0 %v830
    %1177 = vmatprep.subr.bf16.mxu0 %v829
    %1178 = vmatpush1.bf16.msra.mxu0 %v828
    %1179 = vmatprep.subr.bf16.mxu0 %v827
    %1180 = vmatpush1.bf16.msra.mxu0 %v826
    %1181 = vmatprep.subr.bf16.mxu0 %v825
    %1182 = vmatpush1.bf16.msra.mxu0 %v824
    %1183 = vmatprep.subr.bf16.mxu0 %v823
    %1184 = vmatpush1.bf16.msra.mxu0 %v822
    %1185 = vmatprep.subr.bf16.mxu0 %v821
    %1186 = vmatpush1.bf16.msra.mxu0 %v820
    %1187 = vmatprep.subr.bf16.mxu0 %v851
    %1188 = vmatpush2.bf16.msra.mxu0 %v850
    %1189 = vmatprep.subr.bf16.mxu0 %v849
    %1190 = vmatpush2.bf16.msra.mxu0 %v848
    %1191 = vmatprep.subr.bf16.mxu0 %v847
    %1192 = vmatpush2.bf16.msra.mxu0 %v846
    %1193 = vmatprep.subr.bf16.mxu0 %v845
    %1194 = vmatpush2.bf16.msra.mxu0 %v844
    %1195 = vmatprep.subr.bf16.mxu0 %v843
    %1196 = vmatpush2.bf16.msra.mxu0 %v842
    %1197 = vmatprep.subr.bf16.mxu0 %v841
    %1198 = vmatpush2.bf16.msra.mxu0 %v840
    %1199 = vmatprep.subr.bf16.mxu0 %v839
    %1200 = vmatpush2.bf16.msra.mxu0 %v838
    %1201 = vmatprep.subr.bf16.mxu0 %v837
    %1202 = vmatpush2.bf16.msra.mxu0 %v836
    %1203 = vmatprep.mubr.bf16.mxu0 %v263
    %1204 = vmatmul.mubr.bf16.gmra.mxu0 %v262
    %v1205 = vpop.f32.mrf.mxu0
    %v1206 = vadd.f32 %v1153, %v1205
    %v1207 = vpop.f32.mrf.mxu0
    %v1208 = vadd.f32 %v1155, %v1207
    %v1209 = vpop.f32.mrf.mxu0
    %v1210 = vadd.f32 %v1157, %v1209
    %v1211 = vpop.f32.mrf.mxu0
    %v1212 = vadd.f32 %v1159, %v1211
    %1213 = vmatprep.mubr.bf16.mxu0 %v272
    %1214 = vmatmul.mubr.bf16.gmra.mxu0 %v271
    %v1215 = vpop.f32.mrf.mxu0
    %v1216 = vadd.f32 %v1163, %v1215
    %v1217 = vpop.f32.mrf.mxu0
    %v1218 = vadd.f32 %v1165, %v1217
    %v1219 = vpop.f32.mrf.mxu0
    %v1220 = vadd.f32 %v1167, %v1219
    %v1221 = vpop.f32.mrf.mxu0
    %v1222 = vadd.f32 %v1169, %v1221
    %1223 = vdwg.mxu0
    %1224 = vmatprep.subr.bf16.mxu0 %v867
    %1225 = vmatpush1.bf16.msra.mxu0 %v866
    %1226 = vmatprep.subr.bf16.mxu0 %v865
    %1227 = vmatpush1.bf16.msra.mxu0 %v864
    %1228 = vmatprep.subr.bf16.mxu0 %v863
    %1229 = vmatpush1.bf16.msra.mxu0 %v862
    %1230 = vmatprep.subr.bf16.mxu0 %v861
    %1231 = vmatpush1.bf16.msra.mxu0 %v860
    %1232 = vmatprep.subr.bf16.mxu0 %v859
    %1233 = vmatpush1.bf16.msra.mxu0 %v858
    %1234 = vmatprep.subr.bf16.mxu0 %v857
    %1235 = vmatpush1.bf16.msra.mxu0 %v856
    %1236 = vmatprep.subr.bf16.mxu0 %v855
    %1237 = vmatpush1.bf16.msra.mxu0 %v854
    %1238 = vmatprep.subr.bf16.mxu0 %v853
    %1239 = vmatpush1.bf16.msra.mxu0 %v852
    %1240 = vmatprep.subr.bf16.mxu0 0
    %1241 = vmatpush2.bf16.msra.mxu0 0
    %1242 = vmatprep.subr.bf16.mxu0 0
    %1243 = vmatpush2.bf16.msra.mxu0 0
    %1244 = vmatprep.subr.bf16.mxu0 0
    %1245 = vmatpush2.bf16.msra.mxu0 0
    %1246 = vmatprep.subr.bf16.mxu0 0
    %1247 = vmatpush2.bf16.msra.mxu0 0
    %1248 = vmatprep.subr.bf16.mxu0 0
    %1249 = vmatpush2.bf16.msra.mxu0 0
    %1250 = vmatprep.subr.bf16.mxu0 0
    %1251 = vmatpush2.bf16.msra.mxu0 0
    %1252 = vmatprep.subr.bf16.mxu0 0
    %1253 = vmatpush2.bf16.msra.mxu0 0
    %1254 = vmatprep.subr.bf16.mxu0 0
    %1255 = vmatpush2.bf16.msra.mxu0 0
    %1256 = vmatprep.mubr.bf16.mxu0 0
    %1257 = vmatmul.mubr.bf16.gmra.mxu0 %v264
    %v1258 = vpop.f32.mrf.mxu0
    %v1259 = vadd.f32 %v1206, %v1258
    %v1260 = vpop.f32.mrf.mxu0
    %v1261 = vadd.f32 %v1208, %v1260
    %v1262 = vpop.f32.mrf.mxu0
    %v1263 = vadd.f32 %v1210, %v1262
    %v1264 = vpop.f32.mrf.mxu0
    %v1265 = vadd.f32 %v1212, %v1264
    %1266 = vmatprep.mubr.bf16.mxu0 0
    %1267 = vmatmul.mubr.bf16.gmra.mxu0 %v273
    %v1268 = vpop.f32.mrf.mxu0
    %v1269 = vadd.f32 %v1216, %v1268
    %v1270 = vpop.f32.mrf.mxu0
    %v1271 = vadd.f32 %v1218, %v1270
    %v1272 = vpop.f32.mrf.mxu0
    %v1273 = vadd.f32 %v1220, %v1272
    %v1274 = vpop.f32.mrf.mxu0
    %v1275 = vadd.f32 %v1222, %v1274
    %1276 = vdwg.mxu0
    %v1277 = vmax.f32 %v1259, 0.0
    %v1278 = vmax.f32 %v1261, 0.0
    %v1279 = vmax.f32 %v1263, 0.0
    %v1280 = vmax.f32 %v1265, 0.0
    %v1281 = vmax.f32 %v1269, 0.0
    %v1282 = vmax.f32 %v1271, 0.0
    %v1283 = vmax.f32 %v1273, 0.0
    %v1284 = vmax.f32 %v1275, 0.0
    %v1285 = vpack.c.bf16 %v1279, %v1277
    %v1286 = vpack.c.bf16 %v1280, %v1278
    %v1287 = vpack.c.bf16 %v1283, %v1281
    %v1288 = vpack.c.bf16 %v1284, %v1282
    %v1293 = vunpack.c.l.b16 %v1285
    %v1294 = vunpack.c.l.b16 %v1286
    %v1295 = vunpack.c.h.b16 %v1285
    %v1296 = vunpack.c.h.b16 %v1286
    %v1297 = vunpack.c.l.b16 %v1287
    %v1298 = vunpack.c.l.b16 %v1288
    %v1299 = vunpack.c.h.b16 %v1287
    %v1300 = vunpack.c.h.b16 %v1288
    %v1301 = vpack.c.b16 %v1294, %v1293
    %v1302 = vpack.c.b16 %v1296, %v1295
    %v1303 = vpack.c.b16 %v1298, %v1297
    %v1304 = vpack.c.b16 %v1300, %v1299
    %1309 = vst [vmem:[#allocation2] sm:$0xff] %v1301
    %1310 = vst [vmem:[#allocation2 + $0x8] sm:$0xff] %v1302
    %1311 = vst [vmem:[#allocation2 + $0x10] sm:$0xff] %v1303
    %1312 = vst [vmem:[#allocation2 + $0x18] sm:$0xff] %v1304
    %v1313 = vld [vmem:[%s3] sm:$0xf]
    %v1314 = vld [vmem:[%s3 + $0x4] sm:$0xf]
    %v1315 = vld [vmem:[%s3 + $0x8] sm:$0xf]
    %v1316 = vld [vmem:[%s3 + $0xc] sm:$0xf]
    %v1317 = vld [vmem:[%s3 + $0x10] sm:$0xf]
    %v1318 = vld [vmem:[%s3 + $0x14] sm:$0xf]
    %v1319 = vld [vmem:[%s3 + $0x18] sm:$0xf]
    %v1320 = vld [vmem:[%s3 + $0x1c] sm:$0xf]
    %v1321 = vld [vmem:[%s3 + $0x20] sm:$0xf]
    %v1322 = vld [vmem:[%s3 + $0x24] sm:$0xf]
    %v1323 = vld [vmem:[%s3 + $0x28] sm:$0xf]
    %v1324 = vld [vmem:[%s3 + $0x2c] sm:$0xf]
    %v1325 = vld [vmem:[%s3 + $0x30] sm:$0xf]
    %v1326 = vld [vmem:[%s3 + $0x34] sm:$0xf]
    %v1327 = vld [vmem:[%s3 + $0x38] sm:$0xf]
    %v1328 = vld [vmem:[%s3 + $0x3c] sm:$0xf]
    %v1329 = vld [vmem:[%s3 + $0x40] sm:$0xf]
    %v1330 = vld [vmem:[%s3 + $0x44] sm:$0xf]
    %v1331 = vld [vmem:[%s3 + $0x48] sm:$0xf]
    %v1332 = vld [vmem:[%s3 + $0x4c] sm:$0xf]
    %v1333 = vld [vmem:[%s3 + $0x50] sm:$0xf]
    %v1334 = vld [vmem:[%s3 + $0x54] sm:$0xf]
    %v1335 = vld [vmem:[%s3 + $0x58] sm:$0xf]
    %v1336 = vld [vmem:[%s3 + $0x5c] sm:$0xf]
    %v1337 = vld [vmem:[%s3 + $0x60] sm:$0xf]
    %v1338 = vld [vmem:[%s3 + $0x64] sm:$0xf]
    %v1339 = vld [vmem:[%s3 + $0x68] sm:$0xf]
    %v1340 = vld [vmem:[%s3 + $0x6c] sm:$0xf]
    %v1341 = vld [vmem:[%s3 + $0x70] sm:$0xf]
    %v1342 = vld [vmem:[%s3 + $0x74] sm:$0xf]
    %v1343 = vld [vmem:[%s3 + $0x78] sm:$0xf]
    %v1344 = vld [vmem:[%s3 + $0x7c] sm:$0xf]
    %v1345 = vld [vmem:[%s4] sm:$0x1]
    %v1347 = vlaneseq
    %v1348 = vshrl.u32 %v1347, 7
    %v1349 = vsub.s32 0, %v1348
    %v1350 = vrot.slane %v1345, %v1349
    %v1384 = vunpack.c.l.b16 %v1313
    %v1385 = vunpack.c.l.b16 %v1314
    %v1386 = vunpack.c.l.b16 %v1315
    %v1387 = vunpack.c.l.b16 %v1316
    %v1388 = vunpack.c.l.b16 %v1317
    %v1389 = vunpack.c.l.b16 %v1318
    %v1390 = vunpack.c.l.b16 %v1319
    %v1391 = vunpack.c.l.b16 %v1320
    %v1392 = vunpack.c.l.b16 %v1321
    %v1393 = vunpack.c.l.b16 %v1322
    %v1394 = vunpack.c.l.b16 %v1323
    %v1395 = vunpack.c.l.b16 %v1324
    %v1396 = vunpack.c.l.b16 %v1325
    %v1397 = vunpack.c.l.b16 %v1326
    %v1398 = vunpack.c.l.b16 %v1327
    %v1399 = vunpack.c.l.b16 %v1328
    %v1400 = vunpack.c.l.b16 %v1329
    %v1401 = vunpack.c.l.b16 %v1330
    %v1402 = vunpack.c.l.b16 %v1331
    %v1403 = vunpack.c.l.b16 %v1332
    %v1404 = vunpack.c.l.b16 %v1333
    %v1405 = vunpack.c.l.b16 %v1334
    %v1406 = vunpack.c.l.b16 %v1335
    %v1407 = vunpack.c.l.b16 %v1336
    %v1408 = vunpack.c.l.b16 %v1337
    %v1409 = vunpack.c.l.b16 %v1338
    %v1410 = vunpack.c.l.b16 %v1339
    %v1411 = vunpack.c.l.b16 %v1340
    %v1412 = vunpack.c.l.b16 %v1341
    %v1413 = vunpack.c.l.b16 %v1342
    %v1414 = vunpack.c.l.b16 %v1343
    %v1415 = vunpack.c.l.b16 %v1344
    %v1416 = vpack.c.b16 %v1385, %v1384
    %v1417 = vpack.c.b16 %v1387, %v1386
    %v1418 = vpack.c.b16 %v1389, %v1388
    %v1419 = vpack.c.b16 %v1391, %v1390
    %v1420 = vpack.c.b16 %v1393, %v1392
    %v1421 = vpack.c.b16 %v1395, %v1394
    %v1422 = vpack.c.b16 %v1397, %v1396
    %v1423 = vpack.c.b16 %v1399, %v1398
    %v1424 = vpack.c.b16 %v1401, %v1400
    %v1425 = vpack.c.b16 %v1403, %v1402
    %v1426 = vpack.c.b16 %v1405, %v1404
    %v1427 = vpack.c.b16 %v1407, %v1406
    %v1428 = vpack.c.b16 %v1409, %v1408
    %v1429 = vpack.c.b16 %v1411, %v1410
    %v1430 = vpack.c.b16 %v1413, %v1412
    %v1431 = vpack.c.b16 %v1415, %v1414
    %1448 = vmatprep.subr.bf16.mxu0 0
    %1449 = vmatpush1.bf16.msra.mxu0 %v1423
    %1450 = vmatprep.subr.bf16.mxu0 0
    %1451 = vmatpush1.bf16.msra.mxu0 %v1422
    %1452 = vmatprep.subr.bf16.mxu0 0
    %1453 = vmatpush1.bf16.msra.mxu0 %v1421
    %1454 = vmatprep.subr.bf16.mxu0 0
    %1455 = vmatpush1.bf16.msra.mxu0 %v1420
    %1456 = vmatprep.subr.bf16.mxu0 0
    %1457 = vmatpush1.bf16.msra.mxu0 %v1419
    %1458 = vmatprep.subr.bf16.mxu0 0
    %1459 = vmatpush1.bf16.msra.mxu0 %v1418
    %1460 = vmatprep.subr.bf16.mxu0 0
    %1461 = vmatpush1.bf16.msra.mxu0 %v1417
    %1462 = vmatprep.subr.bf16.mxu0 0
    %1463 = vmatpush1.bf16.msra.mxu0 %v1416
    %1464 = vmatprep.subr.bf16.mxu0 0
    %1465 = vmatpush2.bf16.msra.mxu0 %v1431
    %1466 = vmatprep.subr.bf16.mxu0 0
    %1467 = vmatpush2.bf16.msra.mxu0 %v1430
    %1468 = vmatprep.subr.bf16.mxu0 0
    %1469 = vmatpush2.bf16.msra.mxu0 %v1429
    %1470 = vmatprep.subr.bf16.mxu0 0
    %1471 = vmatpush2.bf16.msra.mxu0 %v1428
    %1472 = vmatprep.subr.bf16.mxu0 0
    %1473 = vmatpush2.bf16.msra.mxu0 %v1427
    %1474 = vmatprep.subr.bf16.mxu0 0
    %1475 = vmatpush2.bf16.msra.mxu0 %v1426
    %1476 = vmatprep.subr.bf16.mxu0 0
    %1477 = vmatpush2.bf16.msra.mxu0 %v1425
    %1478 = vmatprep.subr.bf16.mxu0 0
    %1479 = vmatpush2.bf16.msra.mxu0 %v1424
    %1480 = vmatprep.mubr.bf16.mxu0 %v1286
    %1481 = vmatmul.mubr.bf16.gmra.mxu0 %v1285
    %v1482 = vpop.f32.mrf.mxu0
    %v1483 = vadd.f32 %v1350, %v1482
    %v1484 = vpop.f32.mrf.mxu0
    %v1485 = vpop.f32.mrf.mxu0
    %v1486 = vadd.f32 %v1350, %v1485
    %v1487 = vpop.f32.mrf.mxu0
    %1488 = vmatprep.mubr.bf16.mxu0 %v1288
    %1489 = vmatmul.mubr.bf16.gmra.mxu0 %v1287
    %v1490 = vpop.f32.mrf.mxu0
    %v1491 = vadd.f32 %v1350, %v1490
    %v1492 = vpop.f32.mrf.mxu0
    %v1493 = vpop.f32.mrf.mxu0
    %v1494 = vadd.f32 %v1350, %v1493
    %v1495 = vpop.f32.mrf.mxu0
    %1496 = vdwg.mxu0
    %v1497 = vmax.f32 %v1483, 0.0
    %v1498 = vmax.f32 %v1486, 0.0
    %v1499 = vmax.f32 %v1491, 0.0
    %v1500 = vmax.f32 %v1494, 0.0
    %v1501 = vpack.c.bf16 %v1498, %v1497
    %v1502 = vpack.c.bf16 %v1500, %v1499
    %v1505 = vunpack.c.l.b16 %v1501
    %v1506 = vunpack.c.h.b16 %v1501
    %v1507 = vunpack.c.l.b16 %v1502
    %v1508 = vunpack.c.h.b16 %v1502
    %v1509 = vpack.c.b16 %v1505, %v1505
    %v1510 = vpack.c.b16 %v1506, %v1506
    %v1511 = vpack.c.b16 %v1507, %v1507
    %v1512 = vpack.c.b16 %v1508, %v1508
    %1517 = vst [vmem:[%s6] sm:$0xf] %v1509
    %1518 = vst [vmem:[%s6 + $0x4] sm:$0xf] %v1510
    %1519 = vst [vmem:[%s6 + $0x8] sm:$0xf] %v1511
    %1520 = vst [vmem:[%s6 + $0xc] sm:$0xf] %v1512
    // Predicated region
    $region22: #{uacanet_forward.14} parent=1 // pred_check
      _
    $region23: #{uacanet_forward.14} parent=1 // pred_check_branch
      %1522 = sbr.rel (0) target = $region25
    $region24: #{uacanet_forward.14} parent=1 // pred_region
      %s1524 = ssub.s32 512, 512
      %1525 = vsyncadd [#allocation3], %s1524
      %s1526 = sshll.u32 [#allocation2], 4
      %s1527 = int_to_ptr.vmem [resolvable:$true] %s1526
      %1532 = dma.vmem_to_hbm [thread:$0]  %s1527, 512, %s5, [#allocation3], 128, 128, 8
    $region25: #{uacanet_forward.14} parent=1 // pred_fallthru
      _
    // Predicated region
    $region26: #{uacanet_forward.14} parent=1 // pred_check
      _
    $region27: #{uacanet_forward.14} parent=1 // pred_check_branch
      %1534 = sbr.rel (0) target = $region29
    $region28: #{uacanet_forward.14} parent=1 // pred_region
      _
    $region29: #{uacanet_forward.14} parent=1 // pred_fallthru
      _
    // Predicated region
    $region30: #{uacanet_forward.14} parent=1 // pred_check
      _
    $region31: #{uacanet_forward.14} parent=1 // pred_check_branch
      %1536 = sbr.rel (0) target = $region33
    $region32: #{uacanet_forward.14} parent=1 // pred_region
      %1537 = dma.done [#allocation3], 512
    $region33: #{uacanet_forward.14} parent=1 // pred_fallthru
      _
    // Predicated region
    $region34: #{uacanet_forward.14} parent=1 // pred_check
      _
    $region35: #{uacanet_forward.14} parent=1 // pred_check_branch
      %1539 = sbr.rel (0) target = $region37
    $region36: #{uacanet_forward.14} parent=1 // pred_region
      _
    $region37: #{uacanet_forward.14} parent=1 // pred_fallthru
      _
    %1540 = vsyncpa [#allocation3], 1

// kernel: uacanet_forward.16
$region0: #{uacanet_forward.16}
  #allocation0 [shape = 'u32[]', space=smem, size = 0x4, offset = 0x4, fixed_abs, tag = 'smem constant byte address 0x4 - core index']
  #allocation1 [shape = 'u32[144,128]{1,0:T(1,128)}', space=vmem, size = 0x12000, scoped, tag = 'internal scratch']
  %s0 = inlined_call_operand.vmem [shape: bf16[32,576], index: 0, kind: input, shape index: {}]
  %s1 = inlined_call_operand.vmem [shape: bf16[576,128], index: 1, kind: input, shape index: {}]
  %s2 = inlined_call_operand.vmem [shape: f32[1,128], index: 2, kind: input, shape index: {}]
  %s3 = inlined_call_operand.vmem [shape: bf16[128,128], index: 3, kind: input, shape index: {}]
  %s4 = inlined_call_operand.vmem [shape: f32[1,128], index: 4, kind: input, shape index: {}]
  %s5 = inlined_call_operand.vmem [shape: bf16[32,128], index: 5, kind: output, shape index: {0}]
  %s6 = inlined_call_operand.vmem [shape: bf16[32,128], index: 6, kind: output, shape index: {1}]
  %7 = xla_tuple %s5, %s6
  %s8 = sld [smem:[#allocation0]]
  $region38: #{uacanet_forward.16} parent=0
    _
  %s10 = ssub.s32 1, %s8
  %s11 = scalar_select 0, %s10, %s8
  // Predicated region
  $region2: #{uacanet_forward.16} parent=0 // pred_check
    _
  $region3: #{uacanet_forward.16} parent=0 // pred_check_branch
    %13 = sbr.rel (0) target = $region5
  $region4: #{uacanet_forward.16} parent=0 // pred_region
    _
  $region5: #{uacanet_forward.16} parent=0 // pred_fallthru
    _
  // Predicated region
  $region6: #{uacanet_forward.16} parent=0 // pred_check
    _
  $region7: #{uacanet_forward.16} parent=0 // pred_check_branch
    %15 = sbr.rel (0) target = $region9
  $region8: #{uacanet_forward.16} parent=0 // pred_region
    _
  $region9: #{uacanet_forward.16} parent=0 // pred_fallthru
    _
  // Predicated region
  $region10: #{uacanet_forward.16} parent=0 // pred_check
    _
  $region11: #{uacanet_forward.16} parent=0 // pred_check_branch
    %17 = sbr.rel (0) target = $region13
  $region12: #{uacanet_forward.16} parent=0 // pred_region
    _
  $region13: #{uacanet_forward.16} parent=0 // pred_fallthru
    _
  // Predicated region
  $region14: #{uacanet_forward.16} parent=0 // pred_check
    _
  $region15: #{uacanet_forward.16} parent=0 // pred_check_branch
    %19 = sbr.rel (0) target = $region17
  $region16: #{uacanet_forward.16} parent=0 // pred_region
    _
  $region17: #{uacanet_forward.16} parent=0 // pred_fallthru
    _
  // Predicated region
  $region18: #{uacanet_forward.16} parent=0 // pred_check
    _
  $region19: #{uacanet_forward.16} parent=0 // pred_check_branch
    %21 = sbr.rel (0) target = $region21
  $region20: #{uacanet_forward.16} parent=0 // pred_region
    _
  $region21: #{uacanet_forward.16} parent=0 // pred_fallthru
    _
  %v23 = vld [vmem:[%s0] sm:$0xff]
  %v24 = vld [vmem:[%s0 + $0x8] sm:$0xff]
  %v25 = vld [vmem:[%s0 + $0x10] sm:$0xf]
  %v26 = vld [vmem:[%s0 + $0x14] sm:$0xff]
  %v27 = vld [vmem:[%s0 + $0x1c] sm:$0xff]
  %v28 = vld [vmem:[%s0 + $0x24] sm:$0xf]
  %v29 = vld [vmem:[%s0 + $0x28] sm:$0xff]
  %v30 = vld [vmem:[%s0 + $0x30] sm:$0xff]
  %v31 = vld [vmem:[%s0 + $0x38] sm:$0xf]
  %v32 = vld [vmem:[%s0 + $0x3c] sm:$0xff]
  %v33 = vld [vmem:[%s0 + $0x44] sm:$0xff]
  %v34 = vld [vmem:[%s0 + $0x4c] sm:$0xf]
  %v35 = vld [vmem:[%s1] sm:$0xf]
  %v36 = vld [vmem:[%s1 + $0x4] sm:$0xf]
  %v37 = vld [vmem:[%s1 + $0x8] sm:$0xf]
  %v38 = vld [vmem:[%s1 + $0xc] sm:$0xf]
  %v39 = vld [vmem:[%s1 + $0x10] sm:$0xf]
  %v40 = vld [vmem:[%s1 + $0x14] sm:$0xf]
  %v41 = vld [vmem:[%s1 + $0x18] sm:$0xf]
  %v42 = vld [vmem:[%s1 + $0x1c] sm:$0xf]
  %v43 = vld [vmem:[%s1 + $0x20] sm:$0xf]
  %v44 = vld [vmem:[%s1 + $0x24] sm:$0xf]
  %v45 = vld [vmem:[%s1 + $0x28] sm:$0xf]
  %v46 = vld [vmem:[%s1 + $0x2c] sm:$0xf]
  %v47 = vld [vmem:[%s1 + $0x30] sm:$0xf]
  %v48 = vld [vmem:[%s1 + $0x34] sm:$0xf]
  %v49 = vld [vmem:[%s1 + $0x38] sm:$0xf]
  %v50 = vld [vmem:[%s1 + $0x3c] sm:$0xf]
  %v51 = vld [vmem:[%s1 + $0x40] sm:$0xf]
  %v52 = vld [vmem:[%s1 + $0x44] sm:$0xf]
  %v53 = vld [vmem:[%s1 + $0x48] sm:$0xf]
  %v54 = vld [vmem:[%s1 + $0x4c] sm:$0xf]
  %v55 = vld [vmem:[%s1 + $0x50] sm:$0xf]
  %v56 = vld [vmem:[%s1 + $0x54] sm:$0xf]
  %v57 = vld [vmem:[%s1 + $0x58] sm:$0xf]
  %v58 = vld [vmem:[%s1 + $0x5c] sm:$0xf]
  %v59 = vld [vmem:[%s1 + $0x60] sm:$0xf]
  %v60 = vld [vmem:[%s1 + $0x64] sm:$0xf]
  %v61 = vld [vmem:[%s1 + $0x68] sm:$0xf]
  %v62 = vld [vmem:[%s1 + $0x6c] sm:$0xf]
  %v63 = vld [vmem:[%s1 + $0x70] sm:$0xf]
  %v64 = vld [vmem:[%s1 + $0x74] sm:$0xf]
  %v65 = vld [vmem:[%s1 + $0x78] sm:$0xf]
  %v66 = vld [vmem:[%s1 + $0x7c] sm:$0xf]
  %v67 = vld [vmem:[%s1 + $0x80] sm:$0xf]
  %v68 = vld [vmem:[%s1 + $0x84] sm:$0xf]
  %v69 = vld [vmem:[%s1 + $0x88] sm:$0xf]
  %v70 = vld [vmem:[%s1 + $0x8c] sm:$0xf]
  %v71 = vld [vmem:[%s1 + $0x90] sm:$0xf]
  %v72 = vld [vmem:[%s1 + $0x94] sm:$0xf]
  %v73 = vld [vmem:[%s1 + $0x98] sm:$0xf]
  %v74 = vld [vmem:[%s1 + $0x9c] sm:$0xf]
  %v75 = vld [vmem:[%s1 + $0xa0] sm:$0xf]
  %v76 = vld [vmem:[%s1 + $0xa4] sm:$0xf]
  %v77 = vld [vmem:[%s1 + $0xa8] sm:$0xf]
  %v78 = vld [vmem:[%s1 + $0xac] sm:$0xf]
  %v79 = vld [vmem:[%s1 + $0xb0] sm:$0xf]
  %v80 = vld [vmem:[%s1 + $0xb4] sm:$0xf]
  %v81 = vld [vmem:[%s1 + $0xb8] sm:$0xf]
  %v82 = vld [vmem:[%s1 + $0xbc] sm:$0xf]
  %v83 = vld [vmem:[%s1 + $0xc0] sm:$0xf]
  %v84 = vld [vmem:[%s1 + $0xc4] sm:$0xf]
  %v85 = vld [vmem:[%s1 + $0xc8] sm:$0xf]
  %v86 = vld [vmem:[%s1 + $0xcc] sm:$0xf]
  %v87 = vld [vmem:[%s1 + $0xd0] sm:$0xf]
  %v88 = vld [vmem:[%s1 + $0xd4] sm:$0xf]
  %v89 = vld [vmem:[%s1 + $0xd8] sm:$0xf]
  %v90 = vld [vmem:[%s1 + $0xdc] sm:$0xf]
  %v91 = vld [vmem:[%s1 + $0xe0] sm:$0xf]
  %v92 = vld [vmem:[%s1 + $0xe4] sm:$0xf]
  %v93 = vld [vmem:[%s1 + $0xe8] sm:$0xf]
  %v94 = vld [vmem:[%s1 + $0xec] sm:$0xf]
  %v95 = vld [vmem:[%s1 + $0xf0] sm:$0xf]
  %v96 = vld [vmem:[%s1 + $0xf4] sm:$0xf]
  %v97 = vld [vmem:[%s1 + $0xf8] sm:$0xf]
  %v98 = vld [vmem:[%s1 + $0xfc] sm:$0xf]
  %v99 = vld [vmem:[%s1 + $0x100] sm:$0xf]
  %v100 = vld [vmem:[%s1 + $0x104] sm:$0xf]
  %v101 = vld [vmem:[%s1 + $0x108] sm:$0xf]
  %v102 = vld [vmem:[%s1 + $0x10c] sm:$0xf]
  %v103 = vld [vmem:[%s1 + $0x110] sm:$0xf]
  %v104 = vld [vmem:[%s1 + $0x114] sm:$0xf]
  %v105 = vld [vmem:[%s1 + $0x118] sm:$0xf]
  %v106 = vld [vmem:[%s1 + $0x11c] sm:$0xf]
  %v107 = vld [vmem:[%s2] sm:$0x1]
  %v109 = vlaneseq
  %v110 = vshrl.u32 %v109, 7
  %v111 = vsub.s32 0, %v110
  %v112 = vrot.slane %v107, %v111
  %v126 = vunpack.c.l.b16 %v23
  %v127 = vunpack.c.h.b16 %v23
  %v128 = vunpack.c.l.b16 %v24
  %v129 = vunpack.c.h.b16 %v24
  %v130 = vunpack.c.l.b16 %v25
  %v131 = vunpack.c.l.b16 %v26
  %v132 = vunpack.c.h.b16 %v26
  %v133 = vunpack.c.l.b16 %v27
  %v134 = vunpack.c.h.b16 %v27
  %v135 = vunpack.c.l.b16 %v28
  %v136 = vunpack.c.l.b16 %v29
  %v137 = vunpack.c.h.b16 %v29
  %v138 = vunpack.c.l.b16 %v30
  %v139 = vunpack.c.h.b16 %v30
  %v140 = vunpack.c.l.b16 %v31
  %v141 = vunpack.c.l.b16 %v32
  %v142 = vunpack.c.h.b16 %v32
  %v143 = vunpack.c.l.b16 %v33
  %v144 = vunpack.c.h.b16 %v33
  %v145 = vunpack.c.l.b16 %v34
  %v146 = vpack.c.b16 %v131, %v126
  %v147 = vpack.c.b16 %v132, %v127
  %v148 = vpack.c.b16 %v133, %v128
  %v149 = vpack.c.b16 %v134, %v129
  %v150 = vpack.c.b16 %v135, %v130
  %v151 = vpack.c.b16 %v141, %v136
  %v152 = vpack.c.b16 %v142, %v137
  %v153 = vpack.c.b16 %v143, %v138
  %v154 = vpack.c.b16 %v144, %v139
  %v155 = vpack.c.b16 %v145, %v140
  %v236 = vunpack.c.l.b16 %v35
  %v237 = vunpack.c.l.b16 %v36
  %v238 = vunpack.c.l.b16 %v37
  %v239 = vunpack.c.l.b16 %v38
  %v240 = vunpack.c.l.b16 %v39
  %v241 = vunpack.c.l.b16 %v40
  %v242 = vunpack.c.l.b16 %v41
  %v243 = vunpack.c.l.b16 %v42
  %v244 = vunpack.c.l.b16 %v43
  %v245 = vunpack.c.l.b16 %v44
  %v246 = vunpack.c.l.b16 %v45
  %v247 = vunpack.c.l.b16 %v46
  %v248 = vunpack.c.l.b16 %v47
  %v249 = vunpack.c.l.b16 %v48
  %v250 = vunpack.c.l.b16 %v49
  %v251 = vunpack.c.l.b16 %v50
  %v252 = vunpack.c.l.b16 %v51
  %v253 = vunpack.c.l.b16 %v52
  %v254 = vunpack.c.l.b16 %v53
  %v255 = vunpack.c.l.b16 %v54
  %v256 = vunpack.c.l.b16 %v55
  %v257 = vunpack.c.l.b16 %v56
  %v258 = vunpack.c.l.b16 %v57
  %v259 = vunpack.c.l.b16 %v58
  %v260 = vunpack.c.l.b16 %v59
  %v261 = vunpack.c.l.b16 %v60
  %v262 = vunpack.c.l.b16 %v61
  %v263 = vunpack.c.l.b16 %v62
  %v264 = vunpack.c.l.b16 %v63
  %v265 = vunpack.c.l.b16 %v64
  %v266 = vunpack.c.l.b16 %v65
  %v267 = vunpack.c.l.b16 %v66
  %v268 = vunpack.c.l.b16 %v67
  %v269 = vunpack.c.l.b16 %v68
  %v270 = vunpack.c.l.b16 %v69
  %v271 = vunpack.c.l.b16 %v70
  %v272 = vunpack.c.l.b16 %v71
  %v273 = vunpack.c.l.b16 %v72
  %v274 = vunpack.c.l.b16 %v73
  %v275 = vunpack.c.l.b16 %v74
  %v276 = vunpack.c.l.b16 %v75
  %v277 = vunpack.c.l.b16 %v76
  %v278 = vunpack.c.l.b16 %v77
  %v279 = vunpack.c.l.b16 %v78
  %v280 = vunpack.c.l.b16 %v79
  %v281 = vunpack.c.l.b16 %v80
  %v282 = vunpack.c.l.b16 %v81
  %v283 = vunpack.c.l.b16 %v82
  %v284 = vunpack.c.l.b16 %v83
  %v285 = vunpack.c.l.b16 %v84
  %v286 = vunpack.c.l.b16 %v85
  %v287 = vunpack.c.l.b16 %v86
  %v288 = vunpack.c.l.b16 %v87
  %v289 = vunpack.c.l.b16 %v88
  %v290 = vunpack.c.l.b16 %v89
  %v291 = vunpack.c.l.b16 %v90
  %v292 = vunpack.c.l.b16 %v91
  %v293 = vunpack.c.l.b16 %v92
  %v294 = vunpack.c.l.b16 %v93
  %v295 = vunpack.c.l.b16 %v94
  %v296 = vunpack.c.l.b16 %v95
  %v297 = vunpack.c.l.b16 %v96
  %v298 = vunpack.c.l.b16 %v97
  %v299 = vunpack.c.l.b16 %v98
  %v300 = vunpack.c.l.b16 %v99
  %v301 = vunpack.c.l.b16 %v100
  %v302 = vunpack.c.l.b16 %v101
  %v303 = vunpack.c.l.b16 %v102
  %v304 = vunpack.c.l.b16 %v103
  %v305 = vunpack.c.l.b16 %v104
  %v306 = vunpack.c.l.b16 %v105
  %v307 = vunpack.c.l.b16 %v106
  %v308 = vpack.c.b16 %v237, %v236
  %v309 = vpack.c.b16 %v239, %v238
  %v310 = vpack.c.b16 %v241, %v240
  %v311 = vpack.c.b16 %v243, %v242
  %v312 = vpack.c.b16 %v245, %v244
  %v313 = vpack.c.b16 %v247, %v246
  %v314 = vpack.c.b16 %v249, %v248
  %v315 = vpack.c.b16 %v251, %v250
  %v316 = vpack.c.b16 %v253, %v252
  %v317 = vpack.c.b16 %v255, %v254
  %v318 = vpack.c.b16 %v257, %v256
  %v319 = vpack.c.b16 %v259, %v258
  %v320 = vpack.c.b16 %v261, %v260
  %v321 = vpack.c.b16 %v263, %v262
  %v322 = vpack.c.b16 %v265, %v264
  %v323 = vpack.c.b16 %v267, %v266
  %v324 = vpack.c.b16 %v269, %v268
  %v325 = vpack.c.b16 %v271, %v270
  %v326 = vpack.c.b16 %v273, %v272
  %v327 = vpack.c.b16 %v275, %v274
  %v328 = vpack.c.b16 %v277, %v276
  %v329 = vpack.c.b16 %v279, %v278
  %v330 = vpack.c.b16 %v281, %v280
  %v331 = vpack.c.b16 %v283, %v282
  %v332 = vpack.c.b16 %v285, %v284
  %v333 = vpack.c.b16 %v287, %v286
  %v334 = vpack.c.b16 %v289, %v288
  %v335 = vpack.c.b16 %v291, %v290
  %v336 = vpack.c.b16 %v293, %v292
  %v337 = vpack.c.b16 %v295, %v294
  %v338 = vpack.c.b16 %v297, %v296
  %v339 = vpack.c.b16 %v299, %v298
  %v340 = vpack.c.b16 %v301, %v300
  %v341 = vpack.c.b16 %v303, %v302
  %v342 = vpack.c.b16 %v305, %v304
  %v343 = vpack.c.b16 %v307, %v306
  %vm380 = vcmask 523264
  %v382 = vsel %vm380, %v150, 0
  %v385 = vsel %vm380, %v155, 0
  %387 = vmatprep.subr.bf16.mxu0 0
  %388 = vmatpush1.bf16.msra.mxu0 %v315
  %389 = vmatprep.subr.bf16.mxu0 0
  %390 = vmatpush1.bf16.msra.mxu0 %v314
  %391 = vmatprep.subr.bf16.mxu0 0
  %392 = vmatpush1.bf16.msra.mxu0 %v313
  %393 = vmatprep.subr.bf16.mxu0 0
  %394 = vmatpush1.bf16.msra.mxu0 %v312
  %395 = vmatprep.subr.bf16.mxu0 0
  %396 = vmatpush1.bf16.msra.mxu0 %v311
  %397 = vmatprep.subr.bf16.mxu0 0
  %398 = vmatpush1.bf16.msra.mxu0 %v310
  %399 = vmatprep.subr.bf16.mxu0 0
  %400 = vmatpush1.bf16.msra.mxu0 %v309
  %401 = vmatprep.subr.bf16.mxu0 0
  %402 = vmatpush1.bf16.msra.mxu0 %v308
  %403 = vmatprep.subr.bf16.mxu0 0
  %404 = vmatpush2.bf16.msra.mxu0 %v323
  %405 = vmatprep.subr.bf16.mxu0 0
  %406 = vmatpush2.bf16.msra.mxu0 %v322
  %407 = vmatprep.subr.bf16.mxu0 0
  %408 = vmatpush2.bf16.msra.mxu0 %v321
  %409 = vmatprep.subr.bf16.mxu0 0
  %410 = vmatpush2.bf16.msra.mxu0 %v320
  %411 = vmatprep.subr.bf16.mxu0 0
  %412 = vmatpush2.bf16.msra.mxu0 %v319
  %413 = vmatprep.subr.bf16.mxu0 0
  %414 = vmatpush2.bf16.msra.mxu0 %v318
  %415 = vmatprep.subr.bf16.mxu0 0
  %416 = vmatpush2.bf16.msra.mxu0 %v317
  %417 = vmatprep.subr.bf16.mxu0 0
  %418 = vmatpush2.bf16.msra.mxu0 %v316
  %419 = vmatprep.mubr.bf16.mxu0 %v147
  %420 = vmatmul.mubr.bf16.gmra.mxu0 %v146
  %v421 = vpop.f32.mrf.mxu0
  %v422 = vadd.f32 %v112, %v421
  %v423 = vpop.f32.mrf.mxu0
  %v424 = vpop.f32.mrf.mxu0
  %v425 = vadd.f32 %v112, %v424
  %v426 = vpop.f32.mrf.mxu0
  %427 = vmatprep.mubr.bf16.mxu0 %v152
  %428 = vmatmul.mubr.bf16.gmra.mxu0 %v151
  %v429 = vpop.f32.mrf.mxu0
  %v430 = vadd.f32 %v112, %v429
  %v431 = vpop.f32.mrf.mxu0
  %v432 = vpop.f32.mrf.mxu0
  %v433 = vadd.f32 %v112, %v432
  %v434 = vpop.f32.mrf.mxu0
  %435 = vdwg.mxu0
  %436 = vmatprep.subr.bf16.mxu0 0
  %437 = vmatpush1.bf16.msra.mxu0 %v331
  %438 = vmatprep.subr.bf16.mxu0 0
  %439 = vmatpush1.bf16.msra.mxu0 %v330
  %440 = vmatprep.subr.bf16.mxu0 0
  %441 = vmatpush1.bf16.msra.mxu0 %v329
  %442 = vmatprep.subr.bf16.mxu0 0
  %443 = vmatpush1.bf16.msra.mxu0 %v328
  %444 = vmatprep.subr.bf16.mxu0 0
  %445 = vmatpush1.bf16.msra.mxu0 %v327
  %446 = vmatprep.subr.bf16.mxu0 0
  %447 = vmatpush1.bf16.msra.mxu0 %v326
  %448 = vmatprep.subr.bf16.mxu0 0
  %449 = vmatpush1.bf16.msra.mxu0 %v325
  %450 = vmatprep.subr.bf16.mxu0 0
  %451 = vmatpush1.bf16.msra.mxu0 %v324
  %452 = vmatprep.subr.bf16.mxu0 0
  %453 = vmatpush2.bf16.msra.mxu0 %v339
  %454 = vmatprep.subr.bf16.mxu0 0
  %455 = vmatpush2.bf16.msra.mxu0 %v338
  %456 = vmatprep.subr.bf16.mxu0 0
  %457 = vmatpush2.bf16.msra.mxu0 %v337
  %458 = vmatprep.subr.bf16.mxu0 0
  %459 = vmatpush2.bf16.msra.mxu0 %v336
  %460 = vmatprep.subr.bf16.mxu0 0
  %461 = vmatpush2.bf16.msra.mxu0 %v335
  %462 = vmatprep.subr.bf16.mxu0 0
  %463 = vmatpush2.bf16.msra.mxu0 %v334
  %464 = vmatprep.subr.bf16.mxu0 0
  %465 = vmatpush2.bf16.msra.mxu0 %v333
  %466 = vmatprep.subr.bf16.mxu0 0
  %467 = vmatpush2.bf16.msra.mxu0 %v332
  %468 = vmatprep.mubr.bf16.mxu0 %v149
  %469 = vmatmul.mubr.bf16.gmra.mxu0 %v148
  %v470 = vpop.f32.mrf.mxu0
  %v471 = vadd.f32 %v422, %v470
  %v472 = vpop.f32.mrf.mxu0
  %v473 = vpop.f32.mrf.mxu0
  %v474 = vadd.f32 %v425, %v473
  %v475 = vpop.f32.mrf.mxu0
  %476 = vmatprep.mubr.bf16.mxu0 %v154
  %477 = vmatmul.mubr.bf16.gmra.mxu0 %v153
  %v478 = vpop.f32.mrf.mxu0
  %v479 = vadd.f32 %v430, %v478
  %v480 = vpop.f32.mrf.mxu0
  %v481 = vpop.f32.mrf.mxu0
  %v482 = vadd.f32 %v433, %v481
  %v483 = vpop.f32.mrf.mxu0
  %484 = vdwg.mxu0
  %485 = vmatprep.subr.bf16.mxu0 0
  %486 = vmatpush1.bf16.msra.mxu0 0
  %487 = vmatprep.subr.bf16.mxu0 0
  %488 = vmatpush1.bf16.msra.mxu0 0
  %489 = vmatprep.subr.bf16.mxu0 0
  %490 = vmatpush1.bf16.msra.mxu0 0
  %491 = vmatprep.subr.bf16.mxu0 0
  %492 = vmatpush1.bf16.msra.mxu0 0
  %493 = vmatprep.subr.bf16.mxu0 0
  %494 = vmatpush1.bf16.msra.mxu0 %v343
  %495 = vmatprep.subr.bf16.mxu0 0
  %496 = vmatpush1.bf16.msra.mxu0 %v342
  %497 = vmatprep.subr.bf16.mxu0 0
  %498 = vmatpush1.bf16.msra.mxu0 %v341
  %499 = vmatprep.subr.bf16.mxu0 0
  %500 = vmatpush1.bf16.msra.mxu0 %v340
  %501 = vmatprep.subr.bf16.mxu0 0
  %502 = vmatpush2.bf16.msra.mxu0 0
  %503 = vmatprep.subr.bf16.mxu0 0
  %504 = vmatpush2.bf16.msra.mxu0 0
  %505 = vmatprep.subr.bf16.mxu0 0
  %506 = vmatpush2.bf16.msra.mxu0 0
  %507 = vmatprep.subr.bf16.mxu0 0
  %508 = vmatpush2.bf16.msra.mxu0 0
  %509 = vmatprep.subr.bf16.mxu0 0
  %510 = vmatpush2.bf16.msra.mxu0 0
  %511 = vmatprep.subr.bf16.mxu0 0
  %512 = vmatpush2.bf16.msra.mxu0 0
  %513 = vmatprep.subr.bf16.mxu0 0
  %514 = vmatpush2.bf16.msra.mxu0 0
  %515 = vmatprep.subr.bf16.mxu0 0
  %516 = vmatpush2.bf16.msra.mxu0 0
  %517 = vmatprep.mubr.bf16.mxu0 0
  %518 = vmatmul.mubr.bf16.gmra.mxu0 %v382
  %v519 = vpop.f32.mrf.mxu0
  %v520 = vadd.f32 %v471, %v519
  %v521 = vpop.f32.mrf.mxu0
  %v522 = vpop.f32.mrf.mxu0
  %v523 = vadd.f32 %v474, %v522
  %v524 = vpop.f32.mrf.mxu0
  %525 = vmatprep.mubr.bf16.mxu0 0
  %526 = vmatmul.mubr.bf16.gmra.mxu0 %v385
  %v527 = vpop.f32.mrf.mxu0
  %v528 = vadd.f32 %v479, %v527
  %v529 = vpop.f32.mrf.mxu0
  %v530 = vpop.f32.mrf.mxu0
  %v531 = vadd.f32 %v482, %v530
  %v532 = vpop.f32.mrf.mxu0
  %533 = vdwg.mxu0
  %v534 = vmax.f32 %v520, 0.0
  %v535 = vmax.f32 %v523, 0.0
  %v536 = vmax.f32 %v528, 0.0
  %v537 = vmax.f32 %v531, 0.0
  %v538 = vpack.c.bf16 %v535, %v534
  %v539 = vpack.c.bf16 %v537, %v536
  %v542 = vunpack.c.l.b16 %v538
  %v543 = vunpack.c.h.b16 %v538
  %v544 = vunpack.c.l.b16 %v539
  %v545 = vunpack.c.h.b16 %v539
  %v546 = vpack.c.b16 %v542, %v542
  %v547 = vpack.c.b16 %v543, %v543
  %v548 = vpack.c.b16 %v544, %v544
  %v549 = vpack.c.b16 %v545, %v545
  %554 = vst [vmem:[%s5] sm:$0xf] %v546
  %555 = vst [vmem:[%s5 + $0x4] sm:$0xf] %v547
  %556 = vst [vmem:[%s5 + $0x8] sm:$0xf] %v548
  %557 = vst [vmem:[%s5 + $0xc] sm:$0xf] %v549
  %v558 = vld [vmem:[%s3] sm:$0xf]
  %v559 = vld [vmem:[%s3 + $0x4] sm:$0xf]
  %v560 = vld [vmem:[%s3 + $0x8] sm:$0xf]
  %v561 = vld [vmem:[%s3 + $0xc] sm:$0xf]
  %v562 = vld [vmem:[%s3 + $0x10] sm:$0xf]
  %v563 = vld [vmem:[%s3 + $0x14] sm:$0xf]
  %v564 = vld [vmem:[%s3 + $0x18] sm:$0xf]
  %v565 = vld [vmem:[%s3 + $0x1c] sm:$0xf]
  %v566 = vld [vmem:[%s3 + $0x20] sm:$0xf]
  %v567 = vld [vmem:[%s3 + $0x24] sm:$0xf]
  %v568 = vld [vmem:[%s3 + $0x28] sm:$0xf]
  %v569 = vld [vmem:[%s3 + $0x2c] sm:$0xf]
  %v570 = vld [vmem:[%s3 + $0x30] sm:$0xf]
  %v571 = vld [vmem:[%s3 + $0x34] sm:$0xf]
  %v572 = vld [vmem:[%s3 + $0x38] sm:$0xf]
  %v573 = vld [vmem:[%s3 + $0x3c] sm:$0xf]
  %v574 = vld [vmem:[%s4] sm:$0x1]
  %v576 = vlaneseq
  %v577 = vshrl.u32 %v576, 7
  %v578 = vsub.s32 0, %v577
  %v579 = vrot.slane %v574, %v578
  %v597 = vunpack.c.l.b16 %v558
  %v598 = vunpack.c.l.b16 %v559
  %v599 = vunpack.c.l.b16 %v560
  %v600 = vunpack.c.l.b16 %v561
  %v601 = vunpack.c.l.b16 %v562
  %v602 = vunpack.c.l.b16 %v563
  %v603 = vunpack.c.l.b16 %v564
  %v604 = vunpack.c.l.b16 %v565
  %v605 = vunpack.c.l.b16 %v566
  %v606 = vunpack.c.l.b16 %v567
  %v607 = vunpack.c.l.b16 %v568
  %v608 = vunpack.c.l.b16 %v569
  %v609 = vunpack.c.l.b16 %v570
  %v610 = vunpack.c.l.b16 %v571
  %v611 = vunpack.c.l.b16 %v572
  %v612 = vunpack.c.l.b16 %v573
  %v613 = vpack.c.b16 %v598, %v597
  %v614 = vpack.c.b16 %v600, %v599
  %v615 = vpack.c.b16 %v602, %v601
  %v616 = vpack.c.b16 %v604, %v603
  %v617 = vpack.c.b16 %v606, %v605
  %v618 = vpack.c.b16 %v608, %v607
  %v619 = vpack.c.b16 %v610, %v609
  %v620 = vpack.c.b16 %v612, %v611
  %629 = vmatprep.subr.bf16.mxu0 0
  %630 = vmatpush1.bf16.msra.mxu0 %v620
  %631 = vmatprep.subr.bf16.mxu0 0
  %632 = vmatpush1.bf16.msra.mxu0 %v619
  %633 = vmatprep.subr.bf16.mxu0 0
  %634 = vmatpush1.bf16.msra.mxu0 %v618
  %635 = vmatprep.subr.bf16.mxu0 0
  %636 = vmatpush1.bf16.msra.mxu0 %v617
  %637 = vmatprep.subr.bf16.mxu0 0
  %638 = vmatpush1.bf16.msra.mxu0 %v616
  %639 = vmatprep.subr.bf16.mxu0 0
  %640 = vmatpush1.bf16.msra.mxu0 %v615
  %641 = vmatprep.subr.bf16.mxu0 0
  %642 = vmatpush1.bf16.msra.mxu0 %v614
  %643 = vmatprep.subr.bf16.mxu0 0
  %644 = vmatpush1.bf16.msra.mxu0 %v613
  %645 = vmatprep.subr.bf16.mxu0 0
  %646 = vmatpush2.bf16.msra.mxu0 0
  %647 = vmatprep.subr.bf16.mxu0 0
  %648 = vmatpush2.bf16.msra.mxu0 0
  %649 = vmatprep.subr.bf16.mxu0 0
  %650 = vmatpush2.bf16.msra.mxu0 0
  %651 = vmatprep.subr.bf16.mxu0 0
  %652 = vmatpush2.bf16.msra.mxu0 0
  %653 = vmatprep.subr.bf16.mxu0 0
  %654 = vmatpush2.bf16.msra.mxu0 0
  %655 = vmatprep.subr.bf16.mxu0 0
  %656 = vmatpush2.bf16.msra.mxu0 0
  %657 = vmatprep.subr.bf16.mxu0 0
  %658 = vmatpush2.bf16.msra.mxu0 0
  %659 = vmatprep.subr.bf16.mxu0 0
  %660 = vmatpush2.bf16.msra.mxu0 0
  %661 = vmatprep.mubr.bf16.mxu0 0
  %662 = vmatmul.mubr.bf16.gmra.mxu0 %v538
  %v663 = vpop.f32.mrf.mxu0
  %v664 = vadd.f32 %v579, %v663
  %v665 = vpop.f32.mrf.mxu0
  %v666 = vpop.f32.mrf.mxu0
  %v667 = vadd.f32 %v579, %v666
  %v668 = vpop.f32.mrf.mxu0
  %669 = vmatprep.mubr.bf16.mxu0 0
  %670 = vmatmul.mubr.bf16.gmra.mxu0 %v539
  %v671 = vpop.f32.mrf.mxu0
  %v672 = vadd.f32 %v579, %v671
  %v673 = vpop.f32.mrf.mxu0
  %v674 = vpop.f32.mrf.mxu0
  %v675 = vadd.f32 %v579, %v674
  %v676 = vpop.f32.mrf.mxu0
  %677 = vdwg.mxu0
  %v678 = vpack.c.bf16 %v667, %v664
  %v679 = vpack.c.bf16 %v675, %v672
  %v682 = vunpack.c.l.b16 %v678
  %v683 = vunpack.c.h.b16 %v678
  %v684 = vunpack.c.l.b16 %v679
  %v685 = vunpack.c.h.b16 %v679
  %v686 = vpack.c.b16 %v682, %v682
  %v687 = vpack.c.b16 %v683, %v683
  %v688 = vpack.c.b16 %v684, %v684
  %v689 = vpack.c.b16 %v685, %v685
  %694 = vst [vmem:[%s6] sm:$0xf] %v686
  %695 = vst [vmem:[%s6 + $0x4] sm:$0xf] %v687
  %696 = vst [vmem:[%s6 + $0x8] sm:$0xf] %v688
  %697 = vst [vmem:[%s6 + $0xc] sm:$0xf] %v689
  // Predicated region
  $region22: #{uacanet_forward.16} parent=0 // pred_check
    _
  $region23: #{uacanet_forward.16} parent=0 // pred_check_branch
    %699 = sbr.rel (0) target = $region25
  $region24: #{uacanet_forward.16} parent=0 // pred_region
    _
  $region25: #{uacanet_forward.16} parent=0 // pred_fallthru
    _
  // Predicated region
  $region26: #{uacanet_forward.16} parent=0 // pred_check
    _
  $region27: #{uacanet_forward.16} parent=0 // pred_check_branch
    %701 = sbr.rel (0) target = $region29
  $region28: #{uacanet_forward.16} parent=0 // pred_region
    _
  $region29: #{uacanet_forward.16} parent=0 // pred_fallthru
    _
  // Predicated region
  $region30: #{uacanet_forward.16} parent=0 // pred_check
    _
  $region31: #{uacanet_forward.16} parent=0 // pred_check_branch
    %703 = sbr.rel (0) target = $region33
  $region32: #{uacanet_forward.16} parent=0 // pred_region
    _
  $region33: #{uacanet_forward.16} parent=0 // pred_fallthru
    _
  // Predicated region
  $region34: #{uacanet_forward.16} parent=0 // pred_check
    _
  $region35: #{uacanet_forward.16} parent=0 // pred_check_branch
    %705 = sbr.rel (0) target = $region37
  $region36: #{uacanet_forward.16} parent=0 // pred_region
    _
  $region37: #{uacanet_forward.16} parent=0 // pred_fallthru
    _

// kernel: uacanet_forward.15
$region0: #{uacanet_forward.15}
  #allocation0 [shape = 'u32[]', space=smem, size = 0x4, offset = 0x4, fixed_abs, tag = 'smem constant byte address 0x4 - core index']
  #allocation1 [shape = 'u32[144,128]{1,0:T(1,128)}', space=vmem, size = 0x12000, scoped, tag = 'internal scratch']
  %s0 = inlined_call_operand.vmem [shape: bf16[128,864], index: 0, kind: input, shape index: {}]
  %s1 = inlined_call_operand.vmem [shape: bf16[864,128], index: 1, kind: input, shape index: {}]
  %s2 = inlined_call_operand.vmem [shape: f32[1,128], index: 2, kind: input, shape index: {}]
  %s3 = inlined_call_operand.vmem [shape: bf16[128,128], index: 3, kind: input, shape index: {}]
  %s4 = inlined_call_operand.vmem [shape: f32[1,128], index: 4, kind: input, shape index: {}]
  %s5 = inlined_call_operand.vmem [shape: bf16[128,128], index: 5, kind: output, shape index: {0}]
  %s6 = inlined_call_operand.vmem [shape: bf16[128,128], index: 6, kind: output, shape index: {1}]
  %7 = xla_tuple %s5, %s6
  %s8 = sld [smem:[#allocation0]]
  $region38: #{uacanet_forward.15} parent=0
    _
  %s10 = ssub.s32 1, %s8
  %s11 = scalar_select 0, %s10, %s8
  // Predicated region
  $region2: #{uacanet_forward.15} parent=0 // pred_check
    _
  $region3: #{uacanet_forward.15} parent=0 // pred_check_branch
    %13 = sbr.rel (0) target = $region5
  $region4: #{uacanet_forward.15} parent=0 // pred_region
    _
  $region5: #{uacanet_forward.15} parent=0 // pred_fallthru
    _
  // Predicated region
  $region6: #{uacanet_forward.15} parent=0 // pred_check
    _
  $region7: #{uacanet_forward.15} parent=0 // pred_check_branch
    %15 = sbr.rel (0) target = $region9
  $region8: #{uacanet_forward.15} parent=0 // pred_region
    _
  $region9: #{uacanet_forward.15} parent=0 // pred_fallthru
    _
  // Predicated region
  $region10: #{uacanet_forward.15} parent=0 // pred_check
    _
  $region11: #{uacanet_forward.15} parent=0 // pred_check_branch
    %17 = sbr.rel (0) target = $region13
  $region12: #{uacanet_forward.15} parent=0 // pred_region
    _
  $region13: #{uacanet_forward.15} parent=0 // pred_fallthru
    _
  // Predicated region
  $region14: #{uacanet_forward.15} parent=0 // pred_check
    _
  $region15: #{uacanet_forward.15} parent=0 // pred_check_branch
    %19 = sbr.rel (0) target = $region17
  $region16: #{uacanet_forward.15} parent=0 // pred_region
    _
  $region17: #{uacanet_forward.15} parent=0 // pred_fallthru
    _
  // Predicated region
  $region18: #{uacanet_forward.15} parent=0 // pred_check
    _
  $region19: #{uacanet_forward.15} parent=0 // pred_check_branch
    %21 = sbr.rel (0) target = $region21
  $region20: #{uacanet_forward.15} parent=0 // pred_region
    _
  $region21: #{uacanet_forward.15} parent=0 // pred_fallthru
    _
  %v23 = vld [vmem:[%s0] sm:$0xff]
  %v24 = vld [vmem:[%s0 + $0x8] sm:$0xff]
  %v25 = vld [vmem:[%s0 + $0x10] sm:$0xff]
  %v26 = vld [vmem:[%s0 + $0x18] sm:$0xf]
  %v27 = vld [vmem:[%s0 + $0x1c] sm:$0xff]
  %v28 = vld [vmem:[%s0 + $0x24] sm:$0xff]
  %v29 = vld [vmem:[%s0 + $0x2c] sm:$0xff]
  %v30 = vld [vmem:[%s0 + $0x34] sm:$0xf]
  %v31 = vld [vmem:[%s0 + $0x38] sm:$0xff]
  %v32 = vld [vmem:[%s0 + $0x40] sm:$0xff]
  %v33 = vld [vmem:[%s0 + $0x48] sm:$0xff]
  %v34 = vld [vmem:[%s0 + $0x50] sm:$0xf]
  %v35 = vld [vmem:[%s0 + $0x54] sm:$0xff]
  %v36 = vld [vmem:[%s0 + $0x5c] sm:$0xff]
  %v37 = vld [vmem:[%s0 + $0x64] sm:$0xff]
  %v38 = vld [vmem:[%s0 + $0x6c] sm:$0xf]
  %v39 = vld [vmem:[%s0 + $0x70] sm:$0xff]
  %v40 = vld [vmem:[%s0 + $0x78] sm:$0xff]
  %v41 = vld [vmem:[%s0 + $0x80] sm:$0xff]
  %v42 = vld [vmem:[%s0 + $0x88] sm:$0xf]
  %v43 = vld [vmem:[%s0 + $0x8c] sm:$0xff]
  %v44 = vld [vmem:[%s0 + $0x94] sm:$0xff]
  %v45 = vld [vmem:[%s0 + $0x9c] sm:$0xff]
  %v46 = vld [vmem:[%s0 + $0xa4] sm:$0xf]
  %v47 = vld [vmem:[%s0 + $0xa8] sm:$0xff]
  %v48 = vld [vmem:[%s0 + $0xb0] sm:$0xff]
  %v49 = vld [vmem:[%s0 + $0xb8] sm:$0xff]
  %v50 = vld [vmem:[%s0 + $0xc0] sm:$0xf]
  %v51 = vld [vmem:[%s0 + $0xc4] sm:$0xff]
  %v52 = vld [vmem:[%s0 + $0xcc] sm:$0xff]
  %v53 = vld [vmem:[%s0 + $0xd4] sm:$0xff]
  %v54 = vld [vmem:[%s0 + $0xdc] sm:$0xf]
  %v55 = vld [vmem:[%s0 + $0xe0] sm:$0xff]
  %v56 = vld [vmem:[%s0 + $0xe8] sm:$0xff]
  %v57 = vld [vmem:[%s0 + $0xf0] sm:$0xff]
  %v58 = vld [vmem:[%s0 + $0xf8] sm:$0xf]
  %v59 = vld [vmem:[%s0 + $0xfc] sm:$0xff]
  %v60 = vld [vmem:[%s0 + $0x104] sm:$0xff]
  %v61 = vld [vmem:[%s0 + $0x10c] sm:$0xff]
  %v62 = vld [vmem:[%s0 + $0x114] sm:$0xf]
  %v63 = vld [vmem:[%s0 + $0x118] sm:$0xff]
  %v64 = vld [vmem:[%s0 + $0x120] sm:$0xff]
  %v65 = vld [vmem:[%s0 + $0x128] sm:$0xff]
  %v66 = vld [vmem:[%s0 + $0x130] sm:$0xf]
  %v67 = vld [vmem:[%s0 + $0x134] sm:$0xff]
  %v68 = vld [vmem:[%s0 + $0x13c] sm:$0xff]
  %v69 = vld [vmem:[%s0 + $0x144] sm:$0xff]
  %v70 = vld [vmem:[%s0 + $0x14c] sm:$0xf]
  %v71 = vld [vmem:[%s0 + $0x150] sm:$0xff]
  %v72 = vld [vmem:[%s0 + $0x158] sm:$0xff]
  %v73 = vld [vmem:[%s0 + $0x160] sm:$0xff]
  %v74 = vld [vmem:[%s0 + $0x168] sm:$0xf]
  %v75 = vld [vmem:[%s0 + $0x16c] sm:$0xff]
  %v76 = vld [vmem:[%s0 + $0x174] sm:$0xff]
  %v77 = vld [vmem:[%s0 + $0x17c] sm:$0xff]
  %v78 = vld [vmem:[%s0 + $0x184] sm:$0xf]
  %v79 = vld [vmem:[%s0 + $0x188] sm:$0xff]
  %v80 = vld [vmem:[%s0 + $0x190] sm:$0xff]
  %v81 = vld [vmem:[%s0 + $0x198] sm:$0xff]
  %v82 = vld [vmem:[%s0 + $0x1a0] sm:$0xf]
  %v83 = vld [vmem:[%s0 + $0x1a4] sm:$0xff]
  %v84 = vld [vmem:[%s0 + $0x1ac] sm:$0xff]
  %v85 = vld [vmem:[%s0 + $0x1b4] sm:$0xff]
  %v86 = vld [vmem:[%s0 + $0x1bc] sm:$0xf]
  %v87 = vld [vmem:[%s1] sm:$0xf]
  %v88 = vld [vmem:[%s1 + $0x4] sm:$0xf]
  %v89 = vld [vmem:[%s1 + $0x8] sm:$0xf]
  %v90 = vld [vmem:[%s1 + $0xc] sm:$0xf]
  %v91 = vld [vmem:[%s1 + $0x10] sm:$0xf]
  %v92 = vld [vmem:[%s1 + $0x14] sm:$0xf]
  %v93 = vld [vmem:[%s1 + $0x18] sm:$0xf]
  %v94 = vld [vmem:[%s1 + $0x1c] sm:$0xf]
  %v95 = vld [vmem:[%s1 + $0x20] sm:$0xf]
  %v96 = vld [vmem:[%s1 + $0x24] sm:$0xf]
  %v97 = vld [vmem:[%s1 + $0x28] sm:$0xf]
  %v98 = vld [vmem:[%s1 + $0x2c] sm:$0xf]
  %v99 = vld [vmem:[%s1 + $0x30] sm:$0xf]
  %v100 = vld [vmem:[%s1 + $0x34] sm:$0xf]
  %v101 = vld [vmem:[%s1 + $0x38] sm:$0xf]
  %v102 = vld [vmem:[%s1 + $0x3c] sm:$0xf]
  %v103 = vld [vmem:[%s1 + $0x40] sm:$0xf]
  %v104 = vld [vmem:[%s1 + $0x44] sm:$0xf]
  %v105 = vld [vmem:[%s1 + $0x48] sm:$0xf]
  %v106 = vld [vmem:[%s1 + $0x4c] sm:$0xf]
  %v107 = vld [vmem:[%s1 + $0x50] sm:$0xf]
  %v108 = vld [vmem:[%s1 + $0x54] sm:$0xf]
  %v109 = vld [vmem:[%s1 + $0x58] sm:$0xf]
  %v110 = vld [vmem:[%s1 + $0x5c] sm:$0xf]
  %v111 = vld [vmem:[%s1 + $0x60] sm:$0xf]
  %v112 = vld [vmem:[%s1 + $0x64] sm:$0xf]
  %v113 = vld [vmem:[%s1 + $0x68] sm:$0xf]
  %v114 = vld [vmem:[%s1 + $0x6c] sm:$0xf]
  %v115 = vld [vmem:[%s1 + $0x70] sm:$0xf]
  %v116 = vld [vmem:[%s1 + $0x74] sm:$0xf]
  %v117 = vld [vmem:[%s1 + $0x78] sm:$0xf]
  %v118 = vld [vmem:[%s1 + $0x7c] sm:$0xf]
  %v119 = vld [vmem:[%s1 + $0x80] sm:$0xf]
  %v120 = vld [vmem:[%s1 + $0x84] sm:$0xf]
  %v121 = vld [vmem:[%s1 + $0x88] sm:$0xf]
  %v122 = vld [vmem:[%s1 + $0x8c] sm:$0xf]
  %v123 = vld [vmem:[%s1 + $0x90] sm:$0xf]
  %v124 = vld [vmem:[%s1 + $0x94] sm:$0xf]
  %v125 = vld [vmem:[%s1 + $0x98] sm:$0xf]
  %v126 = vld [vmem:[%s1 + $0x9c] sm:$0xf]
  %v127 = vld [vmem:[%s1 + $0xa0] sm:$0xf]
  %v128 = vld [vmem:[%s1 + $0xa4] sm:$0xf]
  %v129 = vld [vmem:[%s1 + $0xa8] sm:$0xf]
  %v130 = vld [vmem:[%s1 + $0xac] sm:$0xf]
  %v131 = vld [vmem:[%s1 + $0xb0] sm:$0xf]
  %v132 = vld [vmem:[%s1 + $0xb4] sm:$0xf]
  %v133 = vld [vmem:[%s1 + $0xb8] sm:$0xf]
  %v134 = vld [vmem:[%s1 + $0xbc] sm:$0xf]
  %v135 = vld [vmem:[%s1 + $0xc0] sm:$0xf]
  %v136 = vld [vmem:[%s1 + $0xc4] sm:$0xf]
  %v137 = vld [vmem:[%s1 + $0xc8] sm:$0xf]
  %v138 = vld [vmem:[%s1 + $0xcc] sm:$0xf]
  %v139 = vld [vmem:[%s1 + $0xd0] sm:$0xf]
  %v140 = vld [vmem:[%s1 + $0xd4] sm:$0xf]
  %v141 = vld [vmem:[%s1 + $0xd8] sm:$0xf]
  %v142 = vld [vmem:[%s1 + $0xdc] sm:$0xf]
  %v143 = vld [vmem:[%s1 + $0xe0] sm:$0xf]
  %v144 = vld [vmem:[%s1 + $0xe4] sm:$0xf]
  %v145 = vld [vmem:[%s1 + $0xe8] sm:$0xf]
  %v146 = vld [vmem:[%s1 + $0xec] sm:$0xf]
  %v147 = vld [vmem:[%s1 + $0xf0] sm:$0xf]
  %v148 = vld [vmem:[%s1 + $0xf4] sm:$0xf]
  %v149 = vld [vmem:[%s1 + $0xf8] sm:$0xf]
  %v150 = vld [vmem:[%s1 + $0xfc] sm:$0xf]
  %v151 = vld [vmem:[%s1 + $0x100] sm:$0xf]
  %v152 = vld [vmem:[%s1 + $0x104] sm:$0xf]
  %v153 = vld [vmem:[%s1 + $0x108] sm:$0xf]
  %v154 = vld [vmem:[%s1 + $0x10c] sm:$0xf]
  %v155 = vld [vmem:[%s1 + $0x110] sm:$0xf]
  %v156 = vld [vmem:[%s1 + $0x114] sm:$0xf]
  %v157 = vld [vmem:[%s1 + $0x118] sm:$0xf]
  %v158 = vld [vmem:[%s1 + $0x11c] sm:$0xf]
  %v159 = vld [vmem:[%s1 + $0x120] sm:$0xf]
  %v160 = vld [vmem:[%s1 + $0x124] sm:$0xf]
  %v161 = vld [vmem:[%s1 + $0x128] sm:$0xf]
  %v162 = vld [vmem:[%s1 + $0x12c] sm:$0xf]
  %v163 = vld [vmem:[%s1 + $0x130] sm:$0xf]
  %v164 = vld [vmem:[%s1 + $0x134] sm:$0xf]
  %v165 = vld [vmem:[%s1 + $0x138] sm:$0xf]
  %v166 = vld [vmem:[%s1 + $0x13c] sm:$0xf]
  %v167 = vld [vmem:[%s1 + $0x140] sm:$0xf]
  %v168 = vld [vmem:[%s1 + $0x144] sm:$0xf]
  %v169 = vld [vmem:[%s1 + $0x148] sm:$0xf]
  %v170 = vld [vmem:[%s1 + $0x14c] sm:$0xf]
  %v171 = vld [vmem:[%s1 + $0x150] sm:$0xf]
  %v172 = vld [vmem:[%s1 + $0x154] sm:$0xf]
  %v173 = vld [vmem:[%s1 + $0x158] sm:$0xf]
  %v174 = vld [vmem:[%s1 + $0x15c] sm:$0xf]
  %v175 = vld [vmem:[%s1 + $0x160] sm:$0xf]
  %v176 = vld [vmem:[%s1 + $0x164] sm:$0xf]
  %v177 = vld [vmem:[%s1 + $0x168] sm:$0xf]
  %v178 = vld [vmem:[%s1 + $0x16c] sm:$0xf]
  %v179 = vld [vmem:[%s1 + $0x170] sm:$0xf]
  %v180 = vld [vmem:[%s1 + $0x174] sm:$0xf]
  %v181 = vld [vmem:[%s1 + $0x178] sm:$0xf]
  %v182 = vld [vmem:[%s1 + $0x17c] sm:$0xf]
  %v183 = vld [vmem:[%s1 + $0x180] sm:$0xf]
  %v184 = vld [vmem:[%s1 + $0x184] sm:$0xf]
  %v185 = vld [vmem:[%s1 + $0x188] sm:$0xf]
  %v186 = vld [vmem:[%s1 + $0x18c] sm:$0xf]
  %v187 = vld [vmem:[%s1 + $0x190] sm:$0xf]
  %v188 = vld [vmem:[%s1 + $0x194] sm:$0xf]
  %v189 = vld [vmem:[%s1 + $0x198] sm:$0xf]
  %v190 = vld [vmem:[%s1 + $0x19c] sm:$0xf]
  %v191 = vld [vmem:[%s1 + $0x1a0] sm:$0xf]
  %v192 = vld [vmem:[%s1 + $0x1a4] sm:$0xf]
  %v193 = vld [vmem:[%s1 + $0x1a8] sm:$0xf]
  %v194 = vld [vmem:[%s1 + $0x1ac] sm:$0xf]
  %v195 = vld [vmem:[%s2] sm:$0x1]
  %v197 = vlaneseq
  %v198 = vshrl.u32 %v197, 7
  %v199 = vsub.s32 0, %v198
  %v200 = vrot.slane %v195, %v199
  %v266 = vunpack.c.l.b16 %v23
  %v267 = vunpack.c.h.b16 %v23
  %v268 = vunpack.c.l.b16 %v24
  %v269 = vunpack.c.h.b16 %v24
  %v270 = vunpack.c.l.b16 %v25
  %v271 = vunpack.c.h.b16 %v25
  %v272 = vunpack.c.l.b16 %v26
  %v273 = vunpack.c.l.b16 %v27
  %v274 = vunpack.c.h.b16 %v27
  %v275 = vunpack.c.l.b16 %v28
  %v276 = vunpack.c.h.b16 %v28
  %v277 = vunpack.c.l.b16 %v29
  %v278 = vunpack.c.h.b16 %v29
  %v279 = vunpack.c.l.b16 %v30
  %v280 = vunpack.c.l.b16 %v31
  %v281 = vunpack.c.h.b16 %v31
  %v282 = vunpack.c.l.b16 %v32
  %v283 = vunpack.c.h.b16 %v32
  %v284 = vunpack.c.l.b16 %v33
  %v285 = vunpack.c.h.b16 %v33
  %v286 = vunpack.c.l.b16 %v34
  %v287 = vunpack.c.l.b16 %v35
  %v288 = vunpack.c.h.b16 %v35
  %v289 = vunpack.c.l.b16 %v36
  %v290 = vunpack.c.h.b16 %v36
  %v291 = vunpack.c.l.b16 %v37
  %v292 = vunpack.c.h.b16 %v37
  %v293 = vunpack.c.l.b16 %v38
  %v294 = vunpack.c.l.b16 %v39
  %v295 = vunpack.c.h.b16 %v39
  %v296 = vunpack.c.l.b16 %v40
  %v297 = vunpack.c.h.b16 %v40
  %v298 = vunpack.c.l.b16 %v41
  %v299 = vunpack.c.h.b16 %v41
  %v300 = vunpack.c.l.b16 %v42
  %v301 = vunpack.c.l.b16 %v43
  %v302 = vunpack.c.h.b16 %v43
  %v303 = vunpack.c.l.b16 %v44
  %v304 = vunpack.c.h.b16 %v44
  %v305 = vunpack.c.l.b16 %v45
  %v306 = vunpack.c.h.b16 %v45
  %v307 = vunpack.c.l.b16 %v46
  %v308 = vunpack.c.l.b16 %v47
  %v309 = vunpack.c.h.b16 %v47
  %v310 = vunpack.c.l.b16 %v48
  %v311 = vunpack.c.h.b16 %v48
  %v312 = vunpack.c.l.b16 %v49
  %v313 = vunpack.c.h.b16 %v49
  %v314 = vunpack.c.l.b16 %v50
  %v315 = vunpack.c.l.b16 %v51
  %v316 = vunpack.c.h.b16 %v51
  %v317 = vunpack.c.l.b16 %v52
  %v318 = vunpack.c.h.b16 %v52
  %v319 = vunpack.c.l.b16 %v53
  %v320 = vunpack.c.h.b16 %v53
  %v321 = vunpack.c.l.b16 %v54
  %v322 = vunpack.c.l.b16 %v55
  %v323 = vunpack.c.h.b16 %v55
  %v324 = vunpack.c.l.b16 %v56
  %v325 = vunpack.c.h.b16 %v56
  %v326 = vunpack.c.l.b16 %v57
  %v327 = vunpack.c.h.b16 %v57
  %v328 = vunpack.c.l.b16 %v58
  %v329 = vunpack.c.l.b16 %v59
  %v330 = vunpack.c.h.b16 %v59
  %v331 = vunpack.c.l.b16 %v60
  %v332 = vunpack.c.h.b16 %v60
  %v333 = vunpack.c.l.b16 %v61
  %v334 = vunpack.c.h.b16 %v61
  %v335 = vunpack.c.l.b16 %v62
  %v336 = vunpack.c.l.b16 %v63
  %v337 = vunpack.c.h.b16 %v63
  %v338 = vunpack.c.l.b16 %v64
  %v339 = vunpack.c.h.b16 %v64
  %v340 = vunpack.c.l.b16 %v65
  %v341 = vunpack.c.h.b16 %v65
  %v342 = vunpack.c.l.b16 %v66
  %v343 = vunpack.c.l.b16 %v67
  %v344 = vunpack.c.h.b16 %v67
  %v345 = vunpack.c.l.b16 %v68
  %v346 = vunpack.c.h.b16 %v68
  %v347 = vunpack.c.l.b16 %v69
  %v348 = vunpack.c.h.b16 %v69
  %v349 = vunpack.c.l.b16 %v70
  %v350 = vunpack.c.l.b16 %v71
  %v351 = vunpack.c.h.b16 %v71
  %v352 = vunpack.c.l.b16 %v72
  %v353 = vunpack.c.h.b16 %v72
  %v354 = vunpack.c.l.b16 %v73
  %v355 = vunpack.c.h.b16 %v73
  %v356 = vunpack.c.l.b16 %v74
  %v357 = vunpack.c.l.b16 %v75
  %v358 = vunpack.c.h.b16 %v75
  %v359 = vunpack.c.l.b16 %v76
  %v360 = vunpack.c.h.b16 %v76
  %v361 = vunpack.c.l.b16 %v77
  %v362 = vunpack.c.h.b16 %v77
  %v363 = vunpack.c.l.b16 %v78
  %v364 = vunpack.c.l.b16 %v79
  %v365 = vunpack.c.h.b16 %v79
  %v366 = vunpack.c.l.b16 %v80
  %v367 = vunpack.c.h.b16 %v80
  %v368 = vunpack.c.l.b16 %v81
  %v369 = vunpack.c.h.b16 %v81
  %v370 = vunpack.c.l.b16 %v82
  %v371 = vunpack.c.l.b16 %v83
  %v372 = vunpack.c.h.b16 %v83
  %v373 = vunpack.c.l.b16 %v84
  %v374 = vunpack.c.h.b16 %v84
  %v375 = vunpack.c.l.b16 %v85
  %v376 = vunpack.c.h.b16 %v85
  %v377 = vunpack.c.l.b16 %v86
  %v378 = vpack.c.b16 %v273, %v266
  %v379 = vpack.c.b16 %v274, %v267
  %v380 = vpack.c.b16 %v275, %v268
  %v381 = vpack.c.b16 %v276, %v269
  %v382 = vpack.c.b16 %v277, %v270
  %v383 = vpack.c.b16 %v278, %v271
  %v384 = vpack.c.b16 %v279, %v272
  %v385 = vpack.c.b16 %v287, %v280
  %v386 = vpack.c.b16 %v288, %v281
  %v387 = vpack.c.b16 %v289, %v282
  %v388 = vpack.c.b16 %v290, %v283
  %v389 = vpack.c.b16 %v291, %v284
  %v390 = vpack.c.b16 %v292, %v285
  %v391 = vpack.c.b16 %v293, %v286
  %v392 = vpack.c.b16 %v301, %v294
  %v393 = vpack.c.b16 %v302, %v295
  %v394 = vpack.c.b16 %v303, %v296
  %v395 = vpack.c.b16 %v304, %v297
  %v396 = vpack.c.b16 %v305, %v298
  %v397 = vpack.c.b16 %v306, %v299
  %v398 = vpack.c.b16 %v307, %v300
  %v399 = vpack.c.b16 %v315, %v308
  %v400 = vpack.c.b16 %v316, %v309
  %v401 = vpack.c.b16 %v317, %v310
  %v402 = vpack.c.b16 %v318, %v311
  %v403 = vpack.c.b16 %v319, %v312
  %v404 = vpack.c.b16 %v320, %v313
  %v405 = vpack.c.b16 %v321, %v314
  %v406 = vpack.c.b16 %v329, %v322
  %v407 = vpack.c.b16 %v330, %v323
  %v408 = vpack.c.b16 %v331, %v324
  %v409 = vpack.c.b16 %v332, %v325
  %v410 = vpack.c.b16 %v333, %v326
  %v411 = vpack.c.b16 %v334, %v327
  %v412 = vpack.c.b16 %v335, %v328
  %v413 = vpack.c.b16 %v343, %v336
  %v414 = vpack.c.b16 %v344, %v337
  %v415 = vpack.c.b16 %v345, %v338
  %v416 = vpack.c.b16 %v346, %v339
  %v417 = vpack.c.b16 %v347, %v340
  %v418 = vpack.c.b16 %v348, %v341
  %v419 = vpack.c.b16 %v349, %v342
  %v420 = vpack.c.b16 %v357, %v350
  %v421 = vpack.c.b16 %v358, %v351
  %v422 = vpack.c.b16 %v359, %v352
  %v423 = vpack.c.b16 %v360, %v353
  %v424 = vpack.c.b16 %v361, %v354
  %v425 = vpack.c.b16 %v362, %v355
  %v426 = vpack.c.b16 %v363, %v356
  %v427 = vpack.c.b16 %v371, %v364
  %v428 = vpack.c.b16 %v372, %v365
  %v429 = vpack.c.b16 %v373, %v366
  %v430 = vpack.c.b16 %v374, %v367
  %v431 = vpack.c.b16 %v375, %v368
  %v432 = vpack.c.b16 %v376, %v369
  %v433 = vpack.c.b16 %v377, %v370
  %v590 = vunpack.c.l.b16 %v87
  %v591 = vunpack.c.l.b16 %v88
  %v592 = vunpack.c.l.b16 %v89
  %v593 = vunpack.c.l.b16 %v90
  %v594 = vunpack.c.l.b16 %v91
  %v595 = vunpack.c.l.b16 %v92
  %v596 = vunpack.c.l.b16 %v93
  %v597 = vunpack.c.l.b16 %v94
  %v598 = vunpack.c.l.b16 %v95
  %v599 = vunpack.c.l.b16 %v96
  %v600 = vunpack.c.l.b16 %v97
  %v601 = vunpack.c.l.b16 %v98
  %v602 = vunpack.c.l.b16 %v99
  %v603 = vunpack.c.l.b16 %v100
  %v604 = vunpack.c.l.b16 %v101
  %v605 = vunpack.c.l.b16 %v102
  %v606 = vunpack.c.l.b16 %v103
  %v607 = vunpack.c.l.b16 %v104
  %v608 = vunpack.c.l.b16 %v105
  %v609 = vunpack.c.l.b16 %v106
  %v610 = vunpack.c.l.b16 %v107
  %v611 = vunpack.c.l.b16 %v108
  %v612 = vunpack.c.l.b16 %v109
  %v613 = vunpack.c.l.b16 %v110
  %v614 = vunpack.c.l.b16 %v111
  %v615 = vunpack.c.l.b16 %v112
  %v616 = vunpack.c.l.b16 %v113
  %v617 = vunpack.c.l.b16 %v114
  %v618 = vunpack.c.l.b16 %v115
  %v619 = vunpack.c.l.b16 %v116
  %v620 = vunpack.c.l.b16 %v117
  %v621 = vunpack.c.l.b16 %v118
  %v622 = vunpack.c.l.b16 %v119
  %v623 = vunpack.c.l.b16 %v120
  %v624 = vunpack.c.l.b16 %v121
  %v625 = vunpack.c.l.b16 %v122
  %v626 = vunpack.c.l.b16 %v123
  %v627 = vunpack.c.l.b16 %v124
  %v628 = vunpack.c.l.b16 %v125
  %v629 = vunpack.c.l.b16 %v126
  %v630 = vunpack.c.l.b16 %v127
  %v631 = vunpack.c.l.b16 %v128
  %v632 = vunpack.c.l.b16 %v129
  %v633 = vunpack.c.l.b16 %v130
  %v634 = vunpack.c.l.b16 %v131
  %v635 = vunpack.c.l.b16 %v132
  %v636 = vunpack.c.l.b16 %v133
  %v637 = vunpack.c.l.b16 %v134
  %v638 = vunpack.c.l.b16 %v135
  %v639 = vunpack.c.l.b16 %v136
  %v640 = vunpack.c.l.b16 %v137
  %v641 = vunpack.c.l.b16 %v138
  %v642 = vunpack.c.l.b16 %v139
  %v643 = vunpack.c.l.b16 %v140
  %v644 = vunpack.c.l.b16 %v141
  %v645 = vunpack.c.l.b16 %v142
  %v646 = vunpack.c.l.b16 %v143
  %v647 = vunpack.c.l.b16 %v144
  %v648 = vunpack.c.l.b16 %v145
  %v649 = vunpack.c.l.b16 %v146
  %v650 = vunpack.c.l.b16 %v147
  %v651 = vunpack.c.l.b16 %v148
  %v652 = vunpack.c.l.b16 %v149
  %v653 = vunpack.c.l.b16 %v150
  %v654 = vunpack.c.l.b16 %v151
  %v655 = vunpack.c.l.b16 %v152
  %v656 = vunpack.c.l.b16 %v153
  %v657 = vunpack.c.l.b16 %v154
  %v658 = vunpack.c.l.b16 %v155
  %v659 = vunpack.c.l.b16 %v156
  %v660 = vunpack.c.l.b16 %v157
  %v661 = vunpack.c.l.b16 %v158
  %v662 = vunpack.c.l.b16 %v159
  %v663 = vunpack.c.l.b16 %v160
  %v664 = vunpack.c.l.b16 %v161
  %v665 = vunpack.c.l.b16 %v162
  %v666 = vunpack.c.l.b16 %v163
  %v667 = vunpack.c.l.b16 %v164
  %v668 = vunpack.c.l.b16 %v165
  %v669 = vunpack.c.l.b16 %v166
  %v670 = vunpack.c.l.b16 %v167
  %v671 = vunpack.c.l.b16 %v168
  %v672 = vunpack.c.l.b16 %v169
  %v673 = vunpack.c.l.b16 %v170
  %v674 = vunpack.c.l.b16 %v171
  %v675 = vunpack.c.l.b16 %v172
  %v676 = vunpack.c.l.b16 %v173
  %v677 = vunpack.c.l.b16 %v174
  %v678 = vunpack.c.l.b16 %v175
  %v679 = vunpack.c.l.b16 %v176
  %v680 = vunpack.c.l.b16 %v177
  %v681 = vunpack.c.l.b16 %v178
  %v682 = vunpack.c.l.b16 %v179
  %v683 = vunpack.c.l.b16 %v180
  %v684 = vunpack.c.l.b16 %v181
  %v685 = vunpack.c.l.b16 %v182
  %v686 = vunpack.c.l.b16 %v183
  %v687 = vunpack.c.l.b16 %v184
  %v688 = vunpack.c.l.b16 %v185
  %v689 = vunpack.c.l.b16 %v186
  %v690 = vunpack.c.l.b16 %v187
  %v691 = vunpack.c.l.b16 %v188
  %v692 = vunpack.c.l.b16 %v189
  %v693 = vunpack.c.l.b16 %v190
  %v694 = vunpack.c.l.b16 %v191
  %v695 = vunpack.c.l.b16 %v192
  %v696 = vunpack.c.l.b16 %v193
  %v697 = vunpack.c.l.b16 %v194
  %v698 = vpack.c.b16 %v591, %v590
  %v699 = vpack.c.b16 %v593, %v592
  %v700 = vpack.c.b16 %v595, %v594
  %v701 = vpack.c.b16 %v597, %v596
  %v702 = vpack.c.b16 %v599, %v598
  %v703 = vpack.c.b16 %v601, %v600
  %v704 = vpack.c.b16 %v603, %v602
  %v705 = vpack.c.b16 %v605, %v604
  %v706 = vpack.c.b16 %v607, %v606
  %v707 = vpack.c.b16 %v609, %v608
  %v708 = vpack.c.b16 %v611, %v610
  %v709 = vpack.c.b16 %v613, %v612
  %v710 = vpack.c.b16 %v615, %v614
  %v711 = vpack.c.b16 %v617, %v616
  %v712 = vpack.c.b16 %v619, %v618
  %v713 = vpack.c.b16 %v621, %v620
  %v714 = vpack.c.b16 %v623, %v622
  %v715 = vpack.c.b16 %v625, %v624
  %v716 = vpack.c.b16 %v627, %v626
  %v717 = vpack.c.b16 %v629, %v628
  %v718 = vpack.c.b16 %v631, %v630
  %v719 = vpack.c.b16 %v633, %v632
  %v720 = vpack.c.b16 %v635, %v634
  %v721 = vpack.c.b16 %v637, %v636
  %v722 = vpack.c.b16 %v639, %v638
  %v723 = vpack.c.b16 %v641, %v640
  %v724 = vpack.c.b16 %v643, %v642
  %v725 = vpack.c.b16 %v645, %v644
  %v726 = vpack.c.b16 %v647, %v646
  %v727 = vpack.c.b16 %v649, %v648
  %v728 = vpack.c.b16 %v651, %v650
  %v729 = vpack.c.b16 %v653, %v652
  %v730 = vpack.c.b16 %v655, %v654
  %v731 = vpack.c.b16 %v657, %v656
  %v732 = vpack.c.b16 %v659, %v658
  %v733 = vpack.c.b16 %v661, %v660
  %v734 = vpack.c.b16 %v663, %v662
  %v735 = vpack.c.b16 %v665, %v664
  %v736 = vpack.c.b16 %v667, %v666
  %v737 = vpack.c.b16 %v669, %v668
  %v738 = vpack.c.b16 %v671, %v670
  %v739 = vpack.c.b16 %v673, %v672
  %v740 = vpack.c.b16 %v675, %v674
  %v741 = vpack.c.b16 %v677, %v676
  %v742 = vpack.c.b16 %v679, %v678
  %v743 = vpack.c.b16 %v681, %v680
  %v744 = vpack.c.b16 %v683, %v682
  %v745 = vpack.c.b16 %v685, %v684
  %v746 = vpack.c.b16 %v687, %v686
  %v747 = vpack.c.b16 %v689, %v688
  %v748 = vpack.c.b16 %v691, %v690
  %v749 = vpack.c.b16 %v693, %v692
  %v750 = vpack.c.b16 %v695, %v694
  %v751 = vpack.c.b16 %v697, %v696
  %vm806 = vcmask 785408
  %v808 = vsel %vm806, %v384, 0
  %v811 = vsel %vm806, %v391, 0
  %v814 = vsel %vm806, %v398, 0
  %v817 = vsel %vm806, %v405, 0
  %v820 = vsel %vm806, %v412, 0
  %v823 = vsel %vm806, %v419, 0
  %v826 = vsel %vm806, %v426, 0
  %v829 = vsel %vm806, %v433, 0
  %831 = vmatprep.subr.bf16.mxu0 0
  %832 = vmatpush1.bf16.msra.mxu0 %v705
  %833 = vmatprep.subr.bf16.mxu0 0
  %834 = vmatpush1.bf16.msra.mxu0 %v704
  %835 = vmatprep.subr.bf16.mxu0 0
  %836 = vmatpush1.bf16.msra.mxu0 %v703
  %837 = vmatprep.subr.bf16.mxu0 0
  %838 = vmatpush1.bf16.msra.mxu0 %v702
  %839 = vmatprep.subr.bf16.mxu0 0
  %840 = vmatpush1.bf16.msra.mxu0 %v701
  %841 = vmatprep.subr.bf16.mxu0 0
  %842 = vmatpush1.bf16.msra.mxu0 %v700
  %843 = vmatprep.subr.bf16.mxu0 0
  %844 = vmatpush1.bf16.msra.mxu0 %v699
  %845 = vmatprep.subr.bf16.mxu0 0
  %846 = vmatpush1.bf16.msra.mxu0 %v698
  %847 = vmatprep.subr.bf16.mxu0 0
  %848 = vmatpush2.bf16.msra.mxu0 %v713
  %849 = vmatprep.subr.bf16.mxu0 0
  %850 = vmatpush2.bf16.msra.mxu0 %v712
  %851 = vmatprep.subr.bf16.mxu0 0
  %852 = vmatpush2.bf16.msra.mxu0 %v711
  %853 = vmatprep.subr.bf16.mxu0 0
  %854 = vmatpush2.bf16.msra.mxu0 %v710
  %855 = vmatprep.subr.bf16.mxu0 0
  %856 = vmatpush2.bf16.msra.mxu0 %v709
  %857 = vmatprep.subr.bf16.mxu0 0
  %858 = vmatpush2.bf16.msra.mxu0 %v708
  %859 = vmatprep.subr.bf16.mxu0 0
  %860 = vmatpush2.bf16.msra.mxu0 %v707
  %861 = vmatprep.subr.bf16.mxu0 0
  %862 = vmatpush2.bf16.msra.mxu0 %v706
  %863 = vmatprep.mubr.bf16.mxu0 %v379
  %864 = vmatmul.mubr.bf16.gmra.mxu0 %v378
  %v865 = vpop.f32.mrf.mxu0
  %v866 = vadd.f32 %v200, %v865
  %v867 = vpop.f32.mrf.mxu0
  %v868 = vpop.f32.mrf.mxu0
  %v869 = vadd.f32 %v200, %v868
  %v870 = vpop.f32.mrf.mxu0
  %871 = vmatprep.mubr.bf16.mxu0 %v386
  %872 = vmatmul.mubr.bf16.gmra.mxu0 %v385
  %v873 = vpop.f32.mrf.mxu0
  %v874 = vadd.f32 %v200, %v873
  %v875 = vpop.f32.mrf.mxu0
  %v876 = vpop.f32.mrf.mxu0
  %v877 = vadd.f32 %v200, %v876
  %v878 = vpop.f32.mrf.mxu0
  %879 = vmatprep.mubr.bf16.mxu0 %v393
  %880 = vmatmul.mubr.bf16.gmra.mxu0 %v392
  %v881 = vpop.f32.mrf.mxu0
  %v882 = vadd.f32 %v200, %v881
  %v883 = vpop.f32.mrf.mxu0
  %v884 = vpop.f32.mrf.mxu0
  %v885 = vadd.f32 %v200, %v884
  %v886 = vpop.f32.mrf.mxu0
  %887 = vmatprep.mubr.bf16.mxu0 %v400
  %888 = vmatmul.mubr.bf16.gmra.mxu0 %v399
  %v889 = vpop.f32.mrf.mxu0
  %v890 = vadd.f32 %v200, %v889
  %v891 = vpop.f32.mrf.mxu0
  %v892 = vpop.f32.mrf.mxu0
  %v893 = vadd.f32 %v200, %v892
  %v894 = vpop.f32.mrf.mxu0
  %895 = vmatprep.mubr.bf16.mxu0 %v407
  %896 = vmatmul.mubr.bf16.gmra.mxu0 %v406
  %v897 = vpop.f32.mrf.mxu0
  %v898 = vadd.f32 %v200, %v897
  %v899 = vpop.f32.mrf.mxu0
  %v900 = vpop.f32.mrf.mxu0
  %v901 = vadd.f32 %v200, %v900
  %v902 = vpop.f32.mrf.mxu0
  %903 = vmatprep.mubr.bf16.mxu0 %v414
  %904 = vmatmul.mubr.bf16.gmra.mxu0 %v413
  %v905 = vpop.f32.mrf.mxu0
  %v906 = vadd.f32 %v200, %v905
  %v907 = vpop.f32.mrf.mxu0
  %v908 = vpop.f32.mrf.mxu0
  %v909 = vadd.f32 %v200, %v908
  %v910 = vpop.f32.mrf.mxu0
  %911 = vmatprep.mubr.bf16.mxu0 %v421
  %912 = vmatmul.mubr.bf16.gmra.mxu0 %v420
  %v913 = vpop.f32.mrf.mxu0
  %v914 = vadd.f32 %v200, %v913
  %v915 = vpop.f32.mrf.mxu0
  %v916 = vpop.f32.mrf.mxu0
  %v917 = vadd.f32 %v200, %v916
  %v918 = vpop.f32.mrf.mxu0
  %919 = vmatprep.mubr.bf16.mxu0 %v428
  %920 = vmatmul.mubr.bf16.gmra.mxu0 %v427
  %v921 = vpop.f32.mrf.mxu0
  %v922 = vadd.f32 %v200, %v921
  %v923 = vpop.f32.mrf.mxu0
  %v924 = vpop.f32.mrf.mxu0
  %v925 = vadd.f32 %v200, %v924
  %v926 = vpop.f32.mrf.mxu0
  %927 = vdwg.mxu0
  %928 = vmatprep.subr.bf16.mxu0 0
  %929 = vmatpush1.bf16.msra.mxu0 %v721
  %930 = vmatprep.subr.bf16.mxu0 0
  %931 = vmatpush1.bf16.msra.mxu0 %v720
  %932 = vmatprep.subr.bf16.mxu0 0
  %933 = vmatpush1.bf16.msra.mxu0 %v719
  %934 = vmatprep.subr.bf16.mxu0 0
  %935 = vmatpush1.bf16.msra.mxu0 %v718
  %936 = vmatprep.subr.bf16.mxu0 0
  %937 = vmatpush1.bf16.msra.mxu0 %v717
  %938 = vmatprep.subr.bf16.mxu0 0
  %939 = vmatpush1.bf16.msra.mxu0 %v716
  %940 = vmatprep.subr.bf16.mxu0 0
  %941 = vmatpush1.bf16.msra.mxu0 %v715
  %942 = vmatprep.subr.bf16.mxu0 0
  %943 = vmatpush1.bf16.msra.mxu0 %v714
  %944 = vmatprep.subr.bf16.mxu0 0
  %945 = vmatpush2.bf16.msra.mxu0 %v729
  %946 = vmatprep.subr.bf16.mxu0 0
  %947 = vmatpush2.bf16.msra.mxu0 %v728
  %948 = vmatprep.subr.bf16.mxu0 0
  %949 = vmatpush2.bf16.msra.mxu0 %v727
  %950 = vmatprep.subr.bf16.mxu0 0
  %951 = vmatpush2.bf16.msra.mxu0 %v726
  %952 = vmatprep.subr.bf16.mxu0 0
  %953 = vmatpush2.bf16.msra.mxu0 %v725
  %954 = vmatprep.subr.bf16.mxu0 0
  %955 = vmatpush2.bf16.msra.mxu0 %v724
  %956 = vmatprep.subr.bf16.mxu0 0
  %957 = vmatpush2.bf16.msra.mxu0 %v723
  %958 = vmatprep.subr.bf16.mxu0 0
  %959 = vmatpush2.bf16.msra.mxu0 %v722
  %960 = vmatprep.mubr.bf16.mxu0 %v381
  %961 = vmatmul.mubr.bf16.gmra.mxu0 %v380
  %v962 = vpop.f32.mrf.mxu0
  %v963 = vadd.f32 %v866, %v962
  %v964 = vpop.f32.mrf.mxu0
  %v965 = vpop.f32.mrf.mxu0
  %v966 = vadd.f32 %v869, %v965
  %v967 = vpop.f32.mrf.mxu0
  %968 = vmatprep.mubr.bf16.mxu0 %v388
  %969 = vmatmul.mubr.bf16.gmra.mxu0 %v387
  %v970 = vpop.f32.mrf.mxu0
  %v971 = vadd.f32 %v874, %v970
  %v972 = vpop.f32.mrf.mxu0
  %v973 = vpop.f32.mrf.mxu0
  %v974 = vadd.f32 %v877, %v973
  %v975 = vpop.f32.mrf.mxu0
  %976 = vmatprep.mubr.bf16.mxu0 %v395
  %977 = vmatmul.mubr.bf16.gmra.mxu0 %v394
  %v978 = vpop.f32.mrf.mxu0
  %v979 = vadd.f32 %v882, %v978
  %v980 = vpop.f32.mrf.mxu0
  %v981 = vpop.f32.mrf.mxu0
  %v982 = vadd.f32 %v885, %v981
  %v983 = vpop.f32.mrf.mxu0
  %984 = vmatprep.mubr.bf16.mxu0 %v402
  %985 = vmatmul.mubr.bf16.gmra.mxu0 %v401
  %v986 = vpop.f32.mrf.mxu0
  %v987 = vadd.f32 %v890, %v986
  %v988 = vpop.f32.mrf.mxu0
  %v989 = vpop.f32.mrf.mxu0
  %v990 = vadd.f32 %v893, %v989
  %v991 = vpop.f32.mrf.mxu0
  %992 = vmatprep.mubr.bf16.mxu0 %v409
  %993 = vmatmul.mubr.bf16.gmra.mxu0 %v408
  %v994 = vpop.f32.mrf.mxu0
  %v995 = vadd.f32 %v898, %v994
  %v996 = vpop.f32.mrf.mxu0
  %v997 = vpop.f32.mrf.mxu0
  %v998 = vadd.f32 %v901, %v997
  %v999 = vpop.f32.mrf.mxu0
  %1000 = vmatprep.mubr.bf16.mxu0 %v416
  %1001 = vmatmul.mubr.bf16.gmra.mxu0 %v415
  %v1002 = vpop.f32.mrf.mxu0
  %v1003 = vadd.f32 %v906, %v1002
  %v1004 = vpop.f32.mrf.mxu0
  %v1005 = vpop.f32.mrf.mxu0
  %v1006 = vadd.f32 %v909, %v1005
  %v1007 = vpop.f32.mrf.mxu0
  %1008 = vmatprep.mubr.bf16.mxu0 %v423
  %1009 = vmatmul.mubr.bf16.gmra.mxu0 %v422
  %v1010 = vpop.f32.mrf.mxu0
  %v1011 = vadd.f32 %v914, %v1010
  %v1012 = vpop.f32.mrf.mxu0
  %v1013 = vpop.f32.mrf.mxu0
  %v1014 = vadd.f32 %v917, %v1013
  %v1015 = vpop.f32.mrf.mxu0
  %1016 = vmatprep.mubr.bf16.mxu0 %v430
  %1017 = vmatmul.mubr.bf16.gmra.mxu0 %v429
  %v1018 = vpop.f32.mrf.mxu0
  %v1019 = vadd.f32 %v922, %v1018
  %v1020 = vpop.f32.mrf.mxu0
  %v1021 = vpop.f32.mrf.mxu0
  %v1022 = vadd.f32 %v925, %v1021
  %v1023 = vpop.f32.mrf.mxu0
  %1024 = vdwg.mxu0
  %1025 = vmatprep.subr.bf16.mxu0 0
  %1026 = vmatpush1.bf16.msra.mxu0 %v737
  %1027 = vmatprep.subr.bf16.mxu0 0
  %1028 = vmatpush1.bf16.msra.mxu0 %v736
  %1029 = vmatprep.subr.bf16.mxu0 0
  %1030 = vmatpush1.bf16.msra.mxu0 %v735
  %1031 = vmatprep.subr.bf16.mxu0 0
  %1032 = vmatpush1.bf16.msra.mxu0 %v734
  %1033 = vmatprep.subr.bf16.mxu0 0
  %1034 = vmatpush1.bf16.msra.mxu0 %v733
  %1035 = vmatprep.subr.bf16.mxu0 0
  %1036 = vmatpush1.bf16.msra.mxu0 %v732
  %1037 = vmatprep.subr.bf16.mxu0 0
  %1038 = vmatpush1.bf16.msra.mxu0 %v731
  %1039 = vmatprep.subr.bf16.mxu0 0
  %1040 = vmatpush1.bf16.msra.mxu0 %v730
  %1041 = vmatprep.subr.bf16.mxu0 0
  %1042 = vmatpush2.bf16.msra.mxu0 %v745
  %1043 = vmatprep.subr.bf16.mxu0 0
  %1044 = vmatpush2.bf16.msra.mxu0 %v744
  %1045 = vmatprep.subr.bf16.mxu0 0
  %1046 = vmatpush2.bf16.msra.mxu0 %v743
  %1047 = vmatprep.subr.bf16.mxu0 0
  %1048 = vmatpush2.bf16.msra.mxu0 %v742
  %1049 = vmatprep.subr.bf16.mxu0 0
  %1050 = vmatpush2.bf16.msra.mxu0 %v741
  %1051 = vmatprep.subr.bf16.mxu0 0
  %1052 = vmatpush2.bf16.msra.mxu0 %v740
  %1053 = vmatprep.subr.bf16.mxu0 0
  %1054 = vmatpush2.bf16.msra.mxu0 %v739
  %1055 = vmatprep.subr.bf16.mxu0 0
  %1056 = vmatpush2.bf16.msra.mxu0 %v738
  %1057 = vmatprep.mubr.bf16.mxu0 %v383
  %1058 = vmatmul.mubr.bf16.gmra.mxu0 %v382
  %v1059 = vpop.f32.mrf.mxu0
  %v1060 = vadd.f32 %v963, %v1059
  %v1061 = vpop.f32.mrf.mxu0
  %v1062 = vpop.f32.mrf.mxu0
  %v1063 = vadd.f32 %v966, %v1062
  %v1064 = vpop.f32.mrf.mxu0
  %1065 = vmatprep.mubr.bf16.mxu0 %v390
  %1066 = vmatmul.mubr.bf16.gmra.mxu0 %v389
  %v1067 = vpop.f32.mrf.mxu0
  %v1068 = vadd.f32 %v971, %v1067
  %v1069 = vpop.f32.mrf.mxu0
  %v1070 = vpop.f32.mrf.mxu0
  %v1071 = vadd.f32 %v974, %v1070
  %v1072 = vpop.f32.mrf.mxu0
  %1073 = vmatprep.mubr.bf16.mxu0 %v397
  %1074 = vmatmul.mubr.bf16.gmra.mxu0 %v396
  %v1075 = vpop.f32.mrf.mxu0
  %v1076 = vadd.f32 %v979, %v1075
  %v1077 = vpop.f32.mrf.mxu0
  %v1078 = vpop.f32.mrf.mxu0
  %v1079 = vadd.f32 %v982, %v1078
  %v1080 = vpop.f32.mrf.mxu0
  %1081 = vmatprep.mubr.bf16.mxu0 %v404
  %1082 = vmatmul.mubr.bf16.gmra.mxu0 %v403
  %v1083 = vpop.f32.mrf.mxu0
  %v1084 = vadd.f32 %v987, %v1083
  %v1085 = vpop.f32.mrf.mxu0
  %v1086 = vpop.f32.mrf.mxu0
  %v1087 = vadd.f32 %v990, %v1086
  %v1088 = vpop.f32.mrf.mxu0
  %1089 = vmatprep.mubr.bf16.mxu0 %v411
  %1090 = vmatmul.mubr.bf16.gmra.mxu0 %v410
  %v1091 = vpop.f32.mrf.mxu0
  %v1092 = vadd.f32 %v995, %v1091
  %v1093 = vpop.f32.mrf.mxu0
  %v1094 = vpop.f32.mrf.mxu0
  %v1095 = vadd.f32 %v998, %v1094
  %v1096 = vpop.f32.mrf.mxu0
  %1097 = vmatprep.mubr.bf16.mxu0 %v418
  %1098 = vmatmul.mubr.bf16.gmra.mxu0 %v417
  %v1099 = vpop.f32.mrf.mxu0
  %v1100 = vadd.f32 %v1003, %v1099
  %v1101 = vpop.f32.mrf.mxu0
  %v1102 = vpop.f32.mrf.mxu0
  %v1103 = vadd.f32 %v1006, %v1102
  %v1104 = vpop.f32.mrf.mxu0
  %1105 = vmatprep.mubr.bf16.mxu0 %v425
  %1106 = vmatmul.mubr.bf16.gmra.mxu0 %v424
  %v1107 = vpop.f32.mrf.mxu0
  %v1108 = vadd.f32 %v1011, %v1107
  %v1109 = vpop.f32.mrf.mxu0
  %v1110 = vpop.f32.mrf.mxu0
  %v1111 = vadd.f32 %v1014, %v1110
  %v1112 = vpop.f32.mrf.mxu0
  %1113 = vmatprep.mubr.bf16.mxu0 %v432
  %1114 = vmatmul.mubr.bf16.gmra.mxu0 %v431
  %v1115 = vpop.f32.mrf.mxu0
  %v1116 = vadd.f32 %v1019, %v1115
  %v1117 = vpop.f32.mrf.mxu0
  %v1118 = vpop.f32.mrf.mxu0
  %v1119 = vadd.f32 %v1022, %v1118
  %v1120 = vpop.f32.mrf.mxu0
  %1121 = vdwg.mxu0
  %1122 = vmatprep.subr.bf16.mxu0 0
  %1123 = vmatpush1.bf16.msra.mxu0 0
  %1124 = vmatprep.subr.bf16.mxu0 0
  %1125 = vmatpush1.bf16.msra.mxu0 0
  %1126 = vmatprep.subr.bf16.mxu0 0
  %1127 = vmatpush1.bf16.msra.mxu0 %v751
  %1128 = vmatprep.subr.bf16.mxu0 0
  %1129 = vmatpush1.bf16.msra.mxu0 %v750
  %1130 = vmatprep.subr.bf16.mxu0 0
  %1131 = vmatpush1.bf16.msra.mxu0 %v749
  %1132 = vmatprep.subr.bf16.mxu0 0
  %1133 = vmatpush1.bf16.msra.mxu0 %v748
  %1134 = vmatprep.subr.bf16.mxu0 0
  %1135 = vmatpush1.bf16.msra.mxu0 %v747
  %1136 = vmatprep.subr.bf16.mxu0 0
  %1137 = vmatpush1.bf16.msra.mxu0 %v746
  %1138 = vmatprep.subr.bf16.mxu0 0
  %1139 = vmatpush2.bf16.msra.mxu0 0
  %1140 = vmatprep.subr.bf16.mxu0 0
  %1141 = vmatpush2.bf16.msra.mxu0 0
  %1142 = vmatprep.subr.bf16.mxu0 0
  %1143 = vmatpush2.bf16.msra.mxu0 0
  %1144 = vmatprep.subr.bf16.mxu0 0
  %1145 = vmatpush2.bf16.msra.mxu0 0
  %1146 = vmatprep.subr.bf16.mxu0 0
  %1147 = vmatpush2.bf16.msra.mxu0 0
  %1148 = vmatprep.subr.bf16.mxu0 0
  %1149 = vmatpush2.bf16.msra.mxu0 0
  %1150 = vmatprep.subr.bf16.mxu0 0
  %1151 = vmatpush2.bf16.msra.mxu0 0
  %1152 = vmatprep.subr.bf16.mxu0 0
  %1153 = vmatpush2.bf16.msra.mxu0 0
  %1154 = vmatprep.mubr.bf16.mxu0 0
  %1155 = vmatmul.mubr.bf16.gmra.mxu0 %v808
  %v1156 = vpop.f32.mrf.mxu0
  %v1157 = vadd.f32 %v1060, %v1156
  %v1158 = vpop.f32.mrf.mxu0
  %v1159 = vpop.f32.mrf.mxu0
  %v1160 = vadd.f32 %v1063, %v1159
  %v1161 = vpop.f32.mrf.mxu0
  %1162 = vmatprep.mubr.bf16.mxu0 0
  %1163 = vmatmul.mubr.bf16.gmra.mxu0 %v811
  %v1164 = vpop.f32.mrf.mxu0
  %v1165 = vadd.f32 %v1068, %v1164
  %v1166 = vpop.f32.mrf.mxu0
  %v1167 = vpop.f32.mrf.mxu0
  %v1168 = vadd.f32 %v1071, %v1167
  %v1169 = vpop.f32.mrf.mxu0
  %1170 = vmatprep.mubr.bf16.mxu0 0
  %1171 = vmatmul.mubr.bf16.gmra.mxu0 %v814
  %v1172 = vpop.f32.mrf.mxu0
  %v1173 = vadd.f32 %v1076, %v1172
  %v1174 = vpop.f32.mrf.mxu0
  %v1175 = vpop.f32.mrf.mxu0
  %v1176 = vadd.f32 %v1079, %v1175
  %v1177 = vpop.f32.mrf.mxu0
  %1178 = vmatprep.mubr.bf16.mxu0 0
  %1179 = vmatmul.mubr.bf16.gmra.mxu0 %v817
  %v1180 = vpop.f32.mrf.mxu0
  %v1181 = vadd.f32 %v1084, %v1180
  %v1182 = vpop.f32.mrf.mxu0
  %v1183 = vpop.f32.mrf.mxu0
  %v1184 = vadd.f32 %v1087, %v1183
  %v1185 = vpop.f32.mrf.mxu0
  %1186 = vmatprep.mubr.bf16.mxu0 0
  %1187 = vmatmul.mubr.bf16.gmra.mxu0 %v820
  %v1188 = vpop.f32.mrf.mxu0
  %v1189 = vadd.f32 %v1092, %v1188
  %v1190 = vpop.f32.mrf.mxu0
  %v1191 = vpop.f32.mrf.mxu0
  %v1192 = vadd.f32 %v1095, %v1191
  %v1193 = vpop.f32.mrf.mxu0
  %1194 = vmatprep.mubr.bf16.mxu0 0
  %1195 = vmatmul.mubr.bf16.gmra.mxu0 %v823
  %v1196 = vpop.f32.mrf.mxu0
  %v1197 = vadd.f32 %v1100, %v1196
  %v1198 = vpop.f32.mrf.mxu0
  %v1199 = vpop.f32.mrf.mxu0
  %v1200 = vadd.f32 %v1103, %v1199
  %v1201 = vpop.f32.mrf.mxu0
  %1202 = vmatprep.mubr.bf16.mxu0 0
  %1203 = vmatmul.mubr.bf16.gmra.mxu0 %v826
  %v1204 = vpop.f32.mrf.mxu0
  %v1205 = vadd.f32 %v1108, %v1204
  %v1206 = vpop.f32.mrf.mxu0
  %v1207 = vpop.f32.mrf.mxu0
  %v1208 = vadd.f32 %v1111, %v1207
  %v1209 = vpop.f32.mrf.mxu0
  %1210 = vmatprep.mubr.bf16.mxu0 0
  %1211 = vmatmul.mubr.bf16.gmra.mxu0 %v829
  %v1212 = vpop.f32.mrf.mxu0
  %v1213 = vadd.f32 %v1116, %v1212
  %v1214 = vpop.f32.mrf.mxu0
  %v1215 = vpop.f32.mrf.mxu0
  %v1216 = vadd.f32 %v1119, %v1215
  %v1217 = vpop.f32.mrf.mxu0
  %1218 = vdwg.mxu0
  %v1219 = vmax.f32 %v1157, 0.0
  %v1220 = vmax.f32 %v1160, 0.0
  %v1221 = vmax.f32 %v1165, 0.0
  %v1222 = vmax.f32 %v1168, 0.0
  %v1223 = vmax.f32 %v1173, 0.0
  %v1224 = vmax.f32 %v1176, 0.0
  %v1225 = vmax.f32 %v1181, 0.0
  %v1226 = vmax.f32 %v1184, 0.0
  %v1227 = vmax.f32 %v1189, 0.0
  %v1228 = vmax.f32 %v1192, 0.0
  %v1229 = vmax.f32 %v1197, 0.0
  %v1230 = vmax.f32 %v1200, 0.0
  %v1231 = vmax.f32 %v1205, 0.0
  %v1232 = vmax.f32 %v1208, 0.0
  %v1233 = vmax.f32 %v1213, 0.0
  %v1234 = vmax.f32 %v1216, 0.0
  %v1235 = vpack.c.bf16 %v1220, %v1219
  %v1236 = vpack.c.bf16 %v1222, %v1221
  %v1237 = vpack.c.bf16 %v1224, %v1223
  %v1238 = vpack.c.bf16 %v1226, %v1225
  %v1239 = vpack.c.bf16 %v1228, %v1227
  %v1240 = vpack.c.bf16 %v1230, %v1229
  %v1241 = vpack.c.bf16 %v1232, %v1231
  %v1242 = vpack.c.bf16 %v1234, %v1233
  %v1251 = vunpack.c.l.b16 %v1235
  %v1252 = vunpack.c.h.b16 %v1235
  %v1253 = vunpack.c.l.b16 %v1236
  %v1254 = vunpack.c.h.b16 %v1236
  %v1255 = vunpack.c.l.b16 %v1237
  %v1256 = vunpack.c.h.b16 %v1237
  %v1257 = vunpack.c.l.b16 %v1238
  %v1258 = vunpack.c.h.b16 %v1238
  %v1259 = vunpack.c.l.b16 %v1239
  %v1260 = vunpack.c.h.b16 %v1239
  %v1261 = vunpack.c.l.b16 %v1240
  %v1262 = vunpack.c.h.b16 %v1240
  %v1263 = vunpack.c.l.b16 %v1241
  %v1264 = vunpack.c.h.b16 %v1241
  %v1265 = vunpack.c.l.b16 %v1242
  %v1266 = vunpack.c.h.b16 %v1242
  %v1267 = vpack.c.b16 %v1251, %v1251
  %v1268 = vpack.c.b16 %v1252, %v1252
  %v1269 = vpack.c.b16 %v1253, %v1253
  %v1270 = vpack.c.b16 %v1254, %v1254
  %v1271 = vpack.c.b16 %v1255, %v1255
  %v1272 = vpack.c.b16 %v1256, %v1256
  %v1273 = vpack.c.b16 %v1257, %v1257
  %v1274 = vpack.c.b16 %v1258, %v1258
  %v1275 = vpack.c.b16 %v1259, %v1259
  %v1276 = vpack.c.b16 %v1260, %v1260
  %v1277 = vpack.c.b16 %v1261, %v1261
  %v1278 = vpack.c.b16 %v1262, %v1262
  %v1279 = vpack.c.b16 %v1263, %v1263
  %v1280 = vpack.c.b16 %v1264, %v1264
  %v1281 = vpack.c.b16 %v1265, %v1265
  %v1282 = vpack.c.b16 %v1266, %v1266
  %1299 = vst [vmem:[%s5] sm:$0xf] %v1267
  %1300 = vst [vmem:[%s5 + $0x4] sm:$0xf] %v1268
  %1301 = vst [vmem:[%s5 + $0x8] sm:$0xf] %v1269
  %1302 = vst [vmem:[%s5 + $0xc] sm:$0xf] %v1270
  %1303 = vst [vmem:[%s5 + $0x10] sm:$0xf] %v1271
  %1304 = vst [vmem:[%s5 + $0x14] sm:$0xf] %v1272
  %1305 = vst [vmem:[%s5 + $0x18] sm:$0xf] %v1273
  %1306 = vst [vmem:[%s5 + $0x1c] sm:$0xf] %v1274
  %1307 = vst [vmem:[%s5 + $0x20] sm:$0xf] %v1275
  %1308 = vst [vmem:[%s5 + $0x24] sm:$0xf] %v1276
  %1309 = vst [vmem:[%s5 + $0x28] sm:$0xf] %v1277
  %1310 = vst [vmem:[%s5 + $0x2c] sm:$0xf] %v1278
  %1311 = vst [vmem:[%s5 + $0x30] sm:$0xf] %v1279
  %1312 = vst [vmem:[%s5 + $0x34] sm:$0xf] %v1280
  %1313 = vst [vmem:[%s5 + $0x38] sm:$0xf] %v1281
  %1314 = vst [vmem:[%s5 + $0x3c] sm:$0xf] %v1282
  %v1315 = vld [vmem:[%s3] sm:$0xf]
  %v1316 = vld [vmem:[%s3 + $0x4] sm:$0xf]
  %v1317 = vld [vmem:[%s3 + $0x8] sm:$0xf]
  %v1318 = vld [vmem:[%s3 + $0xc] sm:$0xf]
  %v1319 = vld [vmem:[%s3 + $0x10] sm:$0xf]
  %v1320 = vld [vmem:[%s3 + $0x14] sm:$0xf]
  %v1321 = vld [vmem:[%s3 + $0x18] sm:$0xf]
  %v1322 = vld [vmem:[%s3 + $0x1c] sm:$0xf]
  %v1323 = vld [vmem:[%s3 + $0x20] sm:$0xf]
  %v1324 = vld [vmem:[%s3 + $0x24] sm:$0xf]
  %v1325 = vld [vmem:[%s3 + $0x28] sm:$0xf]
  %v1326 = vld [vmem:[%s3 + $0x2c] sm:$0xf]
  %v1327 = vld [vmem:[%s3 + $0x30] sm:$0xf]
  %v1328 = vld [vmem:[%s3 + $0x34] sm:$0xf]
  %v1329 = vld [vmem:[%s3 + $0x38] sm:$0xf]
  %v1330 = vld [vmem:[%s3 + $0x3c] sm:$0xf]
  %v1331 = vld [vmem:[%s4] sm:$0x1]
  %v1333 = vlaneseq
  %v1334 = vshrl.u32 %v1333, 7
  %v1335 = vsub.s32 0, %v1334
  %v1336 = vrot.slane %v1331, %v1335
  %v1354 = vunpack.c.l.b16 %v1315
  %v1355 = vunpack.c.l.b16 %v1316
  %v1356 = vunpack.c.l.b16 %v1317
  %v1357 = vunpack.c.l.b16 %v1318
  %v1358 = vunpack.c.l.b16 %v1319
  %v1359 = vunpack.c.l.b16 %v1320
  %v1360 = vunpack.c.l.b16 %v1321
  %v1361 = vunpack.c.l.b16 %v1322
  %v1362 = vunpack.c.l.b16 %v1323
  %v1363 = vunpack.c.l.b16 %v1324
  %v1364 = vunpack.c.l.b16 %v1325
  %v1365 = vunpack.c.l.b16 %v1326
  %v1366 = vunpack.c.l.b16 %v1327
  %v1367 = vunpack.c.l.b16 %v1328
  %v1368 = vunpack.c.l.b16 %v1329
  %v1369 = vunpack.c.l.b16 %v1330
  %v1370 = vpack.c.b16 %v1355, %v1354
  %v1371 = vpack.c.b16 %v1357, %v1356
  %v1372 = vpack.c.b16 %v1359, %v1358
  %v1373 = vpack.c.b16 %v1361, %v1360
  %v1374 = vpack.c.b16 %v1363, %v1362
  %v1375 = vpack.c.b16 %v1365, %v1364
  %v1376 = vpack.c.b16 %v1367, %v1366
  %v1377 = vpack.c.b16 %v1369, %v1368
  %1386 = vmatprep.subr.bf16.mxu0 0
  %1387 = vmatpush1.bf16.msra.mxu0 %v1377
  %1388 = vmatprep.subr.bf16.mxu0 0
  %1389 = vmatpush1.bf16.msra.mxu0 %v1376
  %1390 = vmatprep.subr.bf16.mxu0 0
  %1391 = vmatpush1.bf16.msra.mxu0 %v1375
  %1392 = vmatprep.subr.bf16.mxu0 0
  %1393 = vmatpush1.bf16.msra.mxu0 %v1374
  %1394 = vmatprep.subr.bf16.mxu0 0
  %1395 = vmatpush1.bf16.msra.mxu0 %v1373
  %1396 = vmatprep.subr.bf16.mxu0 0
  %1397 = vmatpush1.bf16.msra.mxu0 %v1372
  %1398 = vmatprep.subr.bf16.mxu0 0
  %1399 = vmatpush1.bf16.msra.mxu0 %v1371
  %1400 = vmatprep.subr.bf16.mxu0 0
  %1401 = vmatpush1.bf16.msra.mxu0 %v1370
  %1402 = vmatprep.subr.bf16.mxu0 0
  %1403 = vmatpush2.bf16.msra.mxu0 0
  %1404 = vmatprep.subr.bf16.mxu0 0
  %1405 = vmatpush2.bf16.msra.mxu0 0
  %1406 = vmatprep.subr.bf16.mxu0 0
  %1407 = vmatpush2.bf16.msra.mxu0 0
  %1408 = vmatprep.subr.bf16.mxu0 0
  %1409 = vmatpush2.bf16.msra.mxu0 0
  %1410 = vmatprep.subr.bf16.mxu0 0
  %1411 = vmatpush2.bf16.msra.mxu0 0
  %1412 = vmatprep.subr.bf16.mxu0 0
  %1413 = vmatpush2.bf16.msra.mxu0 0
  %1414 = vmatprep.subr.bf16.mxu0 0
  %1415 = vmatpush2.bf16.msra.mxu0 0
  %1416 = vmatprep.subr.bf16.mxu0 0
  %1417 = vmatpush2.bf16.msra.mxu0 0
  %1418 = vmatprep.mubr.bf16.mxu0 0
  %1419 = vmatmul.mubr.bf16.gmra.mxu0 %v1235
  %v1420 = vpop.f32.mrf.mxu0
  %v1421 = vadd.f32 %v1336, %v1420
  %v1422 = vpop.f32.mrf.mxu0
  %v1423 = vpop.f32.mrf.mxu0
  %v1424 = vadd.f32 %v1336, %v1423
  %v1425 = vpop.f32.mrf.mxu0
  %1426 = vmatprep.mubr.bf16.mxu0 0
  %1427 = vmatmul.mubr.bf16.gmra.mxu0 %v1236
  %v1428 = vpop.f32.mrf.mxu0
  %v1429 = vadd.f32 %v1336, %v1428
  %v1430 = vpop.f32.mrf.mxu0
  %v1431 = vpop.f32.mrf.mxu0
  %v1432 = vadd.f32 %v1336, %v1431
  %v1433 = vpop.f32.mrf.mxu0
  %1434 = vmatprep.mubr.bf16.mxu0 0
  %1435 = vmatmul.mubr.bf16.gmra.mxu0 %v1237
  %v1436 = vpop.f32.mrf.mxu0
  %v1437 = vadd.f32 %v1336, %v1436
  %v1438 = vpop.f32.mrf.mxu0
  %v1439 = vpop.f32.mrf.mxu0
  %v1440 = vadd.f32 %v1336, %v1439
  %v1441 = vpop.f32.mrf.mxu0
  %1442 = vmatprep.mubr.bf16.mxu0 0
  %1443 = vmatmul.mubr.bf16.gmra.mxu0 %v1238
  %v1444 = vpop.f32.mrf.mxu0
  %v1445 = vadd.f32 %v1336, %v1444
  %v1446 = vpop.f32.mrf.mxu0
  %v1447 = vpop.f32.mrf.mxu0
  %v1448 = vadd.f32 %v1336, %v1447
  %v1449 = vpop.f32.mrf.mxu0
  %1450 = vmatprep.mubr.bf16.mxu0 0
  %1451 = vmatmul.mubr.bf16.gmra.mxu0 %v1239
  %v1452 = vpop.f32.mrf.mxu0
  %v1453 = vadd.f32 %v1336, %v1452
  %v1454 = vpop.f32.mrf.mxu0
  %v1455 = vpop.f32.mrf.mxu0
  %v1456 = vadd.f32 %v1336, %v1455
  %v1457 = vpop.f32.mrf.mxu0
  %1458 = vmatprep.mubr.bf16.mxu0 0
  %1459 = vmatmul.mubr.bf16.gmra.mxu0 %v1240
  %v1460 = vpop.f32.mrf.mxu0
  %v1461 = vadd.f32 %v1336, %v1460
  %v1462 = vpop.f32.mrf.mxu0
  %v1463 = vpop.f32.mrf.mxu0
  %v1464 = vadd.f32 %v1336, %v1463
  %v1465 = vpop.f32.mrf.mxu0
  %1466 = vmatprep.mubr.bf16.mxu0 0
  %1467 = vmatmul.mubr.bf16.gmra.mxu0 %v1241
  %v1468 = vpop.f32.mrf.mxu0
  %v1469 = vadd.f32 %v1336, %v1468
  %v1470 = vpop.f32.mrf.mxu0
  %v1471 = vpop.f32.mrf.mxu0
  %v1472 = vadd.f32 %v1336, %v1471
  %v1473 = vpop.f32.mrf.mxu0
  %1474 = vmatprep.mubr.bf16.mxu0 0
  %1475 = vmatmul.mubr.bf16.gmra.mxu0 %v1242
  %v1476 = vpop.f32.mrf.mxu0
  %v1477 = vadd.f32 %v1336, %v1476
  %v1478 = vpop.f32.mrf.mxu0
  %v1479 = vpop.f32.mrf.mxu0
  %v1480 = vadd.f32 %v1336, %v1479
  %v1481 = vpop.f32.mrf.mxu0
  %1482 = vdwg.mxu0
  %v1483 = vpack.c.bf16 %v1424, %v1421
  %v1484 = vpack.c.bf16 %v1432, %v1429
  %v1485 = vpack.c.bf16 %v1440, %v1437
  %v1486 = vpack.c.bf16 %v1448, %v1445
  %v1487 = vpack.c.bf16 %v1456, %v1453
  %v1488 = vpack.c.bf16 %v1464, %v1461
  %v1489 = vpack.c.bf16 %v1472, %v1469
  %v1490 = vpack.c.bf16 %v1480, %v1477
  %v1499 = vunpack.c.l.b16 %v1483
  %v1500 = vunpack.c.h.b16 %v1483
  %v1501 = vunpack.c.l.b16 %v1484
  %v1502 = vunpack.c.h.b16 %v1484
  %v1503 = vunpack.c.l.b16 %v1485
  %v1504 = vunpack.c.h.b16 %v1485
  %v1505 = vunpack.c.l.b16 %v1486
  %v1506 = vunpack.c.h.b16 %v1486
  %v1507 = vunpack.c.l.b16 %v1487
  %v1508 = vunpack.c.h.b16 %v1487
  %v1509 = vunpack.c.l.b16 %v1488
  %v1510 = vunpack.c.h.b16 %v1488
  %v1511 = vunpack.c.l.b16 %v1489
  %v1512 = vunpack.c.h.b16 %v1489
  %v1513 = vunpack.c.l.b16 %v1490
  %v1514 = vunpack.c.h.b16 %v1490
  %v1515 = vpack.c.b16 %v1499, %v1499
  %v1516 = vpack.c.b16 %v1500, %v1500
  %v1517 = vpack.c.b16 %v1501, %v1501
  %v1518 = vpack.c.b16 %v1502, %v1502
  %v1519 = vpack.c.b16 %v1503, %v1503
  %v1520 = vpack.c.b16 %v1504, %v1504
  %v1521 = vpack.c.b16 %v1505, %v1505
  %v1522 = vpack.c.b16 %v1506, %v1506
  %v1523 = vpack.c.b16 %v1507, %v1507
  %v1524 = vpack.c.b16 %v1508, %v1508
  %v1525 = vpack.c.b16 %v1509, %v1509
  %v1526 = vpack.c.b16 %v1510, %v1510
  %v1527 = vpack.c.b16 %v1511, %v1511
  %v1528 = vpack.c.b16 %v1512, %v1512
  %v1529 = vpack.c.b16 %v1513, %v1513
  %v1530 = vpack.c.b16 %v1514, %v1514
  %1547 = vst [vmem:[%s6] sm:$0xf] %v1515
  %1548 = vst [vmem:[%s6 + $0x4] sm:$0xf] %v1516
  %1549 = vst [vmem:[%s6 + $0x8] sm:$0xf] %v1517
  %1550 = vst [vmem:[%s6 + $0xc] sm:$0xf] %v1518
  %1551 = vst [vmem:[%s6 + $0x10] sm:$0xf] %v1519
  %1552 = vst [vmem:[%s6 + $0x14] sm:$0xf] %v1520
  %1553 = vst [vmem:[%s6 + $0x18] sm:$0xf] %v1521
  %1554 = vst [vmem:[%s6 + $0x1c] sm:$0xf] %v1522
  %1555 = vst [vmem:[%s6 + $0x20] sm:$0xf] %v1523
  %1556 = vst [vmem:[%s6 + $0x24] sm:$0xf] %v1524
  %1557 = vst [vmem:[%s6 + $0x28] sm:$0xf] %v1525
  %1558 = vst [vmem:[%s6 + $0x2c] sm:$0xf] %v1526
  %1559 = vst [vmem:[%s6 + $0x30] sm:$0xf] %v1527
  %1560 = vst [vmem:[%s6 + $0x34] sm:$0xf] %v1528
  %1561 = vst [vmem:[%s6 + $0x38] sm:$0xf] %v1529
  %1562 = vst [vmem:[%s6 + $0x3c] sm:$0xf] %v1530
  // Predicated region
  $region22: #{uacanet_forward.15} parent=0 // pred_check
    _
  $region23: #{uacanet_forward.15} parent=0 // pred_check_branch
    %1564 = sbr.rel (0) target = $region25
  $region24: #{uacanet_forward.15} parent=0 // pred_region
    _
  $region25: #{uacanet_forward.15} parent=0 // pred_fallthru
    _
  // Predicated region
  $region26: #{uacanet_forward.15} parent=0 // pred_check
    _
  $region27: #{uacanet_forward.15} parent=0 // pred_check_branch
    %1566 = sbr.rel (0) target = $region29
  $region28: #{uacanet_forward.15} parent=0 // pred_region
    _
  $region29: #{uacanet_forward.15} parent=0 // pred_fallthru
    _
  // Predicated region
  $region30: #{uacanet_forward.15} parent=0 // pred_check
    _
  $region31: #{uacanet_forward.15} parent=0 // pred_check_branch
    %1568 = sbr.rel (0) target = $region33
  $region32: #{uacanet_forward.15} parent=0 // pred_region
    _
  $region33: #{uacanet_forward.15} parent=0 // pred_fallthru
    _
  // Predicated region
  $region34: #{uacanet_forward.15} parent=0 // pred_check
    _
  $region35: #{uacanet_forward.15} parent=0 // pred_check_branch
    %1570 = sbr.rel (0) target = $region37
  $region36: #{uacanet_forward.15} parent=0 // pred_region
    _
  $region37: #{uacanet_forward.15} parent=0 // pred_fallthru
    _

// kernel: squeeze.4
$region0: #{squeeze.4}
  %s0 = inlined_call_operand.vmem [shape: f32[4,2,1,64,64], index: 0, kind: input, shape index: {}]
  %s1 = inlined_call_operand.vmem [shape: f32[8,32,128], index: 1, kind: output, shape index: {}]
  %v2 = vld [vmem:[%s0] ss:$2 sm:$0xff]
  %vm3 = vcmask 523264
  %4 = vst.msk [vmem:[%s1] sm:$0xff] %vm3, %v2
  %s5 = scalar_lea.vmem %s0, 16
  %v6 = vld [vmem:[%s5] ss:$2 sm:$0xff]
  %vm7 = vcmask 523264
  %s8 = scalar_lea.vmem %s1, 8
  %9 = vst.msk [vmem:[%s8] sm:$0xff] %vm7, %v6
  %s10 = scalar_lea.vmem %s0, 32
  %v11 = vld [vmem:[%s10] ss:$2 sm:$0xff]
  %vm12 = vcmask 523264
  %s13 = scalar_lea.vmem %s1, 16
  %14 = vst.msk [vmem:[%s13] sm:$0xff] %vm12, %v11
  %s15 = scalar_lea.vmem %s0, 48
  %v16 = vld [vmem:[%s15] ss:$2 sm:$0xff]
  %vm17 = vcmask 523264
  %s18 = scalar_lea.vmem %s1, 24
  %19 = vst.msk [vmem:[%s18] sm:$0xff] %vm17, %v16
  %s20 = scalar_lea.vmem %s0, 64
  %v21 = vld [vmem:[%s20] ss:$2 sm:$0xff]
  %vm22 = vcmask 523264
  %s23 = scalar_lea.vmem %s1, 32
  %24 = vst.msk [vmem:[%s23] sm:$0xff] %vm22, %v21
  %s25 = scalar_lea.vmem %s0, 80
  %v26 = vld [vmem:[%s25] ss:$2 sm:$0xff]
  %vm27 = vcmask 523264
  %s28 = scalar_lea.vmem %s1, 40
  %29 = vst.msk [vmem:[%s28] sm:$0xff] %vm27, %v26
  %s30 = scalar_lea.vmem %s0, 96
  %v31 = vld [vmem:[%s30] ss:$2 sm:$0xff]
  %vm32 = vcmask 523264
  %s33 = scalar_lea.vmem %s1, 48
  %34 = vst.msk [vmem:[%s33] sm:$0xff] %vm32, %v31
  %s35 = scalar_lea.vmem %s0, 112
  %v36 = vld [vmem:[%s35] ss:$2 sm:$0xff]
  %vm37 = vcmask 523264
  %s38 = scalar_lea.vmem %s1, 56
  %39 = vst.msk [vmem:[%s38] sm:$0xff] %vm37, %v36
  %s40 = scalar_lea.vmem %s0, 128
  %v41 = vld [vmem:[%s40] ss:$2 sm:$0xff]
  %vm42 = vcmask 523264
  %s43 = scalar_lea.vmem %s1, 64
  %44 = vst.msk [vmem:[%s43] sm:$0xff] %vm42, %v41
  %s45 = scalar_lea.vmem %s0, 144
  %v46 = vld [vmem:[%s45] ss:$2 sm:$0xff]
  %vm47 = vcmask 523264
  %s48 = scalar_lea.vmem %s1, 72
  %49 = vst.msk [vmem:[%s48] sm:$0xff] %vm47, %v46
  %s50 = scalar_lea.vmem %s0, 160
  %v51 = vld [vmem:[%s50] ss:$2 sm:$0xff]
  %vm52 = vcmask 523264
  %s53 = scalar_lea.vmem %s1, 80
  %54 = vst.msk [vmem:[%s53] sm:$0xff] %vm52, %v51
  %s55 = scalar_lea.vmem %s0, 176
  %v56 = vld [vmem:[%s55] ss:$2 sm:$0xff]
  %vm57 = vcmask 523264
  %s58 = scalar_lea.vmem %s1, 88
  %59 = vst.msk [vmem:[%s58] sm:$0xff] %vm57, %v56
  %s60 = scalar_lea.vmem %s0, 192
  %v61 = vld [vmem:[%s60] ss:$2 sm:$0xff]
  %vm62 = vcmask 523264
  %s63 = scalar_lea.vmem %s1, 96
  %64 = vst.msk [vmem:[%s63] sm:$0xff] %vm62, %v61
  %s65 = scalar_lea.vmem %s0, 208
  %v66 = vld [vmem:[%s65] ss:$2 sm:$0xff]
  %vm67 = vcmask 523264
  %s68 = scalar_lea.vmem %s1, 104
  %69 = vst.msk [vmem:[%s68] sm:$0xff] %vm67, %v66
  %s70 = scalar_lea.vmem %s0, 224
  %v71 = vld [vmem:[%s70] ss:$2 sm:$0xff]
  %vm72 = vcmask 523264
  %s73 = scalar_lea.vmem %s1, 112
  %74 = vst.msk [vmem:[%s73] sm:$0xff] %vm72, %v71
  %s75 = scalar_lea.vmem %s0, 240
  %v76 = vld [vmem:[%s75] ss:$2 sm:$0xff]
  %vm77 = vcmask 523264
  %s78 = scalar_lea.vmem %s1, 120
  %79 = vst.msk [vmem:[%s78] sm:$0xff] %vm77, %v76
  %s80 = scalar_lea.vmem %s0, 256
  %v81 = vld [vmem:[%s80] ss:$2 sm:$0xff]
  %vm82 = vcmask 523264
  %s83 = scalar_lea.vmem %s1, 128
  %84 = vst.msk [vmem:[%s83] sm:$0xff] %vm82, %v81
  %s85 = scalar_lea.vmem %s0, 272
  %v86 = vld [vmem:[%s85] ss:$2 sm:$0xff]
  %vm87 = vcmask 523264
  %s88 = scalar_lea.vmem %s1, 136
  %89 = vst.msk [vmem:[%s88] sm:$0xff] %vm87, %v86
  %s90 = scalar_lea.vmem %s0, 288
  %v91 = vld [vmem:[%s90] ss:$2 sm:$0xff]
  %vm92 = vcmask 523264
  %s93 = scalar_lea.vmem %s1, 144
  %94 = vst.msk [vmem:[%s93] sm:$0xff] %vm92, %v91
  %s95 = scalar_lea.vmem %s0, 304
  %v96 = vld [vmem:[%s95] ss:$2 sm:$0xff]
  %vm97 = vcmask 523264
  %s98 = scalar_lea.vmem %s1, 152
  %99 = vst.msk [vmem:[%s98] sm:$0xff] %vm97, %v96
  %s100 = scalar_lea.vmem %s0, 320
  %v101 = vld [vmem:[%s100] ss:$2 sm:$0xff]
  %vm102 = vcmask 523264
  %s103 = scalar_lea.vmem %s1, 160
  %104 = vst.msk [vmem:[%s103] sm:$0xff] %vm102, %v101
  %s105 = scalar_lea.vmem %s0, 336
  %v106 = vld [vmem:[%s105] ss:$2 sm:$0xff]
  %vm107 = vcmask 523264
  %s108 = scalar_lea.vmem %s1, 168
  %109 = vst.msk [vmem:[%s108] sm:$0xff] %vm107, %v106
  %s110 = scalar_lea.vmem %s0, 352
  %v111 = vld [vmem:[%s110] ss:$2 sm:$0xff]
  %vm112 = vcmask 523264
  %s113 = scalar_lea.vmem %s1, 176
  %114 = vst.msk [vmem:[%s113] sm:$0xff] %vm112, %v111
  %s115 = scalar_lea.vmem %s0, 368
  %v116 = vld [vmem:[%s115] ss:$2 sm:$0xff]
  %vm117 = vcmask 523264
  %s118 = scalar_lea.vmem %s1, 184
  %119 = vst.msk [vmem:[%s118] sm:$0xff] %vm117, %v116
  %s120 = scalar_lea.vmem %s0, 384
  %v121 = vld [vmem:[%s120] ss:$2 sm:$0xff]
  %vm122 = vcmask 523264
  %s123 = scalar_lea.vmem %s1, 192
  %124 = vst.msk [vmem:[%s123] sm:$0xff] %vm122, %v121
  %s125 = scalar_lea.vmem %s0, 400
  %v126 = vld [vmem:[%s125] ss:$2 sm:$0xff]
  %vm127 = vcmask 523264
  %s128 = scalar_lea.vmem %s1, 200
  %129 = vst.msk [vmem:[%s128] sm:$0xff] %vm127, %v126
  %s130 = scalar_lea.vmem %s0, 416
  %v131 = vld [vmem:[%s130] ss:$2 sm:$0xff]
  %vm132 = vcmask 523264
  %s133 = scalar_lea.vmem %s1, 208
  %134 = vst.msk [vmem:[%s133] sm:$0xff] %vm132, %v131
  %s135 = scalar_lea.vmem %s0, 432
  %v136 = vld [vmem:[%s135] ss:$2 sm:$0xff]
  %vm137 = vcmask 523264
  %s138 = scalar_lea.vmem %s1, 216
  %139 = vst.msk [vmem:[%s138] sm:$0xff] %vm137, %v136
  %s140 = scalar_lea.vmem %s0, 448
  %v141 = vld [vmem:[%s140] ss:$2 sm:$0xff]
  %vm142 = vcmask 523264
  %s143 = scalar_lea.vmem %s1, 224
  %144 = vst.msk [vmem:[%s143] sm:$0xff] %vm142, %v141
  %s145 = scalar_lea.vmem %s0, 464
  %v146 = vld [vmem:[%s145] ss:$2 sm:$0xff]
  %vm147 = vcmask 523264
  %s148 = scalar_lea.vmem %s1, 232
  %149 = vst.msk [vmem:[%s148] sm:$0xff] %vm147, %v146
  %s150 = scalar_lea.vmem %s0, 480
  %v151 = vld [vmem:[%s150] ss:$2 sm:$0xff]
  %vm152 = vcmask 523264
  %s153 = scalar_lea.vmem %s1, 240
  %154 = vst.msk [vmem:[%s153] sm:$0xff] %vm152, %v151
  %s155 = scalar_lea.vmem %s0, 496
  %v156 = vld [vmem:[%s155] ss:$2 sm:$0xff]
  %vm157 = vcmask 523264
  %s158 = scalar_lea.vmem %s1, 248
  %159 = vst.msk [vmem:[%s158] sm:$0xff] %vm157, %v156
  %s160 = scalar_lea.vmem %s0, 1
  %v161 = vld [vmem:[%s160] ss:$2 sm:$0xff]
  %162 = vrot.lane.b32.xlu0 %v161, 64
  %v163 = vpop.permute.xlu0 %162
  %vm164 = vcmask 1048064
  %165 = vst.msk [vmem:[%s1] sm:$0xff] %vm164, %v163
  %s166 = scalar_lea.vmem %s0, 65
  %v167 = vld [vmem:[%s166] ss:$2 sm:$0xff]
  %168 = vrot.lane.b32.xlu0 %v167, 64
  %v169 = vpop.permute.xlu0 %168
  %vm170 = vcmask 1048064
  %s171 = scalar_lea.vmem %s1, 32
  %172 = vst.msk [vmem:[%s171] sm:$0xff] %vm170, %v169
  %s173 = scalar_lea.vmem %s0, 129
  %v174 = vld [vmem:[%s173] ss:$2 sm:$0xff]
  %175 = vrot.lane.b32.xlu0 %v174, 64
  %v176 = vpop.permute.xlu0 %175
  %vm177 = vcmask 1048064
  %s178 = scalar_lea.vmem %s1, 64
  %179 = vst.msk [vmem:[%s178] sm:$0xff] %vm177, %v176
  %s180 = scalar_lea.vmem %s0, 193
  %v181 = vld [vmem:[%s180] ss:$2 sm:$0xff]
  %182 = vrot.lane.b32.xlu0 %v181, 64
  %v183 = vpop.permute.xlu0 %182
  %vm184 = vcmask 1048064
  %s185 = scalar_lea.vmem %s1, 96
  %186 = vst.msk [vmem:[%s185] sm:$0xff] %vm184, %v183
  %s187 = scalar_lea.vmem %s0, 257
  %v188 = vld [vmem:[%s187] ss:$2 sm:$0xff]
  %189 = vrot.lane.b32.xlu0 %v188, 64
  %v190 = vpop.permute.xlu0 %189
  %vm191 = vcmask 1048064
  %s192 = scalar_lea.vmem %s1, 128
  %193 = vst.msk [vmem:[%s192] sm:$0xff] %vm191, %v190
  %s194 = scalar_lea.vmem %s0, 321
  %v195 = vld [vmem:[%s194] ss:$2 sm:$0xff]
  %196 = vrot.lane.b32.xlu0 %v195, 64
  %v197 = vpop.permute.xlu0 %196
  %vm198 = vcmask 1048064
  %s199 = scalar_lea.vmem %s1, 160
  %200 = vst.msk [vmem:[%s199] sm:$0xff] %vm198, %v197
  %s201 = scalar_lea.vmem %s0, 385
  %v202 = vld [vmem:[%s201] ss:$2 sm:$0xff]
  %203 = vrot.lane.b32.xlu0 %v202, 64
  %v204 = vpop.permute.xlu0 %203
  %vm205 = vcmask 1048064
  %s206 = scalar_lea.vmem %s1, 192
  %207 = vst.msk [vmem:[%s206] sm:$0xff] %vm205, %v204
  %s208 = scalar_lea.vmem %s0, 449
  %v209 = vld [vmem:[%s208] ss:$2 sm:$0xff]
  %210 = vrot.lane.b32.xlu0 %v209, 64
  %v211 = vpop.permute.xlu0 %210
  %vm212 = vcmask 1048064
  %s213 = scalar_lea.vmem %s1, 224
  %214 = vst.msk [vmem:[%s213] sm:$0xff] %vm212, %v211
  %s215 = scalar_lea.vmem %s0, 17
  %v216 = vld [vmem:[%s215] ss:$2 sm:$0xff]
  %217 = vrot.lane.b32.xlu0 %v216, 64
  %v218 = vpop.permute.xlu0 %217
  %vm219 = vcmask 1048064
  %s220 = scalar_lea.vmem %s1, 8
  %221 = vst.msk [vmem:[%s220] sm:$0xff] %vm219, %v218
  %s222 = scalar_lea.vmem %s0, 81
  %v223 = vld [vmem:[%s222] ss:$2 sm:$0xff]
  %224 = vrot.lane.b32.xlu0 %v223, 64
  %v225 = vpop.permute.xlu0 %224
  %vm226 = vcmask 1048064
  %s227 = scalar_lea.vmem %s1, 40
  %228 = vst.msk [vmem:[%s227] sm:$0xff] %vm226, %v225
  %s229 = scalar_lea.vmem %s0, 145
  %v230 = vld [vmem:[%s229] ss:$2 sm:$0xff]
  %231 = vrot.lane.b32.xlu0 %v230, 64
  %v232 = vpop.permute.xlu0 %231
  %vm233 = vcmask 1048064
  %s234 = scalar_lea.vmem %s1, 72
  %235 = vst.msk [vmem:[%s234] sm:$0xff] %vm233, %v232
  %s236 = scalar_lea.vmem %s0, 209
  %v237 = vld [vmem:[%s236] ss:$2 sm:$0xff]
  %238 = vrot.lane.b32.xlu0 %v237, 64
  %v239 = vpop.permute.xlu0 %238
  %vm240 = vcmask 1048064
  %s241 = scalar_lea.vmem %s1, 104
  %242 = vst.msk [vmem:[%s241] sm:$0xff] %vm240, %v239
  %s243 = scalar_lea.vmem %s0, 273
  %v244 = vld [vmem:[%s243] ss:$2 sm:$0xff]
  %245 = vrot.lane.b32.xlu0 %v244, 64
  %v246 = vpop.permute.xlu0 %245
  %vm247 = vcmask 1048064
  %s248 = scalar_lea.vmem %s1, 136
  %249 = vst.msk [vmem:[%s248] sm:$0xff] %vm247, %v246
  %s250 = scalar_lea.vmem %s0, 337
  %v251 = vld [vmem:[%s250] ss:$2 sm:$0xff]
  %252 = vrot.lane.b32.xlu0 %v251, 64
  %v253 = vpop.permute.xlu0 %252
  %vm254 = vcmask 1048064
  %s255 = scalar_lea.vmem %s1, 168
  %256 = vst.msk [vmem:[%s255] sm:$0xff] %vm254, %v253
  %s257 = scalar_lea.vmem %s0, 401
  %v258 = vld [vmem:[%s257] ss:$2 sm:$0xff]
  %259 = vrot.lane.b32.xlu0 %v258, 64
  %v260 = vpop.permute.xlu0 %259
  %vm261 = vcmask 1048064
  %s262 = scalar_lea.vmem %s1, 200
  %263 = vst.msk [vmem:[%s262] sm:$0xff] %vm261, %v260
  %s264 = scalar_lea.vmem %s0, 465
  %v265 = vld [vmem:[%s264] ss:$2 sm:$0xff]
  %266 = vrot.lane.b32.xlu0 %v265, 64
  %v267 = vpop.permute.xlu0 %266
  %vm268 = vcmask 1048064
  %s269 = scalar_lea.vmem %s1, 232
  %270 = vst.msk [vmem:[%s269] sm:$0xff] %vm268, %v267
  %s271 = scalar_lea.vmem %s0, 33
  %v272 = vld [vmem:[%s271] ss:$2 sm:$0xff]
  %273 = vrot.lane.b32.xlu0 %v272, 64
  %v274 = vpop.permute.xlu0 %273
  %vm275 = vcmask 1048064
  %s276 = scalar_lea.vmem %s1, 16
  %277 = vst.msk [vmem:[%s276] sm:$0xff] %vm275, %v274
  %s278 = scalar_lea.vmem %s0, 97
  %v279 = vld [vmem:[%s278] ss:$2 sm:$0xff]
  %280 = vrot.lane.b32.xlu0 %v279, 64
  %v281 = vpop.permute.xlu0 %280
  %vm282 = vcmask 1048064
  %s283 = scalar_lea.vmem %s1, 48
  %284 = vst.msk [vmem:[%s283] sm:$0xff] %vm282, %v281
  %s285 = scalar_lea.vmem %s0, 161
  %v286 = vld [vmem:[%s285] ss:$2 sm:$0xff]
  %287 = vrot.lane.b32.xlu0 %v286, 64
  %v288 = vpop.permute.xlu0 %287
  %vm289 = vcmask 1048064
  %s290 = scalar_lea.vmem %s1, 80
  %291 = vst.msk [vmem:[%s290] sm:$0xff] %vm289, %v288
  %s292 = scalar_lea.vmem %s0, 225
  %v293 = vld [vmem:[%s292] ss:$2 sm:$0xff]
  %294 = vrot.lane.b32.xlu0 %v293, 64
  %v295 = vpop.permute.xlu0 %294
  %vm296 = vcmask 1048064
  %s297 = scalar_lea.vmem %s1, 112
  %298 = vst.msk [vmem:[%s297] sm:$0xff] %vm296, %v295
  %s299 = scalar_lea.vmem %s0, 289
  %v300 = vld [vmem:[%s299] ss:$2 sm:$0xff]
  %301 = vrot.lane.b32.xlu0 %v300, 64
  %v302 = vpop.permute.xlu0 %301
  %vm303 = vcmask 1048064
  %s304 = scalar_lea.vmem %s1, 144
  %305 = vst.msk [vmem:[%s304] sm:$0xff] %vm303, %v302
  %s306 = scalar_lea.vmem %s0, 353
  %v307 = vld [vmem:[%s306] ss:$2 sm:$0xff]
  %308 = vrot.lane.b32.xlu0 %v307, 64
  %v309 = vpop.permute.xlu0 %308
  %vm310 = vcmask 1048064
  %s311 = scalar_lea.vmem %s1, 176
  %312 = vst.msk [vmem:[%s311] sm:$0xff] %vm310, %v309
  %s313 = scalar_lea.vmem %s0, 417
  %v314 = vld [vmem:[%s313] ss:$2 sm:$0xff]
  %315 = vrot.lane.b32.xlu0 %v314, 64
  %v316 = vpop.permute.xlu0 %315
  %vm317 = vcmask 1048064
  %s318 = scalar_lea.vmem %s1, 208
  %319 = vst.msk [vmem:[%s318] sm:$0xff] %vm317, %v316
  %s320 = scalar_lea.vmem %s0, 481
  %v321 = vld [vmem:[%s320] ss:$2 sm:$0xff]
  %322 = vrot.lane.b32.xlu0 %v321, 64
  %v323 = vpop.permute.xlu0 %322
  %vm324 = vcmask 1048064
  %s325 = scalar_lea.vmem %s1, 240
  %326 = vst.msk [vmem:[%s325] sm:$0xff] %vm324, %v323
  %s327 = scalar_lea.vmem %s0, 49
  %v328 = vld [vmem:[%s327] ss:$2 sm:$0xff]
  %329 = vrot.lane.b32.xlu0 %v328, 64
  %v330 = vpop.permute.xlu0 %329
  %vm331 = vcmask 1048064
  %s332 = scalar_lea.vmem %s1, 24
  %333 = vst.msk [vmem:[%s332] sm:$0xff] %vm331, %v330
  %s334 = scalar_lea.vmem %s0, 113
  %v335 = vld [vmem:[%s334] ss:$2 sm:$0xff]
  %336 = vrot.lane.b32.xlu0 %v335, 64
  %v337 = vpop.permute.xlu0 %336
  %vm338 = vcmask 1048064
  %s339 = scalar_lea.vmem %s1, 56
  %340 = vst.msk [vmem:[%s339] sm:$0xff] %vm338, %v337
  %s341 = scalar_lea.vmem %s0, 177
  %v342 = vld [vmem:[%s341] ss:$2 sm:$0xff]
  %343 = vrot.lane.b32.xlu0 %v342, 64
  %v344 = vpop.permute.xlu0 %343
  %vm345 = vcmask 1048064
  %s346 = scalar_lea.vmem %s1, 88
  %347 = vst.msk [vmem:[%s346] sm:$0xff] %vm345, %v344
  %s348 = scalar_lea.vmem %s0, 241
  %v349 = vld [vmem:[%s348] ss:$2 sm:$0xff]
  %350 = vrot.lane.b32.xlu0 %v349, 64
  %v351 = vpop.permute.xlu0 %350
  %vm352 = vcmask 1048064
  %s353 = scalar_lea.vmem %s1, 120
  %354 = vst.msk [vmem:[%s353] sm:$0xff] %vm352, %v351
  %s355 = scalar_lea.vmem %s0, 305
  %v356 = vld [vmem:[%s355] ss:$2 sm:$0xff]
  %357 = vrot.lane.b32.xlu0 %v356, 64
  %v358 = vpop.permute.xlu0 %357
  %vm359 = vcmask 1048064
  %s360 = scalar_lea.vmem %s1, 152
  %361 = vst.msk [vmem:[%s360] sm:$0xff] %vm359, %v358
  %s362 = scalar_lea.vmem %s0, 369
  %v363 = vld [vmem:[%s362] ss:$2 sm:$0xff]
  %364 = vrot.lane.b32.xlu0 %v363, 64
  %v365 = vpop.permute.xlu0 %364
  %vm366 = vcmask 1048064
  %s367 = scalar_lea.vmem %s1, 184
  %368 = vst.msk [vmem:[%s367] sm:$0xff] %vm366, %v365
  %s369 = scalar_lea.vmem %s0, 433
  %v370 = vld [vmem:[%s369] ss:$2 sm:$0xff]
  %371 = vrot.lane.b32.xlu0 %v370, 64
  %v372 = vpop.permute.xlu0 %371
  %vm373 = vcmask 1048064
  %s374 = scalar_lea.vmem %s1, 216
  %375 = vst.msk [vmem:[%s374] sm:$0xff] %vm373, %v372
  %s376 = scalar_lea.vmem %s0, 497
  %v377 = vld [vmem:[%s376] ss:$2 sm:$0xff]
  %378 = vrot.lane.b32.xlu0 %v377, 64
  %v379 = vpop.permute.xlu0 %378
  %vm380 = vcmask 1048064
  %s381 = scalar_lea.vmem %s1, 248
  %382 = vst.msk [vmem:[%s381] sm:$0xff] %vm380, %v379

// kernel: uacanet_forward.18
$region0: #{uacanet_forward.18}
  #allocation0 [shape = 'u32[]', space=smem, size = 0x4, offset = 0x4, fixed_abs, tag = 'smem constant byte address 0x4 - core index']
  #allocation1 [shape = 'u32[144,128]{1,0:T(1,128)}', space=vmem, size = 0x12000, scoped, tag = 'internal scratch']
  %s0 = inlined_call_operand.vmem [shape: bf16[128,576], index: 0, kind: input, shape index: {}]
  %s1 = inlined_call_operand.vmem [shape: bf16[576,128], index: 1, kind: input, shape index: {}]
  %s2 = inlined_call_operand.vmem [shape: f32[1,128], index: 2, kind: input, shape index: {}]
  %s3 = inlined_call_operand.vmem [shape: bf16[128,128], index: 3, kind: input, shape index: {}]
  %s4 = inlined_call_operand.vmem [shape: f32[1,128], index: 4, kind: input, shape index: {}]
  %s5 = inlined_call_operand.hbm [shape: bf16[128,128], index: 5, kind: output, shape index: {0}]
  %s6 = inlined_call_operand.vmem [shape: bf16[128,128], index: 6, kind: output, shape index: {1}]
  %7 = xla_tuple %s5, %s6
  %s8 = sld [smem:[#allocation0]]
  $region38: #{uacanet_forward.18} parent=0
    _
  %s10 = ssub.s32 1, %s8
  %s11 = scalar_select 0, %s10, %s8
  $region1: #{uacanet_forward.18} parent=0
    #allocation2 [shape = 'u8[32768]{0}', space=vmem, size = 0x8000, scoped, tag = 'output window, operand 0, single buffered']
    #allocation3 [shape = 's32[1]{0}', space=sflag, size = 0x4, scoped, tag = 'scoped memory for uacanet_forward.18']
    %12 = vsyncpa [#allocation3], 0
    // Predicated region
    $region2: #{uacanet_forward.18} parent=1 // pred_check
      _
    $region3: #{uacanet_forward.18} parent=1 // pred_check_branch
      %14 = sbr.rel (0) target = $region5
    $region4: #{uacanet_forward.18} parent=1 // pred_region
      _
    $region5: #{uacanet_forward.18} parent=1 // pred_fallthru
      _
    // Predicated region
    $region6: #{uacanet_forward.18} parent=1 // pred_check
      _
    $region7: #{uacanet_forward.18} parent=1 // pred_check_branch
      %16 = sbr.rel (0) target = $region9
    $region8: #{uacanet_forward.18} parent=1 // pred_region
      _
    $region9: #{uacanet_forward.18} parent=1 // pred_fallthru
      _
    // Predicated region
    $region10: #{uacanet_forward.18} parent=1 // pred_check
      _
    $region11: #{uacanet_forward.18} parent=1 // pred_check_branch
      %18 = sbr.rel (0) target = $region13
    $region12: #{uacanet_forward.18} parent=1 // pred_region
      _
    $region13: #{uacanet_forward.18} parent=1 // pred_fallthru
      _
    // Predicated region
    $region14: #{uacanet_forward.18} parent=1 // pred_check
      _
    $region15: #{uacanet_forward.18} parent=1 // pred_check_branch
      %20 = sbr.rel (0) target = $region17
    $region16: #{uacanet_forward.18} parent=1 // pred_region
      _
    $region17: #{uacanet_forward.18} parent=1 // pred_fallthru
      _
    // Predicated region
    $region18: #{uacanet_forward.18} parent=1 // pred_check
      _
    $region19: #{uacanet_forward.18} parent=1 // pred_check_branch
      %22 = sbr.rel (0) target = $region21
    $region20: #{uacanet_forward.18} parent=1 // pred_region
      _
    $region21: #{uacanet_forward.18} parent=1 // pred_fallthru
      _
    %v24 = vld [vmem:[%s0] sm:$0xff]
    %v25 = vld [vmem:[%s0 + $0x8] sm:$0xff]
    %v26 = vld [vmem:[%s0 + $0x10] sm:$0xf]
    %v27 = vld [vmem:[%s0 + $0x14] sm:$0xff]
    %v28 = vld [vmem:[%s0 + $0x1c] sm:$0xff]
    %v29 = vld [vmem:[%s0 + $0x24] sm:$0xf]
    %v30 = vld [vmem:[%s0 + $0x28] sm:$0xff]
    %v31 = vld [vmem:[%s0 + $0x30] sm:$0xff]
    %v32 = vld [vmem:[%s0 + $0x38] sm:$0xf]
    %v33 = vld [vmem:[%s0 + $0x3c] sm:$0xff]
    %v34 = vld [vmem:[%s0 + $0x44] sm:$0xff]
    %v35 = vld [vmem:[%s0 + $0x4c] sm:$0xf]
    %v36 = vld [vmem:[%s0 + $0x50] sm:$0xff]
    %v37 = vld [vmem:[%s0 + $0x58] sm:$0xff]
    %v38 = vld [vmem:[%s0 + $0x60] sm:$0xf]
    %v39 = vld [vmem:[%s0 + $0x64] sm:$0xff]
    %v40 = vld [vmem:[%s0 + $0x6c] sm:$0xff]
    %v41 = vld [vmem:[%s0 + $0x74] sm:$0xf]
    %v42 = vld [vmem:[%s0 + $0x78] sm:$0xff]
    %v43 = vld [vmem:[%s0 + $0x80] sm:$0xff]
    %v44 = vld [vmem:[%s0 + $0x88] sm:$0xf]
    %v45 = vld [vmem:[%s0 + $0x8c] sm:$0xff]
    %v46 = vld [vmem:[%s0 + $0x94] sm:$0xff]
    %v47 = vld [vmem:[%s0 + $0x9c] sm:$0xf]
    %v48 = vld [vmem:[%s0 + $0xa0] sm:$0xff]
    %v49 = vld [vmem:[%s0 + $0xa8] sm:$0xff]
    %v50 = vld [vmem:[%s0 + $0xb0] sm:$0xf]
    %v51 = vld [vmem:[%s0 + $0xb4] sm:$0xff]
    %v52 = vld [vmem:[%s0 + $0xbc] sm:$0xff]
    %v53 = vld [vmem:[%s0 + $0xc4] sm:$0xf]
    %v54 = vld [vmem:[%s0 + $0xc8] sm:$0xff]
    %v55 = vld [vmem:[%s0 + $0xd0] sm:$0xff]
    %v56 = vld [vmem:[%s0 + $0xd8] sm:$0xf]
    %v57 = vld [vmem:[%s0 + $0xdc] sm:$0xff]
    %v58 = vld [vmem:[%s0 + $0xe4] sm:$0xff]
    %v59 = vld [vmem:[%s0 + $0xec] sm:$0xf]
    %v60 = vld [vmem:[%s0 + $0xf0] sm:$0xff]
    %v61 = vld [vmem:[%s0 + $0xf8] sm:$0xff]
    %v62 = vld [vmem:[%s0 + $0x100] sm:$0xf]
    %v63 = vld [vmem:[%s0 + $0x104] sm:$0xff]
    %v64 = vld [vmem:[%s0 + $0x10c] sm:$0xff]
    %v65 = vld [vmem:[%s0 + $0x114] sm:$0xf]
    %v66 = vld [vmem:[%s0 + $0x118] sm:$0xff]
    %v67 = vld [vmem:[%s0 + $0x120] sm:$0xff]
    %v68 = vld [vmem:[%s0 + $0x128] sm:$0xf]
    %v69 = vld [vmem:[%s0 + $0x12c] sm:$0xff]
    %v70 = vld [vmem:[%s0 + $0x134] sm:$0xff]
    %v71 = vld [vmem:[%s0 + $0x13c] sm:$0xf]
    %v72 = vld [vmem:[%s1] sm:$0xf]
    %v73 = vld [vmem:[%s1 + $0x4] sm:$0xf]
    %v74 = vld [vmem:[%s1 + $0x8] sm:$0xf]
    %v75 = vld [vmem:[%s1 + $0xc] sm:$0xf]
    %v76 = vld [vmem:[%s1 + $0x10] sm:$0xf]
    %v77 = vld [vmem:[%s1 + $0x14] sm:$0xf]
    %v78 = vld [vmem:[%s1 + $0x18] sm:$0xf]
    %v79 = vld [vmem:[%s1 + $0x1c] sm:$0xf]
    %v80 = vld [vmem:[%s1 + $0x20] sm:$0xf]
    %v81 = vld [vmem:[%s1 + $0x24] sm:$0xf]
    %v82 = vld [vmem:[%s1 + $0x28] sm:$0xf]
    %v83 = vld [vmem:[%s1 + $0x2c] sm:$0xf]
    %v84 = vld [vmem:[%s1 + $0x30] sm:$0xf]
    %v85 = vld [vmem:[%s1 + $0x34] sm:$0xf]
    %v86 = vld [vmem:[%s1 + $0x38] sm:$0xf]
    %v87 = vld [vmem:[%s1 + $0x3c] sm:$0xf]
    %v88 = vld [vmem:[%s1 + $0x40] sm:$0xf]
    %v89 = vld [vmem:[%s1 + $0x44] sm:$0xf]
    %v90 = vld [vmem:[%s1 + $0x48] sm:$0xf]
    %v91 = vld [vmem:[%s1 + $0x4c] sm:$0xf]
    %v92 = vld [vmem:[%s1 + $0x50] sm:$0xf]
    %v93 = vld [vmem:[%s1 + $0x54] sm:$0xf]
    %v94 = vld [vmem:[%s1 + $0x58] sm:$0xf]
    %v95 = vld [vmem:[%s1 + $0x5c] sm:$0xf]
    %v96 = vld [vmem:[%s1 + $0x60] sm:$0xf]
    %v97 = vld [vmem:[%s1 + $0x64] sm:$0xf]
    %v98 = vld [vmem:[%s1 + $0x68] sm:$0xf]
    %v99 = vld [vmem:[%s1 + $0x6c] sm:$0xf]
    %v100 = vld [vmem:[%s1 + $0x70] sm:$0xf]
    %v101 = vld [vmem:[%s1 + $0x74] sm:$0xf]
    %v102 = vld [vmem:[%s1 + $0x78] sm:$0xf]
    %v103 = vld [vmem:[%s1 + $0x7c] sm:$0xf]
    %v104 = vld [vmem:[%s1 + $0x80] sm:$0xf]
    %v105 = vld [vmem:[%s1 + $0x84] sm:$0xf]
    %v106 = vld [vmem:[%s1 + $0x88] sm:$0xf]
    %v107 = vld [vmem:[%s1 + $0x8c] sm:$0xf]
    %v108 = vld [vmem:[%s1 + $0x90] sm:$0xf]
    %v109 = vld [vmem:[%s1 + $0x94] sm:$0xf]
    %v110 = vld [vmem:[%s1 + $0x98] sm:$0xf]
    %v111 = vld [vmem:[%s1 + $0x9c] sm:$0xf]
    %v112 = vld [vmem:[%s1 + $0xa0] sm:$0xf]
    %v113 = vld [vmem:[%s1 + $0xa4] sm:$0xf]
    %v114 = vld [vmem:[%s1 + $0xa8] sm:$0xf]
    %v115 = vld [vmem:[%s1 + $0xac] sm:$0xf]
    %v116 = vld [vmem:[%s1 + $0xb0] sm:$0xf]
    %v117 = vld [vmem:[%s1 + $0xb4] sm:$0xf]
    %v118 = vld [vmem:[%s1 + $0xb8] sm:$0xf]
    %v119 = vld [vmem:[%s1 + $0xbc] sm:$0xf]
    %v120 = vld [vmem:[%s1 + $0xc0] sm:$0xf]
    %v121 = vld [vmem:[%s1 + $0xc4] sm:$0xf]
    %v122 = vld [vmem:[%s1 + $0xc8] sm:$0xf]
    %v123 = vld [vmem:[%s1 + $0xcc] sm:$0xf]
    %v124 = vld [vmem:[%s1 + $0xd0] sm:$0xf]
    %v125 = vld [vmem:[%s1 + $0xd4] sm:$0xf]
    %v126 = vld [vmem:[%s1 + $0xd8] sm:$0xf]
    %v127 = vld [vmem:[%s1 + $0xdc] sm:$0xf]
    %v128 = vld [vmem:[%s1 + $0xe0] sm:$0xf]
    %v129 = vld [vmem:[%s1 + $0xe4] sm:$0xf]
    %v130 = vld [vmem:[%s1 + $0xe8] sm:$0xf]
    %v131 = vld [vmem:[%s1 + $0xec] sm:$0xf]
    %v132 = vld [vmem:[%s1 + $0xf0] sm:$0xf]
    %v133 = vld [vmem:[%s1 + $0xf4] sm:$0xf]
    %v134 = vld [vmem:[%s1 + $0xf8] sm:$0xf]
    %v135 = vld [vmem:[%s1 + $0xfc] sm:$0xf]
    %v136 = vld [vmem:[%s1 + $0x100] sm:$0xf]
    %v137 = vld [vmem:[%s1 + $0x104] sm:$0xf]
    %v138 = vld [vmem:[%s1 + $0x108] sm:$0xf]
    %v139 = vld [vmem:[%s1 + $0x10c] sm:$0xf]
    %v140 = vld [vmem:[%s1 + $0x110] sm:$0xf]
    %v141 = vld [vmem:[%s1 + $0x114] sm:$0xf]
    %v142 = vld [vmem:[%s1 + $0x118] sm:$0xf]
    %v143 = vld [vmem:[%s1 + $0x11c] sm:$0xf]
    %v144 = vld [vmem:[%s2] sm:$0x1]
    %v146 = vlaneseq
    %v147 = vshrl.u32 %v146, 7
    %v148 = vsub.s32 0, %v147
    %v149 = vrot.slane %v144, %v148
    %v199 = vunpack.c.l.b16 %v24
    %v200 = vunpack.c.h.b16 %v24
    %v201 = vunpack.c.l.b16 %v25
    %v202 = vunpack.c.h.b16 %v25
    %v203 = vunpack.c.l.b16 %v26
    %v204 = vunpack.c.l.b16 %v27
    %v205 = vunpack.c.h.b16 %v27
    %v206 = vunpack.c.l.b16 %v28
    %v207 = vunpack.c.h.b16 %v28
    %v208 = vunpack.c.l.b16 %v29
    %v209 = vunpack.c.l.b16 %v30
    %v210 = vunpack.c.h.b16 %v30
    %v211 = vunpack.c.l.b16 %v31
    %v212 = vunpack.c.h.b16 %v31
    %v213 = vunpack.c.l.b16 %v32
    %v214 = vunpack.c.l.b16 %v33
    %v215 = vunpack.c.h.b16 %v33
    %v216 = vunpack.c.l.b16 %v34
    %v217 = vunpack.c.h.b16 %v34
    %v218 = vunpack.c.l.b16 %v35
    %v219 = vunpack.c.l.b16 %v36
    %v220 = vunpack.c.h.b16 %v36
    %v221 = vunpack.c.l.b16 %v37
    %v222 = vunpack.c.h.b16 %v37
    %v223 = vunpack.c.l.b16 %v38
    %v224 = vunpack.c.l.b16 %v39
    %v225 = vunpack.c.h.b16 %v39
    %v226 = vunpack.c.l.b16 %v40
    %v227 = vunpack.c.h.b16 %v40
    %v228 = vunpack.c.l.b16 %v41
    %v229 = vunpack.c.l.b16 %v42
    %v230 = vunpack.c.h.b16 %v42
    %v231 = vunpack.c.l.b16 %v43
    %v232 = vunpack.c.h.b16 %v43
    %v233 = vunpack.c.l.b16 %v44
    %v234 = vunpack.c.l.b16 %v45
    %v235 = vunpack.c.h.b16 %v45
    %v236 = vunpack.c.l.b16 %v46
    %v237 = vunpack.c.h.b16 %v46
    %v238 = vunpack.c.l.b16 %v47
    %v239 = vunpack.c.l.b16 %v48
    %v240 = vunpack.c.h.b16 %v48
    %v241 = vunpack.c.l.b16 %v49
    %v242 = vunpack.c.h.b16 %v49
    %v243 = vunpack.c.l.b16 %v50
    %v244 = vunpack.c.l.b16 %v51
    %v245 = vunpack.c.h.b16 %v51
    %v246 = vunpack.c.l.b16 %v52
    %v247 = vunpack.c.h.b16 %v52
    %v248 = vunpack.c.l.b16 %v53
    %v249 = vunpack.c.l.b16 %v54
    %v250 = vunpack.c.h.b16 %v54
    %v251 = vunpack.c.l.b16 %v55
    %v252 = vunpack.c.h.b16 %v55
    %v253 = vunpack.c.l.b16 %v56
    %v254 = vunpack.c.l.b16 %v57
    %v255 = vunpack.c.h.b16 %v57
    %v256 = vunpack.c.l.b16 %v58
    %v257 = vunpack.c.h.b16 %v58
    %v258 = vunpack.c.l.b16 %v59
    %v259 = vunpack.c.l.b16 %v60
    %v260 = vunpack.c.h.b16 %v60
    %v261 = vunpack.c.l.b16 %v61
    %v262 = vunpack.c.h.b16 %v61
    %v263 = vunpack.c.l.b16 %v62
    %v264 = vunpack.c.l.b16 %v63
    %v265 = vunpack.c.h.b16 %v63
    %v266 = vunpack.c.l.b16 %v64
    %v267 = vunpack.c.h.b16 %v64
    %v268 = vunpack.c.l.b16 %v65
    %v269 = vunpack.c.l.b16 %v66
    %v270 = vunpack.c.h.b16 %v66
    %v271 = vunpack.c.l.b16 %v67
    %v272 = vunpack.c.h.b16 %v67
    %v273 = vunpack.c.l.b16 %v68
    %v274 = vunpack.c.l.b16 %v69
    %v275 = vunpack.c.h.b16 %v69
    %v276 = vunpack.c.l.b16 %v70
    %v277 = vunpack.c.h.b16 %v70
    %v278 = vunpack.c.l.b16 %v71
    %v279 = vpack.c.b16 %v204, %v199
    %v280 = vpack.c.b16 %v205, %v200
    %v281 = vpack.c.b16 %v206, %v201
    %v282 = vpack.c.b16 %v207, %v202
    %v283 = vpack.c.b16 %v208, %v203
    %v284 = vpack.c.b16 %v214, %v209
    %v285 = vpack.c.b16 %v215, %v210
    %v286 = vpack.c.b16 %v216, %v211
    %v287 = vpack.c.b16 %v217, %v212
    %v288 = vpack.c.b16 %v218, %v213
    %v289 = vpack.c.b16 %v224, %v219
    %v290 = vpack.c.b16 %v225, %v220
    %v291 = vpack.c.b16 %v226, %v221
    %v292 = vpack.c.b16 %v227, %v222
    %v293 = vpack.c.b16 %v228, %v223
    %v294 = vpack.c.b16 %v234, %v229
    %v295 = vpack.c.b16 %v235, %v230
    %v296 = vpack.c.b16 %v236, %v231
    %v297 = vpack.c.b16 %v237, %v232
    %v298 = vpack.c.b16 %v238, %v233
    %v299 = vpack.c.b16 %v244, %v239
    %v300 = vpack.c.b16 %v245, %v240
    %v301 = vpack.c.b16 %v246, %v241
    %v302 = vpack.c.b16 %v247, %v242
    %v303 = vpack.c.b16 %v248, %v243
    %v304 = vpack.c.b16 %v254, %v249
    %v305 = vpack.c.b16 %v255, %v250
    %v306 = vpack.c.b16 %v256, %v251
    %v307 = vpack.c.b16 %v257, %v252
    %v308 = vpack.c.b16 %v258, %v253
    %v309 = vpack.c.b16 %v264, %v259
    %v310 = vpack.c.b16 %v265, %v260
    %v311 = vpack.c.b16 %v266, %v261
    %v312 = vpack.c.b16 %v267, %v262
    %v313 = vpack.c.b16 %v268, %v263
    %v314 = vpack.c.b16 %v274, %v269
    %v315 = vpack.c.b16 %v275, %v270
    %v316 = vpack.c.b16 %v276, %v271
    %v317 = vpack.c.b16 %v277, %v272
    %v318 = vpack.c.b16 %v278, %v273
    %v423 = vunpack.c.l.b16 %v72
    %v424 = vunpack.c.l.b16 %v73
    %v425 = vunpack.c.l.b16 %v74
    %v426 = vunpack.c.l.b16 %v75
    %v427 = vunpack.c.l.b16 %v76
    %v428 = vunpack.c.l.b16 %v77
    %v429 = vunpack.c.l.b16 %v78
    %v430 = vunpack.c.l.b16 %v79
    %v431 = vunpack.c.l.b16 %v80
    %v432 = vunpack.c.l.b16 %v81
    %v433 = vunpack.c.l.b16 %v82
    %v434 = vunpack.c.l.b16 %v83
    %v435 = vunpack.c.l.b16 %v84
    %v436 = vunpack.c.l.b16 %v85
    %v437 = vunpack.c.l.b16 %v86
    %v438 = vunpack.c.l.b16 %v87
    %v439 = vunpack.c.l.b16 %v88
    %v440 = vunpack.c.l.b16 %v89
    %v441 = vunpack.c.l.b16 %v90
    %v442 = vunpack.c.l.b16 %v91
    %v443 = vunpack.c.l.b16 %v92
    %v444 = vunpack.c.l.b16 %v93
    %v445 = vunpack.c.l.b16 %v94
    %v446 = vunpack.c.l.b16 %v95
    %v447 = vunpack.c.l.b16 %v96
    %v448 = vunpack.c.l.b16 %v97
    %v449 = vunpack.c.l.b16 %v98
    %v450 = vunpack.c.l.b16 %v99
    %v451 = vunpack.c.l.b16 %v100
    %v452 = vunpack.c.l.b16 %v101
    %v453 = vunpack.c.l.b16 %v102
    %v454 = vunpack.c.l.b16 %v103
    %v455 = vunpack.c.l.b16 %v104
    %v456 = vunpack.c.l.b16 %v105
    %v457 = vunpack.c.l.b16 %v106
    %v458 = vunpack.c.l.b16 %v107
    %v459 = vunpack.c.l.b16 %v108
    %v460 = vunpack.c.l.b16 %v109
    %v461 = vunpack.c.l.b16 %v110
    %v462 = vunpack.c.l.b16 %v111
    %v463 = vunpack.c.l.b16 %v112
    %v464 = vunpack.c.l.b16 %v113
    %v465 = vunpack.c.l.b16 %v114
    %v466 = vunpack.c.l.b16 %v115
    %v467 = vunpack.c.l.b16 %v116
    %v468 = vunpack.c.l.b16 %v117
    %v469 = vunpack.c.l.b16 %v118
    %v470 = vunpack.c.l.b16 %v119
    %v471 = vunpack.c.l.b16 %v120
    %v472 = vunpack.c.l.b16 %v121
    %v473 = vunpack.c.l.b16 %v122
    %v474 = vunpack.c.l.b16 %v123
    %v475 = vunpack.c.l.b16 %v124
    %v476 = vunpack.c.l.b16 %v125
    %v477 = vunpack.c.l.b16 %v126
    %v478 = vunpack.c.l.b16 %v127
    %v479 = vunpack.c.l.b16 %v128
    %v480 = vunpack.c.l.b16 %v129
    %v481 = vunpack.c.l.b16 %v130
    %v482 = vunpack.c.l.b16 %v131
    %v483 = vunpack.c.l.b16 %v132
    %v484 = vunpack.c.l.b16 %v133
    %v485 = vunpack.c.l.b16 %v134
    %v486 = vunpack.c.l.b16 %v135
    %v487 = vunpack.c.l.b16 %v136
    %v488 = vunpack.c.l.b16 %v137
    %v489 = vunpack.c.l.b16 %v138
    %v490 = vunpack.c.l.b16 %v139
    %v491 = vunpack.c.l.b16 %v140
    %v492 = vunpack.c.l.b16 %v141
    %v493 = vunpack.c.l.b16 %v142
    %v494 = vunpack.c.l.b16 %v143
    %v495 = vpack.c.b16 %v424, %v423
    %v496 = vpack.c.b16 %v426, %v425
    %v497 = vpack.c.b16 %v428, %v427
    %v498 = vpack.c.b16 %v430, %v429
    %v499 = vpack.c.b16 %v432, %v431
    %v500 = vpack.c.b16 %v434, %v433
    %v501 = vpack.c.b16 %v436, %v435
    %v502 = vpack.c.b16 %v438, %v437
    %v503 = vpack.c.b16 %v440, %v439
    %v504 = vpack.c.b16 %v442, %v441
    %v505 = vpack.c.b16 %v444, %v443
    %v506 = vpack.c.b16 %v446, %v445
    %v507 = vpack.c.b16 %v448, %v447
    %v508 = vpack.c.b16 %v450, %v449
    %v509 = vpack.c.b16 %v452, %v451
    %v510 = vpack.c.b16 %v454, %v453
    %v511 = vpack.c.b16 %v456, %v455
    %v512 = vpack.c.b16 %v458, %v457
    %v513 = vpack.c.b16 %v460, %v459
    %v514 = vpack.c.b16 %v462, %v461
    %v515 = vpack.c.b16 %v464, %v463
    %v516 = vpack.c.b16 %v466, %v465
    %v517 = vpack.c.b16 %v468, %v467
    %v518 = vpack.c.b16 %v470, %v469
    %v519 = vpack.c.b16 %v472, %v471
    %v520 = vpack.c.b16 %v474, %v473
    %v521 = vpack.c.b16 %v476, %v475
    %v522 = vpack.c.b16 %v478, %v477
    %v523 = vpack.c.b16 %v480, %v479
    %v524 = vpack.c.b16 %v482, %v481
    %v525 = vpack.c.b16 %v484, %v483
    %v526 = vpack.c.b16 %v486, %v485
    %v527 = vpack.c.b16 %v488, %v487
    %v528 = vpack.c.b16 %v490, %v489
    %v529 = vpack.c.b16 %v492, %v491
    %v530 = vpack.c.b16 %v494, %v493
    %vm567 = vcmask 523264
    %v569 = vsel %vm567, %v283, 0
    %v572 = vsel %vm567, %v288, 0
    %v575 = vsel %vm567, %v293, 0
    %v578 = vsel %vm567, %v298, 0
    %v581 = vsel %vm567, %v303, 0
    %v584 = vsel %vm567, %v308, 0
    %v587 = vsel %vm567, %v313, 0
    %v590 = vsel %vm567, %v318, 0
    %592 = vmatprep.subr.bf16.mxu0 0
    %593 = vmatpush1.bf16.msra.mxu0 %v502
    %594 = vmatprep.subr.bf16.mxu0 0
    %595 = vmatpush1.bf16.msra.mxu0 %v501
    %596 = vmatprep.subr.bf16.mxu0 0
    %597 = vmatpush1.bf16.msra.mxu0 %v500
    %598 = vmatprep.subr.bf16.mxu0 0
    %599 = vmatpush1.bf16.msra.mxu0 %v499
    %600 = vmatprep.subr.bf16.mxu0 0
    %601 = vmatpush1.bf16.msra.mxu0 %v498
    %602 = vmatprep.subr.bf16.mxu0 0
    %603 = vmatpush1.bf16.msra.mxu0 %v497
    %604 = vmatprep.subr.bf16.mxu0 0
    %605 = vmatpush1.bf16.msra.mxu0 %v496
    %606 = vmatprep.subr.bf16.mxu0 0
    %607 = vmatpush1.bf16.msra.mxu0 %v495
    %608 = vmatprep.subr.bf16.mxu0 0
    %609 = vmatpush2.bf16.msra.mxu0 %v510
    %610 = vmatprep.subr.bf16.mxu0 0
    %611 = vmatpush2.bf16.msra.mxu0 %v509
    %612 = vmatprep.subr.bf16.mxu0 0
    %613 = vmatpush2.bf16.msra.mxu0 %v508
    %614 = vmatprep.subr.bf16.mxu0 0
    %615 = vmatpush2.bf16.msra.mxu0 %v507
    %616 = vmatprep.subr.bf16.mxu0 0
    %617 = vmatpush2.bf16.msra.mxu0 %v506
    %618 = vmatprep.subr.bf16.mxu0 0
    %619 = vmatpush2.bf16.msra.mxu0 %v505
    %620 = vmatprep.subr.bf16.mxu0 0
    %621 = vmatpush2.bf16.msra.mxu0 %v504
    %622 = vmatprep.subr.bf16.mxu0 0
    %623 = vmatpush2.bf16.msra.mxu0 %v503
    %624 = vmatprep.mubr.bf16.mxu0 %v280
    %625 = vmatmul.mubr.bf16.gmra.mxu0 %v279
    %v626 = vpop.f32.mrf.mxu0
    %v627 = vadd.f32 %v149, %v626
    %v628 = vpop.f32.mrf.mxu0
    %v629 = vpop.f32.mrf.mxu0
    %v630 = vadd.f32 %v149, %v629
    %v631 = vpop.f32.mrf.mxu0
    %632 = vmatprep.mubr.bf16.mxu0 %v285
    %633 = vmatmul.mubr.bf16.gmra.mxu0 %v284
    %v634 = vpop.f32.mrf.mxu0
    %v635 = vadd.f32 %v149, %v634
    %v636 = vpop.f32.mrf.mxu0
    %v637 = vpop.f32.mrf.mxu0
    %v638 = vadd.f32 %v149, %v637
    %v639 = vpop.f32.mrf.mxu0
    %640 = vmatprep.mubr.bf16.mxu0 %v290
    %641 = vmatmul.mubr.bf16.gmra.mxu0 %v289
    %v642 = vpop.f32.mrf.mxu0
    %v643 = vadd.f32 %v149, %v642
    %v644 = vpop.f32.mrf.mxu0
    %v645 = vpop.f32.mrf.mxu0
    %v646 = vadd.f32 %v149, %v645
    %v647 = vpop.f32.mrf.mxu0
    %648 = vmatprep.mubr.bf16.mxu0 %v295
    %649 = vmatmul.mubr.bf16.gmra.mxu0 %v294
    %v650 = vpop.f32.mrf.mxu0
    %v651 = vadd.f32 %v149, %v650
    %v652 = vpop.f32.mrf.mxu0
    %v653 = vpop.f32.mrf.mxu0
    %v654 = vadd.f32 %v149, %v653
    %v655 = vpop.f32.mrf.mxu0
    %656 = vmatprep.mubr.bf16.mxu0 %v300
    %657 = vmatmul.mubr.bf16.gmra.mxu0 %v299
    %v658 = vpop.f32.mrf.mxu0
    %v659 = vadd.f32 %v149, %v658
    %v660 = vpop.f32.mrf.mxu0
    %v661 = vpop.f32.mrf.mxu0
    %v662 = vadd.f32 %v149, %v661
    %v663 = vpop.f32.mrf.mxu0
    %664 = vmatprep.mubr.bf16.mxu0 %v305
    %665 = vmatmul.mubr.bf16.gmra.mxu0 %v304
    %v666 = vpop.f32.mrf.mxu0
    %v667 = vadd.f32 %v149, %v666
    %v668 = vpop.f32.mrf.mxu0
    %v669 = vpop.f32.mrf.mxu0
    %v670 = vadd.f32 %v149, %v669
    %v671 = vpop.f32.mrf.mxu0
    %672 = vmatprep.mubr.bf16.mxu0 %v310
    %673 = vmatmul.mubr.bf16.gmra.mxu0 %v309
    %v674 = vpop.f32.mrf.mxu0
    %v675 = vadd.f32 %v149, %v674
    %v676 = vpop.f32.mrf.mxu0
    %v677 = vpop.f32.mrf.mxu0
    %v678 = vadd.f32 %v149, %v677
    %v679 = vpop.f32.mrf.mxu0
    %680 = vmatprep.mubr.bf16.mxu0 %v315
    %681 = vmatmul.mubr.bf16.gmra.mxu0 %v314
    %v682 = vpop.f32.mrf.mxu0
    %v683 = vadd.f32 %v149, %v682
    %v684 = vpop.f32.mrf.mxu0
    %v685 = vpop.f32.mrf.mxu0
    %v686 = vadd.f32 %v149, %v685
    %v687 = vpop.f32.mrf.mxu0
    %688 = vdwg.mxu0
    %689 = vmatprep.subr.bf16.mxu0 0
    %690 = vmatpush1.bf16.msra.mxu0 %v518
    %691 = vmatprep.subr.bf16.mxu0 0
    %692 = vmatpush1.bf16.msra.mxu0 %v517
    %693 = vmatprep.subr.bf16.mxu0 0
    %694 = vmatpush1.bf16.msra.mxu0 %v516
    %695 = vmatprep.subr.bf16.mxu0 0
    %696 = vmatpush1.bf16.msra.mxu0 %v515
    %697 = vmatprep.subr.bf16.mxu0 0
    %698 = vmatpush1.bf16.msra.mxu0 %v514
    %699 = vmatprep.subr.bf16.mxu0 0
    %700 = vmatpush1.bf16.msra.mxu0 %v513
    %701 = vmatprep.subr.bf16.mxu0 0
    %702 = vmatpush1.bf16.msra.mxu0 %v512
    %703 = vmatprep.subr.bf16.mxu0 0
    %704 = vmatpush1.bf16.msra.mxu0 %v511
    %705 = vmatprep.subr.bf16.mxu0 0
    %706 = vmatpush2.bf16.msra.mxu0 %v526
    %707 = vmatprep.subr.bf16.mxu0 0
    %708 = vmatpush2.bf16.msra.mxu0 %v525
    %709 = vmatprep.subr.bf16.mxu0 0
    %710 = vmatpush2.bf16.msra.mxu0 %v524
    %711 = vmatprep.subr.bf16.mxu0 0
    %712 = vmatpush2.bf16.msra.mxu0 %v523
    %713 = vmatprep.subr.bf16.mxu0 0
    %714 = vmatpush2.bf16.msra.mxu0 %v522
    %715 = vmatprep.subr.bf16.mxu0 0
    %716 = vmatpush2.bf16.msra.mxu0 %v521
    %717 = vmatprep.subr.bf16.mxu0 0
    %718 = vmatpush2.bf16.msra.mxu0 %v520
    %719 = vmatprep.subr.bf16.mxu0 0
    %720 = vmatpush2.bf16.msra.mxu0 %v519
    %721 = vmatprep.mubr.bf16.mxu0 %v282
    %722 = vmatmul.mubr.bf16.gmra.mxu0 %v281
    %v723 = vpop.f32.mrf.mxu0
    %v724 = vadd.f32 %v627, %v723
    %v725 = vpop.f32.mrf.mxu0
    %v726 = vpop.f32.mrf.mxu0
    %v727 = vadd.f32 %v630, %v726
    %v728 = vpop.f32.mrf.mxu0
    %729 = vmatprep.mubr.bf16.mxu0 %v287
    %730 = vmatmul.mubr.bf16.gmra.mxu0 %v286
    %v731 = vpop.f32.mrf.mxu0
    %v732 = vadd.f32 %v635, %v731
    %v733 = vpop.f32.mrf.mxu0
    %v734 = vpop.f32.mrf.mxu0
    %v735 = vadd.f32 %v638, %v734
    %v736 = vpop.f32.mrf.mxu0
    %737 = vmatprep.mubr.bf16.mxu0 %v292
    %738 = vmatmul.mubr.bf16.gmra.mxu0 %v291
    %v739 = vpop.f32.mrf.mxu0
    %v740 = vadd.f32 %v643, %v739
    %v741 = vpop.f32.mrf.mxu0
    %v742 = vpop.f32.mrf.mxu0
    %v743 = vadd.f32 %v646, %v742
    %v744 = vpop.f32.mrf.mxu0
    %745 = vmatprep.mubr.bf16.mxu0 %v297
    %746 = vmatmul.mubr.bf16.gmra.mxu0 %v296
    %v747 = vpop.f32.mrf.mxu0
    %v748 = vadd.f32 %v651, %v747
    %v749 = vpop.f32.mrf.mxu0
    %v750 = vpop.f32.mrf.mxu0
    %v751 = vadd.f32 %v654, %v750
    %v752 = vpop.f32.mrf.mxu0
    %753 = vmatprep.mubr.bf16.mxu0 %v302
    %754 = vmatmul.mubr.bf16.gmra.mxu0 %v301
    %v755 = vpop.f32.mrf.mxu0
    %v756 = vadd.f32 %v659, %v755
    %v757 = vpop.f32.mrf.mxu0
    %v758 = vpop.f32.mrf.mxu0
    %v759 = vadd.f32 %v662, %v758
    %v760 = vpop.f32.mrf.mxu0
    %761 = vmatprep.mubr.bf16.mxu0 %v307
    %762 = vmatmul.mubr.bf16.gmra.mxu0 %v306
    %v763 = vpop.f32.mrf.mxu0
    %v764 = vadd.f32 %v667, %v763
    %v765 = vpop.f32.mrf.mxu0
    %v766 = vpop.f32.mrf.mxu0
    %v767 = vadd.f32 %v670, %v766
    %v768 = vpop.f32.mrf.mxu0
    %769 = vmatprep.mubr.bf16.mxu0 %v312
    %770 = vmatmul.mubr.bf16.gmra.mxu0 %v311
    %v771 = vpop.f32.mrf.mxu0
    %v772 = vadd.f32 %v675, %v771
    %v773 = vpop.f32.mrf.mxu0
    %v774 = vpop.f32.mrf.mxu0
    %v775 = vadd.f32 %v678, %v774
    %v776 = vpop.f32.mrf.mxu0
    %777 = vmatprep.mubr.bf16.mxu0 %v317
    %778 = vmatmul.mubr.bf16.gmra.mxu0 %v316
    %v779 = vpop.f32.mrf.mxu0
    %v780 = vadd.f32 %v683, %v779
    %v781 = vpop.f32.mrf.mxu0
    %v782 = vpop.f32.mrf.mxu0
    %v783 = vadd.f32 %v686, %v782
    %v784 = vpop.f32.mrf.mxu0
    %785 = vdwg.mxu0
    %786 = vmatprep.subr.bf16.mxu0 0
    %787 = vmatpush1.bf16.msra.mxu0 0
    %788 = vmatprep.subr.bf16.mxu0 0
    %789 = vmatpush1.bf16.msra.mxu0 0
    %790 = vmatprep.subr.bf16.mxu0 0
    %791 = vmatpush1.bf16.msra.mxu0 0
    %792 = vmatprep.subr.bf16.mxu0 0
    %793 = vmatpush1.bf16.msra.mxu0 0
    %794 = vmatprep.subr.bf16.mxu0 0
    %795 = vmatpush1.bf16.msra.mxu0 %v530
    %796 = vmatprep.subr.bf16.mxu0 0
    %797 = vmatpush1.bf16.msra.mxu0 %v529
    %798 = vmatprep.subr.bf16.mxu0 0
    %799 = vmatpush1.bf16.msra.mxu0 %v528
    %800 = vmatprep.subr.bf16.mxu0 0
    %801 = vmatpush1.bf16.msra.mxu0 %v527
    %802 = vmatprep.subr.bf16.mxu0 0
    %803 = vmatpush2.bf16.msra.mxu0 0
    %804 = vmatprep.subr.bf16.mxu0 0
    %805 = vmatpush2.bf16.msra.mxu0 0
    %806 = vmatprep.subr.bf16.mxu0 0
    %807 = vmatpush2.bf16.msra.mxu0 0
    %808 = vmatprep.subr.bf16.mxu0 0
    %809 = vmatpush2.bf16.msra.mxu0 0
    %810 = vmatprep.subr.bf16.mxu0 0
    %811 = vmatpush2.bf16.msra.mxu0 0
    %812 = vmatprep.subr.bf16.mxu0 0
    %813 = vmatpush2.bf16.msra.mxu0 0
    %814 = vmatprep.subr.bf16.mxu0 0
    %815 = vmatpush2.bf16.msra.mxu0 0
    %816 = vmatprep.subr.bf16.mxu0 0
    %817 = vmatpush2.bf16.msra.mxu0 0
    %818 = vmatprep.mubr.bf16.mxu0 0
    %819 = vmatmul.mubr.bf16.gmra.mxu0 %v569
    %v820 = vpop.f32.mrf.mxu0
    %v821 = vadd.f32 %v724, %v820
    %v822 = vpop.f32.mrf.mxu0
    %v823 = vpop.f32.mrf.mxu0
    %v824 = vadd.f32 %v727, %v823
    %v825 = vpop.f32.mrf.mxu0
    %826 = vmatprep.mubr.bf16.mxu0 0
    %827 = vmatmul.mubr.bf16.gmra.mxu0 %v572
    %v828 = vpop.f32.mrf.mxu0
    %v829 = vadd.f32 %v732, %v828
    %v830 = vpop.f32.mrf.mxu0
    %v831 = vpop.f32.mrf.mxu0
    %v832 = vadd.f32 %v735, %v831
    %v833 = vpop.f32.mrf.mxu0
    %834 = vmatprep.mubr.bf16.mxu0 0
    %835 = vmatmul.mubr.bf16.gmra.mxu0 %v575
    %v836 = vpop.f32.mrf.mxu0
    %v837 = vadd.f32 %v740, %v836
    %v838 = vpop.f32.mrf.mxu0
    %v839 = vpop.f32.mrf.mxu0
    %v840 = vadd.f32 %v743, %v839
    %v841 = vpop.f32.mrf.mxu0
    %842 = vmatprep.mubr.bf16.mxu0 0
    %843 = vmatmul.mubr.bf16.gmra.mxu0 %v578
    %v844 = vpop.f32.mrf.mxu0
    %v845 = vadd.f32 %v748, %v844
    %v846 = vpop.f32.mrf.mxu0
    %v847 = vpop.f32.mrf.mxu0
    %v848 = vadd.f32 %v751, %v847
    %v849 = vpop.f32.mrf.mxu0
    %850 = vmatprep.mubr.bf16.mxu0 0
    %851 = vmatmul.mubr.bf16.gmra.mxu0 %v581
    %v852 = vpop.f32.mrf.mxu0
    %v853 = vadd.f32 %v756, %v852
    %v854 = vpop.f32.mrf.mxu0
    %v855 = vpop.f32.mrf.mxu0
    %v856 = vadd.f32 %v759, %v855
    %v857 = vpop.f32.mrf.mxu0
    %858 = vmatprep.mubr.bf16.mxu0 0
    %859 = vmatmul.mubr.bf16.gmra.mxu0 %v584
    %v860 = vpop.f32.mrf.mxu0
    %v861 = vadd.f32 %v764, %v860
    %v862 = vpop.f32.mrf.mxu0
    %v863 = vpop.f32.mrf.mxu0
    %v864 = vadd.f32 %v767, %v863
    %v865 = vpop.f32.mrf.mxu0
    %866 = vmatprep.mubr.bf16.mxu0 0
    %867 = vmatmul.mubr.bf16.gmra.mxu0 %v587
    %v868 = vpop.f32.mrf.mxu0
    %v869 = vadd.f32 %v772, %v868
    %v870 = vpop.f32.mrf.mxu0
    %v871 = vpop.f32.mrf.mxu0
    %v872 = vadd.f32 %v775, %v871
    %v873 = vpop.f32.mrf.mxu0
    %874 = vmatprep.mubr.bf16.mxu0 0
    %875 = vmatmul.mubr.bf16.gmra.mxu0 %v590
    %v876 = vpop.f32.mrf.mxu0
    %v877 = vadd.f32 %v780, %v876
    %v878 = vpop.f32.mrf.mxu0
    %v879 = vpop.f32.mrf.mxu0
    %v880 = vadd.f32 %v783, %v879
    %v881 = vpop.f32.mrf.mxu0
    %882 = vdwg.mxu0
    %v883 = vmax.f32 %v821, 0.0
    %v884 = vmax.f32 %v824, 0.0
    %v885 = vmax.f32 %v829, 0.0
    %v886 = vmax.f32 %v832, 0.0
    %v887 = vmax.f32 %v837, 0.0
    %v888 = vmax.f32 %v840, 0.0
    %v889 = vmax.f32 %v845, 0.0
    %v890 = vmax.f32 %v848, 0.0
    %v891 = vmax.f32 %v853, 0.0
    %v892 = vmax.f32 %v856, 0.0
    %v893 = vmax.f32 %v861, 0.0
    %v894 = vmax.f32 %v864, 0.0
    %v895 = vmax.f32 %v869, 0.0
    %v896 = vmax.f32 %v872, 0.0
    %v897 = vmax.f32 %v877, 0.0
    %v898 = vmax.f32 %v880, 0.0
    %v899 = vpack.c.bf16 %v884, %v883
    %v900 = vpack.c.bf16 %v886, %v885
    %v901 = vpack.c.bf16 %v888, %v887
    %v902 = vpack.c.bf16 %v890, %v889
    %v903 = vpack.c.bf16 %v892, %v891
    %v904 = vpack.c.bf16 %v894, %v893
    %v905 = vpack.c.bf16 %v896, %v895
    %v906 = vpack.c.bf16 %v898, %v897
    %v915 = vunpack.c.l.b16 %v899
    %v916 = vunpack.c.h.b16 %v899
    %v917 = vunpack.c.l.b16 %v900
    %v918 = vunpack.c.h.b16 %v900
    %v919 = vunpack.c.l.b16 %v901
    %v920 = vunpack.c.h.b16 %v901
    %v921 = vunpack.c.l.b16 %v902
    %v922 = vunpack.c.h.b16 %v902
    %v923 = vunpack.c.l.b16 %v903
    %v924 = vunpack.c.h.b16 %v903
    %v925 = vunpack.c.l.b16 %v904
    %v926 = vunpack.c.h.b16 %v904
    %v927 = vunpack.c.l.b16 %v905
    %v928 = vunpack.c.h.b16 %v905
    %v929 = vunpack.c.l.b16 %v906
    %v930 = vunpack.c.h.b16 %v906
    %v931 = vpack.c.b16 %v915, %v915
    %v932 = vpack.c.b16 %v916, %v916
    %v933 = vpack.c.b16 %v917, %v917
    %v934 = vpack.c.b16 %v918, %v918
    %v935 = vpack.c.b16 %v919, %v919
    %v936 = vpack.c.b16 %v920, %v920
    %v937 = vpack.c.b16 %v921, %v921
    %v938 = vpack.c.b16 %v922, %v922
    %v939 = vpack.c.b16 %v923, %v923
    %v940 = vpack.c.b16 %v924, %v924
    %v941 = vpack.c.b16 %v925, %v925
    %v942 = vpack.c.b16 %v926, %v926
    %v943 = vpack.c.b16 %v927, %v927
    %v944 = vpack.c.b16 %v928, %v928
    %v945 = vpack.c.b16 %v929, %v929
    %v946 = vpack.c.b16 %v930, %v930
    %963 = vst [vmem:[#allocation2] sm:$0xf] %v931
    %964 = vst [vmem:[#allocation2 + $0x4] sm:$0xf] %v932
    %965 = vst [vmem:[#allocation2 + $0x8] sm:$0xf] %v933
    %966 = vst [vmem:[#allocation2 + $0xc] sm:$0xf] %v934
    %967 = vst [vmem:[#allocation2 + $0x10] sm:$0xf] %v935
    %968 = vst [vmem:[#allocation2 + $0x14] sm:$0xf] %v936
    %969 = vst [vmem:[#allocation2 + $0x18] sm:$0xf] %v937
    %970 = vst [vmem:[#allocation2 + $0x1c] sm:$0xf] %v938
    %971 = vst [vmem:[#allocation2 + $0x20] sm:$0xf] %v939
    %972 = vst [vmem:[#allocation2 + $0x24] sm:$0xf] %v940
    %973 = vst [vmem:[#allocation2 + $0x28] sm:$0xf] %v941
    %974 = vst [vmem:[#allocation2 + $0x2c] sm:$0xf] %v942
    %975 = vst [vmem:[#allocation2 + $0x30] sm:$0xf] %v943
    %976 = vst [vmem:[#allocation2 + $0x34] sm:$0xf] %v944
    %977 = vst [vmem:[#allocation2 + $0x38] sm:$0xf] %v945
    %978 = vst [vmem:[#allocation2 + $0x3c] sm:$0xf] %v946
    %v979 = vld [vmem:[%s3] sm:$0xf]
    %v980 = vld [vmem:[%s3 + $0x4] sm:$0xf]
    %v981 = vld [vmem:[%s3 + $0x8] sm:$0xf]
    %v982 = vld [vmem:[%s3 + $0xc] sm:$0xf]
    %v983 = vld [vmem:[%s3 + $0x10] sm:$0xf]
    %v984 = vld [vmem:[%s3 + $0x14] sm:$0xf]
    %v985 = vld [vmem:[%s3 + $0x18] sm:$0xf]
    %v986 = vld [vmem:[%s3 + $0x1c] sm:$0xf]
    %v987 = vld [vmem:[%s3 + $0x20] sm:$0xf]
    %v988 = vld [vmem:[%s3 + $0x24] sm:$0xf]
    %v989 = vld [vmem:[%s3 + $0x28] sm:$0xf]
    %v990 = vld [vmem:[%s3 + $0x2c] sm:$0xf]
    %v991 = vld [vmem:[%s3 + $0x30] sm:$0xf]
    %v992 = vld [vmem:[%s3 + $0x34] sm:$0xf]
    %v993 = vld [vmem:[%s3 + $0x38] sm:$0xf]
    %v994 = vld [vmem:[%s3 + $0x3c] sm:$0xf]
    %v995 = vld [vmem:[%s4] sm:$0x1]
    %v997 = vlaneseq
    %v998 = vshrl.u32 %v997, 7
    %v999 = vsub.s32 0, %v998
    %v1000 = vrot.slane %v995, %v999
    %v1018 = vunpack.c.l.b16 %v979
    %v1019 = vunpack.c.l.b16 %v980
    %v1020 = vunpack.c.l.b16 %v981
    %v1021 = vunpack.c.l.b16 %v982
    %v1022 = vunpack.c.l.b16 %v983
    %v1023 = vunpack.c.l.b16 %v984
    %v1024 = vunpack.c.l.b16 %v985
    %v1025 = vunpack.c.l.b16 %v986
    %v1026 = vunpack.c.l.b16 %v987
    %v1027 = vunpack.c.l.b16 %v988
    %v1028 = vunpack.c.l.b16 %v989
    %v1029 = vunpack.c.l.b16 %v990
    %v1030 = vunpack.c.l.b16 %v991
    %v1031 = vunpack.c.l.b16 %v992
    %v1032 = vunpack.c.l.b16 %v993
    %v1033 = vunpack.c.l.b16 %v994
    %v1034 = vpack.c.b16 %v1019, %v1018
    %v1035 = vpack.c.b16 %v1021, %v1020
    %v1036 = vpack.c.b16 %v1023, %v1022
    %v1037 = vpack.c.b16 %v1025, %v1024
    %v1038 = vpack.c.b16 %v1027, %v1026
    %v1039 = vpack.c.b16 %v1029, %v1028
    %v1040 = vpack.c.b16 %v1031, %v1030
    %v1041 = vpack.c.b16 %v1033, %v1032
    %1050 = vmatprep.subr.bf16.mxu0 0
    %1051 = vmatpush1.bf16.msra.mxu0 %v1041
    %1052 = vmatprep.subr.bf16.mxu0 0
    %1053 = vmatpush1.bf16.msra.mxu0 %v1040
    %1054 = vmatprep.subr.bf16.mxu0 0
    %1055 = vmatpush1.bf16.msra.mxu0 %v1039
    %1056 = vmatprep.subr.bf16.mxu0 0
    %1057 = vmatpush1.bf16.msra.mxu0 %v1038
    %1058 = vmatprep.subr.bf16.mxu0 0
    %1059 = vmatpush1.bf16.msra.mxu0 %v1037
    %1060 = vmatprep.subr.bf16.mxu0 0
    %1061 = vmatpush1.bf16.msra.mxu0 %v1036
    %1062 = vmatprep.subr.bf16.mxu0 0
    %1063 = vmatpush1.bf16.msra.mxu0 %v1035
    %1064 = vmatprep.subr.bf16.mxu0 0
    %1065 = vmatpush1.bf16.msra.mxu0 %v1034
    %1066 = vmatprep.subr.bf16.mxu0 0
    %1067 = vmatpush2.bf16.msra.mxu0 0
    %1068 = vmatprep.subr.bf16.mxu0 0
    %1069 = vmatpush2.bf16.msra.mxu0 0
    %1070 = vmatprep.subr.bf16.mxu0 0
    %1071 = vmatpush2.bf16.msra.mxu0 0
    %1072 = vmatprep.subr.bf16.mxu0 0
    %1073 = vmatpush2.bf16.msra.mxu0 0
    %1074 = vmatprep.subr.bf16.mxu0 0
    %1075 = vmatpush2.bf16.msra.mxu0 0
    %1076 = vmatprep.subr.bf16.mxu0 0
    %1077 = vmatpush2.bf16.msra.mxu0 0
    %1078 = vmatprep.subr.bf16.mxu0 0
    %1079 = vmatpush2.bf16.msra.mxu0 0
    %1080 = vmatprep.subr.bf16.mxu0 0
    %1081 = vmatpush2.bf16.msra.mxu0 0
    %1082 = vmatprep.mubr.bf16.mxu0 0
    %1083 = vmatmul.mubr.bf16.gmra.mxu0 %v899
    %v1084 = vpop.f32.mrf.mxu0
    %v1085 = vadd.f32 %v1000, %v1084
    %v1086 = vpop.f32.mrf.mxu0
    %v1087 = vpop.f32.mrf.mxu0
    %v1088 = vadd.f32 %v1000, %v1087
    %v1089 = vpop.f32.mrf.mxu0
    %1090 = vmatprep.mubr.bf16.mxu0 0
    %1091 = vmatmul.mubr.bf16.gmra.mxu0 %v900
    %v1092 = vpop.f32.mrf.mxu0
    %v1093 = vadd.f32 %v1000, %v1092
    %v1094 = vpop.f32.mrf.mxu0
    %v1095 = vpop.f32.mrf.mxu0
    %v1096 = vadd.f32 %v1000, %v1095
    %v1097 = vpop.f32.mrf.mxu0
    %1098 = vmatprep.mubr.bf16.mxu0 0
    %1099 = vmatmul.mubr.bf16.gmra.mxu0 %v901
    %v1100 = vpop.f32.mrf.mxu0
    %v1101 = vadd.f32 %v1000, %v1100
    %v1102 = vpop.f32.mrf.mxu0
    %v1103 = vpop.f32.mrf.mxu0
    %v1104 = vadd.f32 %v1000, %v1103
    %v1105 = vpop.f32.mrf.mxu0
    %1106 = vmatprep.mubr.bf16.mxu0 0
    %1107 = vmatmul.mubr.bf16.gmra.mxu0 %v902
    %v1108 = vpop.f32.mrf.mxu0
    %v1109 = vadd.f32 %v1000, %v1108
    %v1110 = vpop.f32.mrf.mxu0
    %v1111 = vpop.f32.mrf.mxu0
    %v1112 = vadd.f32 %v1000, %v1111
    %v1113 = vpop.f32.mrf.mxu0
    %1114 = vmatprep.mubr.bf16.mxu0 0
    %1115 = vmatmul.mubr.bf16.gmra.mxu0 %v903
    %v1116 = vpop.f32.mrf.mxu0
    %v1117 = vadd.f32 %v1000, %v1116
    %v1118 = vpop.f32.mrf.mxu0
    %v1119 = vpop.f32.mrf.mxu0
    %v1120 = vadd.f32 %v1000, %v1119
    %v1121 = vpop.f32.mrf.mxu0
    %1122 = vmatprep.mubr.bf16.mxu0 0
    %1123 = vmatmul.mubr.bf16.gmra.mxu0 %v904
    %v1124 = vpop.f32.mrf.mxu0
    %v1125 = vadd.f32 %v1000, %v1124
    %v1126 = vpop.f32.mrf.mxu0
    %v1127 = vpop.f32.mrf.mxu0
    %v1128 = vadd.f32 %v1000, %v1127
    %v1129 = vpop.f32.mrf.mxu0
    %1130 = vmatprep.mubr.bf16.mxu0 0
    %1131 = vmatmul.mubr.bf16.gmra.mxu0 %v905
    %v1132 = vpop.f32.mrf.mxu0
    %v1133 = vadd.f32 %v1000, %v1132
    %v1134 = vpop.f32.mrf.mxu0
    %v1135 = vpop.f32.mrf.mxu0
    %v1136 = vadd.f32 %v1000, %v1135
    %v1137 = vpop.f32.mrf.mxu0
    %1138 = vmatprep.mubr.bf16.mxu0 0
    %1139 = vmatmul.mubr.bf16.gmra.mxu0 %v906
    %v1140 = vpop.f32.mrf.mxu0
    %v1141 = vadd.f32 %v1000, %v1140
    %v1142 = vpop.f32.mrf.mxu0
    %v1143 = vpop.f32.mrf.mxu0
    %v1144 = vadd.f32 %v1000, %v1143
    %v1145 = vpop.f32.mrf.mxu0
    %1146 = vdwg.mxu0
    %v1147 = vpack.c.bf16 %v1088, %v1085
    %v1148 = vpack.c.bf16 %v1096, %v1093
    %v1149 = vpack.c.bf16 %v1104, %v1101
    %v1150 = vpack.c.bf16 %v1112, %v1109
    %v1151 = vpack.c.bf16 %v1120, %v1117
    %v1152 = vpack.c.bf16 %v1128, %v1125
    %v1153 = vpack.c.bf16 %v1136, %v1133
    %v1154 = vpack.c.bf16 %v1144, %v1141
    %v1163 = vunpack.c.l.b16 %v1147
    %v1164 = vunpack.c.h.b16 %v1147
    %v1165 = vunpack.c.l.b16 %v1148
    %v1166 = vunpack.c.h.b16 %v1148
    %v1167 = vunpack.c.l.b16 %v1149
    %v1168 = vunpack.c.h.b16 %v1149
    %v1169 = vunpack.c.l.b16 %v1150
    %v1170 = vunpack.c.h.b16 %v1150
    %v1171 = vunpack.c.l.b16 %v1151
    %v1172 = vunpack.c.h.b16 %v1151
    %v1173 = vunpack.c.l.b16 %v1152
    %v1174 = vunpack.c.h.b16 %v1152
    %v1175 = vunpack.c.l.b16 %v1153
    %v1176 = vunpack.c.h.b16 %v1153
    %v1177 = vunpack.c.l.b16 %v1154
    %v1178 = vunpack.c.h.b16 %v1154
    %v1179 = vpack.c.b16 %v1163, %v1163
    %v1180 = vpack.c.b16 %v1164, %v1164
    %v1181 = vpack.c.b16 %v1165, %v1165
    %v1182 = vpack.c.b16 %v1166, %v1166
    %v1183 = vpack.c.b16 %v1167, %v1167
    %v1184 = vpack.c.b16 %v1168, %v1168
    %v1185 = vpack.c.b16 %v1169, %v1169
    %v1186 = vpack.c.b16 %v1170, %v1170
    %v1187 = vpack.c.b16 %v1171, %v1171
    %v1188 = vpack.c.b16 %v1172, %v1172
    %v1189 = vpack.c.b16 %v1173, %v1173
    %v1190 = vpack.c.b16 %v1174, %v1174
    %v1191 = vpack.c.b16 %v1175, %v1175
    %v1192 = vpack.c.b16 %v1176, %v1176
    %v1193 = vpack.c.b16 %v1177, %v1177
    %v1194 = vpack.c.b16 %v1178, %v1178
    %1211 = vst [vmem:[%s6] sm:$0xf] %v1179
    %1212 = vst [vmem:[%s6 + $0x4] sm:$0xf] %v1180
    %1213 = vst [vmem:[%s6 + $0x8] sm:$0xf] %v1181
    %1214 = vst [vmem:[%s6 + $0xc] sm:$0xf] %v1182
    %1215 = vst [vmem:[%s6 + $0x10] sm:$0xf] %v1183
    %1216 = vst [vmem:[%s6 + $0x14] sm:$0xf] %v1184
    %1217 = vst [vmem:[%s6 + $0x18] sm:$0xf] %v1185
    %1218 = vst [vmem:[%s6 + $0x1c] sm:$0xf] %v1186
    %1219 = vst [vmem:[%s6 + $0x20] sm:$0xf] %v1187
    %1220 = vst [vmem:[%s6 + $0x24] sm:$0xf] %v1188
    %1221 = vst [vmem:[%s6 + $0x28] sm:$0xf] %v1189
    %1222 = vst [vmem:[%s6 + $0x2c] sm:$0xf] %v1190
    %1223 = vst [vmem:[%s6 + $0x30] sm:$0xf] %v1191
    %1224 = vst [vmem:[%s6 + $0x34] sm:$0xf] %v1192
    %1225 = vst [vmem:[%s6 + $0x38] sm:$0xf] %v1193
    %1226 = vst [vmem:[%s6 + $0x3c] sm:$0xf] %v1194
    // Predicated region
    $region22: #{uacanet_forward.18} parent=1 // pred_check
      _
    $region23: #{uacanet_forward.18} parent=1 // pred_check_branch
      %1228 = sbr.rel (0) target = $region25
    $region24: #{uacanet_forward.18} parent=1 // pred_region
      %s1230 = ssub.s32 1024, 1024
      %1231 = vsyncadd [#allocation3], %s1230
      %s1232 = sshll.u32 [#allocation2], 4
      %s1233 = int_to_ptr.vmem [resolvable:$true] %s1232
      %1238 = dma.vmem_to_hbm [thread:$0]  %s1233, 1024, %s5, [#allocation3], 64, 64, 4
    $region25: #{uacanet_forward.18} parent=1 // pred_fallthru
      _
    // Predicated region
    $region26: #{uacanet_forward.18} parent=1 // pred_check
      _
    $region27: #{uacanet_forward.18} parent=1 // pred_check_branch
      %1240 = sbr.rel (0) target = $region29
    $region28: #{uacanet_forward.18} parent=1 // pred_region
      _
    $region29: #{uacanet_forward.18} parent=1 // pred_fallthru
      _
    // Predicated region
    $region30: #{uacanet_forward.18} parent=1 // pred_check
      _
    $region31: #{uacanet_forward.18} parent=1 // pred_check_branch
      %1242 = sbr.rel (0) target = $region33
    $region32: #{uacanet_forward.18} parent=1 // pred_region
      %1243 = dma.done [#allocation3], 1024
    $region33: #{uacanet_forward.18} parent=1 // pred_fallthru
      _
    // Predicated region
    $region34: #{uacanet_forward.18} parent=1 // pred_check
      _
    $region35: #{uacanet_forward.18} parent=1 // pred_check_branch
      %1245 = sbr.rel (0) target = $region37
    $region36: #{uacanet_forward.18} parent=1 // pred_region
      _
    $region37: #{uacanet_forward.18} parent=1 // pred_fallthru
      _
    %1246 = vsyncpa [#allocation3], 1

// kernel: uacanet_forward.19
$region0: #{uacanet_forward.19}
  #allocation0 [shape = 'u32[]', space=smem, size = 0x4, offset = 0x4, fixed_abs, tag = 'smem constant byte address 0x4 - core index']
  #allocation1 [shape = 'u32[144,128]{1,0:T(1,128)}', space=vmem, size = 0x12000, scoped, tag = 'internal scratch']
  %s0 = inlined_call_operand.vmem [shape: f32[8,32,128], index: 0, kind: input, shape index: {}]
  %s1 = inlined_call_operand.vmem [shape: f32[2,32,128], index: 1, kind: input, shape index: {}]
  %s2 = inlined_call_operand.vmem [shape: f32[2,32,128], index: 2, kind: input, shape index: {}]
  %s3 = inlined_call_operand.vmem [shape: f32[8,128], index: 3, kind: output, shape index: {}]
  %s4 = sld [smem:[#allocation0]]
  $region22: #{uacanet_forward.19} parent=0
    _
  %s6 = ssub.s32 1, %s4
  %s7 = scalar_select 0, %s6, %s4
  // Predicated region
  $region2: #{uacanet_forward.19} parent=0 // pred_check
    _
  $region3: #{uacanet_forward.19} parent=0 // pred_check_branch
    %9 = sbr.rel (0) target = $region5
  $region4: #{uacanet_forward.19} parent=0 // pred_region
    _
  $region5: #{uacanet_forward.19} parent=0 // pred_fallthru
    _
  // Predicated region
  $region6: #{uacanet_forward.19} parent=0 // pred_check
    _
  $region7: #{uacanet_forward.19} parent=0 // pred_check_branch
    %11 = sbr.rel (0) target = $region9
  $region8: #{uacanet_forward.19} parent=0 // pred_region
    _
  $region9: #{uacanet_forward.19} parent=0 // pred_fallthru
    _
  // Predicated region
  $region10: #{uacanet_forward.19} parent=0 // pred_check
    _
  $region11: #{uacanet_forward.19} parent=0 // pred_check_branch
    %13 = sbr.rel (0) target = $region13
  $region12: #{uacanet_forward.19} parent=0 // pred_region
    _
  $region13: #{uacanet_forward.19} parent=0 // pred_fallthru
    _
  %v14 = vlaneseq
  %v15 = vshrl.u32 %v14, 7
  %v16 = vadd.s32 %v15, 8
  %v17 = vadd.s32 %v15, 16
  %v18 = vadd.s32 %v15, 24
  %v19 = vlaneseq
  %v20 = vand.u32 %v19, 127
  %v21 = vmul.u32 %v15, 128
  %v22 = vmul.u32 %v16, 128
  %v23 = vmul.u32 %v17, 128
  %v24 = vmul.u32 %v18, 128
  %v25 = vadd.s32 %v21, %v20
  %v26 = vadd.s32 %v22, %v20
  %v27 = vadd.s32 %v23, %v20
  %v28 = vadd.s32 %v24, %v20
  %vm29 = vcmp.lt.s32.totalorder %v25, 4096
  %vm30 = vcmp.lt.s32.totalorder %v26, 4096
  %vm31 = vcmp.lt.s32.totalorder %v27, 4096
  %vm32 = vcmp.lt.s32.totalorder %v28, 4096
  %v33 = vsel %vm29, 1, 0
  %v34 = vsel %vm30, 1, 0
  %v35 = vsel %vm31, 1, 0
  %v36 = vsel %vm32, 1, 0
  %v37 = vcvt.s32.f32 %v33
  %v38 = vcvt.s32.f32 %v34
  %v39 = vcvt.s32.f32 %v35
  %v40 = vcvt.s32.f32 %v36
  %v41 = vld [vmem:[%s1] sm:$0xff]
  %v42 = vld [vmem:[%s1 + $0x8] sm:$0xff]
  %v43 = vld [vmem:[%s1 + $0x10] sm:$0xff]
  %v44 = vld [vmem:[%s1 + $0x18] sm:$0xff]
  %v45 = vmul.f32 %v41, %v37
  %v46 = vmul.f32 %v42, %v38
  %v47 = vmul.f32 %v43, %v39
  %v48 = vmul.f32 %v44, %v40
  %v49 = vld [vmem:[%s2] sm:$0xff]
  %v50 = vld [vmem:[%s2 + $0x8] sm:$0xff]
  %v51 = vld [vmem:[%s2 + $0x10] sm:$0xff]
  %v52 = vld [vmem:[%s2 + $0x18] sm:$0xff]
  %v53 = vmul.f32 %v49, %v37
  %v54 = vmul.f32 %v50, %v38
  %v55 = vmul.f32 %v51, %v39
  %v56 = vmul.f32 %v52, %v40
  %v57 = vld [vmem:[%s0] sm:$0xff]
  %v58 = vld [vmem:[%s0 + $0x8] sm:$0xff]
  %v59 = vld [vmem:[%s0 + $0x10] sm:$0xff]
  %v60 = vld [vmem:[%s0 + $0x18] sm:$0xff]
  %v61 = vmax.f32 %v57, 0.0
  %v62 = vmax.f32 %v58, 0.0
  %v63 = vmax.f32 %v59, 0.0
  %v64 = vmax.f32 %v60, 0.0
  %v65 = vmul.f32 %v57, %v45
  %v66 = vmul.f32 %v58, %v46
  %v67 = vmul.f32 %v59, %v47
  %v68 = vmul.f32 %v60, %v48
  %v69 = vsub.f32 %v61, %v65
  %v70 = vsub.f32 %v62, %v66
  %v71 = vsub.f32 %v63, %v67
  %v72 = vsub.f32 %v64, %v68
  %v73 = vand.u32 2147483647, %v57
  %v74 = vand.u32 2147483647, %v58
  %v75 = vand.u32 2147483647, %v59
  %v76 = vand.u32 2147483647, %v60
  %v77 = vsub.f32 0.0, %v73
  %v78 = vsub.f32 0.0, %v74
  %v79 = vsub.f32 0.0, %v75
  %v80 = vsub.f32 0.0, %v76
  %v81 = vmul.f32 %v77, 1.442695
  %v82 = vpow.pop %v81
  %v83 = vmul.f32 %v78, 1.442695
  %v84 = vpow.pop %v83
  %v85 = vmul.f32 %v79, 1.442695
  %v86 = vpow.pop %v85
  %v87 = vmul.f32 %v80, 1.442695
  %v88 = vpow.pop %v87
  %v89 = vadd.f32 %v82, 1.0
  %v90 = vlog2.pop %v89
  %v91 = vmul.f32 %v90, 0.6931472
  %v92 = vmul.f32 -0.5, %v82
  %v93 = vadd.f32 %v92, 1.0
  %v94 = vmul.f32 %v93, %v82
  %v95 = vand.u32 2147483647, %v82
  %vm96 = vcmp.lt.f32.partialorder %v95, 0.0004427343
  %v97 = vsel %vm96, %v94, %v91
  %v98 = vadd.f32 %v84, 1.0
  %v99 = vlog2.pop %v98
  %v100 = vmul.f32 %v99, 0.6931472
  %v101 = vmul.f32 -0.5, %v84
  %v102 = vadd.f32 %v101, 1.0
  %v103 = vmul.f32 %v102, %v84
  %v104 = vand.u32 2147483647, %v84
  %vm105 = vcmp.lt.f32.partialorder %v104, 0.0004427343
  %v106 = vsel %vm105, %v103, %v100
  %v107 = vadd.f32 %v86, 1.0
  %v108 = vlog2.pop %v107
  %v109 = vmul.f32 %v108, 0.6931472
  %v110 = vmul.f32 -0.5, %v86
  %v111 = vadd.f32 %v110, 1.0
  %v112 = vmul.f32 %v111, %v86
  %v113 = vand.u32 2147483647, %v86
  %vm114 = vcmp.lt.f32.partialorder %v113, 0.0004427343
  %v115 = vsel %vm114, %v112, %v109
  %v116 = vadd.f32 %v88, 1.0
  %v117 = vlog2.pop %v116
  %v118 = vmul.f32 %v117, 0.6931472
  %v119 = vmul.f32 -0.5, %v88
  %v120 = vadd.f32 %v119, 1.0
  %v121 = vmul.f32 %v120, %v88
  %v122 = vand.u32 2147483647, %v88
  %vm123 = vcmp.lt.f32.partialorder %v122, 0.0004427343
  %v124 = vsel %vm123, %v121, %v118
  %v125 = vadd.f32 %v69, %v97
  %v126 = vadd.f32 %v70, %v106
  %v127 = vadd.f32 %v71, %v115
  %v128 = vadd.f32 %v72, %v124
  %v129 = vmul.f32 %v125, %v37
  %v130 = vmul.f32 %v126, %v38
  %v131 = vmul.f32 %v127, %v39
  %v132 = vmul.f32 %v128, %v40
  %v133 = vsub.f32 0.0, %v57
  %v134 = vsub.f32 0.0, %v58
  %v135 = vsub.f32 0.0, %v59
  %v136 = vsub.f32 0.0, %v60
  %v137 = vmul.f32 %v133, 1.442695
  %v138 = vpow.pop %v137
  %v139 = vmul.f32 %v134, 1.442695
  %v140 = vpow.pop %v139
  %v141 = vmul.f32 %v135, 1.442695
  %v142 = vpow.pop %v141
  %v143 = vmul.f32 %v136, 1.442695
  %v144 = vpow.pop %v143
  %v145 = vadd.f32 %v138, 1.0
  %v146 = vadd.f32 %v140, 1.0
  %v147 = vadd.f32 %v142, 1.0
  %v148 = vadd.f32 %v144, 1.0
  %v149 = vrcp.pop %v145
  %v150 = vmul.f32 1.0, %v149
  %v151 = vrcp.pop %v146
  %v152 = vmul.f32 1.0, %v151
  %v153 = vrcp.pop %v147
  %v154 = vmul.f32 1.0, %v153
  %v155 = vrcp.pop %v148
  %v156 = vmul.f32 1.0, %v155
  %157 = vadd.xlane.f32.xlu0 %v129
  %v158 = vpop.xlane.xlu0 %157
  %159 = vadd.xlane.f32.xlu0 %v130
  %v160 = vpop.xlane.xlu0 %159
  %161 = vadd.xlane.f32.xlu0 %v131
  %v162 = vpop.xlane.xlu0 %161
  %163 = vadd.xlane.f32.xlu0 %v132
  %v164 = vpop.xlane.xlu0 %163
  %v165 = vadd.f32 %v158, %v160
  %v166 = vadd.f32 %v165, %v162
  %v167 = vadd.f32 %v166, %v164
  %v168 = vrot.slane %v167, 4
  %v169 = vadd.f32 %v167, %v168
  %v170 = vrot.slane %v169, 2
  %v171 = vadd.f32 %v169, %v170
  %v172 = vrot.slane %v171, 1
  %v173 = vadd.f32 %v171, %v172
  %v174 = vmul.f32 %v150, %v45
  %v175 = vmul.f32 %v152, %v46
  %v176 = vmul.f32 %v154, %v47
  %v177 = vmul.f32 %v156, %v48
  %v178 = vmul.f32 %v174, %v53
  %v179 = vmul.f32 %v175, %v54
  %v180 = vmul.f32 %v176, %v55
  %v181 = vmul.f32 %v177, %v56
  %182 = vadd.xlane.f32.xlu0 %v178
  %v183 = vpop.xlane.xlu0 %182
  %184 = vadd.xlane.f32.xlu0 %v179
  %v185 = vpop.xlane.xlu0 %184
  %186 = vadd.xlane.f32.xlu0 %v180
  %v187 = vpop.xlane.xlu0 %186
  %188 = vadd.xlane.f32.xlu0 %v181
  %v189 = vpop.xlane.xlu0 %188
  %v190 = vadd.f32 %v183, %v185
  %v191 = vadd.f32 %v190, %v187
  %v192 = vadd.f32 %v191, %v189
  %v193 = vrot.slane %v192, 4
  %v194 = vadd.f32 %v192, %v193
  %v195 = vrot.slane %v194, 2
  %v196 = vadd.f32 %v194, %v195
  %v197 = vrot.slane %v196, 1
  %v198 = vadd.f32 %v196, %v197
  %v199 = vadd.f32 %v150, %v45
  %v200 = vadd.f32 %v152, %v46
  %v201 = vadd.f32 %v154, %v47
  %v202 = vadd.f32 %v156, %v48
  %v203 = vmul.f32 %v199, %v53
  %v204 = vmul.f32 %v200, %v54
  %v205 = vmul.f32 %v201, %v55
  %v206 = vmul.f32 %v202, %v56
  %207 = vadd.xlane.f32.xlu0 %v203
  %v208 = vpop.xlane.xlu0 %207
  %209 = vadd.xlane.f32.xlu0 %v204
  %v210 = vpop.xlane.xlu0 %209
  %211 = vadd.xlane.f32.xlu0 %v205
  %v212 = vpop.xlane.xlu0 %211
  %213 = vadd.xlane.f32.xlu0 %v206
  %v214 = vpop.xlane.xlu0 %213
  %v215 = vadd.f32 %v208, %v210
  %v216 = vadd.f32 %v215, %v212
  %v217 = vadd.f32 %v216, %v214
  %v218 = vrot.slane %v217, 4
  %v219 = vadd.f32 %v217, %v218
  %v220 = vrot.slane %v219, 2
  %v221 = vadd.f32 %v219, %v220
  %v222 = vrot.slane %v221, 1
  %v223 = vadd.f32 %v221, %v222
  %vm224 = vcmp.eq.s32.totalorder %v20, 0
  %v225 = vsel %vm224, %v173, 0.0
  %vm226 = vcmp.eq.s32.totalorder %v20, 1
  %v227 = vsel %vm226, %v198, 0.0
  %v228 = vadd.f32 %v225, %v227
  %vm229 = vcmp.eq.s32.totalorder %v20, 2
  %v230 = vsel %vm229, %v223, 0.0
  %v231 = vadd.f32 %v228, %v230
  %232 = vst [vmem:[%s3] sm:$0x1] %v231
  %s233 = scalar_lea.vmem %s0, 64
  %v234 = vld [vmem:[%s233] sm:$0xff]
  %v235 = vld [vmem:[%s233 + $0x8] sm:$0xff]
  %v236 = vld [vmem:[%s233 + $0x10] sm:$0xff]
  %v237 = vld [vmem:[%s233 + $0x18] sm:$0xff]
  %v238 = vmax.f32 %v234, 0.0
  %v239 = vmax.f32 %v235, 0.0
  %v240 = vmax.f32 %v236, 0.0
  %v241 = vmax.f32 %v237, 0.0
  %v242 = vmul.f32 %v234, %v45
  %v243 = vmul.f32 %v235, %v46
  %v244 = vmul.f32 %v236, %v47
  %v245 = vmul.f32 %v237, %v48
  %v246 = vsub.f32 %v238, %v242
  %v247 = vsub.f32 %v239, %v243
  %v248 = vsub.f32 %v240, %v244
  %v249 = vsub.f32 %v241, %v245
  %v250 = vand.u32 2147483647, %v234
  %v251 = vand.u32 2147483647, %v235
  %v252 = vand.u32 2147483647, %v236
  %v253 = vand.u32 2147483647, %v237
  %v254 = vsub.f32 0.0, %v250
  %v255 = vsub.f32 0.0, %v251
  %v256 = vsub.f32 0.0, %v252
  %v257 = vsub.f32 0.0, %v253
  %v258 = vmul.f32 %v254, 1.442695
  %v259 = vpow.pop %v258
  %v260 = vmul.f32 %v255, 1.442695
  %v261 = vpow.pop %v260
  %v262 = vmul.f32 %v256, 1.442695
  %v263 = vpow.pop %v262
  %v264 = vmul.f32 %v257, 1.442695
  %v265 = vpow.pop %v264
  %v266 = vadd.f32 %v259, 1.0
  %v267 = vlog2.pop %v266
  %v268 = vmul.f32 %v267, 0.6931472
  %v269 = vmul.f32 -0.5, %v259
  %v270 = vadd.f32 %v269, 1.0
  %v271 = vmul.f32 %v270, %v259
  %v272 = vand.u32 2147483647, %v259
  %vm273 = vcmp.lt.f32.partialorder %v272, 0.0004427343
  %v274 = vsel %vm273, %v271, %v268
  %v275 = vadd.f32 %v261, 1.0
  %v276 = vlog2.pop %v275
  %v277 = vmul.f32 %v276, 0.6931472
  %v278 = vmul.f32 -0.5, %v261
  %v279 = vadd.f32 %v278, 1.0
  %v280 = vmul.f32 %v279, %v261
  %v281 = vand.u32 2147483647, %v261
  %vm282 = vcmp.lt.f32.partialorder %v281, 0.0004427343
  %v283 = vsel %vm282, %v280, %v277
  %v284 = vadd.f32 %v263, 1.0
  %v285 = vlog2.pop %v284
  %v286 = vmul.f32 %v285, 0.6931472
  %v287 = vmul.f32 -0.5, %v263
  %v288 = vadd.f32 %v287, 1.0
  %v289 = vmul.f32 %v288, %v263
  %v290 = vand.u32 2147483647, %v263
  %vm291 = vcmp.lt.f32.partialorder %v290, 0.0004427343
  %v292 = vsel %vm291, %v289, %v286
  %v293 = vadd.f32 %v265, 1.0
  %v294 = vlog2.pop %v293
  %v295 = vmul.f32 %v294, 0.6931472
  %v296 = vmul.f32 -0.5, %v265
  %v297 = vadd.f32 %v296, 1.0
  %v298 = vmul.f32 %v297, %v265
  %v299 = vand.u32 2147483647, %v265
  %vm300 = vcmp.lt.f32.partialorder %v299, 0.0004427343
  %v301 = vsel %vm300, %v298, %v295
  %v302 = vadd.f32 %v246, %v274
  %v303 = vadd.f32 %v247, %v283
  %v304 = vadd.f32 %v248, %v292
  %v305 = vadd.f32 %v249, %v301
  %v306 = vmul.f32 %v302, %v37
  %v307 = vmul.f32 %v303, %v38
  %v308 = vmul.f32 %v304, %v39
  %v309 = vmul.f32 %v305, %v40
  %v310 = vsub.f32 0.0, %v234
  %v311 = vsub.f32 0.0, %v235
  %v312 = vsub.f32 0.0, %v236
  %v313 = vsub.f32 0.0, %v237
  %v314 = vmul.f32 %v310, 1.442695
  %v315 = vpow.pop %v314
  %v316 = vmul.f32 %v311, 1.442695
  %v317 = vpow.pop %v316
  %v318 = vmul.f32 %v312, 1.442695
  %v319 = vpow.pop %v318
  %v320 = vmul.f32 %v313, 1.442695
  %v321 = vpow.pop %v320
  %v322 = vadd.f32 %v315, 1.0
  %v323 = vadd.f32 %v317, 1.0
  %v324 = vadd.f32 %v319, 1.0
  %v325 = vadd.f32 %v321, 1.0
  %v326 = vrcp.pop %v322
  %v327 = vmul.f32 1.0, %v326
  %v328 = vrcp.pop %v323
  %v329 = vmul.f32 1.0, %v328
  %v330 = vrcp.pop %v324
  %v331 = vmul.f32 1.0, %v330
  %v332 = vrcp.pop %v325
  %v333 = vmul.f32 1.0, %v332
  %334 = vadd.xlane.f32.xlu0 %v306
  %v335 = vpop.xlane.xlu0 %334
  %336 = vadd.xlane.f32.xlu0 %v307
  %v337 = vpop.xlane.xlu0 %336
  %338 = vadd.xlane.f32.xlu0 %v308
  %v339 = vpop.xlane.xlu0 %338
  %340 = vadd.xlane.f32.xlu0 %v309
  %v341 = vpop.xlane.xlu0 %340
  %v342 = vadd.f32 %v335, %v337
  %v343 = vadd.f32 %v342, %v339
  %v344 = vadd.f32 %v343, %v341
  %v345 = vrot.slane %v344, 4
  %v346 = vadd.f32 %v344, %v345
  %v347 = vrot.slane %v346, 2
  %v348 = vadd.f32 %v346, %v347
  %v349 = vrot.slane %v348, 1
  %v350 = vadd.f32 %v348, %v349
  %v351 = vmul.f32 %v327, %v45
  %v352 = vmul.f32 %v329, %v46
  %v353 = vmul.f32 %v331, %v47
  %v354 = vmul.f32 %v333, %v48
  %v355 = vmul.f32 %v351, %v53
  %v356 = vmul.f32 %v352, %v54
  %v357 = vmul.f32 %v353, %v55
  %v358 = vmul.f32 %v354, %v56
  %359 = vadd.xlane.f32.xlu0 %v355
  %v360 = vpop.xlane.xlu0 %359
  %361 = vadd.xlane.f32.xlu0 %v356
  %v362 = vpop.xlane.xlu0 %361
  %363 = vadd.xlane.f32.xlu0 %v357
  %v364 = vpop.xlane.xlu0 %363
  %365 = vadd.xlane.f32.xlu0 %v358
  %v366 = vpop.xlane.xlu0 %365
  %v367 = vadd.f32 %v360, %v362
  %v368 = vadd.f32 %v367, %v364
  %v369 = vadd.f32 %v368, %v366
  %v370 = vrot.slane %v369, 4
  %v371 = vadd.f32 %v369, %v370
  %v372 = vrot.slane %v371, 2
  %v373 = vadd.f32 %v371, %v372
  %v374 = vrot.slane %v373, 1
  %v375 = vadd.f32 %v373, %v374
  %v376 = vadd.f32 %v327, %v45
  %v377 = vadd.f32 %v329, %v46
  %v378 = vadd.f32 %v331, %v47
  %v379 = vadd.f32 %v333, %v48
  %v380 = vmul.f32 %v376, %v53
  %v381 = vmul.f32 %v377, %v54
  %v382 = vmul.f32 %v378, %v55
  %v383 = vmul.f32 %v379, %v56
  %384 = vadd.xlane.f32.xlu0 %v380
  %v385 = vpop.xlane.xlu0 %384
  %386 = vadd.xlane.f32.xlu0 %v381
  %v387 = vpop.xlane.xlu0 %386
  %388 = vadd.xlane.f32.xlu0 %v382
  %v389 = vpop.xlane.xlu0 %388
  %390 = vadd.xlane.f32.xlu0 %v383
  %v391 = vpop.xlane.xlu0 %390
  %v392 = vadd.f32 %v385, %v387
  %v393 = vadd.f32 %v392, %v389
  %v394 = vadd.f32 %v393, %v391
  %v395 = vrot.slane %v394, 4
  %v396 = vadd.f32 %v394, %v395
  %v397 = vrot.slane %v396, 2
  %v398 = vadd.f32 %v396, %v397
  %v399 = vrot.slane %v398, 1
  %v400 = vadd.f32 %v398, %v399
  %v401 = vsel %vm224, %v350, 0.0
  %v402 = vsel %vm226, %v375, 0.0
  %v403 = vadd.f32 %v401, %v402
  %v404 = vsel %vm229, %v400, 0.0
  %v405 = vadd.f32 %v403, %v404
  %406 = vst [vmem:[%s3 + $0x2] sm:$0x1] %v405
  %s407 = scalar_lea.vmem %s0, 128
  %v408 = vld [vmem:[%s407] sm:$0xff]
  %v409 = vld [vmem:[%s407 + $0x8] sm:$0xff]
  %v410 = vld [vmem:[%s407 + $0x10] sm:$0xff]
  %v411 = vld [vmem:[%s407 + $0x18] sm:$0xff]
  %v412 = vmax.f32 %v408, 0.0
  %v413 = vmax.f32 %v409, 0.0
  %v414 = vmax.f32 %v410, 0.0
  %v415 = vmax.f32 %v411, 0.0
  %v416 = vmul.f32 %v408, %v45
  %v417 = vmul.f32 %v409, %v46
  %v418 = vmul.f32 %v410, %v47
  %v419 = vmul.f32 %v411, %v48
  %v420 = vsub.f32 %v412, %v416
  %v421 = vsub.f32 %v413, %v417
  %v422 = vsub.f32 %v414, %v418
  %v423 = vsub.f32 %v415, %v419
  %v424 = vand.u32 2147483647, %v408
  %v425 = vand.u32 2147483647, %v409
  %v426 = vand.u32 2147483647, %v410
  %v427 = vand.u32 2147483647, %v411
  %v428 = vsub.f32 0.0, %v424
  %v429 = vsub.f32 0.0, %v425
  %v430 = vsub.f32 0.0, %v426
  %v431 = vsub.f32 0.0, %v427
  %v432 = vmul.f32 %v428, 1.442695
  %v433 = vpow.pop %v432
  %v434 = vmul.f32 %v429, 1.442695
  %v435 = vpow.pop %v434
  %v436 = vmul.f32 %v430, 1.442695
  %v437 = vpow.pop %v436
  %v438 = vmul.f32 %v431, 1.442695
  %v439 = vpow.pop %v438
  %v440 = vadd.f32 %v433, 1.0
  %v441 = vlog2.pop %v440
  %v442 = vmul.f32 %v441, 0.6931472
  %v443 = vmul.f32 -0.5, %v433
  %v444 = vadd.f32 %v443, 1.0
  %v445 = vmul.f32 %v444, %v433
  %v446 = vand.u32 2147483647, %v433
  %vm447 = vcmp.lt.f32.partialorder %v446, 0.0004427343
  %v448 = vsel %vm447, %v445, %v442
  %v449 = vadd.f32 %v435, 1.0
  %v450 = vlog2.pop %v449
  %v451 = vmul.f32 %v450, 0.6931472
  %v452 = vmul.f32 -0.5, %v435
  %v453 = vadd.f32 %v452, 1.0
  %v454 = vmul.f32 %v453, %v435
  %v455 = vand.u32 2147483647, %v435
  %vm456 = vcmp.lt.f32.partialorder %v455, 0.0004427343
  %v457 = vsel %vm456, %v454, %v451
  %v458 = vadd.f32 %v437, 1.0
  %v459 = vlog2.pop %v458
  %v460 = vmul.f32 %v459, 0.6931472
  %v461 = vmul.f32 -0.5, %v437
  %v462 = vadd.f32 %v461, 1.0
  %v463 = vmul.f32 %v462, %v437
  %v464 = vand.u32 2147483647, %v437
  %vm465 = vcmp.lt.f32.partialorder %v464, 0.0004427343
  %v466 = vsel %vm465, %v463, %v460
  %v467 = vadd.f32 %v439, 1.0
  %v468 = vlog2.pop %v467
  %v469 = vmul.f32 %v468, 0.6931472
  %v470 = vmul.f32 -0.5, %v439
  %v471 = vadd.f32 %v470, 1.0
  %v472 = vmul.f32 %v471, %v439
  %v473 = vand.u32 2147483647, %v439
  %vm474 = vcmp.lt.f32.partialorder %v473, 0.0004427343
  %v475 = vsel %vm474, %v472, %v469
  %v476 = vadd.f32 %v420, %v448
  %v477 = vadd.f32 %v421, %v457
  %v478 = vadd.f32 %v422, %v466
  %v479 = vadd.f32 %v423, %v475
  %v480 = vmul.f32 %v476, %v37
  %v481 = vmul.f32 %v477, %v38
  %v482 = vmul.f32 %v478, %v39
  %v483 = vmul.f32 %v479, %v40
  %v484 = vsub.f32 0.0, %v408
  %v485 = vsub.f32 0.0, %v409
  %v486 = vsub.f32 0.0, %v410
  %v487 = vsub.f32 0.0, %v411
  %v488 = vmul.f32 %v484, 1.442695
  %v489 = vpow.pop %v488
  %v490 = vmul.f32 %v485, 1.442695
  %v491 = vpow.pop %v490
  %v492 = vmul.f32 %v486, 1.442695
  %v493 = vpow.pop %v492
  %v494 = vmul.f32 %v487, 1.442695
  %v495 = vpow.pop %v494
  %v496 = vadd.f32 %v489, 1.0
  %v497 = vadd.f32 %v491, 1.0
  %v498 = vadd.f32 %v493, 1.0
  %v499 = vadd.f32 %v495, 1.0
  %v500 = vrcp.pop %v496
  %v501 = vmul.f32 1.0, %v500
  %v502 = vrcp.pop %v497
  %v503 = vmul.f32 1.0, %v502
  %v504 = vrcp.pop %v498
  %v505 = vmul.f32 1.0, %v504
  %v506 = vrcp.pop %v499
  %v507 = vmul.f32 1.0, %v506
  %508 = vadd.xlane.f32.xlu0 %v480
  %v509 = vpop.xlane.xlu0 %508
  %510 = vadd.xlane.f32.xlu0 %v481
  %v511 = vpop.xlane.xlu0 %510
  %512 = vadd.xlane.f32.xlu0 %v482
  %v513 = vpop.xlane.xlu0 %512
  %514 = vadd.xlane.f32.xlu0 %v483
  %v515 = vpop.xlane.xlu0 %514
  %v516 = vadd.f32 %v509, %v511
  %v517 = vadd.f32 %v516, %v513
  %v518 = vadd.f32 %v517, %v515
  %v519 = vrot.slane %v518, 4
  %v520 = vadd.f32 %v518, %v519
  %v521 = vrot.slane %v520, 2
  %v522 = vadd.f32 %v520, %v521
  %v523 = vrot.slane %v522, 1
  %v524 = vadd.f32 %v522, %v523
  %v525 = vmul.f32 %v501, %v45
  %v526 = vmul.f32 %v503, %v46
  %v527 = vmul.f32 %v505, %v47
  %v528 = vmul.f32 %v507, %v48
  %v529 = vmul.f32 %v525, %v53
  %v530 = vmul.f32 %v526, %v54
  %v531 = vmul.f32 %v527, %v55
  %v532 = vmul.f32 %v528, %v56
  %533 = vadd.xlane.f32.xlu0 %v529
  %v534 = vpop.xlane.xlu0 %533
  %535 = vadd.xlane.f32.xlu0 %v530
  %v536 = vpop.xlane.xlu0 %535
  %537 = vadd.xlane.f32.xlu0 %v531
  %v538 = vpop.xlane.xlu0 %537
  %539 = vadd.xlane.f32.xlu0 %v532
  %v540 = vpop.xlane.xlu0 %539
  %v541 = vadd.f32 %v534, %v536
  %v542 = vadd.f32 %v541, %v538
  %v543 = vadd.f32 %v542, %v540
  %v544 = vrot.slane %v543, 4
  %v545 = vadd.f32 %v543, %v544
  %v546 = vrot.slane %v545, 2
  %v547 = vadd.f32 %v545, %v546
  %v548 = vrot.slane %v547, 1
  %v549 = vadd.f32 %v547, %v548
  %v550 = vadd.f32 %v501, %v45
  %v551 = vadd.f32 %v503, %v46
  %v552 = vadd.f32 %v505, %v47
  %v553 = vadd.f32 %v507, %v48
  %v554 = vmul.f32 %v550, %v53
  %v555 = vmul.f32 %v551, %v54
  %v556 = vmul.f32 %v552, %v55
  %v557 = vmul.f32 %v553, %v56
  %558 = vadd.xlane.f32.xlu0 %v554
  %v559 = vpop.xlane.xlu0 %558
  %560 = vadd.xlane.f32.xlu0 %v555
  %v561 = vpop.xlane.xlu0 %560
  %562 = vadd.xlane.f32.xlu0 %v556
  %v563 = vpop.xlane.xlu0 %562
  %564 = vadd.xlane.f32.xlu0 %v557
  %v565 = vpop.xlane.xlu0 %564
  %v566 = vadd.f32 %v559, %v561
  %v567 = vadd.f32 %v566, %v563
  %v568 = vadd.f32 %v567, %v565
  %v569 = vrot.slane %v568, 4
  %v570 = vadd.f32 %v568, %v569
  %v571 = vrot.slane %v570, 2
  %v572 = vadd.f32 %v570, %v571
  %v573 = vrot.slane %v572, 1
  %v574 = vadd.f32 %v572, %v573
  %v575 = vsel %vm224, %v524, 0.0
  %v576 = vsel %vm226, %v549, 0.0
  %v577 = vadd.f32 %v575, %v576
  %v578 = vsel %vm229, %v574, 0.0
  %v579 = vadd.f32 %v577, %v578
  %580 = vst [vmem:[%s3 + $0x4] sm:$0x1] %v579
  %s581 = scalar_lea.vmem %s0, 192
  %v582 = vld [vmem:[%s581] sm:$0xff]
  %v583 = vld [vmem:[%s581 + $0x8] sm:$0xff]
  %v584 = vld [vmem:[%s581 + $0x10] sm:$0xff]
  %v585 = vld [vmem:[%s581 + $0x18] sm:$0xff]
  %v586 = vmax.f32 %v582, 0.0
  %v587 = vmax.f32 %v583, 0.0
  %v588 = vmax.f32 %v584, 0.0
  %v589 = vmax.f32 %v585, 0.0
  %v590 = vmul.f32 %v582, %v45
  %v591 = vmul.f32 %v583, %v46
  %v592 = vmul.f32 %v584, %v47
  %v593 = vmul.f32 %v585, %v48
  %v594 = vsub.f32 %v586, %v590
  %v595 = vsub.f32 %v587, %v591
  %v596 = vsub.f32 %v588, %v592
  %v597 = vsub.f32 %v589, %v593
  %v598 = vand.u32 2147483647, %v582
  %v599 = vand.u32 2147483647, %v583
  %v600 = vand.u32 2147483647, %v584
  %v601 = vand.u32 2147483647, %v585
  %v602 = vsub.f32 0.0, %v598
  %v603 = vsub.f32 0.0, %v599
  %v604 = vsub.f32 0.0, %v600
  %v605 = vsub.f32 0.0, %v601
  %v606 = vmul.f32 %v602, 1.442695
  %v607 = vpow.pop %v606
  %v608 = vmul.f32 %v603, 1.442695
  %v609 = vpow.pop %v608
  %v610 = vmul.f32 %v604, 1.442695
  %v611 = vpow.pop %v610
  %v612 = vmul.f32 %v605, 1.442695
  %v613 = vpow.pop %v612
  %v614 = vadd.f32 %v607, 1.0
  %v615 = vlog2.pop %v614
  %v616 = vmul.f32 %v615, 0.6931472
  %v617 = vmul.f32 -0.5, %v607
  %v618 = vadd.f32 %v617, 1.0
  %v619 = vmul.f32 %v618, %v607
  %v620 = vand.u32 2147483647, %v607
  %vm621 = vcmp.lt.f32.partialorder %v620, 0.0004427343
  %v622 = vsel %vm621, %v619, %v616
  %v623 = vadd.f32 %v609, 1.0
  %v624 = vlog2.pop %v623
  %v625 = vmul.f32 %v624, 0.6931472
  %v626 = vmul.f32 -0.5, %v609
  %v627 = vadd.f32 %v626, 1.0
  %v628 = vmul.f32 %v627, %v609
  %v629 = vand.u32 2147483647, %v609
  %vm630 = vcmp.lt.f32.partialorder %v629, 0.0004427343
  %v631 = vsel %vm630, %v628, %v625
  %v632 = vadd.f32 %v611, 1.0
  %v633 = vlog2.pop %v632
  %v634 = vmul.f32 %v633, 0.6931472
  %v635 = vmul.f32 -0.5, %v611
  %v636 = vadd.f32 %v635, 1.0
  %v637 = vmul.f32 %v636, %v611
  %v638 = vand.u32 2147483647, %v611
  %vm639 = vcmp.lt.f32.partialorder %v638, 0.0004427343
  %v640 = vsel %vm639, %v637, %v634
  %v641 = vadd.f32 %v613, 1.0
  %v642 = vlog2.pop %v641
  %v643 = vmul.f32 %v642, 0.6931472
  %v644 = vmul.f32 -0.5, %v613
  %v645 = vadd.f32 %v644, 1.0
  %v646 = vmul.f32 %v645, %v613
  %v647 = vand.u32 2147483647, %v613
  %vm648 = vcmp.lt.f32.partialorder %v647, 0.0004427343
  %v649 = vsel %vm648, %v646, %v643
  %v650 = vadd.f32 %v594, %v622
  %v651 = vadd.f32 %v595, %v631
  %v652 = vadd.f32 %v596, %v640
  %v653 = vadd.f32 %v597, %v649
  %v654 = vmul.f32 %v650, %v37
  %v655 = vmul.f32 %v651, %v38
  %v656 = vmul.f32 %v652, %v39
  %v657 = vmul.f32 %v653, %v40
  %v658 = vsub.f32 0.0, %v582
  %v659 = vsub.f32 0.0, %v583
  %v660 = vsub.f32 0.0, %v584
  %v661 = vsub.f32 0.0, %v585
  %v662 = vmul.f32 %v658, 1.442695
  %v663 = vpow.pop %v662
  %v664 = vmul.f32 %v659, 1.442695
  %v665 = vpow.pop %v664
  %v666 = vmul.f32 %v660, 1.442695
  %v667 = vpow.pop %v666
  %v668 = vmul.f32 %v661, 1.442695
  %v669 = vpow.pop %v668
  %v670 = vadd.f32 %v663, 1.0
  %v671 = vadd.f32 %v665, 1.0
  %v672 = vadd.f32 %v667, 1.0
  %v673 = vadd.f32 %v669, 1.0
  %v674 = vrcp.pop %v670
  %v675 = vmul.f32 1.0, %v674
  %v676 = vrcp.pop %v671
  %v677 = vmul.f32 1.0, %v676
  %v678 = vrcp.pop %v672
  %v679 = vmul.f32 1.0, %v678
  %v680 = vrcp.pop %v673
  %v681 = vmul.f32 1.0, %v680
  %682 = vadd.xlane.f32.xlu0 %v654
  %v683 = vpop.xlane.xlu0 %682
  %684 = vadd.xlane.f32.xlu0 %v655
  %v685 = vpop.xlane.xlu0 %684
  %686 = vadd.xlane.f32.xlu0 %v656
  %v687 = vpop.xlane.xlu0 %686
  %688 = vadd.xlane.f32.xlu0 %v657
  %v689 = vpop.xlane.xlu0 %688
  %v690 = vadd.f32 %v683, %v685
  %v691 = vadd.f32 %v690, %v687
  %v692 = vadd.f32 %v691, %v689
  %v693 = vrot.slane %v692, 4
  %v694 = vadd.f32 %v692, %v693
  %v695 = vrot.slane %v694, 2
  %v696 = vadd.f32 %v694, %v695
  %v697 = vrot.slane %v696, 1
  %v698 = vadd.f32 %v696, %v697
  %v699 = vmul.f32 %v675, %v45
  %v700 = vmul.f32 %v677, %v46
  %v701 = vmul.f32 %v679, %v47
  %v702 = vmul.f32 %v681, %v48
  %v703 = vmul.f32 %v699, %v53
  %v704 = vmul.f32 %v700, %v54
  %v705 = vmul.f32 %v701, %v55
  %v706 = vmul.f32 %v702, %v56
  %707 = vadd.xlane.f32.xlu0 %v703
  %v708 = vpop.xlane.xlu0 %707
  %709 = vadd.xlane.f32.xlu0 %v704
  %v710 = vpop.xlane.xlu0 %709
  %711 = vadd.xlane.f32.xlu0 %v705
  %v712 = vpop.xlane.xlu0 %711
  %713 = vadd.xlane.f32.xlu0 %v706
  %v714 = vpop.xlane.xlu0 %713
  %v715 = vadd.f32 %v708, %v710
  %v716 = vadd.f32 %v715, %v712
  %v717 = vadd.f32 %v716, %v714
  %v718 = vrot.slane %v717, 4
  %v719 = vadd.f32 %v717, %v718
  %v720 = vrot.slane %v719, 2
  %v721 = vadd.f32 %v719, %v720
  %v722 = vrot.slane %v721, 1
  %v723 = vadd.f32 %v721, %v722
  %v724 = vadd.f32 %v675, %v45
  %v725 = vadd.f32 %v677, %v46
  %v726 = vadd.f32 %v679, %v47
  %v727 = vadd.f32 %v681, %v48
  %v728 = vmul.f32 %v724, %v53
  %v729 = vmul.f32 %v725, %v54
  %v730 = vmul.f32 %v726, %v55
  %v731 = vmul.f32 %v727, %v56
  %732 = vadd.xlane.f32.xlu0 %v728
  %v733 = vpop.xlane.xlu0 %732
  %734 = vadd.xlane.f32.xlu0 %v729
  %v735 = vpop.xlane.xlu0 %734
  %736 = vadd.xlane.f32.xlu0 %v730
  %v737 = vpop.xlane.xlu0 %736
  %738 = vadd.xlane.f32.xlu0 %v731
  %v739 = vpop.xlane.xlu0 %738
  %v740 = vadd.f32 %v733, %v735
  %v741 = vadd.f32 %v740, %v737
  %v742 = vadd.f32 %v741, %v739
  %v743 = vrot.slane %v742, 4
  %v744 = vadd.f32 %v742, %v743
  %v745 = vrot.slane %v744, 2
  %v746 = vadd.f32 %v744, %v745
  %v747 = vrot.slane %v746, 1
  %v748 = vadd.f32 %v746, %v747
  %v749 = vsel %vm224, %v698, 0.0
  %v750 = vsel %vm226, %v723, 0.0
  %v751 = vadd.f32 %v749, %v750
  %v752 = vsel %vm229, %v748, 0.0
  %v753 = vadd.f32 %v751, %v752
  %754 = vst [vmem:[%s3 + $0x6] sm:$0x1] %v753
  %s755 = scalar_lea.vmem %s1, 32
  %v756 = vld [vmem:[%s755] sm:$0xff]
  %v757 = vld [vmem:[%s755 + $0x8] sm:$0xff]
  %v758 = vld [vmem:[%s755 + $0x10] sm:$0xff]
  %v759 = vld [vmem:[%s755 + $0x18] sm:$0xff]
  %v760 = vmul.f32 %v756, %v37
  %v761 = vmul.f32 %v757, %v38
  %v762 = vmul.f32 %v758, %v39
  %v763 = vmul.f32 %v759, %v40
  %s764 = scalar_lea.vmem %s2, 32
  %v765 = vld [vmem:[%s764] sm:$0xff]
  %v766 = vld [vmem:[%s764 + $0x8] sm:$0xff]
  %v767 = vld [vmem:[%s764 + $0x10] sm:$0xff]
  %v768 = vld [vmem:[%s764 + $0x18] sm:$0xff]
  %v769 = vmul.f32 %v765, %v37
  %v770 = vmul.f32 %v766, %v38
  %v771 = vmul.f32 %v767, %v39
  %v772 = vmul.f32 %v768, %v40
  %s773 = scalar_lea.vmem %s0, 32
  %v774 = vld [vmem:[%s773] sm:$0xff]
  %v775 = vld [vmem:[%s773 + $0x8] sm:$0xff]
  %v776 = vld [vmem:[%s773 + $0x10] sm:$0xff]
  %v777 = vld [vmem:[%s773 + $0x18] sm:$0xff]
  %v778 = vmax.f32 %v774, 0.0
  %v779 = vmax.f32 %v775, 0.0
  %v780 = vmax.f32 %v776, 0.0
  %v781 = vmax.f32 %v777, 0.0
  %v782 = vmul.f32 %v774, %v760
  %v783 = vmul.f32 %v775, %v761
  %v784 = vmul.f32 %v776, %v762
  %v785 = vmul.f32 %v777, %v763
  %v786 = vsub.f32 %v778, %v782
  %v787 = vsub.f32 %v779, %v783
  %v788 = vsub.f32 %v780, %v784
  %v789 = vsub.f32 %v781, %v785
  %v790 = vand.u32 2147483647, %v774
  %v791 = vand.u32 2147483647, %v775
  %v792 = vand.u32 2147483647, %v776
  %v793 = vand.u32 2147483647, %v777
  %v794 = vsub.f32 0.0, %v790
  %v795 = vsub.f32 0.0, %v791
  %v796 = vsub.f32 0.0, %v792
  %v797 = vsub.f32 0.0, %v793
  %v798 = vmul.f32 %v794, 1.442695
  %v799 = vpow.pop %v798
  %v800 = vmul.f32 %v795, 1.442695
  %v801 = vpow.pop %v800
  %v802 = vmul.f32 %v796, 1.442695
  %v803 = vpow.pop %v802
  %v804 = vmul.f32 %v797, 1.442695
  %v805 = vpow.pop %v804
  %v806 = vadd.f32 %v799, 1.0
  %v807 = vlog2.pop %v806
  %v808 = vmul.f32 %v807, 0.6931472
  %v809 = vmul.f32 -0.5, %v799
  %v810 = vadd.f32 %v809, 1.0
  %v811 = vmul.f32 %v810, %v799
  %v812 = vand.u32 2147483647, %v799
  %vm813 = vcmp.lt.f32.partialorder %v812, 0.0004427343
  %v814 = vsel %vm813, %v811, %v808
  %v815 = vadd.f32 %v801, 1.0
  %v816 = vlog2.pop %v815
  %v817 = vmul.f32 %v816, 0.6931472
  %v818 = vmul.f32 -0.5, %v801
  %v819 = vadd.f32 %v818, 1.0
  %v820 = vmul.f32 %v819, %v801
  %v821 = vand.u32 2147483647, %v801
  %vm822 = vcmp.lt.f32.partialorder %v821, 0.0004427343
  %v823 = vsel %vm822, %v820, %v817
  %v824 = vadd.f32 %v803, 1.0
  %v825 = vlog2.pop %v824
  %v826 = vmul.f32 %v825, 0.6931472
  %v827 = vmul.f32 -0.5, %v803
  %v828 = vadd.f32 %v827, 1.0
  %v829 = vmul.f32 %v828, %v803
  %v830 = vand.u32 2147483647, %v803
  %vm831 = vcmp.lt.f32.partialorder %v830, 0.0004427343
  %v832 = vsel %vm831, %v829, %v826
  %v833 = vadd.f32 %v805, 1.0
  %v834 = vlog2.pop %v833
  %v835 = vmul.f32 %v834, 0.6931472
  %v836 = vmul.f32 -0.5, %v805
  %v837 = vadd.f32 %v836, 1.0
  %v838 = vmul.f32 %v837, %v805
  %v839 = vand.u32 2147483647, %v805
  %vm840 = vcmp.lt.f32.partialorder %v839, 0.0004427343
  %v841 = vsel %vm840, %v838, %v835
  %v842 = vadd.f32 %v786, %v814
  %v843 = vadd.f32 %v787, %v823
  %v844 = vadd.f32 %v788, %v832
  %v845 = vadd.f32 %v789, %v841
  %v846 = vmul.f32 %v842, %v37
  %v847 = vmul.f32 %v843, %v38
  %v848 = vmul.f32 %v844, %v39
  %v849 = vmul.f32 %v845, %v40
  %v850 = vsub.f32 0.0, %v774
  %v851 = vsub.f32 0.0, %v775
  %v852 = vsub.f32 0.0, %v776
  %v853 = vsub.f32 0.0, %v777
  %v854 = vmul.f32 %v850, 1.442695
  %v855 = vpow.pop %v854
  %v856 = vmul.f32 %v851, 1.442695
  %v857 = vpow.pop %v856
  %v858 = vmul.f32 %v852, 1.442695
  %v859 = vpow.pop %v858
  %v860 = vmul.f32 %v853, 1.442695
  %v861 = vpow.pop %v860
  %v862 = vadd.f32 %v855, 1.0
  %v863 = vadd.f32 %v857, 1.0
  %v864 = vadd.f32 %v859, 1.0
  %v865 = vadd.f32 %v861, 1.0
  %v866 = vrcp.pop %v862
  %v867 = vmul.f32 1.0, %v866
  %v868 = vrcp.pop %v863
  %v869 = vmul.f32 1.0, %v868
  %v870 = vrcp.pop %v864
  %v871 = vmul.f32 1.0, %v870
  %v872 = vrcp.pop %v865
  %v873 = vmul.f32 1.0, %v872
  %874 = vadd.xlane.f32.xlu0 %v846
  %v875 = vpop.xlane.xlu0 %874
  %876 = vadd.xlane.f32.xlu0 %v847
  %v877 = vpop.xlane.xlu0 %876
  %878 = vadd.xlane.f32.xlu0 %v848
  %v879 = vpop.xlane.xlu0 %878
  %880 = vadd.xlane.f32.xlu0 %v849
  %v881 = vpop.xlane.xlu0 %880
  %v882 = vadd.f32 %v875, %v877
  %v883 = vadd.f32 %v882, %v879
  %v884 = vadd.f32 %v883, %v881
  %v885 = vrot.slane %v884, 4
  %v886 = vadd.f32 %v884, %v885
  %v887 = vrot.slane %v886, 2
  %v888 = vadd.f32 %v886, %v887
  %v889 = vrot.slane %v888, 1
  %v890 = vadd.f32 %v888, %v889
  %v891 = vmul.f32 %v867, %v760
  %v892 = vmul.f32 %v869, %v761
  %v893 = vmul.f32 %v871, %v762
  %v894 = vmul.f32 %v873, %v763
  %v895 = vmul.f32 %v891, %v769
  %v896 = vmul.f32 %v892, %v770
  %v897 = vmul.f32 %v893, %v771
  %v898 = vmul.f32 %v894, %v772
  %899 = vadd.xlane.f32.xlu0 %v895
  %v900 = vpop.xlane.xlu0 %899
  %901 = vadd.xlane.f32.xlu0 %v896
  %v902 = vpop.xlane.xlu0 %901
  %903 = vadd.xlane.f32.xlu0 %v897
  %v904 = vpop.xlane.xlu0 %903
  %905 = vadd.xlane.f32.xlu0 %v898
  %v906 = vpop.xlane.xlu0 %905
  %v907 = vadd.f32 %v900, %v902
  %v908 = vadd.f32 %v907, %v904
  %v909 = vadd.f32 %v908, %v906
  %v910 = vrot.slane %v909, 4
  %v911 = vadd.f32 %v909, %v910
  %v912 = vrot.slane %v911, 2
  %v913 = vadd.f32 %v911, %v912
  %v914 = vrot.slane %v913, 1
  %v915 = vadd.f32 %v913, %v914
  %v916 = vadd.f32 %v867, %v760
  %v917 = vadd.f32 %v869, %v761
  %v918 = vadd.f32 %v871, %v762
  %v919 = vadd.f32 %v873, %v763
  %v920 = vmul.f32 %v916, %v769
  %v921 = vmul.f32 %v917, %v770
  %v922 = vmul.f32 %v918, %v771
  %v923 = vmul.f32 %v919, %v772
  %924 = vadd.xlane.f32.xlu0 %v920
  %v925 = vpop.xlane.xlu0 %924
  %926 = vadd.xlane.f32.xlu0 %v921
  %v927 = vpop.xlane.xlu0 %926
  %928 = vadd.xlane.f32.xlu0 %v922
  %v929 = vpop.xlane.xlu0 %928
  %930 = vadd.xlane.f32.xlu0 %v923
  %v931 = vpop.xlane.xlu0 %930
  %v932 = vadd.f32 %v925, %v927
  %v933 = vadd.f32 %v932, %v929
  %v934 = vadd.f32 %v933, %v931
  %v935 = vrot.slane %v934, 4
  %v936 = vadd.f32 %v934, %v935
  %v937 = vrot.slane %v936, 2
  %v938 = vadd.f32 %v936, %v937
  %v939 = vrot.slane %v938, 1
  %v940 = vadd.f32 %v938, %v939
  %v941 = vsel %vm224, %v890, 0.0
  %v942 = vsel %vm226, %v915, 0.0
  %v943 = vadd.f32 %v941, %v942
  %v944 = vsel %vm229, %v940, 0.0
  %v945 = vadd.f32 %v943, %v944
  %946 = vst [vmem:[%s3 + $0x1] sm:$0x1] %v945
  %s947 = scalar_lea.vmem %s0, 96
  %v948 = vld [vmem:[%s947] sm:$0xff]
  %v949 = vld [vmem:[%s947 + $0x8] sm:$0xff]
  %v950 = vld [vmem:[%s947 + $0x10] sm:$0xff]
  %v951 = vld [vmem:[%s947 + $0x18] sm:$0xff]
  %v952 = vmax.f32 %v948, 0.0
  %v953 = vmax.f32 %v949, 0.0
  %v954 = vmax.f32 %v950, 0.0
  %v955 = vmax.f32 %v951, 0.0
  %v956 = vmul.f32 %v948, %v760
  %v957 = vmul.f32 %v949, %v761
  %v958 = vmul.f32 %v950, %v762
  %v959 = vmul.f32 %v951, %v763
  %v960 = vsub.f32 %v952, %v956
  %v961 = vsub.f32 %v953, %v957
  %v962 = vsub.f32 %v954, %v958
  %v963 = vsub.f32 %v955, %v959
  %v964 = vand.u32 2147483647, %v948
  %v965 = vand.u32 2147483647, %v949
  %v966 = vand.u32 2147483647, %v950
  %v967 = vand.u32 2147483647, %v951
  %v968 = vsub.f32 0.0, %v964
  %v969 = vsub.f32 0.0, %v965
  %v970 = vsub.f32 0.0, %v966
  %v971 = vsub.f32 0.0, %v967
  %v972 = vmul.f32 %v968, 1.442695
  %v973 = vpow.pop %v972
  %v974 = vmul.f32 %v969, 1.442695
  %v975 = vpow.pop %v974
  %v976 = vmul.f32 %v970, 1.442695
  %v977 = vpow.pop %v976
  %v978 = vmul.f32 %v971, 1.442695
  %v979 = vpow.pop %v978
  %v980 = vadd.f32 %v973, 1.0
  %v981 = vlog2.pop %v980
  %v982 = vmul.f32 %v981, 0.6931472
  %v983 = vmul.f32 -0.5, %v973
  %v984 = vadd.f32 %v983, 1.0
  %v985 = vmul.f32 %v984, %v973
  %v986 = vand.u32 2147483647, %v973
  %vm987 = vcmp.lt.f32.partialorder %v986, 0.0004427343
  %v988 = vsel %vm987, %v985, %v982
  %v989 = vadd.f32 %v975, 1.0
  %v990 = vlog2.pop %v989
  %v991 = vmul.f32 %v990, 0.6931472
  %v992 = vmul.f32 -0.5, %v975
  %v993 = vadd.f32 %v992, 1.0
  %v994 = vmul.f32 %v993, %v975
  %v995 = vand.u32 2147483647, %v975
  %vm996 = vcmp.lt.f32.partialorder %v995, 0.0004427343
  %v997 = vsel %vm996, %v994, %v991
  %v998 = vadd.f32 %v977, 1.0
  %v999 = vlog2.pop %v998
  %v1000 = vmul.f32 %v999, 0.6931472
  %v1001 = vmul.f32 -0.5, %v977
  %v1002 = vadd.f32 %v1001, 1.0
  %v1003 = vmul.f32 %v1002, %v977
  %v1004 = vand.u32 2147483647, %v977
  %vm1005 = vcmp.lt.f32.partialorder %v1004, 0.0004427343
  %v1006 = vsel %vm1005, %v1003, %v1000
  %v1007 = vadd.f32 %v979, 1.0
  %v1008 = vlog2.pop %v1007
  %v1009 = vmul.f32 %v1008, 0.6931472
  %v1010 = vmul.f32 -0.5, %v979
  %v1011 = vadd.f32 %v1010, 1.0
  %v1012 = vmul.f32 %v1011, %v979
  %v1013 = vand.u32 2147483647, %v979
  %vm1014 = vcmp.lt.f32.partialorder %v1013, 0.0004427343
  %v1015 = vsel %vm1014, %v1012, %v1009
  %v1016 = vadd.f32 %v960, %v988
  %v1017 = vadd.f32 %v961, %v997
  %v1018 = vadd.f32 %v962, %v1006
  %v1019 = vadd.f32 %v963, %v1015
  %v1020 = vmul.f32 %v1016, %v37
  %v1021 = vmul.f32 %v1017, %v38
  %v1022 = vmul.f32 %v1018, %v39
  %v1023 = vmul.f32 %v1019, %v40
  %v1024 = vsub.f32 0.0, %v948
  %v1025 = vsub.f32 0.0, %v949
  %v1026 = vsub.f32 0.0, %v950
  %v1027 = vsub.f32 0.0, %v951
  %v1028 = vmul.f32 %v1024, 1.442695
  %v1029 = vpow.pop %v1028
  %v1030 = vmul.f32 %v1025, 1.442695
  %v1031 = vpow.pop %v1030
  %v1032 = vmul.f32 %v1026, 1.442695
  %v1033 = vpow.pop %v1032
  %v1034 = vmul.f32 %v1027, 1.442695
  %v1035 = vpow.pop %v1034
  %v1036 = vadd.f32 %v1029, 1.0
  %v1037 = vadd.f32 %v1031, 1.0
  %v1038 = vadd.f32 %v1033, 1.0
  %v1039 = vadd.f32 %v1035, 1.0
  %v1040 = vrcp.pop %v1036
  %v1041 = vmul.f32 1.0, %v1040
  %v1042 = vrcp.pop %v1037
  %v1043 = vmul.f32 1.0, %v1042
  %v1044 = vrcp.pop %v1038
  %v1045 = vmul.f32 1.0, %v1044
  %v1046 = vrcp.pop %v1039
  %v1047 = vmul.f32 1.0, %v1046
  %1048 = vadd.xlane.f32.xlu0 %v1020
  %v1049 = vpop.xlane.xlu0 %1048
  %1050 = vadd.xlane.f32.xlu0 %v1021
  %v1051 = vpop.xlane.xlu0 %1050
  %1052 = vadd.xlane.f32.xlu0 %v1022
  %v1053 = vpop.xlane.xlu0 %1052
  %1054 = vadd.xlane.f32.xlu0 %v1023
  %v1055 = vpop.xlane.xlu0 %1054
  %v1056 = vadd.f32 %v1049, %v1051
  %v1057 = vadd.f32 %v1056, %v1053
  %v1058 = vadd.f32 %v1057, %v1055
  %v1059 = vrot.slane %v1058, 4
  %v1060 = vadd.f32 %v1058, %v1059
  %v1061 = vrot.slane %v1060, 2
  %v1062 = vadd.f32 %v1060, %v1061
  %v1063 = vrot.slane %v1062, 1
  %v1064 = vadd.f32 %v1062, %v1063
  %v1065 = vmul.f32 %v1041, %v760
  %v1066 = vmul.f32 %v1043, %v761
  %v1067 = vmul.f32 %v1045, %v762
  %v1068 = vmul.f32 %v1047, %v763
  %v1069 = vmul.f32 %v1065, %v769
  %v1070 = vmul.f32 %v1066, %v770
  %v1071 = vmul.f32 %v1067, %v771
  %v1072 = vmul.f32 %v1068, %v772
  %1073 = vadd.xlane.f32.xlu0 %v1069
  %v1074 = vpop.xlane.xlu0 %1073
  %1075 = vadd.xlane.f32.xlu0 %v1070
  %v1076 = vpop.xlane.xlu0 %1075
  %1077 = vadd.xlane.f32.xlu0 %v1071
  %v1078 = vpop.xlane.xlu0 %1077
  %1079 = vadd.xlane.f32.xlu0 %v1072
  %v1080 = vpop.xlane.xlu0 %1079
  %v1081 = vadd.f32 %v1074, %v1076
  %v1082 = vadd.f32 %v1081, %v1078
  %v1083 = vadd.f32 %v1082, %v1080
  %v1084 = vrot.slane %v1083, 4
  %v1085 = vadd.f32 %v1083, %v1084
  %v1086 = vrot.slane %v1085, 2
  %v1087 = vadd.f32 %v1085, %v1086
  %v1088 = vrot.slane %v1087, 1
  %v1089 = vadd.f32 %v1087, %v1088
  %v1090 = vadd.f32 %v1041, %v760
  %v1091 = vadd.f32 %v1043, %v761
  %v1092 = vadd.f32 %v1045, %v762
  %v1093 = vadd.f32 %v1047, %v763
  %v1094 = vmul.f32 %v1090, %v769
  %v1095 = vmul.f32 %v1091, %v770
  %v1096 = vmul.f32 %v1092, %v771
  %v1097 = vmul.f32 %v1093, %v772
  %1098 = vadd.xlane.f32.xlu0 %v1094
  %v1099 = vpop.xlane.xlu0 %1098
  %1100 = vadd.xlane.f32.xlu0 %v1095
  %v1101 = vpop.xlane.xlu0 %1100
  %1102 = vadd.xlane.f32.xlu0 %v1096
  %v1103 = vpop.xlane.xlu0 %1102
  %1104 = vadd.xlane.f32.xlu0 %v1097
  %v1105 = vpop.xlane.xlu0 %1104
  %v1106 = vadd.f32 %v1099, %v1101
  %v1107 = vadd.f32 %v1106, %v1103
  %v1108 = vadd.f32 %v1107, %v1105
  %v1109 = vrot.slane %v1108, 4
  %v1110 = vadd.f32 %v1108, %v1109
  %v1111 = vrot.slane %v1110, 2
  %v1112 = vadd.f32 %v1110, %v1111
  %v1113 = vrot.slane %v1112, 1
  %v1114 = vadd.f32 %v1112, %v1113
  %v1115 = vsel %vm224, %v1064, 0.0
  %v1116 = vsel %vm226, %v1089, 0.0
  %v1117 = vadd.f32 %v1115, %v1116
  %v1118 = vsel %vm229, %v1114, 0.0
  %v1119 = vadd.f32 %v1117, %v1118
  %1120 = vst [vmem:[%s3 + $0x3] sm:$0x1] %v1119
  %s1121 = scalar_lea.vmem %s0, 160
  %v1122 = vld [vmem:[%s1121] sm:$0xff]
  %v1123 = vld [vmem:[%s1121 + $0x8] sm:$0xff]
  %v1124 = vld [vmem:[%s1121 + $0x10] sm:$0xff]
  %v1125 = vld [vmem:[%s1121 + $0x18] sm:$0xff]
  %v1126 = vmax.f32 %v1122, 0.0
  %v1127 = vmax.f32 %v1123, 0.0
  %v1128 = vmax.f32 %v1124, 0.0
  %v1129 = vmax.f32 %v1125, 0.0
  %v1130 = vmul.f32 %v1122, %v760
  %v1131 = vmul.f32 %v1123, %v761
  %v1132 = vmul.f32 %v1124, %v762
  %v1133 = vmul.f32 %v1125, %v763
  %v1134 = vsub.f32 %v1126, %v1130
  %v1135 = vsub.f32 %v1127, %v1131
  %v1136 = vsub.f32 %v1128, %v1132
  %v1137 = vsub.f32 %v1129, %v1133
  %v1138 = vand.u32 2147483647, %v1122
  %v1139 = vand.u32 2147483647, %v1123
  %v1140 = vand.u32 2147483647, %v1124
  %v1141 = vand.u32 2147483647, %v1125
  %v1142 = vsub.f32 0.0, %v1138
  %v1143 = vsub.f32 0.0, %v1139
  %v1144 = vsub.f32 0.0, %v1140
  %v1145 = vsub.f32 0.0, %v1141
  %v1146 = vmul.f32 %v1142, 1.442695
  %v1147 = vpow.pop %v1146
  %v1148 = vmul.f32 %v1143, 1.442695
  %v1149 = vpow.pop %v1148
  %v1150 = vmul.f32 %v1144, 1.442695
  %v1151 = vpow.pop %v1150
  %v1152 = vmul.f32 %v1145, 1.442695
  %v1153 = vpow.pop %v1152
  %v1154 = vadd.f32 %v1147, 1.0
  %v1155 = vlog2.pop %v1154
  %v1156 = vmul.f32 %v1155, 0.6931472
  %v1157 = vmul.f32 -0.5, %v1147
  %v1158 = vadd.f32 %v1157, 1.0
  %v1159 = vmul.f32 %v1158, %v1147
  %v1160 = vand.u32 2147483647, %v1147
  %vm1161 = vcmp.lt.f32.partialorder %v1160, 0.0004427343
  %v1162 = vsel %vm1161, %v1159, %v1156
  %v1163 = vadd.f32 %v1149, 1.0
  %v1164 = vlog2.pop %v1163
  %v1165 = vmul.f32 %v1164, 0.6931472
  %v1166 = vmul.f32 -0.5, %v1149
  %v1167 = vadd.f32 %v1166, 1.0
  %v1168 = vmul.f32 %v1167, %v1149
  %v1169 = vand.u32 2147483647, %v1149
  %vm1170 = vcmp.lt.f32.partialorder %v1169, 0.0004427343
  %v1171 = vsel %vm1170, %v1168, %v1165
  %v1172 = vadd.f32 %v1151, 1.0
  %v1173 = vlog2.pop %v1172
  %v1174 = vmul.f32 %v1173, 0.6931472
  %v1175 = vmul.f32 -0.5, %v1151
  %v1176 = vadd.f32 %v1175, 1.0
  %v1177 = vmul.f32 %v1176, %v1151
  %v1178 = vand.u32 2147483647, %v1151
  %vm1179 = vcmp.lt.f32.partialorder %v1178, 0.0004427343
  %v1180 = vsel %vm1179, %v1177, %v1174
  %v1181 = vadd.f32 %v1153, 1.0
  %v1182 = vlog2.pop %v1181
  %v1183 = vmul.f32 %v1182, 0.6931472
  %v1184 = vmul.f32 -0.5, %v1153
  %v1185 = vadd.f32 %v1184, 1.0
  %v1186 = vmul.f32 %v1185, %v1153
  %v1187 = vand.u32 2147483647, %v1153
  %vm1188 = vcmp.lt.f32.partialorder %v1187, 0.0004427343
  %v1189 = vsel %vm1188, %v1186, %v1183
  %v1190 = vadd.f32 %v1134, %v1162
  %v1191 = vadd.f32 %v1135, %v1171
  %v1192 = vadd.f32 %v1136, %v1180
  %v1193 = vadd.f32 %v1137, %v1189
  %v1194 = vmul.f32 %v1190, %v37
  %v1195 = vmul.f32 %v1191, %v38
  %v1196 = vmul.f32 %v1192, %v39
  %v1197 = vmul.f32 %v1193, %v40
  %v1198 = vsub.f32 0.0, %v1122
  %v1199 = vsub.f32 0.0, %v1123
  %v1200 = vsub.f32 0.0, %v1124
  %v1201 = vsub.f32 0.0, %v1125
  %v1202 = vmul.f32 %v1198, 1.442695
  %v1203 = vpow.pop %v1202
  %v1204 = vmul.f32 %v1199, 1.442695
  %v1205 = vpow.pop %v1204
  %v1206 = vmul.f32 %v1200, 1.442695
  %v1207 = vpow.pop %v1206
  %v1208 = vmul.f32 %v1201, 1.442695
  %v1209 = vpow.pop %v1208
  %v1210 = vadd.f32 %v1203, 1.0
  %v1211 = vadd.f32 %v1205, 1.0
  %v1212 = vadd.f32 %v1207, 1.0
  %v1213 = vadd.f32 %v1209, 1.0
  %v1214 = vrcp.pop %v1210
  %v1215 = vmul.f32 1.0, %v1214
  %v1216 = vrcp.pop %v1211
  %v1217 = vmul.f32 1.0, %v1216
  %v1218 = vrcp.pop %v1212
  %v1219 = vmul.f32 1.0, %v1218
  %v1220 = vrcp.pop %v1213
  %v1221 = vmul.f32 1.0, %v1220
  %1222 = vadd.xlane.f32.xlu0 %v1194
  %v1223 = vpop.xlane.xlu0 %1222
  %1224 = vadd.xlane.f32.xlu0 %v1195
  %v1225 = vpop.xlane.xlu0 %1224
  %1226 = vadd.xlane.f32.xlu0 %v1196
  %v1227 = vpop.xlane.xlu0 %1226
  %1228 = vadd.xlane.f32.xlu0 %v1197
  %v1229 = vpop.xlane.xlu0 %1228
  %v1230 = vadd.f32 %v1223, %v1225
  %v1231 = vadd.f32 %v1230, %v1227
  %v1232 = vadd.f32 %v1231, %v1229
  %v1233 = vrot.slane %v1232, 4
  %v1234 = vadd.f32 %v1232, %v1233
  %v1235 = vrot.slane %v1234, 2
  %v1236 = vadd.f32 %v1234, %v1235
  %v1237 = vrot.slane %v1236, 1
  %v1238 = vadd.f32 %v1236, %v1237
  %v1239 = vmul.f32 %v1215, %v760
  %v1240 = vmul.f32 %v1217, %v761
  %v1241 = vmul.f32 %v1219, %v762
  %v1242 = vmul.f32 %v1221, %v763
  %v1243 = vmul.f32 %v1239, %v769
  %v1244 = vmul.f32 %v1240, %v770
  %v1245 = vmul.f32 %v1241, %v771
  %v1246 = vmul.f32 %v1242, %v772
  %1247 = vadd.xlane.f32.xlu0 %v1243
  %v1248 = vpop.xlane.xlu0 %1247
  %1249 = vadd.xlane.f32.xlu0 %v1244
  %v1250 = vpop.xlane.xlu0 %1249
  %1251 = vadd.xlane.f32.xlu0 %v1245
  %v1252 = vpop.xlane.xlu0 %1251
  %1253 = vadd.xlane.f32.xlu0 %v1246
  %v1254 = vpop.xlane.xlu0 %1253
  %v1255 = vadd.f32 %v1248, %v1250
  %v1256 = vadd.f32 %v1255, %v1252
  %v1257 = vadd.f32 %v1256, %v1254
  %v1258 = vrot.slane %v1257, 4
  %v1259 = vadd.f32 %v1257, %v1258
  %v1260 = vrot.slane %v1259, 2
  %v1261 = vadd.f32 %v1259, %v1260
  %v1262 = vrot.slane %v1261, 1
  %v1263 = vadd.f32 %v1261, %v1262
  %v1264 = vadd.f32 %v1215, %v760
  %v1265 = vadd.f32 %v1217, %v761
  %v1266 = vadd.f32 %v1219, %v762
  %v1267 = vadd.f32 %v1221, %v763
  %v1268 = vmul.f32 %v1264, %v769
  %v1269 = vmul.f32 %v1265, %v770
  %v1270 = vmul.f32 %v1266, %v771
  %v1271 = vmul.f32 %v1267, %v772
  %1272 = vadd.xlane.f32.xlu0 %v1268
  %v1273 = vpop.xlane.xlu0 %1272
  %1274 = vadd.xlane.f32.xlu0 %v1269
  %v1275 = vpop.xlane.xlu0 %1274
  %1276 = vadd.xlane.f32.xlu0 %v1270
  %v1277 = vpop.xlane.xlu0 %1276
  %1278 = vadd.xlane.f32.xlu0 %v1271
  %v1279 = vpop.xlane.xlu0 %1278
  %v1280 = vadd.f32 %v1273, %v1275
  %v1281 = vadd.f32 %v1280, %v1277
  %v1282 = vadd.f32 %v1281, %v1279
  %v1283 = vrot.slane %v1282, 4
  %v1284 = vadd.f32 %v1282, %v1283
  %v1285 = vrot.slane %v1284, 2
  %v1286 = vadd.f32 %v1284, %v1285
  %v1287 = vrot.slane %v1286, 1
  %v1288 = vadd.f32 %v1286, %v1287
  %v1289 = vsel %vm224, %v1238, 0.0
  %v1290 = vsel %vm226, %v1263, 0.0
  %v1291 = vadd.f32 %v1289, %v1290
  %v1292 = vsel %vm229, %v1288, 0.0
  %v1293 = vadd.f32 %v1291, %v1292
  %1294 = vst [vmem:[%s3 + $0x5] sm:$0x1] %v1293
  %s1295 = scalar_lea.vmem %s0, 224
  %v1296 = vld [vmem:[%s1295] sm:$0xff]
  %v1297 = vld [vmem:[%s1295 + $0x8] sm:$0xff]
  %v1298 = vld [vmem:[%s1295 + $0x10] sm:$0xff]
  %v1299 = vld [vmem:[%s1295 + $0x18] sm:$0xff]
  %v1300 = vmax.f32 %v1296, 0.0
  %v1301 = vmax.f32 %v1297, 0.0
  %v1302 = vmax.f32 %v1298, 0.0
  %v1303 = vmax.f32 %v1299, 0.0
  %v1304 = vmul.f32 %v1296, %v760
  %v1305 = vmul.f32 %v1297, %v761
  %v1306 = vmul.f32 %v1298, %v762
  %v1307 = vmul.f32 %v1299, %v763
  %v1308 = vsub.f32 %v1300, %v1304
  %v1309 = vsub.f32 %v1301, %v1305
  %v1310 = vsub.f32 %v1302, %v1306
  %v1311 = vsub.f32 %v1303, %v1307
  %v1312 = vand.u32 2147483647, %v1296
  %v1313 = vand.u32 2147483647, %v1297
  %v1314 = vand.u32 2147483647, %v1298
  %v1315 = vand.u32 2147483647, %v1299
  %v1316 = vsub.f32 0.0, %v1312
  %v1317 = vsub.f32 0.0, %v1313
  %v1318 = vsub.f32 0.0, %v1314
  %v1319 = vsub.f32 0.0, %v1315
  %v1320 = vmul.f32 %v1316, 1.442695
  %v1321 = vpow.pop %v1320
  %v1322 = vmul.f32 %v1317, 1.442695
  %v1323 = vpow.pop %v1322
  %v1324 = vmul.f32 %v1318, 1.442695
  %v1325 = vpow.pop %v1324
  %v1326 = vmul.f32 %v1319, 1.442695
  %v1327 = vpow.pop %v1326
  %v1328 = vadd.f32 %v1321, 1.0
  %v1329 = vlog2.pop %v1328
  %v1330 = vmul.f32 %v1329, 0.6931472
  %v1331 = vmul.f32 -0.5, %v1321
  %v1332 = vadd.f32 %v1331, 1.0
  %v1333 = vmul.f32 %v1332, %v1321
  %v1334 = vand.u32 2147483647, %v1321
  %vm1335 = vcmp.lt.f32.partialorder %v1334, 0.0004427343
  %v1336 = vsel %vm1335, %v1333, %v1330
  %v1337 = vadd.f32 %v1323, 1.0
  %v1338 = vlog2.pop %v1337
  %v1339 = vmul.f32 %v1338, 0.6931472
  %v1340 = vmul.f32 -0.5, %v1323
  %v1341 = vadd.f32 %v1340, 1.0
  %v1342 = vmul.f32 %v1341, %v1323
  %v1343 = vand.u32 2147483647, %v1323
  %vm1344 = vcmp.lt.f32.partialorder %v1343, 0.0004427343
  %v1345 = vsel %vm1344, %v1342, %v1339
  %v1346 = vadd.f32 %v1325, 1.0
  %v1347 = vlog2.pop %v1346
  %v1348 = vmul.f32 %v1347, 0.6931472
  %v1349 = vmul.f32 -0.5, %v1325
  %v1350 = vadd.f32 %v1349, 1.0
  %v1351 = vmul.f32 %v1350, %v1325
  %v1352 = vand.u32 2147483647, %v1325
  %vm1353 = vcmp.lt.f32.partialorder %v1352, 0.0004427343
  %v1354 = vsel %vm1353, %v1351, %v1348
  %v1355 = vadd.f32 %v1327, 1.0
  %v1356 = vlog2.pop %v1355
  %v1357 = vmul.f32 %v1356, 0.6931472
  %v1358 = vmul.f32 -0.5, %v1327
  %v1359 = vadd.f32 %v1358, 1.0
  %v1360 = vmul.f32 %v1359, %v1327
  %v1361 = vand.u32 2147483647, %v1327
  %vm1362 = vcmp.lt.f32.partialorder %v1361, 0.0004427343
  %v1363 = vsel %vm1362, %v1360, %v1357
  %v1364 = vadd.f32 %v1308, %v1336
  %v1365 = vadd.f32 %v1309, %v1345
  %v1366 = vadd.f32 %v1310, %v1354
  %v1367 = vadd.f32 %v1311, %v1363
  %v1368 = vmul.f32 %v1364, %v37
  %v1369 = vmul.f32 %v1365, %v38
  %v1370 = vmul.f32 %v1366, %v39
  %v1371 = vmul.f32 %v1367, %v40
  %v1372 = vsub.f32 0.0, %v1296
  %v1373 = vsub.f32 0.0, %v1297
  %v1374 = vsub.f32 0.0, %v1298
  %v1375 = vsub.f32 0.0, %v1299
  %v1376 = vmul.f32 %v1372, 1.442695
  %v1377 = vpow.pop %v1376
  %v1378 = vmul.f32 %v1373, 1.442695
  %v1379 = vpow.pop %v1378
  %v1380 = vmul.f32 %v1374, 1.442695
  %v1381 = vpow.pop %v1380
  %v1382 = vmul.f32 %v1375, 1.442695
  %v1383 = vpow.pop %v1382
  %v1384 = vadd.f32 %v1377, 1.0
  %v1385 = vadd.f32 %v1379, 1.0
  %v1386 = vadd.f32 %v1381, 1.0
  %v1387 = vadd.f32 %v1383, 1.0
  %v1388 = vrcp.pop %v1384
  %v1389 = vmul.f32 1.0, %v1388
  %v1390 = vrcp.pop %v1385
  %v1391 = vmul.f32 1.0, %v1390
  %v1392 = vrcp.pop %v1386
  %v1393 = vmul.f32 1.0, %v1392
  %v1394 = vrcp.pop %v1387
  %v1395 = vmul.f32 1.0, %v1394
  %1396 = vadd.xlane.f32.xlu0 %v1368
  %v1397 = vpop.xlane.xlu0 %1396
  %1398 = vadd.xlane.f32.xlu0 %v1369
  %v1399 = vpop.xlane.xlu0 %1398
  %1400 = vadd.xlane.f32.xlu0 %v1370
  %v1401 = vpop.xlane.xlu0 %1400
  %1402 = vadd.xlane.f32.xlu0 %v1371
  %v1403 = vpop.xlane.xlu0 %1402
  %v1404 = vadd.f32 %v1397, %v1399
  %v1405 = vadd.f32 %v1404, %v1401
  %v1406 = vadd.f32 %v1405, %v1403
  %v1407 = vrot.slane %v1406, 4
  %v1408 = vadd.f32 %v1406, %v1407
  %v1409 = vrot.slane %v1408, 2
  %v1410 = vadd.f32 %v1408, %v1409
  %v1411 = vrot.slane %v1410, 1
  %v1412 = vadd.f32 %v1410, %v1411
  %v1413 = vmul.f32 %v1389, %v760
  %v1414 = vmul.f32 %v1391, %v761
  %v1415 = vmul.f32 %v1393, %v762
  %v1416 = vmul.f32 %v1395, %v763
  %v1417 = vmul.f32 %v1413, %v769
  %v1418 = vmul.f32 %v1414, %v770
  %v1419 = vmul.f32 %v1415, %v771
  %v1420 = vmul.f32 %v1416, %v772
  %1421 = vadd.xlane.f32.xlu0 %v1417
  %v1422 = vpop.xlane.xlu0 %1421
  %1423 = vadd.xlane.f32.xlu0 %v1418
  %v1424 = vpop.xlane.xlu0 %1423
  %1425 = vadd.xlane.f32.xlu0 %v1419
  %v1426 = vpop.xlane.xlu0 %1425
  %1427 = vadd.xlane.f32.xlu0 %v1420
  %v1428 = vpop.xlane.xlu0 %1427
  %v1429 = vadd.f32 %v1422, %v1424
  %v1430 = vadd.f32 %v1429, %v1426
  %v1431 = vadd.f32 %v1430, %v1428
  %v1432 = vrot.slane %v1431, 4
  %v1433 = vadd.f32 %v1431, %v1432
  %v1434 = vrot.slane %v1433, 2
  %v1435 = vadd.f32 %v1433, %v1434
  %v1436 = vrot.slane %v1435, 1
  %v1437 = vadd.f32 %v1435, %v1436
  %v1438 = vadd.f32 %v1389, %v760
  %v1439 = vadd.f32 %v1391, %v761
  %v1440 = vadd.f32 %v1393, %v762
  %v1441 = vadd.f32 %v1395, %v763
  %v1442 = vmul.f32 %v1438, %v769
  %v1443 = vmul.f32 %v1439, %v770
  %v1444 = vmul.f32 %v1440, %v771
  %v1445 = vmul.f32 %v1441, %v772
  %1446 = vadd.xlane.f32.xlu0 %v1442
  %v1447 = vpop.xlane.xlu0 %1446
  %1448 = vadd.xlane.f32.xlu0 %v1443
  %v1449 = vpop.xlane.xlu0 %1448
  %1450 = vadd.xlane.f32.xlu0 %v1444
  %v1451 = vpop.xlane.xlu0 %1450
  %1452 = vadd.xlane.f32.xlu0 %v1445
  %v1453 = vpop.xlane.xlu0 %1452
  %v1454 = vadd.f32 %v1447, %v1449
  %v1455 = vadd.f32 %v1454, %v1451
  %v1456 = vadd.f32 %v1455, %v1453
  %v1457 = vrot.slane %v1456, 4
  %v1458 = vadd.f32 %v1456, %v1457
  %v1459 = vrot.slane %v1458, 2
  %v1460 = vadd.f32 %v1458, %v1459
  %v1461 = vrot.slane %v1460, 1
  %v1462 = vadd.f32 %v1460, %v1461
  %v1463 = vsel %vm224, %v1412, 0.0
  %v1464 = vsel %vm226, %v1437, 0.0
  %v1465 = vadd.f32 %v1463, %v1464
  %v1466 = vsel %vm229, %v1462, 0.0
  %v1467 = vadd.f32 %v1465, %v1466
  %1468 = vst [vmem:[%s3 + $0x7] sm:$0x1] %v1467
  // Predicated region
  $region14: #{uacanet_forward.19} parent=0 // pred_check
    _
  $region15: #{uacanet_forward.19} parent=0 // pred_check_branch
    %1470 = sbr.rel (0) target = $region17
  $region16: #{uacanet_forward.19} parent=0 // pred_region
    _
  $region17: #{uacanet_forward.19} parent=0 // pred_fallthru
    _
  // Predicated region
  $region18: #{uacanet_forward.19} parent=0 // pred_check
    _
  $region19: #{uacanet_forward.19} parent=0 // pred_check_branch
    %1472 = sbr.rel (0) target = $region21
  $region20: #{uacanet_forward.19} parent=0 // pred_region
    _
  $region21: #{uacanet_forward.19} parent=0 // pred_fallthru
    _

</llo_original>
